<compile_context>
chip_gen: v5e
topology: v5e:2x2
jax: 0.10.0
libtpu: 0.0.40
codegen_flags: <defaults>
</compile_context>

<pallas_src>
import jax
import jax.numpy as jnp
from jax import lax
from jax.experimental import pallas as pl
from jax.experimental.pallas import tpu as pltpu

INPUT_SIZE = 129
HIDDEN = 256
OUTPUT = 64


def lstm_kernel(gx_ref, whh_ref, wlin_ref, blin_ref, out_ref, h_ref, c_ref):
    """Runs the recurrence over precomputed input gates + final linear projection.

    gx_ref   : (S, 4H) f32   precomputed x @ W_ih^T + (b_ih + b_hh), gate order [i,f,o,g]
    whh_ref  : (H, 4H) bf16  W_hh^T, gate order [i,f,o,g]
    wlin_ref : (H, 64) f32   W_linear^T
    blin_ref : (1, 64) f32   b_linear
    out_ref  : (1, 64) f32   prediction at the last timestep
    h_ref    : (1, H)  f32   hidden-state scratch
    c_ref    : (1, H)  f32   cell-state scratch
    """
    S = gx_ref.shape[0]
    H = HIDDEN

    h_ref[...] = jnp.zeros_like(h_ref)
    c_ref[...] = jnp.zeros_like(c_ref)

    def step(t, carry):
        h = h_ref[...]                                    # (1, H) f32
        c = c_ref[...]                                    # (1, H) f32
        # Single MXU matmul per step (bf16 operands, f32 accumulation).
        gates = gx_ref[pl.ds(t, 1), :] + jnp.dot(
            h.astype(jnp.bfloat16), whh_ref[...],
            preferred_element_type=jnp.float32)           # (1, 4H) f32
        # One contiguous sigmoid over [i, f, o], one tanh over [g].
        sig = jax.nn.sigmoid(gates[:, : 3 * H])
        g_g = jnp.tanh(gates[:, 3 * H:])
        i_g = sig[:, 0 * H:1 * H]
        f_g = sig[:, 1 * H:2 * H]
        o_g = sig[:, 2 * H:3 * H]
        c_new = f_g * c + i_g * g_g
        c_ref[...] = c_new
        h_ref[...] = o_g * jnp.tanh(c_new)
        return carry

    lax.fori_loop(0, S, step, 0, unroll=True)

    out_ref[...] = (
        jnp.dot(h_ref[...], wlin_ref[...], preferred_element_type=jnp.float32)
        + blin_ref[...]
    )


def _permute_ifgo_to_ifog(w):
    """Reorder the 4H gate axis (axis 0) from PyTorch [i,f,g,o] to [i,f,o,g]."""
    i, f, g, o = jnp.split(w, 4, axis=0)
    return jnp.concatenate([i, f, o, g], axis=0)


def lstm_forward(x, w_ih, w_hh, b_ih, b_hh, w_lin, b_lin):
    """x: (S, 129) float32.  Returns (64,) prediction for the last timestep."""
    # Gate permutation + input projection done once in the wrapper (XLA).
    w_ih_p = _permute_ifgo_to_ifog(w_ih)                  # (4H, 129)
    w_hh_p = _permute_ifgo_to_ifog(w_hh)                  # (4H, 256)
    b_p = _permute_ifgo_to_ifog((b_ih + b_hh)[:, None])[:, 0]   # (4H,)

    # Precompute input contribution for all timesteps: one M=S matmul instead of
    # S sequential M=1 matmuls inside the kernel; W_ih never DMA'd into the kernel.
    gates_x = (x @ w_ih_p.T + b_p).astype(jnp.float32)    # (S, 4H) f32

    whh_t = w_hh_p.T.astype(jnp.bfloat16)                 # (256, 4H) bf16 for the MXU
    wlin_t = w_lin.T                                      # (256, 64) f32
    blin = b_lin.reshape(1, -1)                           # (1, 64)

    vmem = pl.BlockSpec(memory_space=pltpu.MemorySpace.VMEM)
    out = pl.pallas_call(
        lstm_kernel,
        out_shape=jax.ShapeDtypeStruct((1, OUTPUT), jnp.float32),
        in_specs=[vmem] * 4,
        out_specs=vmem,
        scratch_shapes=[
            pltpu.VMEM((1, HIDDEN), jnp.float32),   # h state
            pltpu.VMEM((1, HIDDEN), jnp.float32),   # c state
        ],
    )(gates_x, whh_t, wlin_t, blin)
    return out[0]


def lstm_reference(x, w_ih, w_hh, b_ih, b_hh, w_lin, b_lin):
    """Pure-JAX f32 reference mirroring torch.nn.LSTM + Linear (batch=1)."""
    H = HIDDEN
    h = jnp.zeros((H,), jnp.float32)
    c = jnp.zeros((H,), jnp.float32)

    def step(carry, x_t):
        h, c = carry
        gates = x_t @ w_ih.T + b_ih + h @ w_hh.T + b_hh
        i_g = jax.nn.sigmoid(gates[0 * H:1 * H])
        f_g = jax.nn.sigmoid(gates[1 * H:2 * H])
        g_g = jnp.tanh(gates[2 * H:3 * H])
        o_g = jax.nn.sigmoid(gates[3 * H:4 * H])
        c = f_g * c + i_g * g_g
        h = o_g * jnp.tanh(c)
        return (h, c), None

    (h, _), _ = lax.scan(step, (h, c), x)
    return h @ w_lin.T + b_lin


if __name__ == "__main__":
    key = jax.random.PRNGKey(0)
    ks = jax.random.split(key, 7)

    S = 8  # sequence length
    # Deterministic synthetic parameters (PyTorch-like uniform(-1/sqrt(H), 1/sqrt(H)))
    bound = 1.0 / jnp.sqrt(jnp.float32(HIDDEN))
    w_ih = jax.random.uniform(ks[0], (4 * HIDDEN, INPUT_SIZE), jnp.float32, -bound, bound)
    w_hh = jax.random.uniform(ks[1], (4 * HIDDEN, HIDDEN), jnp.float32, -bound, bound)
    b_ih = jax.random.uniform(ks[2], (4 * HIDDEN,), jnp.float32, -bound, bound)
    b_hh = jax.random.uniform(ks[3], (4 * HIDDEN,), jnp.float32, -bound, bound)
    w_lin = jax.random.uniform(ks[4], (OUTPUT, HIDDEN), jnp.float32, -bound, bound)
    b_lin = jax.random.uniform(ks[5], (OUTPUT,), jnp.float32, -bound, bound)

    # Input features are in [0, 1] per the module docstring.
    x = jax.random.uniform(ks[6], (S, INPUT_SIZE), jnp.float32, 0.0, 1.0)

    pred = lstm_forward(x, w_ih, w_hh, b_ih, b_hh, w_lin, b_lin)
    pred = jax.block_until_ready(pred)

    ref = lstm_reference(x, w_ih, w_hh, b_ih, b_hh, w_lin, b_lin)
    assert pred.shape == (OUTPUT,)
    # bf16 MXU operands (f32 accumulation) -> loosened tolerance vs. the f32 reference.
    assert jnp.allclose(pred, ref, rtol=5e-2, atol=5e-2), "mismatch vs reference"

    print("KERNEL_OK")
</pallas_src>

<mosaic_0001>
module attributes {stable_mosaic.version = 11 : i64} {
  func.func @lstm_kernel(%arg0: memref<8x1024xf32, #tpu.memory_space<vmem>>, %arg1: memref<256x1024xbf16, #tpu.memory_space<vmem>>, %arg2: memref<256x64xf32, #tpu.memory_space<vmem>>, %arg3: memref<1x64xf32, #tpu.memory_space<vmem>>, %arg4: memref<1x64xf32, #tpu.memory_space<vmem>>, %arg5: memref<1x256xf32, #tpu.memory_space<vmem>>, %arg6: memref<1x256xf32, #tpu.memory_space<vmem>>) attributes {dimension_semantics = [], scalar_prefetch = 0 : i64, scratch_operands = 2 : i64, tpu.core_type = #tpu.core_type<tc>} {
    %cst = arith.constant 0.000000e+00 : f32
    %0 = vector.broadcast %cst : f32 to vector<1x256xf32>
    %c0 = arith.constant 0 : index
    %c0_0 = arith.constant 0 : index
    %1 = vector.load %arg5[%c0, %c0_0] : memref<1x256xf32, #tpu.memory_space<vmem>>, vector<1x256xf32>
    tpu.vector_store %arg5[%c0, %c0_0], %0 {strides = array<i32>} : memref<1x256xf32, #tpu.memory_space<vmem>>, vector<1x256xf32>,
    %cst_1 = arith.constant 0.000000e+00 : f32
    %2 = vector.broadcast %cst_1 : f32 to vector<1x256xf32>
    %c0_2 = arith.constant 0 : index
    %c0_3 = arith.constant 0 : index
    %3 = vector.load %arg6[%c0_2, %c0_3] : memref<1x256xf32, #tpu.memory_space<vmem>>, vector<1x256xf32>
    tpu.vector_store %arg6[%c0_2, %c0_3], %2 {strides = array<i32>} : memref<1x256xf32, #tpu.memory_space<vmem>>, vector<1x256xf32>,
    %c0_i32 = arith.constant 0 : i32
    %c0_4 = arith.constant 0 : index
    %c0_5 = arith.constant 0 : index
    %4 = vector.load %arg5[%c0_4, %c0_5] : memref<1x256xf32, #tpu.memory_space<vmem>>, vector<1x256xf32>
    %c0_6 = arith.constant 0 : index
    %c0_7 = arith.constant 0 : index
    %5 = vector.load %arg6[%c0_6, %c0_7] : memref<1x256xf32, #tpu.memory_space<vmem>>, vector<1x256xf32>
    %6 = arith.index_cast %c0_i32 : i32 to index
    %c0_8 = arith.constant 0 : index
    %7 = vector.load %arg0[%6, %c0_8] : memref<8x1024xf32, #tpu.memory_space<vmem>>, vector<1x1024xf32>
    %8 = arith.truncf %4 : vector<1x256xf32> to vector<1x256xbf16>
    %c0_9 = arith.constant 0 : index
    %c0_10 = arith.constant 0 : index
    %9 = vector.load %arg1[%c0_9, %c0_10] : memref<256x1024xbf16, #tpu.memory_space<vmem>>, vector<256x1024xbf16>
    %cst_11 = arith.constant dense<0.000000e+00> : vector<1x1024xf32>
    %10 = tpu.matmul %8, %9, %cst_11 {dimension_numbers = #tpu.dot_dimension_numbers<[1], [0], [0], [1], [0, 0, 1, 1], [], []>} : vector<1x256xbf16>, vector<256x1024xbf16>, vector<1x1024xf32> -> vector<1x1024xf32>
    %11 = arith.addf %7, %10 : vector<1x1024xf32>
    %12 = vector.extract_strided_slice %11 {offsets = [0, 0], sizes = [1, 768], strides = [1, 1]} : vector<1x1024xf32> to vector<1x768xf32>
    %13 = arith.negf %12 : vector<1x768xf32>
    %14 = math.exp %13 : vector<1x768xf32>
    %cst_12 = arith.constant 1.000000e+00 : f32
    %15 = vector.broadcast %cst_12 : f32 to vector<1x768xf32>
    %16 = arith.addf %15, %14 : vector<1x768xf32>
    %17 = arith.divf %15, %16 : vector<1x768xf32>
    %18 = vector.extract_strided_slice %11 {offsets = [0, 768], sizes = [1, 256], strides = [1, 1]} : vector<1x1024xf32> to vector<1x256xf32>
    %19 = math.tanh %18 : vector<1x256xf32>
    %20 = vector.extract_strided_slice %17 {offsets = [0, 0], sizes = [1, 256], strides = [1, 1]} : vector<1x768xf32> to vector<1x256xf32>
    %21 = vector.extract_strided_slice %17 {offsets = [0, 256], sizes = [1, 256], strides = [1, 1]} : vector<1x768xf32> to vector<1x256xf32>
    %22 = vector.extract_strided_slice %17 {offsets = [0, 512], sizes = [1, 256], strides = [1, 1]} : vector<1x768xf32> to vector<1x256xf32>
    %23 = arith.mulf %21, %5 : vector<1x256xf32>
    %24 = arith.mulf %20, %19 : vector<1x256xf32>
    %25 = arith.addf %23, %24 : vector<1x256xf32>
    %c0_13 = arith.constant 0 : index
    %c0_14 = arith.constant 0 : index
    %26 = vector.load %arg6[%c0_13, %c0_14] : memref<1x256xf32, #tpu.memory_space<vmem>>, vector<1x256xf32>
    tpu.vector_store %arg6[%c0_13, %c0_14], %25 {strides = array<i32>} : memref<1x256xf32, #tpu.memory_space<vmem>>, vector<1x256xf32>,
    %27 = math.tanh %25 : vector<1x256xf32>
    %28 = arith.mulf %22, %27 : vector<1x256xf32>
    %c0_15 = arith.constant 0 : index
    %c0_16 = arith.constant 0 : index
    %29 = vector.load %arg5[%c0_15, %c0_16] : memref<1x256xf32, #tpu.memory_space<vmem>>, vector<1x256xf32>
    tpu.vector_store %arg5[%c0_15, %c0_16], %28 {strides = array<i32>} : memref<1x256xf32, #tpu.memory_space<vmem>>, vector<1x256xf32>,
    %c1_i32 = arith.constant 1 : i32
    %c0_17 = arith.constant 0 : index
    %c0_18 = arith.constant 0 : index
    %30 = vector.load %arg5[%c0_17, %c0_18] : memref<1x256xf32, #tpu.memory_space<vmem>>, vector<1x256xf32>
    %c0_19 = arith.constant 0 : index
    %c0_20 = arith.constant 0 : index
    %31 = vector.load %arg6[%c0_19, %c0_20] : memref<1x256xf32, #tpu.memory_space<vmem>>, vector<1x256xf32>
    %32 = arith.index_cast %c1_i32 : i32 to index
    %c0_21 = arith.constant 0 : index
    %33 = vector.load %arg0[%32, %c0_21] : memref<8x1024xf32, #tpu.memory_space<vmem>>, vector<1x1024xf32>
    %34 = arith.truncf %30 : vector<1x256xf32> to vector<1x256xbf16>
    %c0_22 = arith.constant 0 : index
    %c0_23 = arith.constant 0 : index
    %35 = vector.load %arg1[%c0_22, %c0_23] : memref<256x1024xbf16, #tpu.memory_space<vmem>>, vector<256x1024xbf16>
    %cst_24 = arith.constant dense<0.000000e+00> : vector<1x1024xf32>
    %36 = tpu.matmul %34, %35, %cst_24 {dimension_numbers = #tpu.dot_dimension_numbers<[1], [0], [0], [1], [0, 0, 1, 1], [], []>} : vector<1x256xbf16>, vector<256x1024xbf16>, vector<1x1024xf32> -> vector<1x1024xf32>
    %37 = arith.addf %33, %36 : vector<1x1024xf32>
    %38 = vector.extract_strided_slice %37 {offsets = [0, 0], sizes = [1, 768], strides = [1, 1]} : vector<1x1024xf32> to vector<1x768xf32>
    %39 = arith.negf %38 : vector<1x768xf32>
    %40 = math.exp %39 : vector<1x768xf32>
    %cst_25 = arith.constant 1.000000e+00 : f32
    %41 = vector.broadcast %cst_25 : f32 to vector<1x768xf32>
    %42 = arith.addf %41, %40 : vector<1x768xf32>
    %43 = arith.divf %41, %42 : vector<1x768xf32>
    %44 = vector.extract_strided_slice %37 {offsets = [0, 768], sizes = [1, 256], strides = [1, 1]} : vector<1x1024xf32> to vector<1x256xf32>
    %45 = math.tanh %44 : vector<1x256xf32>
    %46 = vector.extract_strided_slice %43 {offsets = [0, 0], sizes = [1, 256], strides = [1, 1]} : vector<1x768xf32> to vector<1x256xf32>
    %47 = vector.extract_strided_slice %43 {offsets = [0, 256], sizes = [1, 256], strides = [1, 1]} : vector<1x768xf32> to vector<1x256xf32>
    %48 = vector.extract_strided_slice %43 {offsets = [0, 512], sizes = [1, 256], strides = [1, 1]} : vector<1x768xf32> to vector<1x256xf32>
    %49 = arith.mulf %47, %31 : vector<1x256xf32>
    %50 = arith.mulf %46, %45 : vector<1x256xf32>
    %51 = arith.addf %49, %50 : vector<1x256xf32>
    %c0_26 = arith.constant 0 : index
    %c0_27 = arith.constant 0 : index
    %52 = vector.load %arg6[%c0_26, %c0_27] : memref<1x256xf32, #tpu.memory_space<vmem>>, vector<1x256xf32>
    tpu.vector_store %arg6[%c0_26, %c0_27], %51 {strides = array<i32>} : memref<1x256xf32, #tpu.memory_space<vmem>>, vector<1x256xf32>,
    %53 = math.tanh %51 : vector<1x256xf32>
    %54 = arith.mulf %48, %53 : vector<1x256xf32>
    %c0_28 = arith.constant 0 : index
    %c0_29 = arith.constant 0 : index
    %55 = vector.load %arg5[%c0_28, %c0_29] : memref<1x256xf32, #tpu.memory_space<vmem>>, vector<1x256xf32>
    tpu.vector_store %arg5[%c0_28, %c0_29], %54 {strides = array<i32>} : memref<1x256xf32, #tpu.memory_space<vmem>>, vector<1x256xf32>,
    %c2_i32 = arith.constant 2 : i32
    %c0_30 = arith.constant 0 : index
    %c0_31 = arith.constant 0 : index
    %56 = vector.load %arg5[%c0_30, %c0_31] : memref<1x256xf32, #tpu.memory_space<vmem>>, vector<1x256xf32>
    %c0_32 = arith.constant 0 : index
    %c0_33 = arith.constant 0 : index
    %57 = vector.load %arg6[%c0_32, %c0_33] : memref<1x256xf32, #tpu.memory_space<vmem>>, vector<1x256xf32>
    %58 = arith.index_cast %c2_i32 : i32 to index
    %c0_34 = arith.constant 0 : index
    %59 = vector.load %arg0[%58, %c0_34] : memref<8x1024xf32, #tpu.memory_space<vmem>>, vector<1x1024xf32>
    %60 = arith.truncf %56 : vector<1x256xf32> to vector<1x256xbf16>
    %c0_35 = arith.constant 0 : index
    %c0_36 = arith.constant 0 : index
    %61 = vector.load %arg1[%c0_35, %c0_36] : memref<256x1024xbf16, #tpu.memory_space<vmem>>, vector<256x1024xbf16>
    %cst_37 = arith.constant dense<0.000000e+00> : vector<1x1024xf32>
    %62 = tpu.matmul %60, %61, %cst_37 {dimension_numbers = #tpu.dot_dimension_numbers<[1], [0], [0], [1], [0, 0, 1, 1], [], []>} : vector<1x256xbf16>, vector<256x1024xbf16>, vector<1x1024xf32> -> vector<1x1024xf32>
    %63 = arith.addf %59, %62 : vector<1x1024xf32>
    %64 = vector.extract_strided_slice %63 {offsets = [0, 0], sizes = [1, 768], strides = [1, 1]} : vector<1x1024xf32> to vector<1x768xf32>
    %65 = arith.negf %64 : vector<1x768xf32>
    %66 = math.exp %65 : vector<1x768xf32>
    %cst_38 = arith.constant 1.000000e+00 : f32
    %67 = vector.broadcast %cst_38 : f32 to vector<1x768xf32>
    %68 = arith.addf %67, %66 : vector<1x768xf32>
    %69 = arith.divf %67, %68 : vector<1x768xf32>
    %70 = vector.extract_strided_slice %63 {offsets = [0, 768], sizes = [1, 256], strides = [1, 1]} : vector<1x1024xf32> to vector<1x256xf32>
    %71 = math.tanh %70 : vector<1x256xf32>
    %72 = vector.extract_strided_slice %69 {offsets = [0, 0], sizes = [1, 256], strides = [1, 1]} : vector<1x768xf32> to vector<1x256xf32>
    %73 = vector.extract_strided_slice %69 {offsets = [0, 256], sizes = [1, 256], strides = [1, 1]} : vector<1x768xf32> to vector<1x256xf32>
    %74 = vector.extract_strided_slice %69 {offsets = [0, 512], sizes = [1, 256], strides = [1, 1]} : vector<1x768xf32> to vector<1x256xf32>
    %75 = arith.mulf %73, %57 : vector<1x256xf32>
    %76 = arith.mulf %72, %71 : vector<1x256xf32>
    %77 = arith.addf %75, %76 : vector<1x256xf32>
    %c0_39 = arith.constant 0 : index
    %c0_40 = arith.constant 0 : index
    %78 = vector.load %arg6[%c0_39, %c0_40] : memref<1x256xf32, #tpu.memory_space<vmem>>, vector<1x256xf32>
    tpu.vector_store %arg6[%c0_39, %c0_40], %77 {strides = array<i32>} : memref<1x256xf32, #tpu.memory_space<vmem>>, vector<1x256xf32>,
    %79 = math.tanh %77 : vector<1x256xf32>
    %80 = arith.mulf %74, %79 : vector<1x256xf32>
    %c0_41 = arith.constant 0 : index
    %c0_42 = arith.constant 0 : index
    %81 = vector.load %arg5[%c0_41, %c0_42] : memref<1x256xf32, #tpu.memory_space<vmem>>, vector<1x256xf32>
    tpu.vector_store %arg5[%c0_41, %c0_42], %80 {strides = array<i32>} : memref<1x256xf32, #tpu.memory_space<vmem>>, vector<1x256xf32>,
    %c3_i32 = arith.constant 3 : i32
    %c0_43 = arith.constant 0 : index
    %c0_44 = arith.constant 0 : index
    %82 = vector.load %arg5[%c0_43, %c0_44] : memref<1x256xf32, #tpu.memory_space<vmem>>, vector<1x256xf32>
    %c0_45 = arith.constant 0 : index
    %c0_46 = arith.constant 0 : index
    %83 = vector.load %arg6[%c0_45, %c0_46] : memref<1x256xf32, #tpu.memory_space<vmem>>, vector<1x256xf32>
    %84 = arith.index_cast %c3_i32 : i32 to index
    %c0_47 = arith.constant 0 : index
    %85 = vector.load %arg0[%84, %c0_47] : memref<8x1024xf32, #tpu.memory_space<vmem>>, vector<1x1024xf32>
    %86 = arith.truncf %82 : vector<1x256xf32> to vector<1x256xbf16>
    %c0_48 = arith.constant 0 : index
    %c0_49 = arith.constant 0 : index
    %87 = vector.load %arg1[%c0_48, %c0_49] : memref<256x1024xbf16, #tpu.memory_space<vmem>>, vector<256x1024xbf16>
    %cst_50 = arith.constant dense<0.000000e+00> : vector<1x1024xf32>
    %88 = tpu.matmul %86, %87, %cst_50 {dimension_numbers = #tpu.dot_dimension_numbers<[1], [0], [0], [1], [0, 0, 1, 1], [], []>} : vector<1x256xbf16>, vector<256x1024xbf16>, vector<1x1024xf32> -> vector<1x1024xf32>
    %89 = arith.addf %85, %88 : vector<1x1024xf32>
    %90 = vector.extract_strided_slice %89 {offsets = [0, 0], sizes = [1, 768], strides = [1, 1]} : vector<1x1024xf32> to vector<1x768xf32>
    %91 = arith.negf %90 : vector<1x768xf32>
    %92 = math.exp %91 : vector<1x768xf32>
    %cst_51 = arith.constant 1.000000e+00 : f32
    %93 = vector.broadcast %cst_51 : f32 to vector<1x768xf32>
    %94 = arith.addf %93, %92 : vector<1x768xf32>
    %95 = arith.divf %93, %94 : vector<1x768xf32>
    %96 = vector.extract_strided_slice %89 {offsets = [0, 768], sizes = [1, 256], strides = [1, 1]} : vector<1x1024xf32> to vector<1x256xf32>
    %97 = math.tanh %96 : vector<1x256xf32>
    %98 = vector.extract_strided_slice %95 {offsets = [0, 0], sizes = [1, 256], strides = [1, 1]} : vector<1x768xf32> to vector<1x256xf32>
    %99 = vector.extract_strided_slice %95 {offsets = [0, 256], sizes = [1, 256], strides = [1, 1]} : vector<1x768xf32> to vector<1x256xf32>
    %100 = vector.extract_strided_slice %95 {offsets = [0, 512], sizes = [1, 256], strides = [1, 1]} : vector<1x768xf32> to vector<1x256xf32>
    %101 = arith.mulf %99, %83 : vector<1x256xf32>
    %102 = arith.mulf %98, %97 : vector<1x256xf32>
    %103 = arith.addf %101, %102 : vector<1x256xf32>
    %c0_52 = arith.constant 0 : index
    %c0_53 = arith.constant 0 : index
    %104 = vector.load %arg6[%c0_52, %c0_53] : memref<1x256xf32, #tpu.memory_space<vmem>>, vector<1x256xf32>
    tpu.vector_store %arg6[%c0_52, %c0_53], %103 {strides = array<i32>} : memref<1x256xf32, #tpu.memory_space<vmem>>, vector<1x256xf32>,
    %105 = math.tanh %103 : vector<1x256xf32>
    %106 = arith.mulf %100, %105 : vector<1x256xf32>
    %c0_54 = arith.constant 0 : index
    %c0_55 = arith.constant 0 : index
    %107 = vector.load %arg5[%c0_54, %c0_55] : memref<1x256xf32, #tpu.memory_space<vmem>>, vector<1x256xf32>
    tpu.vector_store %arg5[%c0_54, %c0_55], %106 {strides = array<i32>} : memref<1x256xf32, #tpu.memory_space<vmem>>, vector<1x256xf32>,
    %c4_i32 = arith.constant 4 : i32
    %c0_56 = arith.constant 0 : index
    %c0_57 = arith.constant 0 : index
    %108 = vector.load %arg5[%c0_56, %c0_57] : memref<1x256xf32, #tpu.memory_space<vmem>>, vector<1x256xf32>
    %c0_58 = arith.constant 0 : index
    %c0_59 = arith.constant 0 : index
    %109 = vector.load %arg6[%c0_58, %c0_59] : memref<1x256xf32, #tpu.memory_space<vmem>>, vector<1x256xf32>
    %110 = arith.index_cast %c4_i32 : i32 to index
    %c0_60 = arith.constant 0 : index
    %111 = vector.load %arg0[%110, %c0_60] : memref<8x1024xf32, #tpu.memory_space<vmem>>, vector<1x1024xf32>
    %112 = arith.truncf %108 : vector<1x256xf32> to vector<1x256xbf16>
    %c0_61 = arith.constant 0 : index
    %c0_62 = arith.constant 0 : index
    %113 = vector.load %arg1[%c0_61, %c0_62] : memref<256x1024xbf16, #tpu.memory_space<vmem>>, vector<256x1024xbf16>
    %cst_63 = arith.constant dense<0.000000e+00> : vector<1x1024xf32>
    %114 = tpu.matmul %112, %113, %cst_63 {dimension_numbers = #tpu.dot_dimension_numbers<[1], [0], [0], [1], [0, 0, 1, 1], [], []>} : vector<1x256xbf16>, vector<256x1024xbf16>, vector<1x1024xf32> -> vector<1x1024xf32>
    %115 = arith.addf %111, %114 : vector<1x1024xf32>
    %116 = vector.extract_strided_slice %115 {offsets = [0, 0], sizes = [1, 768], strides = [1, 1]} : vector<1x1024xf32> to vector<1x768xf32>
    %117 = arith.negf %116 : vector<1x768xf32>
    %118 = math.exp %117 : vector<1x768xf32>
    %cst_64 = arith.constant 1.000000e+00 : f32
    %119 = vector.broadcast %cst_64 : f32 to vector<1x768xf32>
    %120 = arith.addf %119, %118 : vector<1x768xf32>
    %121 = arith.divf %119, %120 : vector<1x768xf32>
    %122 = vector.extract_strided_slice %115 {offsets = [0, 768], sizes = [1, 256], strides = [1, 1]} : vector<1x1024xf32> to vector<1x256xf32>
    %123 = math.tanh %122 : vector<1x256xf32>
    %124 = vector.extract_strided_slice %121 {offsets = [0, 0], sizes = [1, 256], strides = [1, 1]} : vector<1x768xf32> to vector<1x256xf32>
    %125 = vector.extract_strided_slice %121 {offsets = [0, 256], sizes = [1, 256], strides = [1, 1]} : vector<1x768xf32> to vector<1x256xf32>
    %126 = vector.extract_strided_slice %121 {offsets = [0, 512], sizes = [1, 256], strides = [1, 1]} : vector<1x768xf32> to vector<1x256xf32>
    %127 = arith.mulf %125, %109 : vector<1x256xf32>
    %128 = arith.mulf %124, %123 : vector<1x256xf32>
    %129 = arith.addf %127, %128 : vector<1x256xf32>
    %c0_65 = arith.constant 0 : index
    %c0_66 = arith.constant 0 : index
    %130 = vector.load %arg6[%c0_65, %c0_66] : memref<1x256xf32, #tpu.memory_space<vmem>>, vector<1x256xf32>
    tpu.vector_store %arg6[%c0_65, %c0_66], %129 {strides = array<i32>} : memref<1x256xf32, #tpu.memory_space<vmem>>, vector<1x256xf32>,
    %131 = math.tanh %129 : vector<1x256xf32>
    %132 = arith.mulf %126, %131 : vector<1x256xf32>
    %c0_67 = arith.constant 0 : index
    %c0_68 = arith.constant 0 : index
    %133 = vector.load %arg5[%c0_67, %c0_68] : memref<1x256xf32, #tpu.memory_space<vmem>>, vector<1x256xf32>
    tpu.vector_store %arg5[%c0_67, %c0_68], %132 {strides = array<i32>} : memref<1x256xf32, #tpu.memory_space<vmem>>, vector<1x256xf32>,
    %c5_i32 = arith.constant 5 : i32
    %c0_69 = arith.constant 0 : index
    %c0_70 = arith.constant 0 : index
    %134 = vector.load %arg5[%c0_69, %c0_70] : memref<1x256xf32, #tpu.memory_space<vmem>>, vector<1x256xf32>
    %c0_71 = arith.constant 0 : index
    %c0_72 = arith.constant 0 : index
    %135 = vector.load %arg6[%c0_71, %c0_72] : memref<1x256xf32, #tpu.memory_space<vmem>>, vector<1x256xf32>
    %136 = arith.index_cast %c5_i32 : i32 to index
    %c0_73 = arith.constant 0 : index
    %137 = vector.load %arg0[%136, %c0_73] : memref<8x1024xf32, #tpu.memory_space<vmem>>, vector<1x1024xf32>
    %138 = arith.truncf %134 : vector<1x256xf32> to vector<1x256xbf16>
    %c0_74 = arith.constant 0 : index
    %c0_75 = arith.constant 0 : index
    %139 = vector.load %arg1[%c0_74, %c0_75] : memref<256x1024xbf16, #tpu.memory_space<vmem>>, vector<256x1024xbf16>
    %cst_76 = arith.constant dense<0.000000e+00> : vector<1x1024xf32>
    %140 = tpu.matmul %138, %139, %cst_76 {dimension_numbers = #tpu.dot_dimension_numbers<[1], [0], [0], [1], [0, 0, 1, 1], [], []>} : vector<1x256xbf16>, vector<256x1024xbf16>, vector<1x1024xf32> -> vector<1x1024xf32>
    %141 = arith.addf %137, %140 : vector<1x1024xf32>
    %142 = vector.extract_strided_slice %141 {offsets = [0, 0], sizes = [1, 768], strides = [1, 1]} : vector<1x1024xf32> to vector<1x768xf32>
    %143 = arith.negf %142 : vector<1x768xf32>
    %144 = math.exp %143 : vector<1x768xf32>
    %cst_77 = arith.constant 1.000000e+00 : f32
    %145 = vector.broadcast %cst_77 : f32 to vector<1x768xf32>
    %146 = arith.addf %145, %144 : vector<1x768xf32>
    %147 = arith.divf %145, %146 : vector<1x768xf32>
    %148 = vector.extract_strided_slice %141 {offsets = [0, 768], sizes = [1, 256], strides = [1, 1]} : vector<1x1024xf32> to vector<1x256xf32>
    %149 = math.tanh %148 : vector<1x256xf32>
    %150 = vector.extract_strided_slice %147 {offsets = [0, 0], sizes = [1, 256], strides = [1, 1]} : vector<1x768xf32> to vector<1x256xf32>
    %151 = vector.extract_strided_slice %147 {offsets = [0, 256], sizes = [1, 256], strides = [1, 1]} : vector<1x768xf32> to vector<1x256xf32>
    %152 = vector.extract_strided_slice %147 {offsets = [0, 512], sizes = [1, 256], strides = [1, 1]} : vector<1x768xf32> to vector<1x256xf32>
    %153 = arith.mulf %151, %135 : vector<1x256xf32>
    %154 = arith.mulf %150, %149 : vector<1x256xf32>
    %155 = arith.addf %153, %154 : vector<1x256xf32>
    %c0_78 = arith.constant 0 : index
    %c0_79 = arith.constant 0 : index
    %156 = vector.load %arg6[%c0_78, %c0_79] : memref<1x256xf32, #tpu.memory_space<vmem>>, vector<1x256xf32>
    tpu.vector_store %arg6[%c0_78, %c0_79], %155 {strides = array<i32>} : memref<1x256xf32, #tpu.memory_space<vmem>>, vector<1x256xf32>,
    %157 = math.tanh %155 : vector<1x256xf32>
    %158 = arith.mulf %152, %157 : vector<1x256xf32>
    %c0_80 = arith.constant 0 : index
    %c0_81 = arith.constant 0 : index
    %159 = vector.load %arg5[%c0_80, %c0_81] : memref<1x256xf32, #tpu.memory_space<vmem>>, vector<1x256xf32>
    tpu.vector_store %arg5[%c0_80, %c0_81], %158 {strides = array<i32>} : memref<1x256xf32, #tpu.memory_space<vmem>>, vector<1x256xf32>,
    %c6_i32 = arith.constant 6 : i32
    %c0_82 = arith.constant 0 : index
    %c0_83 = arith.constant 0 : index
    %160 = vector.load %arg5[%c0_82, %c0_83] : memref<1x256xf32, #tpu.memory_space<vmem>>, vector<1x256xf32>
    %c0_84 = arith.constant 0 : index
    %c0_85 = arith.constant 0 : index
    %161 = vector.load %arg6[%c0_84, %c0_85] : memref<1x256xf32, #tpu.memory_space<vmem>>, vector<1x256xf32>
    %162 = arith.index_cast %c6_i32 : i32 to index
    %c0_86 = arith.constant 0 : index
    %163 = vector.load %arg0[%162, %c0_86] : memref<8x1024xf32, #tpu.memory_space<vmem>>, vector<1x1024xf32>
    %164 = arith.truncf %160 : vector<1x256xf32> to vector<1x256xbf16>
    %c0_87 = arith.constant 0 : index
    %c0_88 = arith.constant 0 : index
    %165 = vector.load %arg1[%c0_87, %c0_88] : memref<256x1024xbf16, #tpu.memory_space<vmem>>, vector<256x1024xbf16>
    %cst_89 = arith.constant dense<0.000000e+00> : vector<1x1024xf32>
    %166 = tpu.matmul %164, %165, %cst_89 {dimension_numbers = #tpu.dot_dimension_numbers<[1], [0], [0], [1], [0, 0, 1, 1], [], []>} : vector<1x256xbf16>, vector<256x1024xbf16>, vector<1x1024xf32> -> vector<1x1024xf32>
    %167 = arith.addf %163, %166 : vector<1x1024xf32>
    %168 = vector.extract_strided_slice %167 {offsets = [0, 0], sizes = [1, 768], strides = [1, 1]} : vector<1x1024xf32> to vector<1x768xf32>
    %169 = arith.negf %168 : vector<1x768xf32>
    %170 = math.exp %169 : vector<1x768xf32>
    %cst_90 = arith.constant 1.000000e+00 : f32
    %171 = vector.broadcast %cst_90 : f32 to vector<1x768xf32>
    %172 = arith.addf %171, %170 : vector<1x768xf32>
    %173 = arith.divf %171, %172 : vector<1x768xf32>
    %174 = vector.extract_strided_slice %167 {offsets = [0, 768], sizes = [1, 256], strides = [1, 1]} : vector<1x1024xf32> to vector<1x256xf32>
    %175 = math.tanh %174 : vector<1x256xf32>
    %176 = vector.extract_strided_slice %173 {offsets = [0, 0], sizes = [1, 256], strides = [1, 1]} : vector<1x768xf32> to vector<1x256xf32>
    %177 = vector.extract_strided_slice %173 {offsets = [0, 256], sizes = [1, 256], strides = [1, 1]} : vector<1x768xf32> to vector<1x256xf32>
    %178 = vector.extract_strided_slice %173 {offsets = [0, 512], sizes = [1, 256], strides = [1, 1]} : vector<1x768xf32> to vector<1x256xf32>
    %179 = arith.mulf %177, %161 : vector<1x256xf32>
    %180 = arith.mulf %176, %175 : vector<1x256xf32>
    %181 = arith.addf %179, %180 : vector<1x256xf32>
    %c0_91 = arith.constant 0 : index
    %c0_92 = arith.constant 0 : index
    %182 = vector.load %arg6[%c0_91, %c0_92] : memref<1x256xf32, #tpu.memory_space<vmem>>, vector<1x256xf32>
    tpu.vector_store %arg6[%c0_91, %c0_92], %181 {strides = array<i32>} : memref<1x256xf32, #tpu.memory_space<vmem>>, vector<1x256xf32>,
    %183 = math.tanh %181 : vector<1x256xf32>
    %184 = arith.mulf %178, %183 : vector<1x256xf32>
    %c0_93 = arith.constant 0 : index
    %c0_94 = arith.constant 0 : index
    %185 = vector.load %arg5[%c0_93, %c0_94] : memref<1x256xf32, #tpu.memory_space<vmem>>, vector<1x256xf32>
    tpu.vector_store %arg5[%c0_93, %c0_94], %184 {strides = array<i32>} : memref<1x256xf32, #tpu.memory_space<vmem>>, vector<1x256xf32>,
    %c7_i32 = arith.constant 7 : i32
    %c0_95 = arith.constant 0 : index
    %c0_96 = arith.constant 0 : index
    %186 = vector.load %arg5[%c0_95, %c0_96] : memref<1x256xf32, #tpu.memory_space<vmem>>, vector<1x256xf32>
    %c0_97 = arith.constant 0 : index
    %c0_98 = arith.constant 0 : index
    %187 = vector.load %arg6[%c0_97, %c0_98] : memref<1x256xf32, #tpu.memory_space<vmem>>, vector<1x256xf32>
    %188 = arith.index_cast %c7_i32 : i32 to index
    %c0_99 = arith.constant 0 : index
    %189 = vector.load %arg0[%188, %c0_99] : memref<8x1024xf32, #tpu.memory_space<vmem>>, vector<1x1024xf32>
    %190 = arith.truncf %186 : vector<1x256xf32> to vector<1x256xbf16>
    %c0_100 = arith.constant 0 : index
    %c0_101 = arith.constant 0 : index
    %191 = vector.load %arg1[%c0_100, %c0_101] : memref<256x1024xbf16, #tpu.memory_space<vmem>>, vector<256x1024xbf16>
    %cst_102 = arith.constant dense<0.000000e+00> : vector<1x1024xf32>
    %192 = tpu.matmul %190, %191, %cst_102 {dimension_numbers = #tpu.dot_dimension_numbers<[1], [0], [0], [1], [0, 0, 1, 1], [], []>} : vector<1x256xbf16>, vector<256x1024xbf16>, vector<1x1024xf32> -> vector<1x1024xf32>
    %193 = arith.addf %189, %192 : vector<1x1024xf32>
    %194 = vector.extract_strided_slice %193 {offsets = [0, 0], sizes = [1, 768], strides = [1, 1]} : vector<1x1024xf32> to vector<1x768xf32>
    %195 = arith.negf %194 : vector<1x768xf32>
    %196 = math.exp %195 : vector<1x768xf32>
    %cst_103 = arith.constant 1.000000e+00 : f32
    %197 = vector.broadcast %cst_103 : f32 to vector<1x768xf32>
    %198 = arith.addf %197, %196 : vector<1x768xf32>
    %199 = arith.divf %197, %198 : vector<1x768xf32>
    %200 = vector.extract_strided_slice %193 {offsets = [0, 768], sizes = [1, 256], strides = [1, 1]} : vector<1x1024xf32> to vector<1x256xf32>
    %201 = math.tanh %200 : vector<1x256xf32>
    %202 = vector.extract_strided_slice %199 {offsets = [0, 0], sizes = [1, 256], strides = [1, 1]} : vector<1x768xf32> to vector<1x256xf32>
    %203 = vector.extract_strided_slice %199 {offsets = [0, 256], sizes = [1, 256], strides = [1, 1]} : vector<1x768xf32> to vector<1x256xf32>
    %204 = vector.extract_strided_slice %199 {offsets = [0, 512], sizes = [1, 256], strides = [1, 1]} : vector<1x768xf32> to vector<1x256xf32>
    %205 = arith.mulf %203, %187 : vector<1x256xf32>
    %206 = arith.mulf %202, %201 : vector<1x256xf32>
    %207 = arith.addf %205, %206 : vector<1x256xf32>
    %c0_104 = arith.constant 0 : index
    %c0_105 = arith.constant 0 : index
    %208 = vector.load %arg6[%c0_104, %c0_105] : memref<1x256xf32, #tpu.memory_space<vmem>>, vector<1x256xf32>
    tpu.vector_store %arg6[%c0_104, %c0_105], %207 {strides = array<i32>} : memref<1x256xf32, #tpu.memory_space<vmem>>, vector<1x256xf32>,
    %209 = math.tanh %207 : vector<1x256xf32>
    %210 = arith.mulf %204, %209 : vector<1x256xf32>
    %c0_106 = arith.constant 0 : index
    %c0_107 = arith.constant 0 : index
    %211 = vector.load %arg5[%c0_106, %c0_107] : memref<1x256xf32, #tpu.memory_space<vmem>>, vector<1x256xf32>
    tpu.vector_store %arg5[%c0_106, %c0_107], %210 {strides = array<i32>} : memref<1x256xf32, #tpu.memory_space<vmem>>, vector<1x256xf32>,
    %c8_i32 = arith.constant 8 : i32
    %c0_108 = arith.constant 0 : index
    %c0_109 = arith.constant 0 : index
    %212 = vector.load %arg5[%c0_108, %c0_109] : memref<1x256xf32, #tpu.memory_space<vmem>>, vector<1x256xf32>
    %c0_110 = arith.constant 0 : index
    %c0_111 = arith.constant 0 : index
    %213 = vector.load %arg2[%c0_110, %c0_111] : memref<256x64xf32, #tpu.memory_space<vmem>>, vector<256x64xf32>
    %cst_112 = arith.constant dense<0.000000e+00> : vector<1x64xf32>
    %214 = tpu.matmul %212, %213, %cst_112 {dimension_numbers = #tpu.dot_dimension_numbers<[1], [0], [0], [1], [0, 0, 1, 1], [], []>} : vector<1x256xf32>, vector<256x64xf32>, vector<1x64xf32> -> vector<1x64xf32>
    %c0_113 = arith.constant 0 : index
    %c0_114 = arith.constant 0 : index
    %215 = vector.load %arg3[%c0_113, %c0_114] : memref<1x64xf32, #tpu.memory_space<vmem>>, vector<1x64xf32>
    %216 = arith.addf %214, %215 : vector<1x64xf32>
    %c0_115 = arith.constant 0 : index
    %c0_116 = arith.constant 0 : index
    %217 = vector.load %arg4[%c0_115, %c0_116] : memref<1x64xf32, #tpu.memory_space<vmem>>, vector<1x64xf32>
    tpu.vector_store %arg4[%c0_115, %c0_116], %216 {strides = array<i32>} : memref<1x64xf32, #tpu.memory_space<vmem>>, vector<1x64xf32>,
    return
  }
}

</mosaic_0001>

<llo_original>
// kernel: tpu_custom_call.1
$region0: #{tpu_custom_call.1}
  #allocation0 [shape = 'u32[]', space=smem, size = 0x4, offset = 0x4, fixed_abs, tag = 'smem constant byte address 0x4 - core index']
  #allocation1 [shape = 'u32[72,128]{1,0:T(1,128)}', space=vmem, size = 0x9000, scoped, tag = 'internal scratch']
  #allocation2 [shape = 'f32[1,256]{1,0:T(1,128)}', space=vmem, size = 0x400, scoped, tag = 'scratch operand']
  #allocation3 [shape = 'f32[1,256]{1,0:T(1,128)}', space=vmem, size = 0x400, scoped, tag = 'scratch operand']
  %s0 = inlined_call_operand.vmem [shape: f32[8,1024], index: 0, kind: input, shape index: {}]
  %s1 = inlined_call_operand.hbm [shape: bf16[256,1024], index: 1, kind: input, shape index: {}]
  %s2 = inlined_call_operand.vmem [shape: f32[256,64], index: 2, kind: input, shape index: {}]
  %s3 = inlined_call_operand.vmem [shape: f32[1,64], index: 3, kind: input, shape index: {}]
  %s4 = inlined_call_operand.hbm [shape: f32[1,64], index: 4, kind: output, shape index: {}]
  %s5 = sld [smem:[#allocation0]]
  $region30: #{tpu_custom_call.1} parent=0
    _
  %s7 = ssub.s32 1, %s5
  %s8 = scalar_select 0, %s7, %s5
  $region1: #{tpu_custom_call.1} parent=0
    #allocation4 [shape = 'u8[524288]{0}', space=vmem, size = 0x80000, scoped, tag = 'input window, operand 1, single buffered']
    #allocation5 [shape = 's32[1]{0}', space=sflag, size = 0x4, scoped, tag = 'scoped memory for tpu_custom_call.1']
    #allocation6 [shape = 's32[1]{0}', space=sflag, size = 0x4, scoped, tag = 'scoped memory for tpu_custom_call.1']
    #allocation7 [shape = 'u8[512]{0}', space=vmem, size = 0x400, scoped, tag = 'output window, operand 0, single buffered']
    %9 = vsyncpa [#allocation5], 0
    %10 = vsyncpa [#allocation6], 0
    // Predicated region
    $region2: #{tpu_custom_call.1} parent=1 // pred_check
      _
    $region3: #{tpu_custom_call.1} parent=1 // pred_check_branch
      %12 = sbr.rel (0) target = $region5
    $region4: #{tpu_custom_call.1} parent=1 // pred_region
      _
    $region5: #{tpu_custom_call.1} parent=1 // pred_fallthru
      _
    // Predicated region
    $region6: #{tpu_custom_call.1} parent=1 // pred_check
      _
    $region7: #{tpu_custom_call.1} parent=1 // pred_check_branch
      %14 = sbr.rel (0) target = $region9
    $region8: #{tpu_custom_call.1} parent=1 // pred_region
      %16 = vsyncadd [#allocation5], 0
      %s17 = sshll.u32 %s1, 4
      %s18 = int_to_ptr.hbm [resolvable:$true] %s17
      %s19 = sshll.u32 [#allocation4], 4
      %s20 = int_to_ptr.vmem [resolvable:$true] %s19
      %25 = dma.hbm_to_vmem [thread:$0]  %s18, 16384, %s20, [#allocation5], 512, 512, 32
    $region9: #{tpu_custom_call.1} parent=1 // pred_fallthru
      _
    // Predicated region
    $region10: #{tpu_custom_call.1} parent=1 // pred_check
      _
    $region11: #{tpu_custom_call.1} parent=1 // pred_check_branch
      %27 = sbr.rel (0) target = $region13
    $region12: #{tpu_custom_call.1} parent=1 // pred_region
      _
    $region13: #{tpu_custom_call.1} parent=1 // pred_fallthru
      _
    // Predicated region
    $region14: #{tpu_custom_call.1} parent=1 // pred_check
      _
    $region15: #{tpu_custom_call.1} parent=1 // pred_check_branch
      %29 = sbr.rel (0) target = $region17
    $region16: #{tpu_custom_call.1} parent=1 // pred_region
      _
    $region17: #{tpu_custom_call.1} parent=1 // pred_fallthru
      _
    // Predicated region
    $region18: #{tpu_custom_call.1} parent=1 // pred_check
      _
    $region19: #{tpu_custom_call.1} parent=1 // pred_check_branch
      %31 = sbr.rel (0) target = $region21
    $region20: #{tpu_custom_call.1} parent=1 // pred_region
      %33 = dma.done [#allocation5], 16384
    $region21: #{tpu_custom_call.1} parent=1 // pred_fallthru
      _
    %v34 = vlaneseq
    %vm35 = vcmp.ge.s32.totalorder %v34, 0
    %vm36 = vcmp.lt.s32.totalorder %v34, 256
    %vm37 = vmand %vm35, %vm36
    %38 = vst.msk [vmem:[#allocation2] sm:$0x3] %vm37, 0.0
    %39 = vst.msk [vmem:[#allocation3] sm:$0x3] %vm37, 0.0
    %v40 = vld [vmem:[#allocation2] sm:$0x3]
    %v41 = vld [vmem:[#allocation3] sm:$0x3]
    %v42 = vld [vmem:[%s0] ss:$8 sm:$0xf]
    %v43 = vld [vmem:[%s0] ss:$8 sm:$0xf0]
    %v44 = vor.u32 %v42, %v43
    %v46 = vperm.slane %v40, 0
    %v47 = vperm.slane %v40, 1
    %v50 = vpack.c.bf16 %v46, %v46
    %v51 = vpack.c.bf16 %v47, %v47
    %v52 = vld [vmem:[#allocation4] sm:$0xff]
    %v53 = vld [vmem:[#allocation4 + $0x8] sm:$0xff]
    %v54 = vld [vmem:[#allocation4 + $0x10] sm:$0xff]
    %v55 = vld [vmem:[#allocation4 + $0x18] sm:$0xff]
    %v56 = vld [vmem:[#allocation4 + $0x20] sm:$0xff]
    %v57 = vld [vmem:[#allocation4 + $0x28] sm:$0xff]
    %v58 = vld [vmem:[#allocation4 + $0x30] sm:$0xff]
    %v59 = vld [vmem:[#allocation4 + $0x38] sm:$0xff]
    %v60 = vld [vmem:[#allocation4 + $0x40] sm:$0xff]
    %v61 = vld [vmem:[#allocation4 + $0x48] sm:$0xff]
    %v62 = vld [vmem:[#allocation4 + $0x50] sm:$0xff]
    %v63 = vld [vmem:[#allocation4 + $0x58] sm:$0xff]
    %v64 = vld [vmem:[#allocation4 + $0x60] sm:$0xff]
    %v65 = vld [vmem:[#allocation4 + $0x68] sm:$0xff]
    %v66 = vld [vmem:[#allocation4 + $0x70] sm:$0xff]
    %v67 = vld [vmem:[#allocation4 + $0x78] sm:$0xff]
    %v68 = vld [vmem:[#allocation4 + $0x80] sm:$0xff]
    %v69 = vld [vmem:[#allocation4 + $0x88] sm:$0xff]
    %v70 = vld [vmem:[#allocation4 + $0x90] sm:$0xff]
    %v71 = vld [vmem:[#allocation4 + $0x98] sm:$0xff]
    %v72 = vld [vmem:[#allocation4 + $0xa0] sm:$0xff]
    %v73 = vld [vmem:[#allocation4 + $0xa8] sm:$0xff]
    %v74 = vld [vmem:[#allocation4 + $0xb0] sm:$0xff]
    %v75 = vld [vmem:[#allocation4 + $0xb8] sm:$0xff]
    %v76 = vld [vmem:[#allocation4 + $0xc0] sm:$0xff]
    %v77 = vld [vmem:[#allocation4 + $0xc8] sm:$0xff]
    %v78 = vld [vmem:[#allocation4 + $0xd0] sm:$0xff]
    %v79 = vld [vmem:[#allocation4 + $0xd8] sm:$0xff]
    %v80 = vld [vmem:[#allocation4 + $0xe0] sm:$0xff]
    %v81 = vld [vmem:[#allocation4 + $0xe8] sm:$0xff]
    %v82 = vld [vmem:[#allocation4 + $0xf0] sm:$0xff]
    %v83 = vld [vmem:[#allocation4 + $0xf8] sm:$0xff]
    %v84 = vld [vmem:[#allocation4 + $0x100] sm:$0xff]
    %v85 = vld [vmem:[#allocation4 + $0x108] sm:$0xff]
    %v86 = vld [vmem:[#allocation4 + $0x110] sm:$0xff]
    %v87 = vld [vmem:[#allocation4 + $0x118] sm:$0xff]
    %v88 = vld [vmem:[#allocation4 + $0x120] sm:$0xff]
    %v89 = vld [vmem:[#allocation4 + $0x128] sm:$0xff]
    %v90 = vld [vmem:[#allocation4 + $0x130] sm:$0xff]
    %v91 = vld [vmem:[#allocation4 + $0x138] sm:$0xff]
    %v92 = vld [vmem:[#allocation4 + $0x140] sm:$0xff]
    %v93 = vld [vmem:[#allocation4 + $0x148] sm:$0xff]
    %v94 = vld [vmem:[#allocation4 + $0x150] sm:$0xff]
    %v95 = vld [vmem:[#allocation4 + $0x158] sm:$0xff]
    %v96 = vld [vmem:[#allocation4 + $0x160] sm:$0xff]
    %v97 = vld [vmem:[#allocation4 + $0x168] sm:$0xff]
    %v98 = vld [vmem:[#allocation4 + $0x170] sm:$0xff]
    %v99 = vld [vmem:[#allocation4 + $0x178] sm:$0xff]
    %v100 = vld [vmem:[#allocation4 + $0x180] sm:$0xff]
    %v101 = vld [vmem:[#allocation4 + $0x188] sm:$0xff]
    %v102 = vld [vmem:[#allocation4 + $0x190] sm:$0xff]
    %v103 = vld [vmem:[#allocation4 + $0x198] sm:$0xff]
    %v104 = vld [vmem:[#allocation4 + $0x1a0] sm:$0xff]
    %v105 = vld [vmem:[#allocation4 + $0x1a8] sm:$0xff]
    %v106 = vld [vmem:[#allocation4 + $0x1b0] sm:$0xff]
    %v107 = vld [vmem:[#allocation4 + $0x1b8] sm:$0xff]
    %v108 = vld [vmem:[#allocation4 + $0x1c0] sm:$0xff]
    %v109 = vld [vmem:[#allocation4 + $0x1c8] sm:$0xff]
    %v110 = vld [vmem:[#allocation4 + $0x1d0] sm:$0xff]
    %v111 = vld [vmem:[#allocation4 + $0x1d8] sm:$0xff]
    %v112 = vld [vmem:[#allocation4 + $0x1e0] sm:$0xff]
    %v113 = vld [vmem:[#allocation4 + $0x1e8] sm:$0xff]
    %v114 = vld [vmem:[#allocation4 + $0x1f0] sm:$0xff]
    %v115 = vld [vmem:[#allocation4 + $0x1f8] sm:$0xff]
    %v116 = vld [vmem:[#allocation4 + $0x200] sm:$0xff]
    %v117 = vld [vmem:[#allocation4 + $0x208] sm:$0xff]
    %v118 = vld [vmem:[#allocation4 + $0x210] sm:$0xff]
    %v119 = vld [vmem:[#allocation4 + $0x218] sm:$0xff]
    %v120 = vld [vmem:[#allocation4 + $0x220] sm:$0xff]
    %v121 = vld [vmem:[#allocation4 + $0x228] sm:$0xff]
    %v122 = vld [vmem:[#allocation4 + $0x230] sm:$0xff]
    %v123 = vld [vmem:[#allocation4 + $0x238] sm:$0xff]
    %v124 = vld [vmem:[#allocation4 + $0x240] sm:$0xff]
    %v125 = vld [vmem:[#allocation4 + $0x248] sm:$0xff]
    %v126 = vld [vmem:[#allocation4 + $0x250] sm:$0xff]
    %v127 = vld [vmem:[#allocation4 + $0x258] sm:$0xff]
    %v128 = vld [vmem:[#allocation4 + $0x260] sm:$0xff]
    %v129 = vld [vmem:[#allocation4 + $0x268] sm:$0xff]
    %v130 = vld [vmem:[#allocation4 + $0x270] sm:$0xff]
    %v131 = vld [vmem:[#allocation4 + $0x278] sm:$0xff]
    %v132 = vld [vmem:[#allocation4 + $0x280] sm:$0xff]
    %v133 = vld [vmem:[#allocation4 + $0x288] sm:$0xff]
    %v134 = vld [vmem:[#allocation4 + $0x290] sm:$0xff]
    %v135 = vld [vmem:[#allocation4 + $0x298] sm:$0xff]
    %v136 = vld [vmem:[#allocation4 + $0x2a0] sm:$0xff]
    %v137 = vld [vmem:[#allocation4 + $0x2a8] sm:$0xff]
    %v138 = vld [vmem:[#allocation4 + $0x2b0] sm:$0xff]
    %v139 = vld [vmem:[#allocation4 + $0x2b8] sm:$0xff]
    %v140 = vld [vmem:[#allocation4 + $0x2c0] sm:$0xff]
    %v141 = vld [vmem:[#allocation4 + $0x2c8] sm:$0xff]
    %v142 = vld [vmem:[#allocation4 + $0x2d0] sm:$0xff]
    %v143 = vld [vmem:[#allocation4 + $0x2d8] sm:$0xff]
    %v144 = vld [vmem:[#allocation4 + $0x2e0] sm:$0xff]
    %v145 = vld [vmem:[#allocation4 + $0x2e8] sm:$0xff]
    %v146 = vld [vmem:[#allocation4 + $0x2f0] sm:$0xff]
    %v147 = vld [vmem:[#allocation4 + $0x2f8] sm:$0xff]
    %v148 = vld [vmem:[#allocation4 + $0x300] sm:$0xff]
    %v149 = vld [vmem:[#allocation4 + $0x308] sm:$0xff]
    %v150 = vld [vmem:[#allocation4 + $0x310] sm:$0xff]
    %v151 = vld [vmem:[#allocation4 + $0x318] sm:$0xff]
    %v152 = vld [vmem:[#allocation4 + $0x320] sm:$0xff]
    %v153 = vld [vmem:[#allocation4 + $0x328] sm:$0xff]
    %v154 = vld [vmem:[#allocation4 + $0x330] sm:$0xff]
    %v155 = vld [vmem:[#allocation4 + $0x338] sm:$0xff]
    %v156 = vld [vmem:[#allocation4 + $0x340] sm:$0xff]
    %v157 = vld [vmem:[#allocation4 + $0x348] sm:$0xff]
    %v158 = vld [vmem:[#allocation4 + $0x350] sm:$0xff]
    %v159 = vld [vmem:[#allocation4 + $0x358] sm:$0xff]
    %v160 = vld [vmem:[#allocation4 + $0x360] sm:$0xff]
    %v161 = vld [vmem:[#allocation4 + $0x368] sm:$0xff]
    %v162 = vld [vmem:[#allocation4 + $0x370] sm:$0xff]
    %v163 = vld [vmem:[#allocation4 + $0x378] sm:$0xff]
    %v164 = vld [vmem:[#allocation4 + $0x380] sm:$0xff]
    %v165 = vld [vmem:[#allocation4 + $0x388] sm:$0xff]
    %v166 = vld [vmem:[#allocation4 + $0x390] sm:$0xff]
    %v167 = vld [vmem:[#allocation4 + $0x398] sm:$0xff]
    %v168 = vld [vmem:[#allocation4 + $0x3a0] sm:$0xff]
    %v169 = vld [vmem:[#allocation4 + $0x3a8] sm:$0xff]
    %v170 = vld [vmem:[#allocation4 + $0x3b0] sm:$0xff]
    %v171 = vld [vmem:[#allocation4 + $0x3b8] sm:$0xff]
    %v172 = vld [vmem:[#allocation4 + $0x3c0] sm:$0xff]
    %v173 = vld [vmem:[#allocation4 + $0x3c8] sm:$0xff]
    %v174 = vld [vmem:[#allocation4 + $0x3d0] sm:$0xff]
    %v175 = vld [vmem:[#allocation4 + $0x3d8] sm:$0xff]
    %v176 = vld [vmem:[#allocation4 + $0x3e0] sm:$0xff]
    %v177 = vld [vmem:[#allocation4 + $0x3e8] sm:$0xff]
    %v178 = vld [vmem:[#allocation4 + $0x3f0] sm:$0xff]
    %v179 = vld [vmem:[#allocation4 + $0x3f8] sm:$0xff]
    %v308 = vunpack.c.l.b16 %v52
    %v309 = vunpack.c.h.b16 %v52
    %v310 = vunpack.c.l.b16 %v53
    %v311 = vunpack.c.h.b16 %v53
    %v312 = vunpack.c.l.b16 %v54
    %v313 = vunpack.c.h.b16 %v54
    %v314 = vunpack.c.l.b16 %v55
    %v315 = vunpack.c.h.b16 %v55
    %v316 = vunpack.c.l.b16 %v56
    %v317 = vunpack.c.h.b16 %v56
    %v318 = vunpack.c.l.b16 %v57
    %v319 = vunpack.c.h.b16 %v57
    %v320 = vunpack.c.l.b16 %v58
    %v321 = vunpack.c.h.b16 %v58
    %v322 = vunpack.c.l.b16 %v59
    %v323 = vunpack.c.h.b16 %v59
    %v324 = vunpack.c.l.b16 %v60
    %v325 = vunpack.c.h.b16 %v60
    %v326 = vunpack.c.l.b16 %v61
    %v327 = vunpack.c.h.b16 %v61
    %v328 = vunpack.c.l.b16 %v62
    %v329 = vunpack.c.h.b16 %v62
    %v330 = vunpack.c.l.b16 %v63
    %v331 = vunpack.c.h.b16 %v63
    %v332 = vunpack.c.l.b16 %v64
    %v333 = vunpack.c.h.b16 %v64
    %v334 = vunpack.c.l.b16 %v65
    %v335 = vunpack.c.h.b16 %v65
    %v336 = vunpack.c.l.b16 %v66
    %v337 = vunpack.c.h.b16 %v66
    %v338 = vunpack.c.l.b16 %v67
    %v339 = vunpack.c.h.b16 %v67
    %v340 = vunpack.c.l.b16 %v68
    %v341 = vunpack.c.h.b16 %v68
    %v342 = vunpack.c.l.b16 %v69
    %v343 = vunpack.c.h.b16 %v69
    %v344 = vunpack.c.l.b16 %v70
    %v345 = vunpack.c.h.b16 %v70
    %v346 = vunpack.c.l.b16 %v71
    %v347 = vunpack.c.h.b16 %v71
    %v348 = vunpack.c.l.b16 %v72
    %v349 = vunpack.c.h.b16 %v72
    %v350 = vunpack.c.l.b16 %v73
    %v351 = vunpack.c.h.b16 %v73
    %v352 = vunpack.c.l.b16 %v74
    %v353 = vunpack.c.h.b16 %v74
    %v354 = vunpack.c.l.b16 %v75
    %v355 = vunpack.c.h.b16 %v75
    %v356 = vunpack.c.l.b16 %v76
    %v357 = vunpack.c.h.b16 %v76
    %v358 = vunpack.c.l.b16 %v77
    %v359 = vunpack.c.h.b16 %v77
    %v360 = vunpack.c.l.b16 %v78
    %v361 = vunpack.c.h.b16 %v78
    %v362 = vunpack.c.l.b16 %v79
    %v363 = vunpack.c.h.b16 %v79
    %v364 = vunpack.c.l.b16 %v80
    %v365 = vunpack.c.h.b16 %v80
    %v366 = vunpack.c.l.b16 %v81
    %v367 = vunpack.c.h.b16 %v81
    %v368 = vunpack.c.l.b16 %v82
    %v369 = vunpack.c.h.b16 %v82
    %v370 = vunpack.c.l.b16 %v83
    %v371 = vunpack.c.h.b16 %v83
    %v372 = vunpack.c.l.b16 %v84
    %v373 = vunpack.c.h.b16 %v84
    %v374 = vunpack.c.l.b16 %v85
    %v375 = vunpack.c.h.b16 %v85
    %v376 = vunpack.c.l.b16 %v86
    %v377 = vunpack.c.h.b16 %v86
    %v378 = vunpack.c.l.b16 %v87
    %v379 = vunpack.c.h.b16 %v87
    %v380 = vunpack.c.l.b16 %v88
    %v381 = vunpack.c.h.b16 %v88
    %v382 = vunpack.c.l.b16 %v89
    %v383 = vunpack.c.h.b16 %v89
    %v384 = vunpack.c.l.b16 %v90
    %v385 = vunpack.c.h.b16 %v90
    %v386 = vunpack.c.l.b16 %v91
    %v387 = vunpack.c.h.b16 %v91
    %v388 = vunpack.c.l.b16 %v92
    %v389 = vunpack.c.h.b16 %v92
    %v390 = vunpack.c.l.b16 %v93
    %v391 = vunpack.c.h.b16 %v93
    %v392 = vunpack.c.l.b16 %v94
    %v393 = vunpack.c.h.b16 %v94
    %v394 = vunpack.c.l.b16 %v95
    %v395 = vunpack.c.h.b16 %v95
    %v396 = vunpack.c.l.b16 %v96
    %v397 = vunpack.c.h.b16 %v96
    %v398 = vunpack.c.l.b16 %v97
    %v399 = vunpack.c.h.b16 %v97
    %v400 = vunpack.c.l.b16 %v98
    %v401 = vunpack.c.h.b16 %v98
    %v402 = vunpack.c.l.b16 %v99
    %v403 = vunpack.c.h.b16 %v99
    %v404 = vunpack.c.l.b16 %v100
    %v405 = vunpack.c.h.b16 %v100
    %v406 = vunpack.c.l.b16 %v101
    %v407 = vunpack.c.h.b16 %v101
    %v408 = vunpack.c.l.b16 %v102
    %v409 = vunpack.c.h.b16 %v102
    %v410 = vunpack.c.l.b16 %v103
    %v411 = vunpack.c.h.b16 %v103
    %v412 = vunpack.c.l.b16 %v104
    %v413 = vunpack.c.h.b16 %v104
    %v414 = vunpack.c.l.b16 %v105
    %v415 = vunpack.c.h.b16 %v105
    %v416 = vunpack.c.l.b16 %v106
    %v417 = vunpack.c.h.b16 %v106
    %v418 = vunpack.c.l.b16 %v107
    %v419 = vunpack.c.h.b16 %v107
    %v420 = vunpack.c.l.b16 %v108
    %v421 = vunpack.c.h.b16 %v108
    %v422 = vunpack.c.l.b16 %v109
    %v423 = vunpack.c.h.b16 %v109
    %v424 = vunpack.c.l.b16 %v110
    %v425 = vunpack.c.h.b16 %v110
    %v426 = vunpack.c.l.b16 %v111
    %v427 = vunpack.c.h.b16 %v111
    %v428 = vunpack.c.l.b16 %v112
    %v429 = vunpack.c.h.b16 %v112
    %v430 = vunpack.c.l.b16 %v113
    %v431 = vunpack.c.h.b16 %v113
    %v432 = vunpack.c.l.b16 %v114
    %v433 = vunpack.c.h.b16 %v114
    %v434 = vunpack.c.l.b16 %v115
    %v435 = vunpack.c.h.b16 %v115
    %v436 = vunpack.c.l.b16 %v116
    %v437 = vunpack.c.h.b16 %v116
    %v438 = vunpack.c.l.b16 %v117
    %v439 = vunpack.c.h.b16 %v117
    %v440 = vunpack.c.l.b16 %v118
    %v441 = vunpack.c.h.b16 %v118
    %v442 = vunpack.c.l.b16 %v119
    %v443 = vunpack.c.h.b16 %v119
    %v444 = vunpack.c.l.b16 %v120
    %v445 = vunpack.c.h.b16 %v120
    %v446 = vunpack.c.l.b16 %v121
    %v447 = vunpack.c.h.b16 %v121
    %v448 = vunpack.c.l.b16 %v122
    %v449 = vunpack.c.h.b16 %v122
    %v450 = vunpack.c.l.b16 %v123
    %v451 = vunpack.c.h.b16 %v123
    %v452 = vunpack.c.l.b16 %v124
    %v453 = vunpack.c.h.b16 %v124
    %v454 = vunpack.c.l.b16 %v125
    %v455 = vunpack.c.h.b16 %v125
    %v456 = vunpack.c.l.b16 %v126
    %v457 = vunpack.c.h.b16 %v126
    %v458 = vunpack.c.l.b16 %v127
    %v459 = vunpack.c.h.b16 %v127
    %v460 = vunpack.c.l.b16 %v128
    %v461 = vunpack.c.h.b16 %v128
    %v462 = vunpack.c.l.b16 %v129
    %v463 = vunpack.c.h.b16 %v129
    %v464 = vunpack.c.l.b16 %v130
    %v465 = vunpack.c.h.b16 %v130
    %v466 = vunpack.c.l.b16 %v131
    %v467 = vunpack.c.h.b16 %v131
    %v468 = vunpack.c.l.b16 %v132
    %v469 = vunpack.c.h.b16 %v132
    %v470 = vunpack.c.l.b16 %v133
    %v471 = vunpack.c.h.b16 %v133
    %v472 = vunpack.c.l.b16 %v134
    %v473 = vunpack.c.h.b16 %v134
    %v474 = vunpack.c.l.b16 %v135
    %v475 = vunpack.c.h.b16 %v135
    %v476 = vunpack.c.l.b16 %v136
    %v477 = vunpack.c.h.b16 %v136
    %v478 = vunpack.c.l.b16 %v137
    %v479 = vunpack.c.h.b16 %v137
    %v480 = vunpack.c.l.b16 %v138
    %v481 = vunpack.c.h.b16 %v138
    %v482 = vunpack.c.l.b16 %v139
    %v483 = vunpack.c.h.b16 %v139
    %v484 = vunpack.c.l.b16 %v140
    %v485 = vunpack.c.h.b16 %v140
    %v486 = vunpack.c.l.b16 %v141
    %v487 = vunpack.c.h.b16 %v141
    %v488 = vunpack.c.l.b16 %v142
    %v489 = vunpack.c.h.b16 %v142
    %v490 = vunpack.c.l.b16 %v143
    %v491 = vunpack.c.h.b16 %v143
    %v492 = vunpack.c.l.b16 %v144
    %v493 = vunpack.c.h.b16 %v144
    %v494 = vunpack.c.l.b16 %v145
    %v495 = vunpack.c.h.b16 %v145
    %v496 = vunpack.c.l.b16 %v146
    %v497 = vunpack.c.h.b16 %v146
    %v498 = vunpack.c.l.b16 %v147
    %v499 = vunpack.c.h.b16 %v147
    %v500 = vunpack.c.l.b16 %v148
    %v501 = vunpack.c.h.b16 %v148
    %v502 = vunpack.c.l.b16 %v149
    %v503 = vunpack.c.h.b16 %v149
    %v504 = vunpack.c.l.b16 %v150
    %v505 = vunpack.c.h.b16 %v150
    %v506 = vunpack.c.l.b16 %v151
    %v507 = vunpack.c.h.b16 %v151
    %v508 = vunpack.c.l.b16 %v152
    %v509 = vunpack.c.h.b16 %v152
    %v510 = vunpack.c.l.b16 %v153
    %v511 = vunpack.c.h.b16 %v153
    %v512 = vunpack.c.l.b16 %v154
    %v513 = vunpack.c.h.b16 %v154
    %v514 = vunpack.c.l.b16 %v155
    %v515 = vunpack.c.h.b16 %v155
    %v516 = vunpack.c.l.b16 %v156
    %v517 = vunpack.c.h.b16 %v156
    %v518 = vunpack.c.l.b16 %v157
    %v519 = vunpack.c.h.b16 %v157
    %v520 = vunpack.c.l.b16 %v158
    %v521 = vunpack.c.h.b16 %v158
    %v522 = vunpack.c.l.b16 %v159
    %v523 = vunpack.c.h.b16 %v159
    %v524 = vunpack.c.l.b16 %v160
    %v525 = vunpack.c.h.b16 %v160
    %v526 = vunpack.c.l.b16 %v161
    %v527 = vunpack.c.h.b16 %v161
    %v528 = vunpack.c.l.b16 %v162
    %v529 = vunpack.c.h.b16 %v162
    %v530 = vunpack.c.l.b16 %v163
    %v531 = vunpack.c.h.b16 %v163
    %v532 = vunpack.c.l.b16 %v164
    %v533 = vunpack.c.h.b16 %v164
    %v534 = vunpack.c.l.b16 %v165
    %v535 = vunpack.c.h.b16 %v165
    %v536 = vunpack.c.l.b16 %v166
    %v537 = vunpack.c.h.b16 %v166
    %v538 = vunpack.c.l.b16 %v167
    %v539 = vunpack.c.h.b16 %v167
    %v540 = vunpack.c.l.b16 %v168
    %v541 = vunpack.c.h.b16 %v168
    %v542 = vunpack.c.l.b16 %v169
    %v543 = vunpack.c.h.b16 %v169
    %v544 = vunpack.c.l.b16 %v170
    %v545 = vunpack.c.h.b16 %v170
    %v546 = vunpack.c.l.b16 %v171
    %v547 = vunpack.c.h.b16 %v171
    %v548 = vunpack.c.l.b16 %v172
    %v549 = vunpack.c.h.b16 %v172
    %v550 = vunpack.c.l.b16 %v173
    %v551 = vunpack.c.h.b16 %v173
    %v552 = vunpack.c.l.b16 %v174
    %v553 = vunpack.c.h.b16 %v174
    %v554 = vunpack.c.l.b16 %v175
    %v555 = vunpack.c.h.b16 %v175
    %v556 = vunpack.c.l.b16 %v176
    %v557 = vunpack.c.h.b16 %v176
    %v558 = vunpack.c.l.b16 %v177
    %v559 = vunpack.c.h.b16 %v177
    %v560 = vunpack.c.l.b16 %v178
    %v561 = vunpack.c.h.b16 %v178
    %v562 = vunpack.c.l.b16 %v179
    %v563 = vunpack.c.h.b16 %v179
    %v564 = vpack.c.b16 %v316, %v308
    %v565 = vpack.c.b16 %v317, %v309
    %v566 = vpack.c.b16 %v318, %v310
    %v567 = vpack.c.b16 %v319, %v311
    %v568 = vpack.c.b16 %v320, %v312
    %v569 = vpack.c.b16 %v321, %v313
    %v570 = vpack.c.b16 %v322, %v314
    %v571 = vpack.c.b16 %v323, %v315
    %v572 = vpack.c.b16 %v332, %v324
    %v573 = vpack.c.b16 %v333, %v325
    %v574 = vpack.c.b16 %v334, %v326
    %v575 = vpack.c.b16 %v335, %v327
    %v576 = vpack.c.b16 %v336, %v328
    %v577 = vpack.c.b16 %v337, %v329
    %v578 = vpack.c.b16 %v338, %v330
    %v579 = vpack.c.b16 %v339, %v331
    %v580 = vpack.c.b16 %v348, %v340
    %v581 = vpack.c.b16 %v349, %v341
    %v582 = vpack.c.b16 %v350, %v342
    %v583 = vpack.c.b16 %v351, %v343
    %v584 = vpack.c.b16 %v352, %v344
    %v585 = vpack.c.b16 %v353, %v345
    %v586 = vpack.c.b16 %v354, %v346
    %v587 = vpack.c.b16 %v355, %v347
    %v588 = vpack.c.b16 %v364, %v356
    %v589 = vpack.c.b16 %v365, %v357
    %v590 = vpack.c.b16 %v366, %v358
    %v591 = vpack.c.b16 %v367, %v359
    %v592 = vpack.c.b16 %v368, %v360
    %v593 = vpack.c.b16 %v369, %v361
    %v594 = vpack.c.b16 %v370, %v362
    %v595 = vpack.c.b16 %v371, %v363
    %v596 = vpack.c.b16 %v380, %v372
    %v597 = vpack.c.b16 %v381, %v373
    %v598 = vpack.c.b16 %v382, %v374
    %v599 = vpack.c.b16 %v383, %v375
    %v600 = vpack.c.b16 %v384, %v376
    %v601 = vpack.c.b16 %v385, %v377
    %v602 = vpack.c.b16 %v386, %v378
    %v603 = vpack.c.b16 %v387, %v379
    %v604 = vpack.c.b16 %v396, %v388
    %v605 = vpack.c.b16 %v397, %v389
    %v606 = vpack.c.b16 %v398, %v390
    %v607 = vpack.c.b16 %v399, %v391
    %v608 = vpack.c.b16 %v400, %v392
    %v609 = vpack.c.b16 %v401, %v393
    %v610 = vpack.c.b16 %v402, %v394
    %v611 = vpack.c.b16 %v403, %v395
    %v612 = vpack.c.b16 %v412, %v404
    %v613 = vpack.c.b16 %v413, %v405
    %v614 = vpack.c.b16 %v414, %v406
    %v615 = vpack.c.b16 %v415, %v407
    %v616 = vpack.c.b16 %v416, %v408
    %v617 = vpack.c.b16 %v417, %v409
    %v618 = vpack.c.b16 %v418, %v410
    %v619 = vpack.c.b16 %v419, %v411
    %v620 = vpack.c.b16 %v428, %v420
    %v621 = vpack.c.b16 %v429, %v421
    %v622 = vpack.c.b16 %v430, %v422
    %v623 = vpack.c.b16 %v431, %v423
    %v624 = vpack.c.b16 %v432, %v424
    %v625 = vpack.c.b16 %v433, %v425
    %v626 = vpack.c.b16 %v434, %v426
    %v627 = vpack.c.b16 %v435, %v427
    %v628 = vpack.c.b16 %v444, %v436
    %v629 = vpack.c.b16 %v445, %v437
    %v630 = vpack.c.b16 %v446, %v438
    %v631 = vpack.c.b16 %v447, %v439
    %v632 = vpack.c.b16 %v448, %v440
    %v633 = vpack.c.b16 %v449, %v441
    %v634 = vpack.c.b16 %v450, %v442
    %v635 = vpack.c.b16 %v451, %v443
    %v636 = vpack.c.b16 %v460, %v452
    %v637 = vpack.c.b16 %v461, %v453
    %v638 = vpack.c.b16 %v462, %v454
    %v639 = vpack.c.b16 %v463, %v455
    %v640 = vpack.c.b16 %v464, %v456
    %v641 = vpack.c.b16 %v465, %v457
    %v642 = vpack.c.b16 %v466, %v458
    %v643 = vpack.c.b16 %v467, %v459
    %v644 = vpack.c.b16 %v476, %v468
    %v645 = vpack.c.b16 %v477, %v469
    %v646 = vpack.c.b16 %v478, %v470
    %v647 = vpack.c.b16 %v479, %v471
    %v648 = vpack.c.b16 %v480, %v472
    %v649 = vpack.c.b16 %v481, %v473
    %v650 = vpack.c.b16 %v482, %v474
    %v651 = vpack.c.b16 %v483, %v475
    %v652 = vpack.c.b16 %v492, %v484
    %v653 = vpack.c.b16 %v493, %v485
    %v654 = vpack.c.b16 %v494, %v486
    %v655 = vpack.c.b16 %v495, %v487
    %v656 = vpack.c.b16 %v496, %v488
    %v657 = vpack.c.b16 %v497, %v489
    %v658 = vpack.c.b16 %v498, %v490
    %v659 = vpack.c.b16 %v499, %v491
    %v660 = vpack.c.b16 %v508, %v500
    %v661 = vpack.c.b16 %v509, %v501
    %v662 = vpack.c.b16 %v510, %v502
    %v663 = vpack.c.b16 %v511, %v503
    %v664 = vpack.c.b16 %v512, %v504
    %v665 = vpack.c.b16 %v513, %v505
    %v666 = vpack.c.b16 %v514, %v506
    %v667 = vpack.c.b16 %v515, %v507
    %v668 = vpack.c.b16 %v524, %v516
    %v669 = vpack.c.b16 %v525, %v517
    %v670 = vpack.c.b16 %v526, %v518
    %v671 = vpack.c.b16 %v527, %v519
    %v672 = vpack.c.b16 %v528, %v520
    %v673 = vpack.c.b16 %v529, %v521
    %v674 = vpack.c.b16 %v530, %v522
    %v675 = vpack.c.b16 %v531, %v523
    %v676 = vpack.c.b16 %v540, %v532
    %v677 = vpack.c.b16 %v541, %v533
    %v678 = vpack.c.b16 %v542, %v534
    %v679 = vpack.c.b16 %v543, %v535
    %v680 = vpack.c.b16 %v544, %v536
    %v681 = vpack.c.b16 %v545, %v537
    %v682 = vpack.c.b16 %v546, %v538
    %v683 = vpack.c.b16 %v547, %v539
    %v684 = vpack.c.b16 %v556, %v548
    %v685 = vpack.c.b16 %v557, %v549
    %v686 = vpack.c.b16 %v558, %v550
    %v687 = vpack.c.b16 %v559, %v551
    %v688 = vpack.c.b16 %v560, %v552
    %v689 = vpack.c.b16 %v561, %v553
    %v690 = vpack.c.b16 %v562, %v554
    %v691 = vpack.c.b16 %v563, %v555
    %820 = vmatpush.bf16.msra.mxu0 %v620
    %821 = vmatpush.bf16.msra.mxu0 %v612
    %822 = vmatpush.bf16.msra.mxu0 %v604
    %823 = vmatpush.bf16.msra.mxu0 %v596
    %824 = vmatpush.bf16.msra.mxu0 %v588
    %825 = vmatpush.bf16.msra.mxu0 %v580
    %826 = vmatpush.bf16.msra.mxu0 %v572
    %827 = vmatpush.bf16.msra.mxu0 %v564
    %828 = vmatmul.bf16.gmra.mxu0 %v50
    %v829 = vpop.f32.mrf.mxu0
    %v830 = vadd.f32 0.0, %v829
    %v831 = vpop.f32.mrf.mxu0
    %832 = vdwg.mxu0
    %833 = vmatpush.bf16.msra.mxu0 %v684
    %834 = vmatpush.bf16.msra.mxu0 %v676
    %835 = vmatpush.bf16.msra.mxu0 %v668
    %836 = vmatpush.bf16.msra.mxu0 %v660
    %837 = vmatpush.bf16.msra.mxu0 %v652
    %838 = vmatpush.bf16.msra.mxu0 %v644
    %839 = vmatpush.bf16.msra.mxu0 %v636
    %840 = vmatpush.bf16.msra.mxu0 %v628
    %841 = vmatmul.bf16.gmra.mxu0 %v51
    %v842 = vpop.f32.mrf.mxu0
    %v843 = vadd.f32 %v830, %v842
    %v844 = vpop.f32.mrf.mxu0
    %845 = vdwg.mxu0
    %846 = vmatpush.bf16.msra.mxu0 %v621
    %847 = vmatpush.bf16.msra.mxu0 %v613
    %848 = vmatpush.bf16.msra.mxu0 %v605
    %849 = vmatpush.bf16.msra.mxu0 %v597
    %850 = vmatpush.bf16.msra.mxu0 %v589
    %851 = vmatpush.bf16.msra.mxu0 %v581
    %852 = vmatpush.bf16.msra.mxu0 %v573
    %853 = vmatpush.bf16.msra.mxu0 %v565
    %854 = vmatmul.bf16.gmra.mxu0 %v50
    %v855 = vpop.f32.mrf.mxu0
    %v856 = vadd.f32 0.0, %v855
    %v857 = vpop.f32.mrf.mxu0
    %858 = vdwg.mxu0
    %859 = vmatpush.bf16.msra.mxu0 %v685
    %860 = vmatpush.bf16.msra.mxu0 %v677
    %861 = vmatpush.bf16.msra.mxu0 %v669
    %862 = vmatpush.bf16.msra.mxu0 %v661
    %863 = vmatpush.bf16.msra.mxu0 %v653
    %864 = vmatpush.bf16.msra.mxu0 %v645
    %865 = vmatpush.bf16.msra.mxu0 %v637
    %866 = vmatpush.bf16.msra.mxu0 %v629
    %867 = vmatmul.bf16.gmra.mxu0 %v51
    %v868 = vpop.f32.mrf.mxu0
    %v869 = vadd.f32 %v856, %v868
    %v870 = vpop.f32.mrf.mxu0
    %871 = vdwg.mxu0
    %872 = vmatpush.bf16.msra.mxu0 %v622
    %873 = vmatpush.bf16.msra.mxu0 %v614
    %874 = vmatpush.bf16.msra.mxu0 %v606
    %875 = vmatpush.bf16.msra.mxu0 %v598
    %876 = vmatpush.bf16.msra.mxu0 %v590
    %877 = vmatpush.bf16.msra.mxu0 %v582
    %878 = vmatpush.bf16.msra.mxu0 %v574
    %879 = vmatpush.bf16.msra.mxu0 %v566
    %880 = vmatmul.bf16.gmra.mxu0 %v50
    %v881 = vpop.f32.mrf.mxu0
    %v882 = vadd.f32 0.0, %v881
    %v883 = vpop.f32.mrf.mxu0
    %884 = vdwg.mxu0
    %885 = vmatpush.bf16.msra.mxu0 %v686
    %886 = vmatpush.bf16.msra.mxu0 %v678
    %887 = vmatpush.bf16.msra.mxu0 %v670
    %888 = vmatpush.bf16.msra.mxu0 %v662
    %889 = vmatpush.bf16.msra.mxu0 %v654
    %890 = vmatpush.bf16.msra.mxu0 %v646
    %891 = vmatpush.bf16.msra.mxu0 %v638
    %892 = vmatpush.bf16.msra.mxu0 %v630
    %893 = vmatmul.bf16.gmra.mxu0 %v51
    %v894 = vpop.f32.mrf.mxu0
    %v895 = vadd.f32 %v882, %v894
    %v896 = vpop.f32.mrf.mxu0
    %897 = vdwg.mxu0
    %898 = vmatpush.bf16.msra.mxu0 %v623
    %899 = vmatpush.bf16.msra.mxu0 %v615
    %900 = vmatpush.bf16.msra.mxu0 %v607
    %901 = vmatpush.bf16.msra.mxu0 %v599
    %902 = vmatpush.bf16.msra.mxu0 %v591
    %903 = vmatpush.bf16.msra.mxu0 %v583
    %904 = vmatpush.bf16.msra.mxu0 %v575
    %905 = vmatpush.bf16.msra.mxu0 %v567
    %906 = vmatmul.bf16.gmra.mxu0 %v50
    %v907 = vpop.f32.mrf.mxu0
    %v908 = vadd.f32 0.0, %v907
    %v909 = vpop.f32.mrf.mxu0
    %910 = vdwg.mxu0
    %911 = vmatpush.bf16.msra.mxu0 %v687
    %912 = vmatpush.bf16.msra.mxu0 %v679
    %913 = vmatpush.bf16.msra.mxu0 %v671
    %914 = vmatpush.bf16.msra.mxu0 %v663
    %915 = vmatpush.bf16.msra.mxu0 %v655
    %916 = vmatpush.bf16.msra.mxu0 %v647
    %917 = vmatpush.bf16.msra.mxu0 %v639
    %918 = vmatpush.bf16.msra.mxu0 %v631
    %919 = vmatmul.bf16.gmra.mxu0 %v51
    %v920 = vpop.f32.mrf.mxu0
    %v921 = vadd.f32 %v908, %v920
    %v922 = vpop.f32.mrf.mxu0
    %923 = vdwg.mxu0
    %924 = vmatpush.bf16.msra.mxu0 %v624
    %925 = vmatpush.bf16.msra.mxu0 %v616
    %926 = vmatpush.bf16.msra.mxu0 %v608
    %927 = vmatpush.bf16.msra.mxu0 %v600
    %928 = vmatpush.bf16.msra.mxu0 %v592
    %929 = vmatpush.bf16.msra.mxu0 %v584
    %930 = vmatpush.bf16.msra.mxu0 %v576
    %931 = vmatpush.bf16.msra.mxu0 %v568
    %932 = vmatmul.bf16.gmra.mxu0 %v50
    %v933 = vpop.f32.mrf.mxu0
    %v934 = vadd.f32 0.0, %v933
    %v935 = vpop.f32.mrf.mxu0
    %936 = vdwg.mxu0
    %937 = vmatpush.bf16.msra.mxu0 %v688
    %938 = vmatpush.bf16.msra.mxu0 %v680
    %939 = vmatpush.bf16.msra.mxu0 %v672
    %940 = vmatpush.bf16.msra.mxu0 %v664
    %941 = vmatpush.bf16.msra.mxu0 %v656
    %942 = vmatpush.bf16.msra.mxu0 %v648
    %943 = vmatpush.bf16.msra.mxu0 %v640
    %944 = vmatpush.bf16.msra.mxu0 %v632
    %945 = vmatmul.bf16.gmra.mxu0 %v51
    %v946 = vpop.f32.mrf.mxu0
    %v947 = vadd.f32 %v934, %v946
    %v948 = vpop.f32.mrf.mxu0
    %949 = vdwg.mxu0
    %950 = vmatpush.bf16.msra.mxu0 %v625
    %951 = vmatpush.bf16.msra.mxu0 %v617
    %952 = vmatpush.bf16.msra.mxu0 %v609
    %953 = vmatpush.bf16.msra.mxu0 %v601
    %954 = vmatpush.bf16.msra.mxu0 %v593
    %955 = vmatpush.bf16.msra.mxu0 %v585
    %956 = vmatpush.bf16.msra.mxu0 %v577
    %957 = vmatpush.bf16.msra.mxu0 %v569
    %958 = vmatmul.bf16.gmra.mxu0 %v50
    %v959 = vpop.f32.mrf.mxu0
    %v960 = vadd.f32 0.0, %v959
    %v961 = vpop.f32.mrf.mxu0
    %962 = vdwg.mxu0
    %963 = vmatpush.bf16.msra.mxu0 %v689
    %964 = vmatpush.bf16.msra.mxu0 %v681
    %965 = vmatpush.bf16.msra.mxu0 %v673
    %966 = vmatpush.bf16.msra.mxu0 %v665
    %967 = vmatpush.bf16.msra.mxu0 %v657
    %968 = vmatpush.bf16.msra.mxu0 %v649
    %969 = vmatpush.bf16.msra.mxu0 %v641
    %970 = vmatpush.bf16.msra.mxu0 %v633
    %971 = vmatmul.bf16.gmra.mxu0 %v51
    %v972 = vpop.f32.mrf.mxu0
    %v973 = vadd.f32 %v960, %v972
    %v974 = vpop.f32.mrf.mxu0
    %975 = vdwg.mxu0
    %976 = vmatpush.bf16.msra.mxu0 %v626
    %977 = vmatpush.bf16.msra.mxu0 %v618
    %978 = vmatpush.bf16.msra.mxu0 %v610
    %979 = vmatpush.bf16.msra.mxu0 %v602
    %980 = vmatpush.bf16.msra.mxu0 %v594
    %981 = vmatpush.bf16.msra.mxu0 %v586
    %982 = vmatpush.bf16.msra.mxu0 %v578
    %983 = vmatpush.bf16.msra.mxu0 %v570
    %984 = vmatmul.bf16.gmra.mxu0 %v50
    %v985 = vpop.f32.mrf.mxu0
    %v986 = vadd.f32 0.0, %v985
    %v987 = vpop.f32.mrf.mxu0
    %988 = vdwg.mxu0
    %989 = vmatpush.bf16.msra.mxu0 %v690
    %990 = vmatpush.bf16.msra.mxu0 %v682
    %991 = vmatpush.bf16.msra.mxu0 %v674
    %992 = vmatpush.bf16.msra.mxu0 %v666
    %993 = vmatpush.bf16.msra.mxu0 %v658
    %994 = vmatpush.bf16.msra.mxu0 %v650
    %995 = vmatpush.bf16.msra.mxu0 %v642
    %996 = vmatpush.bf16.msra.mxu0 %v634
    %997 = vmatmul.bf16.gmra.mxu0 %v51
    %v998 = vpop.f32.mrf.mxu0
    %v999 = vadd.f32 %v986, %v998
    %v1000 = vpop.f32.mrf.mxu0
    %1001 = vdwg.mxu0
    %1002 = vmatpush.bf16.msra.mxu0 %v627
    %1003 = vmatpush.bf16.msra.mxu0 %v619
    %1004 = vmatpush.bf16.msra.mxu0 %v611
    %1005 = vmatpush.bf16.msra.mxu0 %v603
    %1006 = vmatpush.bf16.msra.mxu0 %v595
    %1007 = vmatpush.bf16.msra.mxu0 %v587
    %1008 = vmatpush.bf16.msra.mxu0 %v579
    %1009 = vmatpush.bf16.msra.mxu0 %v571
    %1010 = vmatmul.bf16.gmra.mxu0 %v50
    %v1011 = vpop.f32.mrf.mxu0
    %v1012 = vadd.f32 0.0, %v1011
    %v1013 = vpop.f32.mrf.mxu0
    %1014 = vdwg.mxu0
    %1015 = vmatpush.bf16.msra.mxu0 %v691
    %1016 = vmatpush.bf16.msra.mxu0 %v683
    %1017 = vmatpush.bf16.msra.mxu0 %v675
    %1018 = vmatpush.bf16.msra.mxu0 %v667
    %1019 = vmatpush.bf16.msra.mxu0 %v659
    %1020 = vmatpush.bf16.msra.mxu0 %v651
    %1021 = vmatpush.bf16.msra.mxu0 %v643
    %1022 = vmatpush.bf16.msra.mxu0 %v635
    %1023 = vmatmul.bf16.gmra.mxu0 %v51
    %v1024 = vpop.f32.mrf.mxu0
    %v1025 = vadd.f32 %v1012, %v1024
    %v1026 = vpop.f32.mrf.mxu0
    %1027 = vdwg.mxu0
    %v1036 = vrot.slane %v869, 7
    %v1037 = vrot.slane %v895, 6
    %v1038 = vrot.slane %v921, 5
    %v1039 = vrot.slane %v947, 4
    %v1040 = vrot.slane %v973, 3
    %v1041 = vrot.slane %v999, 2
    %v1042 = vrot.slane %v1025, 1
    %vm1043 = vcmask 1040384
    %v1044 = vsel %vm1043, %v843, %v1036
    %vm1045 = vcmask 1042434
    %v1046 = vsel %vm1045, %v1037, %v1038
    %vm1047 = vcmask 1041408
    %v1048 = vsel %vm1047, %v1044, %v1046
    %vm1049 = vcmask 1044484
    %v1050 = vsel %vm1049, %v1039, %v1040
    %vm1051 = vcmask 1046534
    %v1052 = vsel %vm1051, %v1041, %v1042
    %vm1053 = vcmask 1045508
    %v1054 = vsel %vm1053, %v1050, %v1052
    %vm1055 = vcmask 1043456
    %v1056 = vsel %vm1055, %v1048, %v1054
    %v1058 = vadd.f32 %v44, %v1056
    %v1059 = vxor.u32 %v1058, 2147483648
    %v1060 = vmul.f32 %v1059, 1.442695
    %v1061 = vpow.pop %v1060
    %v1062 = vadd.f32 %v1061, 1.0
    %v1063 = vrcp.pop %v1062
    %v1064 = vmul.f32 %v1062, %v1063
    %v1065 = vsub.f32 1.0, %v1064
    %v1066 = vmul.f32 %v1063, %v1065
    %v1067 = vadd.f32 %v1063, %v1066
    %vm1068 = vweird.f32 %v1062
    %vm1069 = vweird.f32 %v1063
    %vm1070 = vmor %vm1068, %vm1069
    %v1071 = vsel %vm1070, %v1063, %v1067
    %v1072 = vand.u32 2147483647, %v1062
    %vm1073 = vcmp.eq.f32.partialorder %v1072, 8.507059e+37
    %v1074 = vand.u32 %v1062, 2147483648
    %v1075 = vor.u32 1.1754944e-38, %v1074
    %v1076 = vsel %vm1073, %v1075, %v1071
    %v1077 = vmul.f32 1.0, %v1076
    %v1079 = vrot.slane %v1058, 6
    %v1081 = vtanh.pop %v1079
    %v1083 = vrot.slane %v1077, 2
    %v1085 = vmul.f32 %v1083, %v41
    %v1086 = vmul.f32 %v1077, %v1081
    %v1087 = vadd.f32 %v1085, %v1086
    %1088 = vst.msk [vmem:[#allocation3] sm:$0x3] %vm37, %v1087
    %v1089 = vtanh.pop %v1087
    %v1090 = vrot.slane %v1077, 4
    %v1092 = vmul.f32 %v1090, %v1089
    %1093 = vst.msk [vmem:[#allocation2] sm:$0x3] %vm37, %v1092
    %v1094 = vld [vmem:[#allocation2] sm:$0x3]
    %v1095 = vld [vmem:[#allocation3] sm:$0x3]
    %s1096 = scalar_lea.vmem %s0, 1
    %v1097 = vld [vmem:[%s1096] ss:$8 sm:$0xf]
    %v1098 = vld [vmem:[%s1096] ss:$8 sm:$0xf0]
    %v1099 = vor.u32 %v1097, %v1098
    %v1101 = vperm.slane %v1094, 0
    %v1102 = vperm.slane %v1094, 1
    %v1105 = vpack.c.bf16 %v1101, %v1101
    %v1106 = vpack.c.bf16 %v1102, %v1102
    %v1107 = vld [vmem:[#allocation4] sm:$0xff]
    %v1108 = vld [vmem:[#allocation4 + $0x8] sm:$0xff]
    %v1109 = vld [vmem:[#allocation4 + $0x10] sm:$0xff]
    %v1110 = vld [vmem:[#allocation4 + $0x18] sm:$0xff]
    %v1111 = vld [vmem:[#allocation4 + $0x20] sm:$0xff]
    %v1112 = vld [vmem:[#allocation4 + $0x28] sm:$0xff]
    %v1113 = vld [vmem:[#allocation4 + $0x30] sm:$0xff]
    %v1114 = vld [vmem:[#allocation4 + $0x38] sm:$0xff]
    %v1115 = vld [vmem:[#allocation4 + $0x40] sm:$0xff]
    %v1116 = vld [vmem:[#allocation4 + $0x48] sm:$0xff]
    %v1117 = vld [vmem:[#allocation4 + $0x50] sm:$0xff]
    %v1118 = vld [vmem:[#allocation4 + $0x58] sm:$0xff]
    %v1119 = vld [vmem:[#allocation4 + $0x60] sm:$0xff]
    %v1120 = vld [vmem:[#allocation4 + $0x68] sm:$0xff]
    %v1121 = vld [vmem:[#allocation4 + $0x70] sm:$0xff]
    %v1122 = vld [vmem:[#allocation4 + $0x78] sm:$0xff]
    %v1123 = vld [vmem:[#allocation4 + $0x80] sm:$0xff]
    %v1124 = vld [vmem:[#allocation4 + $0x88] sm:$0xff]
    %v1125 = vld [vmem:[#allocation4 + $0x90] sm:$0xff]
    %v1126 = vld [vmem:[#allocation4 + $0x98] sm:$0xff]
    %v1127 = vld [vmem:[#allocation4 + $0xa0] sm:$0xff]
    %v1128 = vld [vmem:[#allocation4 + $0xa8] sm:$0xff]
    %v1129 = vld [vmem:[#allocation4 + $0xb0] sm:$0xff]
    %v1130 = vld [vmem:[#allocation4 + $0xb8] sm:$0xff]
    %v1131 = vld [vmem:[#allocation4 + $0xc0] sm:$0xff]
    %v1132 = vld [vmem:[#allocation4 + $0xc8] sm:$0xff]
    %v1133 = vld [vmem:[#allocation4 + $0xd0] sm:$0xff]
    %v1134 = vld [vmem:[#allocation4 + $0xd8] sm:$0xff]
    %v1135 = vld [vmem:[#allocation4 + $0xe0] sm:$0xff]
    %v1136 = vld [vmem:[#allocation4 + $0xe8] sm:$0xff]
    %v1137 = vld [vmem:[#allocation4 + $0xf0] sm:$0xff]
    %v1138 = vld [vmem:[#allocation4 + $0xf8] sm:$0xff]
    %v1139 = vld [vmem:[#allocation4 + $0x100] sm:$0xff]
    %v1140 = vld [vmem:[#allocation4 + $0x108] sm:$0xff]
    %v1141 = vld [vmem:[#allocation4 + $0x110] sm:$0xff]
    %v1142 = vld [vmem:[#allocation4 + $0x118] sm:$0xff]
    %v1143 = vld [vmem:[#allocation4 + $0x120] sm:$0xff]
    %v1144 = vld [vmem:[#allocation4 + $0x128] sm:$0xff]
    %v1145 = vld [vmem:[#allocation4 + $0x130] sm:$0xff]
    %v1146 = vld [vmem:[#allocation4 + $0x138] sm:$0xff]
    %v1147 = vld [vmem:[#allocation4 + $0x140] sm:$0xff]
    %v1148 = vld [vmem:[#allocation4 + $0x148] sm:$0xff]
    %v1149 = vld [vmem:[#allocation4 + $0x150] sm:$0xff]
    %v1150 = vld [vmem:[#allocation4 + $0x158] sm:$0xff]
    %v1151 = vld [vmem:[#allocation4 + $0x160] sm:$0xff]
    %v1152 = vld [vmem:[#allocation4 + $0x168] sm:$0xff]
    %v1153 = vld [vmem:[#allocation4 + $0x170] sm:$0xff]
    %v1154 = vld [vmem:[#allocation4 + $0x178] sm:$0xff]
    %v1155 = vld [vmem:[#allocation4 + $0x180] sm:$0xff]
    %v1156 = vld [vmem:[#allocation4 + $0x188] sm:$0xff]
    %v1157 = vld [vmem:[#allocation4 + $0x190] sm:$0xff]
    %v1158 = vld [vmem:[#allocation4 + $0x198] sm:$0xff]
    %v1159 = vld [vmem:[#allocation4 + $0x1a0] sm:$0xff]
    %v1160 = vld [vmem:[#allocation4 + $0x1a8] sm:$0xff]
    %v1161 = vld [vmem:[#allocation4 + $0x1b0] sm:$0xff]
    %v1162 = vld [vmem:[#allocation4 + $0x1b8] sm:$0xff]
    %v1163 = vld [vmem:[#allocation4 + $0x1c0] sm:$0xff]
    %v1164 = vld [vmem:[#allocation4 + $0x1c8] sm:$0xff]
    %v1165 = vld [vmem:[#allocation4 + $0x1d0] sm:$0xff]
    %v1166 = vld [vmem:[#allocation4 + $0x1d8] sm:$0xff]
    %v1167 = vld [vmem:[#allocation4 + $0x1e0] sm:$0xff]
    %v1168 = vld [vmem:[#allocation4 + $0x1e8] sm:$0xff]
    %v1169 = vld [vmem:[#allocation4 + $0x1f0] sm:$0xff]
    %v1170 = vld [vmem:[#allocation4 + $0x1f8] sm:$0xff]
    %v1171 = vld [vmem:[#allocation4 + $0x200] sm:$0xff]
    %v1172 = vld [vmem:[#allocation4 + $0x208] sm:$0xff]
    %v1173 = vld [vmem:[#allocation4 + $0x210] sm:$0xff]
    %v1174 = vld [vmem:[#allocation4 + $0x218] sm:$0xff]
    %v1175 = vld [vmem:[#allocation4 + $0x220] sm:$0xff]
    %v1176 = vld [vmem:[#allocation4 + $0x228] sm:$0xff]
    %v1177 = vld [vmem:[#allocation4 + $0x230] sm:$0xff]
    %v1178 = vld [vmem:[#allocation4 + $0x238] sm:$0xff]
    %v1179 = vld [vmem:[#allocation4 + $0x240] sm:$0xff]
    %v1180 = vld [vmem:[#allocation4 + $0x248] sm:$0xff]
    %v1181 = vld [vmem:[#allocation4 + $0x250] sm:$0xff]
    %v1182 = vld [vmem:[#allocation4 + $0x258] sm:$0xff]
    %v1183 = vld [vmem:[#allocation4 + $0x260] sm:$0xff]
    %v1184 = vld [vmem:[#allocation4 + $0x268] sm:$0xff]
    %v1185 = vld [vmem:[#allocation4 + $0x270] sm:$0xff]
    %v1186 = vld [vmem:[#allocation4 + $0x278] sm:$0xff]
    %v1187 = vld [vmem:[#allocation4 + $0x280] sm:$0xff]
    %v1188 = vld [vmem:[#allocation4 + $0x288] sm:$0xff]
    %v1189 = vld [vmem:[#allocation4 + $0x290] sm:$0xff]
    %v1190 = vld [vmem:[#allocation4 + $0x298] sm:$0xff]
    %v1191 = vld [vmem:[#allocation4 + $0x2a0] sm:$0xff]
    %v1192 = vld [vmem:[#allocation4 + $0x2a8] sm:$0xff]
    %v1193 = vld [vmem:[#allocation4 + $0x2b0] sm:$0xff]
    %v1194 = vld [vmem:[#allocation4 + $0x2b8] sm:$0xff]
    %v1195 = vld [vmem:[#allocation4 + $0x2c0] sm:$0xff]
    %v1196 = vld [vmem:[#allocation4 + $0x2c8] sm:$0xff]
    %v1197 = vld [vmem:[#allocation4 + $0x2d0] sm:$0xff]
    %v1198 = vld [vmem:[#allocation4 + $0x2d8] sm:$0xff]
    %v1199 = vld [vmem:[#allocation4 + $0x2e0] sm:$0xff]
    %v1200 = vld [vmem:[#allocation4 + $0x2e8] sm:$0xff]
    %v1201 = vld [vmem:[#allocation4 + $0x2f0] sm:$0xff]
    %v1202 = vld [vmem:[#allocation4 + $0x2f8] sm:$0xff]
    %v1203 = vld [vmem:[#allocation4 + $0x300] sm:$0xff]
    %v1204 = vld [vmem:[#allocation4 + $0x308] sm:$0xff]
    %v1205 = vld [vmem:[#allocation4 + $0x310] sm:$0xff]
    %v1206 = vld [vmem:[#allocation4 + $0x318] sm:$0xff]
    %v1207 = vld [vmem:[#allocation4 + $0x320] sm:$0xff]
    %v1208 = vld [vmem:[#allocation4 + $0x328] sm:$0xff]
    %v1209 = vld [vmem:[#allocation4 + $0x330] sm:$0xff]
    %v1210 = vld [vmem:[#allocation4 + $0x338] sm:$0xff]
    %v1211 = vld [vmem:[#allocation4 + $0x340] sm:$0xff]
    %v1212 = vld [vmem:[#allocation4 + $0x348] sm:$0xff]
    %v1213 = vld [vmem:[#allocation4 + $0x350] sm:$0xff]
    %v1214 = vld [vmem:[#allocation4 + $0x358] sm:$0xff]
    %v1215 = vld [vmem:[#allocation4 + $0x360] sm:$0xff]
    %v1216 = vld [vmem:[#allocation4 + $0x368] sm:$0xff]
    %v1217 = vld [vmem:[#allocation4 + $0x370] sm:$0xff]
    %v1218 = vld [vmem:[#allocation4 + $0x378] sm:$0xff]
    %v1219 = vld [vmem:[#allocation4 + $0x380] sm:$0xff]
    %v1220 = vld [vmem:[#allocation4 + $0x388] sm:$0xff]
    %v1221 = vld [vmem:[#allocation4 + $0x390] sm:$0xff]
    %v1222 = vld [vmem:[#allocation4 + $0x398] sm:$0xff]
    %v1223 = vld [vmem:[#allocation4 + $0x3a0] sm:$0xff]
    %v1224 = vld [vmem:[#allocation4 + $0x3a8] sm:$0xff]
    %v1225 = vld [vmem:[#allocation4 + $0x3b0] sm:$0xff]
    %v1226 = vld [vmem:[#allocation4 + $0x3b8] sm:$0xff]
    %v1227 = vld [vmem:[#allocation4 + $0x3c0] sm:$0xff]
    %v1228 = vld [vmem:[#allocation4 + $0x3c8] sm:$0xff]
    %v1229 = vld [vmem:[#allocation4 + $0x3d0] sm:$0xff]
    %v1230 = vld [vmem:[#allocation4 + $0x3d8] sm:$0xff]
    %v1231 = vld [vmem:[#allocation4 + $0x3e0] sm:$0xff]
    %v1232 = vld [vmem:[#allocation4 + $0x3e8] sm:$0xff]
    %v1233 = vld [vmem:[#allocation4 + $0x3f0] sm:$0xff]
    %v1234 = vld [vmem:[#allocation4 + $0x3f8] sm:$0xff]
    %v1363 = vunpack.c.l.b16 %v1107
    %v1364 = vunpack.c.h.b16 %v1107
    %v1365 = vunpack.c.l.b16 %v1108
    %v1366 = vunpack.c.h.b16 %v1108
    %v1367 = vunpack.c.l.b16 %v1109
    %v1368 = vunpack.c.h.b16 %v1109
    %v1369 = vunpack.c.l.b16 %v1110
    %v1370 = vunpack.c.h.b16 %v1110
    %v1371 = vunpack.c.l.b16 %v1111
    %v1372 = vunpack.c.h.b16 %v1111
    %v1373 = vunpack.c.l.b16 %v1112
    %v1374 = vunpack.c.h.b16 %v1112
    %v1375 = vunpack.c.l.b16 %v1113
    %v1376 = vunpack.c.h.b16 %v1113
    %v1377 = vunpack.c.l.b16 %v1114
    %v1378 = vunpack.c.h.b16 %v1114
    %v1379 = vunpack.c.l.b16 %v1115
    %v1380 = vunpack.c.h.b16 %v1115
    %v1381 = vunpack.c.l.b16 %v1116
    %v1382 = vunpack.c.h.b16 %v1116
    %v1383 = vunpack.c.l.b16 %v1117
    %v1384 = vunpack.c.h.b16 %v1117
    %v1385 = vunpack.c.l.b16 %v1118
    %v1386 = vunpack.c.h.b16 %v1118
    %v1387 = vunpack.c.l.b16 %v1119
    %v1388 = vunpack.c.h.b16 %v1119
    %v1389 = vunpack.c.l.b16 %v1120
    %v1390 = vunpack.c.h.b16 %v1120
    %v1391 = vunpack.c.l.b16 %v1121
    %v1392 = vunpack.c.h.b16 %v1121
    %v1393 = vunpack.c.l.b16 %v1122
    %v1394 = vunpack.c.h.b16 %v1122
    %v1395 = vunpack.c.l.b16 %v1123
    %v1396 = vunpack.c.h.b16 %v1123
    %v1397 = vunpack.c.l.b16 %v1124
    %v1398 = vunpack.c.h.b16 %v1124
    %v1399 = vunpack.c.l.b16 %v1125
    %v1400 = vunpack.c.h.b16 %v1125
    %v1401 = vunpack.c.l.b16 %v1126
    %v1402 = vunpack.c.h.b16 %v1126
    %v1403 = vunpack.c.l.b16 %v1127
    %v1404 = vunpack.c.h.b16 %v1127
    %v1405 = vunpack.c.l.b16 %v1128
    %v1406 = vunpack.c.h.b16 %v1128
    %v1407 = vunpack.c.l.b16 %v1129
    %v1408 = vunpack.c.h.b16 %v1129
    %v1409 = vunpack.c.l.b16 %v1130
    %v1410 = vunpack.c.h.b16 %v1130
    %v1411 = vunpack.c.l.b16 %v1131
    %v1412 = vunpack.c.h.b16 %v1131
    %v1413 = vunpack.c.l.b16 %v1132
    %v1414 = vunpack.c.h.b16 %v1132
    %v1415 = vunpack.c.l.b16 %v1133
    %v1416 = vunpack.c.h.b16 %v1133
    %v1417 = vunpack.c.l.b16 %v1134
    %v1418 = vunpack.c.h.b16 %v1134
    %v1419 = vunpack.c.l.b16 %v1135
    %v1420 = vunpack.c.h.b16 %v1135
    %v1421 = vunpack.c.l.b16 %v1136
    %v1422 = vunpack.c.h.b16 %v1136
    %v1423 = vunpack.c.l.b16 %v1137
    %v1424 = vunpack.c.h.b16 %v1137
    %v1425 = vunpack.c.l.b16 %v1138
    %v1426 = vunpack.c.h.b16 %v1138
    %v1427 = vunpack.c.l.b16 %v1139
    %v1428 = vunpack.c.h.b16 %v1139
    %v1429 = vunpack.c.l.b16 %v1140
    %v1430 = vunpack.c.h.b16 %v1140
    %v1431 = vunpack.c.l.b16 %v1141
    %v1432 = vunpack.c.h.b16 %v1141
    %v1433 = vunpack.c.l.b16 %v1142
    %v1434 = vunpack.c.h.b16 %v1142
    %v1435 = vunpack.c.l.b16 %v1143
    %v1436 = vunpack.c.h.b16 %v1143
    %v1437 = vunpack.c.l.b16 %v1144
    %v1438 = vunpack.c.h.b16 %v1144
    %v1439 = vunpack.c.l.b16 %v1145
    %v1440 = vunpack.c.h.b16 %v1145
    %v1441 = vunpack.c.l.b16 %v1146
    %v1442 = vunpack.c.h.b16 %v1146
    %v1443 = vunpack.c.l.b16 %v1147
    %v1444 = vunpack.c.h.b16 %v1147
    %v1445 = vunpack.c.l.b16 %v1148
    %v1446 = vunpack.c.h.b16 %v1148
    %v1447 = vunpack.c.l.b16 %v1149
    %v1448 = vunpack.c.h.b16 %v1149
    %v1449 = vunpack.c.l.b16 %v1150
    %v1450 = vunpack.c.h.b16 %v1150
    %v1451 = vunpack.c.l.b16 %v1151
    %v1452 = vunpack.c.h.b16 %v1151
    %v1453 = vunpack.c.l.b16 %v1152
    %v1454 = vunpack.c.h.b16 %v1152
    %v1455 = vunpack.c.l.b16 %v1153
    %v1456 = vunpack.c.h.b16 %v1153
    %v1457 = vunpack.c.l.b16 %v1154
    %v1458 = vunpack.c.h.b16 %v1154
    %v1459 = vunpack.c.l.b16 %v1155
    %v1460 = vunpack.c.h.b16 %v1155
    %v1461 = vunpack.c.l.b16 %v1156
    %v1462 = vunpack.c.h.b16 %v1156
    %v1463 = vunpack.c.l.b16 %v1157
    %v1464 = vunpack.c.h.b16 %v1157
    %v1465 = vunpack.c.l.b16 %v1158
    %v1466 = vunpack.c.h.b16 %v1158
    %v1467 = vunpack.c.l.b16 %v1159
    %v1468 = vunpack.c.h.b16 %v1159
    %v1469 = vunpack.c.l.b16 %v1160
    %v1470 = vunpack.c.h.b16 %v1160
    %v1471 = vunpack.c.l.b16 %v1161
    %v1472 = vunpack.c.h.b16 %v1161
    %v1473 = vunpack.c.l.b16 %v1162
    %v1474 = vunpack.c.h.b16 %v1162
    %v1475 = vunpack.c.l.b16 %v1163
    %v1476 = vunpack.c.h.b16 %v1163
    %v1477 = vunpack.c.l.b16 %v1164
    %v1478 = vunpack.c.h.b16 %v1164
    %v1479 = vunpack.c.l.b16 %v1165
    %v1480 = vunpack.c.h.b16 %v1165
    %v1481 = vunpack.c.l.b16 %v1166
    %v1482 = vunpack.c.h.b16 %v1166
    %v1483 = vunpack.c.l.b16 %v1167
    %v1484 = vunpack.c.h.b16 %v1167
    %v1485 = vunpack.c.l.b16 %v1168
    %v1486 = vunpack.c.h.b16 %v1168
    %v1487 = vunpack.c.l.b16 %v1169
    %v1488 = vunpack.c.h.b16 %v1169
    %v1489 = vunpack.c.l.b16 %v1170
    %v1490 = vunpack.c.h.b16 %v1170
    %v1491 = vunpack.c.l.b16 %v1171
    %v1492 = vunpack.c.h.b16 %v1171
    %v1493 = vunpack.c.l.b16 %v1172
    %v1494 = vunpack.c.h.b16 %v1172
    %v1495 = vunpack.c.l.b16 %v1173
    %v1496 = vunpack.c.h.b16 %v1173
    %v1497 = vunpack.c.l.b16 %v1174
    %v1498 = vunpack.c.h.b16 %v1174
    %v1499 = vunpack.c.l.b16 %v1175
    %v1500 = vunpack.c.h.b16 %v1175
    %v1501 = vunpack.c.l.b16 %v1176
    %v1502 = vunpack.c.h.b16 %v1176
    %v1503 = vunpack.c.l.b16 %v1177
    %v1504 = vunpack.c.h.b16 %v1177
    %v1505 = vunpack.c.l.b16 %v1178
    %v1506 = vunpack.c.h.b16 %v1178
    %v1507 = vunpack.c.l.b16 %v1179
    %v1508 = vunpack.c.h.b16 %v1179
    %v1509 = vunpack.c.l.b16 %v1180
    %v1510 = vunpack.c.h.b16 %v1180
    %v1511 = vunpack.c.l.b16 %v1181
    %v1512 = vunpack.c.h.b16 %v1181
    %v1513 = vunpack.c.l.b16 %v1182
    %v1514 = vunpack.c.h.b16 %v1182
    %v1515 = vunpack.c.l.b16 %v1183
    %v1516 = vunpack.c.h.b16 %v1183
    %v1517 = vunpack.c.l.b16 %v1184
    %v1518 = vunpack.c.h.b16 %v1184
    %v1519 = vunpack.c.l.b16 %v1185
    %v1520 = vunpack.c.h.b16 %v1185
    %v1521 = vunpack.c.l.b16 %v1186
    %v1522 = vunpack.c.h.b16 %v1186
    %v1523 = vunpack.c.l.b16 %v1187
    %v1524 = vunpack.c.h.b16 %v1187
    %v1525 = vunpack.c.l.b16 %v1188
    %v1526 = vunpack.c.h.b16 %v1188
    %v1527 = vunpack.c.l.b16 %v1189
    %v1528 = vunpack.c.h.b16 %v1189
    %v1529 = vunpack.c.l.b16 %v1190
    %v1530 = vunpack.c.h.b16 %v1190
    %v1531 = vunpack.c.l.b16 %v1191
    %v1532 = vunpack.c.h.b16 %v1191
    %v1533 = vunpack.c.l.b16 %v1192
    %v1534 = vunpack.c.h.b16 %v1192
    %v1535 = vunpack.c.l.b16 %v1193
    %v1536 = vunpack.c.h.b16 %v1193
    %v1537 = vunpack.c.l.b16 %v1194
    %v1538 = vunpack.c.h.b16 %v1194
    %v1539 = vunpack.c.l.b16 %v1195
    %v1540 = vunpack.c.h.b16 %v1195
    %v1541 = vunpack.c.l.b16 %v1196
    %v1542 = vunpack.c.h.b16 %v1196
    %v1543 = vunpack.c.l.b16 %v1197
    %v1544 = vunpack.c.h.b16 %v1197
    %v1545 = vunpack.c.l.b16 %v1198
    %v1546 = vunpack.c.h.b16 %v1198
    %v1547 = vunpack.c.l.b16 %v1199
    %v1548 = vunpack.c.h.b16 %v1199
    %v1549 = vunpack.c.l.b16 %v1200
    %v1550 = vunpack.c.h.b16 %v1200
    %v1551 = vunpack.c.l.b16 %v1201
    %v1552 = vunpack.c.h.b16 %v1201
    %v1553 = vunpack.c.l.b16 %v1202
    %v1554 = vunpack.c.h.b16 %v1202
    %v1555 = vunpack.c.l.b16 %v1203
    %v1556 = vunpack.c.h.b16 %v1203
    %v1557 = vunpack.c.l.b16 %v1204
    %v1558 = vunpack.c.h.b16 %v1204
    %v1559 = vunpack.c.l.b16 %v1205
    %v1560 = vunpack.c.h.b16 %v1205
    %v1561 = vunpack.c.l.b16 %v1206
    %v1562 = vunpack.c.h.b16 %v1206
    %v1563 = vunpack.c.l.b16 %v1207
    %v1564 = vunpack.c.h.b16 %v1207
    %v1565 = vunpack.c.l.b16 %v1208
    %v1566 = vunpack.c.h.b16 %v1208
    %v1567 = vunpack.c.l.b16 %v1209
    %v1568 = vunpack.c.h.b16 %v1209
    %v1569 = vunpack.c.l.b16 %v1210
    %v1570 = vunpack.c.h.b16 %v1210
    %v1571 = vunpack.c.l.b16 %v1211
    %v1572 = vunpack.c.h.b16 %v1211
    %v1573 = vunpack.c.l.b16 %v1212
    %v1574 = vunpack.c.h.b16 %v1212
    %v1575 = vunpack.c.l.b16 %v1213
    %v1576 = vunpack.c.h.b16 %v1213
    %v1577 = vunpack.c.l.b16 %v1214
    %v1578 = vunpack.c.h.b16 %v1214
    %v1579 = vunpack.c.l.b16 %v1215
    %v1580 = vunpack.c.h.b16 %v1215
    %v1581 = vunpack.c.l.b16 %v1216
    %v1582 = vunpack.c.h.b16 %v1216
    %v1583 = vunpack.c.l.b16 %v1217
    %v1584 = vunpack.c.h.b16 %v1217
    %v1585 = vunpack.c.l.b16 %v1218
    %v1586 = vunpack.c.h.b16 %v1218
    %v1587 = vunpack.c.l.b16 %v1219
    %v1588 = vunpack.c.h.b16 %v1219
    %v1589 = vunpack.c.l.b16 %v1220
    %v1590 = vunpack.c.h.b16 %v1220
    %v1591 = vunpack.c.l.b16 %v1221
    %v1592 = vunpack.c.h.b16 %v1221
    %v1593 = vunpack.c.l.b16 %v1222
    %v1594 = vunpack.c.h.b16 %v1222
    %v1595 = vunpack.c.l.b16 %v1223
    %v1596 = vunpack.c.h.b16 %v1223
    %v1597 = vunpack.c.l.b16 %v1224
    %v1598 = vunpack.c.h.b16 %v1224
    %v1599 = vunpack.c.l.b16 %v1225
    %v1600 = vunpack.c.h.b16 %v1225
    %v1601 = vunpack.c.l.b16 %v1226
    %v1602 = vunpack.c.h.b16 %v1226
    %v1603 = vunpack.c.l.b16 %v1227
    %v1604 = vunpack.c.h.b16 %v1227
    %v1605 = vunpack.c.l.b16 %v1228
    %v1606 = vunpack.c.h.b16 %v1228
    %v1607 = vunpack.c.l.b16 %v1229
    %v1608 = vunpack.c.h.b16 %v1229
    %v1609 = vunpack.c.l.b16 %v1230
    %v1610 = vunpack.c.h.b16 %v1230
    %v1611 = vunpack.c.l.b16 %v1231
    %v1612 = vunpack.c.h.b16 %v1231
    %v1613 = vunpack.c.l.b16 %v1232
    %v1614 = vunpack.c.h.b16 %v1232
    %v1615 = vunpack.c.l.b16 %v1233
    %v1616 = vunpack.c.h.b16 %v1233
    %v1617 = vunpack.c.l.b16 %v1234
    %v1618 = vunpack.c.h.b16 %v1234
    %v1619 = vpack.c.b16 %v1371, %v1363
    %v1620 = vpack.c.b16 %v1372, %v1364
    %v1621 = vpack.c.b16 %v1373, %v1365
    %v1622 = vpack.c.b16 %v1374, %v1366
    %v1623 = vpack.c.b16 %v1375, %v1367
    %v1624 = vpack.c.b16 %v1376, %v1368
    %v1625 = vpack.c.b16 %v1377, %v1369
    %v1626 = vpack.c.b16 %v1378, %v1370
    %v1627 = vpack.c.b16 %v1387, %v1379
    %v1628 = vpack.c.b16 %v1388, %v1380
    %v1629 = vpack.c.b16 %v1389, %v1381
    %v1630 = vpack.c.b16 %v1390, %v1382
    %v1631 = vpack.c.b16 %v1391, %v1383
    %v1632 = vpack.c.b16 %v1392, %v1384
    %v1633 = vpack.c.b16 %v1393, %v1385
    %v1634 = vpack.c.b16 %v1394, %v1386
    %v1635 = vpack.c.b16 %v1403, %v1395
    %v1636 = vpack.c.b16 %v1404, %v1396
    %v1637 = vpack.c.b16 %v1405, %v1397
    %v1638 = vpack.c.b16 %v1406, %v1398
    %v1639 = vpack.c.b16 %v1407, %v1399
    %v1640 = vpack.c.b16 %v1408, %v1400
    %v1641 = vpack.c.b16 %v1409, %v1401
    %v1642 = vpack.c.b16 %v1410, %v1402
    %v1643 = vpack.c.b16 %v1419, %v1411
    %v1644 = vpack.c.b16 %v1420, %v1412
    %v1645 = vpack.c.b16 %v1421, %v1413
    %v1646 = vpack.c.b16 %v1422, %v1414
    %v1647 = vpack.c.b16 %v1423, %v1415
    %v1648 = vpack.c.b16 %v1424, %v1416
    %v1649 = vpack.c.b16 %v1425, %v1417
    %v1650 = vpack.c.b16 %v1426, %v1418
    %v1651 = vpack.c.b16 %v1435, %v1427
    %v1652 = vpack.c.b16 %v1436, %v1428
    %v1653 = vpack.c.b16 %v1437, %v1429
    %v1654 = vpack.c.b16 %v1438, %v1430
    %v1655 = vpack.c.b16 %v1439, %v1431
    %v1656 = vpack.c.b16 %v1440, %v1432
    %v1657 = vpack.c.b16 %v1441, %v1433
    %v1658 = vpack.c.b16 %v1442, %v1434
    %v1659 = vpack.c.b16 %v1451, %v1443
    %v1660 = vpack.c.b16 %v1452, %v1444
    %v1661 = vpack.c.b16 %v1453, %v1445
    %v1662 = vpack.c.b16 %v1454, %v1446
    %v1663 = vpack.c.b16 %v1455, %v1447
    %v1664 = vpack.c.b16 %v1456, %v1448
    %v1665 = vpack.c.b16 %v1457, %v1449
    %v1666 = vpack.c.b16 %v1458, %v1450
    %v1667 = vpack.c.b16 %v1467, %v1459
    %v1668 = vpack.c.b16 %v1468, %v1460
    %v1669 = vpack.c.b16 %v1469, %v1461
    %v1670 = vpack.c.b16 %v1470, %v1462
    %v1671 = vpack.c.b16 %v1471, %v1463
    %v1672 = vpack.c.b16 %v1472, %v1464
    %v1673 = vpack.c.b16 %v1473, %v1465
    %v1674 = vpack.c.b16 %v1474, %v1466
    %v1675 = vpack.c.b16 %v1483, %v1475
    %v1676 = vpack.c.b16 %v1484, %v1476
    %v1677 = vpack.c.b16 %v1485, %v1477
    %v1678 = vpack.c.b16 %v1486, %v1478
    %v1679 = vpack.c.b16 %v1487, %v1479
    %v1680 = vpack.c.b16 %v1488, %v1480
    %v1681 = vpack.c.b16 %v1489, %v1481
    %v1682 = vpack.c.b16 %v1490, %v1482
    %v1683 = vpack.c.b16 %v1499, %v1491
    %v1684 = vpack.c.b16 %v1500, %v1492
    %v1685 = vpack.c.b16 %v1501, %v1493
    %v1686 = vpack.c.b16 %v1502, %v1494
    %v1687 = vpack.c.b16 %v1503, %v1495
    %v1688 = vpack.c.b16 %v1504, %v1496
    %v1689 = vpack.c.b16 %v1505, %v1497
    %v1690 = vpack.c.b16 %v1506, %v1498
    %v1691 = vpack.c.b16 %v1515, %v1507
    %v1692 = vpack.c.b16 %v1516, %v1508
    %v1693 = vpack.c.b16 %v1517, %v1509
    %v1694 = vpack.c.b16 %v1518, %v1510
    %v1695 = vpack.c.b16 %v1519, %v1511
    %v1696 = vpack.c.b16 %v1520, %v1512
    %v1697 = vpack.c.b16 %v1521, %v1513
    %v1698 = vpack.c.b16 %v1522, %v1514
    %v1699 = vpack.c.b16 %v1531, %v1523
    %v1700 = vpack.c.b16 %v1532, %v1524
    %v1701 = vpack.c.b16 %v1533, %v1525
    %v1702 = vpack.c.b16 %v1534, %v1526
    %v1703 = vpack.c.b16 %v1535, %v1527
    %v1704 = vpack.c.b16 %v1536, %v1528
    %v1705 = vpack.c.b16 %v1537, %v1529
    %v1706 = vpack.c.b16 %v1538, %v1530
    %v1707 = vpack.c.b16 %v1547, %v1539
    %v1708 = vpack.c.b16 %v1548, %v1540
    %v1709 = vpack.c.b16 %v1549, %v1541
    %v1710 = vpack.c.b16 %v1550, %v1542
    %v1711 = vpack.c.b16 %v1551, %v1543
    %v1712 = vpack.c.b16 %v1552, %v1544
    %v1713 = vpack.c.b16 %v1553, %v1545
    %v1714 = vpack.c.b16 %v1554, %v1546
    %v1715 = vpack.c.b16 %v1563, %v1555
    %v1716 = vpack.c.b16 %v1564, %v1556
    %v1717 = vpack.c.b16 %v1565, %v1557
    %v1718 = vpack.c.b16 %v1566, %v1558
    %v1719 = vpack.c.b16 %v1567, %v1559
    %v1720 = vpack.c.b16 %v1568, %v1560
    %v1721 = vpack.c.b16 %v1569, %v1561
    %v1722 = vpack.c.b16 %v1570, %v1562
    %v1723 = vpack.c.b16 %v1579, %v1571
    %v1724 = vpack.c.b16 %v1580, %v1572
    %v1725 = vpack.c.b16 %v1581, %v1573
    %v1726 = vpack.c.b16 %v1582, %v1574
    %v1727 = vpack.c.b16 %v1583, %v1575
    %v1728 = vpack.c.b16 %v1584, %v1576
    %v1729 = vpack.c.b16 %v1585, %v1577
    %v1730 = vpack.c.b16 %v1586, %v1578
    %v1731 = vpack.c.b16 %v1595, %v1587
    %v1732 = vpack.c.b16 %v1596, %v1588
    %v1733 = vpack.c.b16 %v1597, %v1589
    %v1734 = vpack.c.b16 %v1598, %v1590
    %v1735 = vpack.c.b16 %v1599, %v1591
    %v1736 = vpack.c.b16 %v1600, %v1592
    %v1737 = vpack.c.b16 %v1601, %v1593
    %v1738 = vpack.c.b16 %v1602, %v1594
    %v1739 = vpack.c.b16 %v1611, %v1603
    %v1740 = vpack.c.b16 %v1612, %v1604
    %v1741 = vpack.c.b16 %v1613, %v1605
    %v1742 = vpack.c.b16 %v1614, %v1606
    %v1743 = vpack.c.b16 %v1615, %v1607
    %v1744 = vpack.c.b16 %v1616, %v1608
    %v1745 = vpack.c.b16 %v1617, %v1609
    %v1746 = vpack.c.b16 %v1618, %v1610
    %1875 = vmatpush.bf16.msra.mxu0 %v1675
    %1876 = vmatpush.bf16.msra.mxu0 %v1667
    %1877 = vmatpush.bf16.msra.mxu0 %v1659
    %1878 = vmatpush.bf16.msra.mxu0 %v1651
    %1879 = vmatpush.bf16.msra.mxu0 %v1643
    %1880 = vmatpush.bf16.msra.mxu0 %v1635
    %1881 = vmatpush.bf16.msra.mxu0 %v1627
    %1882 = vmatpush.bf16.msra.mxu0 %v1619
    %1883 = vmatmul.bf16.gmra.mxu0 %v1105
    %v1884 = vpop.f32.mrf.mxu0
    %v1885 = vadd.f32 0.0, %v1884
    %v1886 = vpop.f32.mrf.mxu0
    %1887 = vdwg.mxu0
    %1888 = vmatpush.bf16.msra.mxu0 %v1739
    %1889 = vmatpush.bf16.msra.mxu0 %v1731
    %1890 = vmatpush.bf16.msra.mxu0 %v1723
    %1891 = vmatpush.bf16.msra.mxu0 %v1715
    %1892 = vmatpush.bf16.msra.mxu0 %v1707
    %1893 = vmatpush.bf16.msra.mxu0 %v1699
    %1894 = vmatpush.bf16.msra.mxu0 %v1691
    %1895 = vmatpush.bf16.msra.mxu0 %v1683
    %1896 = vmatmul.bf16.gmra.mxu0 %v1106
    %v1897 = vpop.f32.mrf.mxu0
    %v1898 = vadd.f32 %v1885, %v1897
    %v1899 = vpop.f32.mrf.mxu0
    %1900 = vdwg.mxu0
    %1901 = vmatpush.bf16.msra.mxu0 %v1676
    %1902 = vmatpush.bf16.msra.mxu0 %v1668
    %1903 = vmatpush.bf16.msra.mxu0 %v1660
    %1904 = vmatpush.bf16.msra.mxu0 %v1652
    %1905 = vmatpush.bf16.msra.mxu0 %v1644
    %1906 = vmatpush.bf16.msra.mxu0 %v1636
    %1907 = vmatpush.bf16.msra.mxu0 %v1628
    %1908 = vmatpush.bf16.msra.mxu0 %v1620
    %1909 = vmatmul.bf16.gmra.mxu0 %v1105
    %v1910 = vpop.f32.mrf.mxu0
    %v1911 = vadd.f32 0.0, %v1910
    %v1912 = vpop.f32.mrf.mxu0
    %1913 = vdwg.mxu0
    %1914 = vmatpush.bf16.msra.mxu0 %v1740
    %1915 = vmatpush.bf16.msra.mxu0 %v1732
    %1916 = vmatpush.bf16.msra.mxu0 %v1724
    %1917 = vmatpush.bf16.msra.mxu0 %v1716
    %1918 = vmatpush.bf16.msra.mxu0 %v1708
    %1919 = vmatpush.bf16.msra.mxu0 %v1700
    %1920 = vmatpush.bf16.msra.mxu0 %v1692
    %1921 = vmatpush.bf16.msra.mxu0 %v1684
    %1922 = vmatmul.bf16.gmra.mxu0 %v1106
    %v1923 = vpop.f32.mrf.mxu0
    %v1924 = vadd.f32 %v1911, %v1923
    %v1925 = vpop.f32.mrf.mxu0
    %1926 = vdwg.mxu0
    %1927 = vmatpush.bf16.msra.mxu0 %v1677
    %1928 = vmatpush.bf16.msra.mxu0 %v1669
    %1929 = vmatpush.bf16.msra.mxu0 %v1661
    %1930 = vmatpush.bf16.msra.mxu0 %v1653
    %1931 = vmatpush.bf16.msra.mxu0 %v1645
    %1932 = vmatpush.bf16.msra.mxu0 %v1637
    %1933 = vmatpush.bf16.msra.mxu0 %v1629
    %1934 = vmatpush.bf16.msra.mxu0 %v1621
    %1935 = vmatmul.bf16.gmra.mxu0 %v1105
    %v1936 = vpop.f32.mrf.mxu0
    %v1937 = vadd.f32 0.0, %v1936
    %v1938 = vpop.f32.mrf.mxu0
    %1939 = vdwg.mxu0
    %1940 = vmatpush.bf16.msra.mxu0 %v1741
    %1941 = vmatpush.bf16.msra.mxu0 %v1733
    %1942 = vmatpush.bf16.msra.mxu0 %v1725
    %1943 = vmatpush.bf16.msra.mxu0 %v1717
    %1944 = vmatpush.bf16.msra.mxu0 %v1709
    %1945 = vmatpush.bf16.msra.mxu0 %v1701
    %1946 = vmatpush.bf16.msra.mxu0 %v1693
    %1947 = vmatpush.bf16.msra.mxu0 %v1685
    %1948 = vmatmul.bf16.gmra.mxu0 %v1106
    %v1949 = vpop.f32.mrf.mxu0
    %v1950 = vadd.f32 %v1937, %v1949
    %v1951 = vpop.f32.mrf.mxu0
    %1952 = vdwg.mxu0
    %1953 = vmatpush.bf16.msra.mxu0 %v1678
    %1954 = vmatpush.bf16.msra.mxu0 %v1670
    %1955 = vmatpush.bf16.msra.mxu0 %v1662
    %1956 = vmatpush.bf16.msra.mxu0 %v1654
    %1957 = vmatpush.bf16.msra.mxu0 %v1646
    %1958 = vmatpush.bf16.msra.mxu0 %v1638
    %1959 = vmatpush.bf16.msra.mxu0 %v1630
    %1960 = vmatpush.bf16.msra.mxu0 %v1622
    %1961 = vmatmul.bf16.gmra.mxu0 %v1105
    %v1962 = vpop.f32.mrf.mxu0
    %v1963 = vadd.f32 0.0, %v1962
    %v1964 = vpop.f32.mrf.mxu0
    %1965 = vdwg.mxu0
    %1966 = vmatpush.bf16.msra.mxu0 %v1742
    %1967 = vmatpush.bf16.msra.mxu0 %v1734
    %1968 = vmatpush.bf16.msra.mxu0 %v1726
    %1969 = vmatpush.bf16.msra.mxu0 %v1718
    %1970 = vmatpush.bf16.msra.mxu0 %v1710
    %1971 = vmatpush.bf16.msra.mxu0 %v1702
    %1972 = vmatpush.bf16.msra.mxu0 %v1694
    %1973 = vmatpush.bf16.msra.mxu0 %v1686
    %1974 = vmatmul.bf16.gmra.mxu0 %v1106
    %v1975 = vpop.f32.mrf.mxu0
    %v1976 = vadd.f32 %v1963, %v1975
    %v1977 = vpop.f32.mrf.mxu0
    %1978 = vdwg.mxu0
    %1979 = vmatpush.bf16.msra.mxu0 %v1679
    %1980 = vmatpush.bf16.msra.mxu0 %v1671
    %1981 = vmatpush.bf16.msra.mxu0 %v1663
    %1982 = vmatpush.bf16.msra.mxu0 %v1655
    %1983 = vmatpush.bf16.msra.mxu0 %v1647
    %1984 = vmatpush.bf16.msra.mxu0 %v1639
    %1985 = vmatpush.bf16.msra.mxu0 %v1631
    %1986 = vmatpush.bf16.msra.mxu0 %v1623
    %1987 = vmatmul.bf16.gmra.mxu0 %v1105
    %v1988 = vpop.f32.mrf.mxu0
    %v1989 = vadd.f32 0.0, %v1988
    %v1990 = vpop.f32.mrf.mxu0
    %1991 = vdwg.mxu0
    %1992 = vmatpush.bf16.msra.mxu0 %v1743
    %1993 = vmatpush.bf16.msra.mxu0 %v1735
    %1994 = vmatpush.bf16.msra.mxu0 %v1727
    %1995 = vmatpush.bf16.msra.mxu0 %v1719
    %1996 = vmatpush.bf16.msra.mxu0 %v1711
    %1997 = vmatpush.bf16.msra.mxu0 %v1703
    %1998 = vmatpush.bf16.msra.mxu0 %v1695
    %1999 = vmatpush.bf16.msra.mxu0 %v1687
    %2000 = vmatmul.bf16.gmra.mxu0 %v1106
    %v2001 = vpop.f32.mrf.mxu0
    %v2002 = vadd.f32 %v1989, %v2001
    %v2003 = vpop.f32.mrf.mxu0
    %2004 = vdwg.mxu0
    %2005 = vmatpush.bf16.msra.mxu0 %v1680
    %2006 = vmatpush.bf16.msra.mxu0 %v1672
    %2007 = vmatpush.bf16.msra.mxu0 %v1664
    %2008 = vmatpush.bf16.msra.mxu0 %v1656
    %2009 = vmatpush.bf16.msra.mxu0 %v1648
    %2010 = vmatpush.bf16.msra.mxu0 %v1640
    %2011 = vmatpush.bf16.msra.mxu0 %v1632
    %2012 = vmatpush.bf16.msra.mxu0 %v1624
    %2013 = vmatmul.bf16.gmra.mxu0 %v1105
    %v2014 = vpop.f32.mrf.mxu0
    %v2015 = vadd.f32 0.0, %v2014
    %v2016 = vpop.f32.mrf.mxu0
    %2017 = vdwg.mxu0
    %2018 = vmatpush.bf16.msra.mxu0 %v1744
    %2019 = vmatpush.bf16.msra.mxu0 %v1736
    %2020 = vmatpush.bf16.msra.mxu0 %v1728
    %2021 = vmatpush.bf16.msra.mxu0 %v1720
    %2022 = vmatpush.bf16.msra.mxu0 %v1712
    %2023 = vmatpush.bf16.msra.mxu0 %v1704
    %2024 = vmatpush.bf16.msra.mxu0 %v1696
    %2025 = vmatpush.bf16.msra.mxu0 %v1688
    %2026 = vmatmul.bf16.gmra.mxu0 %v1106
    %v2027 = vpop.f32.mrf.mxu0
    %v2028 = vadd.f32 %v2015, %v2027
    %v2029 = vpop.f32.mrf.mxu0
    %2030 = vdwg.mxu0
    %2031 = vmatpush.bf16.msra.mxu0 %v1681
    %2032 = vmatpush.bf16.msra.mxu0 %v1673
    %2033 = vmatpush.bf16.msra.mxu0 %v1665
    %2034 = vmatpush.bf16.msra.mxu0 %v1657
    %2035 = vmatpush.bf16.msra.mxu0 %v1649
    %2036 = vmatpush.bf16.msra.mxu0 %v1641
    %2037 = vmatpush.bf16.msra.mxu0 %v1633
    %2038 = vmatpush.bf16.msra.mxu0 %v1625
    %2039 = vmatmul.bf16.gmra.mxu0 %v1105
    %v2040 = vpop.f32.mrf.mxu0
    %v2041 = vadd.f32 0.0, %v2040
    %v2042 = vpop.f32.mrf.mxu0
    %2043 = vdwg.mxu0
    %2044 = vmatpush.bf16.msra.mxu0 %v1745
    %2045 = vmatpush.bf16.msra.mxu0 %v1737
    %2046 = vmatpush.bf16.msra.mxu0 %v1729
    %2047 = vmatpush.bf16.msra.mxu0 %v1721
    %2048 = vmatpush.bf16.msra.mxu0 %v1713
    %2049 = vmatpush.bf16.msra.mxu0 %v1705
    %2050 = vmatpush.bf16.msra.mxu0 %v1697
    %2051 = vmatpush.bf16.msra.mxu0 %v1689
    %2052 = vmatmul.bf16.gmra.mxu0 %v1106
    %v2053 = vpop.f32.mrf.mxu0
    %v2054 = vadd.f32 %v2041, %v2053
    %v2055 = vpop.f32.mrf.mxu0
    %2056 = vdwg.mxu0
    %2057 = vmatpush.bf16.msra.mxu0 %v1682
    %2058 = vmatpush.bf16.msra.mxu0 %v1674
    %2059 = vmatpush.bf16.msra.mxu0 %v1666
    %2060 = vmatpush.bf16.msra.mxu0 %v1658
    %2061 = vmatpush.bf16.msra.mxu0 %v1650
    %2062 = vmatpush.bf16.msra.mxu0 %v1642
    %2063 = vmatpush.bf16.msra.mxu0 %v1634
    %2064 = vmatpush.bf16.msra.mxu0 %v1626
    %2065 = vmatmul.bf16.gmra.mxu0 %v1105
    %v2066 = vpop.f32.mrf.mxu0
    %v2067 = vadd.f32 0.0, %v2066
    %v2068 = vpop.f32.mrf.mxu0
    %2069 = vdwg.mxu0
    %2070 = vmatpush.bf16.msra.mxu0 %v1746
    %2071 = vmatpush.bf16.msra.mxu0 %v1738
    %2072 = vmatpush.bf16.msra.mxu0 %v1730
    %2073 = vmatpush.bf16.msra.mxu0 %v1722
    %2074 = vmatpush.bf16.msra.mxu0 %v1714
    %2075 = vmatpush.bf16.msra.mxu0 %v1706
    %2076 = vmatpush.bf16.msra.mxu0 %v1698
    %2077 = vmatpush.bf16.msra.mxu0 %v1690
    %2078 = vmatmul.bf16.gmra.mxu0 %v1106
    %v2079 = vpop.f32.mrf.mxu0
    %v2080 = vadd.f32 %v2067, %v2079
    %v2081 = vpop.f32.mrf.mxu0
    %2082 = vdwg.mxu0
    %v2091 = vrot.slane %v1924, 7
    %v2092 = vrot.slane %v1950, 6
    %v2093 = vrot.slane %v1976, 5
    %v2094 = vrot.slane %v2002, 4
    %v2095 = vrot.slane %v2028, 3
    %v2096 = vrot.slane %v2054, 2
    %v2097 = vrot.slane %v2080, 1
    %v2098 = vsel %vm1043, %v1898, %v2091
    %v2099 = vsel %vm1045, %v2092, %v2093
    %v2100 = vsel %vm1047, %v2098, %v2099
    %v2101 = vsel %vm1049, %v2094, %v2095
    %v2102 = vsel %vm1051, %v2096, %v2097
    %v2103 = vsel %vm1053, %v2101, %v2102
    %v2104 = vsel %vm1055, %v2100, %v2103
    %v2106 = vadd.f32 %v1099, %v2104
    %v2107 = vxor.u32 %v2106, 2147483648
    %v2108 = vmul.f32 %v2107, 1.442695
    %v2109 = vpow.pop %v2108
    %v2110 = vadd.f32 %v2109, 1.0
    %v2111 = vrcp.pop %v2110
    %v2112 = vmul.f32 %v2110, %v2111
    %v2113 = vsub.f32 1.0, %v2112
    %v2114 = vmul.f32 %v2111, %v2113
    %v2115 = vadd.f32 %v2111, %v2114
    %vm2116 = vweird.f32 %v2110
    %vm2117 = vweird.f32 %v2111
    %vm2118 = vmor %vm2116, %vm2117
    %v2119 = vsel %vm2118, %v2111, %v2115
    %v2120 = vand.u32 2147483647, %v2110
    %vm2121 = vcmp.eq.f32.partialorder %v2120, 8.507059e+37
    %v2122 = vand.u32 %v2110, 2147483648
    %v2123 = vor.u32 1.1754944e-38, %v2122
    %v2124 = vsel %vm2121, %v2123, %v2119
    %v2125 = vmul.f32 1.0, %v2124
    %v2127 = vrot.slane %v2106, 6
    %v2129 = vtanh.pop %v2127
    %v2131 = vrot.slane %v2125, 2
    %v2133 = vmul.f32 %v2131, %v1095
    %v2134 = vmul.f32 %v2125, %v2129
    %v2135 = vadd.f32 %v2133, %v2134
    %2136 = vst.msk [vmem:[#allocation3] sm:$0x3] %vm37, %v2135
    %v2137 = vtanh.pop %v2135
    %v2138 = vrot.slane %v2125, 4
    %v2140 = vmul.f32 %v2138, %v2137
    %2141 = vst.msk [vmem:[#allocation2] sm:$0x3] %vm37, %v2140
    %v2142 = vld [vmem:[#allocation2] sm:$0x3]
    %v2143 = vld [vmem:[#allocation3] sm:$0x3]
    %s2144 = scalar_lea.vmem %s0, 2
    %v2145 = vld [vmem:[%s2144] ss:$8 sm:$0xf]
    %v2146 = vld [vmem:[%s2144] ss:$8 sm:$0xf0]
    %v2147 = vor.u32 %v2145, %v2146
    %v2149 = vperm.slane %v2142, 0
    %v2150 = vperm.slane %v2142, 1
    %v2153 = vpack.c.bf16 %v2149, %v2149
    %v2154 = vpack.c.bf16 %v2150, %v2150
    %v2155 = vld [vmem:[#allocation4] sm:$0xff]
    %v2156 = vld [vmem:[#allocation4 + $0x8] sm:$0xff]
    %v2157 = vld [vmem:[#allocation4 + $0x10] sm:$0xff]
    %v2158 = vld [vmem:[#allocation4 + $0x18] sm:$0xff]
    %v2159 = vld [vmem:[#allocation4 + $0x20] sm:$0xff]
    %v2160 = vld [vmem:[#allocation4 + $0x28] sm:$0xff]
    %v2161 = vld [vmem:[#allocation4 + $0x30] sm:$0xff]
    %v2162 = vld [vmem:[#allocation4 + $0x38] sm:$0xff]
    %v2163 = vld [vmem:[#allocation4 + $0x40] sm:$0xff]
    %v2164 = vld [vmem:[#allocation4 + $0x48] sm:$0xff]
    %v2165 = vld [vmem:[#allocation4 + $0x50] sm:$0xff]
    %v2166 = vld [vmem:[#allocation4 + $0x58] sm:$0xff]
    %v2167 = vld [vmem:[#allocation4 + $0x60] sm:$0xff]
    %v2168 = vld [vmem:[#allocation4 + $0x68] sm:$0xff]
    %v2169 = vld [vmem:[#allocation4 + $0x70] sm:$0xff]
    %v2170 = vld [vmem:[#allocation4 + $0x78] sm:$0xff]
    %v2171 = vld [vmem:[#allocation4 + $0x80] sm:$0xff]
    %v2172 = vld [vmem:[#allocation4 + $0x88] sm:$0xff]
    %v2173 = vld [vmem:[#allocation4 + $0x90] sm:$0xff]
    %v2174 = vld [vmem:[#allocation4 + $0x98] sm:$0xff]
    %v2175 = vld [vmem:[#allocation4 + $0xa0] sm:$0xff]
    %v2176 = vld [vmem:[#allocation4 + $0xa8] sm:$0xff]
    %v2177 = vld [vmem:[#allocation4 + $0xb0] sm:$0xff]
    %v2178 = vld [vmem:[#allocation4 + $0xb8] sm:$0xff]
    %v2179 = vld [vmem:[#allocation4 + $0xc0] sm:$0xff]
    %v2180 = vld [vmem:[#allocation4 + $0xc8] sm:$0xff]
    %v2181 = vld [vmem:[#allocation4 + $0xd0] sm:$0xff]
    %v2182 = vld [vmem:[#allocation4 + $0xd8] sm:$0xff]
    %v2183 = vld [vmem:[#allocation4 + $0xe0] sm:$0xff]
    %v2184 = vld [vmem:[#allocation4 + $0xe8] sm:$0xff]
    %v2185 = vld [vmem:[#allocation4 + $0xf0] sm:$0xff]
    %v2186 = vld [vmem:[#allocation4 + $0xf8] sm:$0xff]
    %v2187 = vld [vmem:[#allocation4 + $0x100] sm:$0xff]
    %v2188 = vld [vmem:[#allocation4 + $0x108] sm:$0xff]
    %v2189 = vld [vmem:[#allocation4 + $0x110] sm:$0xff]
    %v2190 = vld [vmem:[#allocation4 + $0x118] sm:$0xff]
    %v2191 = vld [vmem:[#allocation4 + $0x120] sm:$0xff]
    %v2192 = vld [vmem:[#allocation4 + $0x128] sm:$0xff]
    %v2193 = vld [vmem:[#allocation4 + $0x130] sm:$0xff]
    %v2194 = vld [vmem:[#allocation4 + $0x138] sm:$0xff]
    %v2195 = vld [vmem:[#allocation4 + $0x140] sm:$0xff]
    %v2196 = vld [vmem:[#allocation4 + $0x148] sm:$0xff]
    %v2197 = vld [vmem:[#allocation4 + $0x150] sm:$0xff]
    %v2198 = vld [vmem:[#allocation4 + $0x158] sm:$0xff]
    %v2199 = vld [vmem:[#allocation4 + $0x160] sm:$0xff]
    %v2200 = vld [vmem:[#allocation4 + $0x168] sm:$0xff]
    %v2201 = vld [vmem:[#allocation4 + $0x170] sm:$0xff]
    %v2202 = vld [vmem:[#allocation4 + $0x178] sm:$0xff]
    %v2203 = vld [vmem:[#allocation4 + $0x180] sm:$0xff]
    %v2204 = vld [vmem:[#allocation4 + $0x188] sm:$0xff]
    %v2205 = vld [vmem:[#allocation4 + $0x190] sm:$0xff]
    %v2206 = vld [vmem:[#allocation4 + $0x198] sm:$0xff]
    %v2207 = vld [vmem:[#allocation4 + $0x1a0] sm:$0xff]
    %v2208 = vld [vmem:[#allocation4 + $0x1a8] sm:$0xff]
    %v2209 = vld [vmem:[#allocation4 + $0x1b0] sm:$0xff]
    %v2210 = vld [vmem:[#allocation4 + $0x1b8] sm:$0xff]
    %v2211 = vld [vmem:[#allocation4 + $0x1c0] sm:$0xff]
    %v2212 = vld [vmem:[#allocation4 + $0x1c8] sm:$0xff]
    %v2213 = vld [vmem:[#allocation4 + $0x1d0] sm:$0xff]
    %v2214 = vld [vmem:[#allocation4 + $0x1d8] sm:$0xff]
    %v2215 = vld [vmem:[#allocation4 + $0x1e0] sm:$0xff]
    %v2216 = vld [vmem:[#allocation4 + $0x1e8] sm:$0xff]
    %v2217 = vld [vmem:[#allocation4 + $0x1f0] sm:$0xff]
    %v2218 = vld [vmem:[#allocation4 + $0x1f8] sm:$0xff]
    %v2219 = vld [vmem:[#allocation4 + $0x200] sm:$0xff]
    %v2220 = vld [vmem:[#allocation4 + $0x208] sm:$0xff]
    %v2221 = vld [vmem:[#allocation4 + $0x210] sm:$0xff]
    %v2222 = vld [vmem:[#allocation4 + $0x218] sm:$0xff]
    %v2223 = vld [vmem:[#allocation4 + $0x220] sm:$0xff]
    %v2224 = vld [vmem:[#allocation4 + $0x228] sm:$0xff]
    %v2225 = vld [vmem:[#allocation4 + $0x230] sm:$0xff]
    %v2226 = vld [vmem:[#allocation4 + $0x238] sm:$0xff]
    %v2227 = vld [vmem:[#allocation4 + $0x240] sm:$0xff]
    %v2228 = vld [vmem:[#allocation4 + $0x248] sm:$0xff]
    %v2229 = vld [vmem:[#allocation4 + $0x250] sm:$0xff]
    %v2230 = vld [vmem:[#allocation4 + $0x258] sm:$0xff]
    %v2231 = vld [vmem:[#allocation4 + $0x260] sm:$0xff]
    %v2232 = vld [vmem:[#allocation4 + $0x268] sm:$0xff]
    %v2233 = vld [vmem:[#allocation4 + $0x270] sm:$0xff]
    %v2234 = vld [vmem:[#allocation4 + $0x278] sm:$0xff]
    %v2235 = vld [vmem:[#allocation4 + $0x280] sm:$0xff]
    %v2236 = vld [vmem:[#allocation4 + $0x288] sm:$0xff]
    %v2237 = vld [vmem:[#allocation4 + $0x290] sm:$0xff]
    %v2238 = vld [vmem:[#allocation4 + $0x298] sm:$0xff]
    %v2239 = vld [vmem:[#allocation4 + $0x2a0] sm:$0xff]
    %v2240 = vld [vmem:[#allocation4 + $0x2a8] sm:$0xff]
    %v2241 = vld [vmem:[#allocation4 + $0x2b0] sm:$0xff]
    %v2242 = vld [vmem:[#allocation4 + $0x2b8] sm:$0xff]
    %v2243 = vld [vmem:[#allocation4 + $0x2c0] sm:$0xff]
    %v2244 = vld [vmem:[#allocation4 + $0x2c8] sm:$0xff]
    %v2245 = vld [vmem:[#allocation4 + $0x2d0] sm:$0xff]
    %v2246 = vld [vmem:[#allocation4 + $0x2d8] sm:$0xff]
    %v2247 = vld [vmem:[#allocation4 + $0x2e0] sm:$0xff]
    %v2248 = vld [vmem:[#allocation4 + $0x2e8] sm:$0xff]
    %v2249 = vld [vmem:[#allocation4 + $0x2f0] sm:$0xff]
    %v2250 = vld [vmem:[#allocation4 + $0x2f8] sm:$0xff]
    %v2251 = vld [vmem:[#allocation4 + $0x300] sm:$0xff]
    %v2252 = vld [vmem:[#allocation4 + $0x308] sm:$0xff]
    %v2253 = vld [vmem:[#allocation4 + $0x310] sm:$0xff]
    %v2254 = vld [vmem:[#allocation4 + $0x318] sm:$0xff]
    %v2255 = vld [vmem:[#allocation4 + $0x320] sm:$0xff]
    %v2256 = vld [vmem:[#allocation4 + $0x328] sm:$0xff]
    %v2257 = vld [vmem:[#allocation4 + $0x330] sm:$0xff]
    %v2258 = vld [vmem:[#allocation4 + $0x338] sm:$0xff]
    %v2259 = vld [vmem:[#allocation4 + $0x340] sm:$0xff]
    %v2260 = vld [vmem:[#allocation4 + $0x348] sm:$0xff]
    %v2261 = vld [vmem:[#allocation4 + $0x350] sm:$0xff]
    %v2262 = vld [vmem:[#allocation4 + $0x358] sm:$0xff]
    %v2263 = vld [vmem:[#allocation4 + $0x360] sm:$0xff]
    %v2264 = vld [vmem:[#allocation4 + $0x368] sm:$0xff]
    %v2265 = vld [vmem:[#allocation4 + $0x370] sm:$0xff]
    %v2266 = vld [vmem:[#allocation4 + $0x378] sm:$0xff]
    %v2267 = vld [vmem:[#allocation4 + $0x380] sm:$0xff]
    %v2268 = vld [vmem:[#allocation4 + $0x388] sm:$0xff]
    %v2269 = vld [vmem:[#allocation4 + $0x390] sm:$0xff]
    %v2270 = vld [vmem:[#allocation4 + $0x398] sm:$0xff]
    %v2271 = vld [vmem:[#allocation4 + $0x3a0] sm:$0xff]
    %v2272 = vld [vmem:[#allocation4 + $0x3a8] sm:$0xff]
    %v2273 = vld [vmem:[#allocation4 + $0x3b0] sm:$0xff]
    %v2274 = vld [vmem:[#allocation4 + $0x3b8] sm:$0xff]
    %v2275 = vld [vmem:[#allocation4 + $0x3c0] sm:$0xff]
    %v2276 = vld [vmem:[#allocation4 + $0x3c8] sm:$0xff]
    %v2277 = vld [vmem:[#allocation4 + $0x3d0] sm:$0xff]
    %v2278 = vld [vmem:[#allocation4 + $0x3d8] sm:$0xff]
    %v2279 = vld [vmem:[#allocation4 + $0x3e0] sm:$0xff]
    %v2280 = vld [vmem:[#allocation4 + $0x3e8] sm:$0xff]
    %v2281 = vld [vmem:[#allocation4 + $0x3f0] sm:$0xff]
    %v2282 = vld [vmem:[#allocation4 + $0x3f8] sm:$0xff]
    %v2411 = vunpack.c.l.b16 %v2155
    %v2412 = vunpack.c.h.b16 %v2155
    %v2413 = vunpack.c.l.b16 %v2156
    %v2414 = vunpack.c.h.b16 %v2156
    %v2415 = vunpack.c.l.b16 %v2157
    %v2416 = vunpack.c.h.b16 %v2157
    %v2417 = vunpack.c.l.b16 %v2158
    %v2418 = vunpack.c.h.b16 %v2158
    %v2419 = vunpack.c.l.b16 %v2159
    %v2420 = vunpack.c.h.b16 %v2159
    %v2421 = vunpack.c.l.b16 %v2160
    %v2422 = vunpack.c.h.b16 %v2160
    %v2423 = vunpack.c.l.b16 %v2161
    %v2424 = vunpack.c.h.b16 %v2161
    %v2425 = vunpack.c.l.b16 %v2162
    %v2426 = vunpack.c.h.b16 %v2162
    %v2427 = vunpack.c.l.b16 %v2163
    %v2428 = vunpack.c.h.b16 %v2163
    %v2429 = vunpack.c.l.b16 %v2164
    %v2430 = vunpack.c.h.b16 %v2164
    %v2431 = vunpack.c.l.b16 %v2165
    %v2432 = vunpack.c.h.b16 %v2165
    %v2433 = vunpack.c.l.b16 %v2166
    %v2434 = vunpack.c.h.b16 %v2166
    %v2435 = vunpack.c.l.b16 %v2167
    %v2436 = vunpack.c.h.b16 %v2167
    %v2437 = vunpack.c.l.b16 %v2168
    %v2438 = vunpack.c.h.b16 %v2168
    %v2439 = vunpack.c.l.b16 %v2169
    %v2440 = vunpack.c.h.b16 %v2169
    %v2441 = vunpack.c.l.b16 %v2170
    %v2442 = vunpack.c.h.b16 %v2170
    %v2443 = vunpack.c.l.b16 %v2171
    %v2444 = vunpack.c.h.b16 %v2171
    %v2445 = vunpack.c.l.b16 %v2172
    %v2446 = vunpack.c.h.b16 %v2172
    %v2447 = vunpack.c.l.b16 %v2173
    %v2448 = vunpack.c.h.b16 %v2173
    %v2449 = vunpack.c.l.b16 %v2174
    %v2450 = vunpack.c.h.b16 %v2174
    %v2451 = vunpack.c.l.b16 %v2175
    %v2452 = vunpack.c.h.b16 %v2175
    %v2453 = vunpack.c.l.b16 %v2176
    %v2454 = vunpack.c.h.b16 %v2176
    %v2455 = vunpack.c.l.b16 %v2177
    %v2456 = vunpack.c.h.b16 %v2177
    %v2457 = vunpack.c.l.b16 %v2178
    %v2458 = vunpack.c.h.b16 %v2178
    %v2459 = vunpack.c.l.b16 %v2179
    %v2460 = vunpack.c.h.b16 %v2179
    %v2461 = vunpack.c.l.b16 %v2180
    %v2462 = vunpack.c.h.b16 %v2180
    %v2463 = vunpack.c.l.b16 %v2181
    %v2464 = vunpack.c.h.b16 %v2181
    %v2465 = vunpack.c.l.b16 %v2182
    %v2466 = vunpack.c.h.b16 %v2182
    %v2467 = vunpack.c.l.b16 %v2183
    %v2468 = vunpack.c.h.b16 %v2183
    %v2469 = vunpack.c.l.b16 %v2184
    %v2470 = vunpack.c.h.b16 %v2184
    %v2471 = vunpack.c.l.b16 %v2185
    %v2472 = vunpack.c.h.b16 %v2185
    %v2473 = vunpack.c.l.b16 %v2186
    %v2474 = vunpack.c.h.b16 %v2186
    %v2475 = vunpack.c.l.b16 %v2187
    %v2476 = vunpack.c.h.b16 %v2187
    %v2477 = vunpack.c.l.b16 %v2188
    %v2478 = vunpack.c.h.b16 %v2188
    %v2479 = vunpack.c.l.b16 %v2189
    %v2480 = vunpack.c.h.b16 %v2189
    %v2481 = vunpack.c.l.b16 %v2190
    %v2482 = vunpack.c.h.b16 %v2190
    %v2483 = vunpack.c.l.b16 %v2191
    %v2484 = vunpack.c.h.b16 %v2191
    %v2485 = vunpack.c.l.b16 %v2192
    %v2486 = vunpack.c.h.b16 %v2192
    %v2487 = vunpack.c.l.b16 %v2193
    %v2488 = vunpack.c.h.b16 %v2193
    %v2489 = vunpack.c.l.b16 %v2194
    %v2490 = vunpack.c.h.b16 %v2194
    %v2491 = vunpack.c.l.b16 %v2195
    %v2492 = vunpack.c.h.b16 %v2195
    %v2493 = vunpack.c.l.b16 %v2196
    %v2494 = vunpack.c.h.b16 %v2196
    %v2495 = vunpack.c.l.b16 %v2197
    %v2496 = vunpack.c.h.b16 %v2197
    %v2497 = vunpack.c.l.b16 %v2198
    %v2498 = vunpack.c.h.b16 %v2198
    %v2499 = vunpack.c.l.b16 %v2199
    %v2500 = vunpack.c.h.b16 %v2199
    %v2501 = vunpack.c.l.b16 %v2200
    %v2502 = vunpack.c.h.b16 %v2200
    %v2503 = vunpack.c.l.b16 %v2201
    %v2504 = vunpack.c.h.b16 %v2201
    %v2505 = vunpack.c.l.b16 %v2202
    %v2506 = vunpack.c.h.b16 %v2202
    %v2507 = vunpack.c.l.b16 %v2203
    %v2508 = vunpack.c.h.b16 %v2203
    %v2509 = vunpack.c.l.b16 %v2204
    %v2510 = vunpack.c.h.b16 %v2204
    %v2511 = vunpack.c.l.b16 %v2205
    %v2512 = vunpack.c.h.b16 %v2205
    %v2513 = vunpack.c.l.b16 %v2206
    %v2514 = vunpack.c.h.b16 %v2206
    %v2515 = vunpack.c.l.b16 %v2207
    %v2516 = vunpack.c.h.b16 %v2207
    %v2517 = vunpack.c.l.b16 %v2208
    %v2518 = vunpack.c.h.b16 %v2208
    %v2519 = vunpack.c.l.b16 %v2209
    %v2520 = vunpack.c.h.b16 %v2209
    %v2521 = vunpack.c.l.b16 %v2210
    %v2522 = vunpack.c.h.b16 %v2210
    %v2523 = vunpack.c.l.b16 %v2211
    %v2524 = vunpack.c.h.b16 %v2211
    %v2525 = vunpack.c.l.b16 %v2212
    %v2526 = vunpack.c.h.b16 %v2212
    %v2527 = vunpack.c.l.b16 %v2213
    %v2528 = vunpack.c.h.b16 %v2213
    %v2529 = vunpack.c.l.b16 %v2214
    %v2530 = vunpack.c.h.b16 %v2214
    %v2531 = vunpack.c.l.b16 %v2215
    %v2532 = vunpack.c.h.b16 %v2215
    %v2533 = vunpack.c.l.b16 %v2216
    %v2534 = vunpack.c.h.b16 %v2216
    %v2535 = vunpack.c.l.b16 %v2217
    %v2536 = vunpack.c.h.b16 %v2217
    %v2537 = vunpack.c.l.b16 %v2218
    %v2538 = vunpack.c.h.b16 %v2218
    %v2539 = vunpack.c.l.b16 %v2219
    %v2540 = vunpack.c.h.b16 %v2219
    %v2541 = vunpack.c.l.b16 %v2220
    %v2542 = vunpack.c.h.b16 %v2220
    %v2543 = vunpack.c.l.b16 %v2221
    %v2544 = vunpack.c.h.b16 %v2221
    %v2545 = vunpack.c.l.b16 %v2222
    %v2546 = vunpack.c.h.b16 %v2222
    %v2547 = vunpack.c.l.b16 %v2223
    %v2548 = vunpack.c.h.b16 %v2223
    %v2549 = vunpack.c.l.b16 %v2224
    %v2550 = vunpack.c.h.b16 %v2224
    %v2551 = vunpack.c.l.b16 %v2225
    %v2552 = vunpack.c.h.b16 %v2225
    %v2553 = vunpack.c.l.b16 %v2226
    %v2554 = vunpack.c.h.b16 %v2226
    %v2555 = vunpack.c.l.b16 %v2227
    %v2556 = vunpack.c.h.b16 %v2227
    %v2557 = vunpack.c.l.b16 %v2228
    %v2558 = vunpack.c.h.b16 %v2228
    %v2559 = vunpack.c.l.b16 %v2229
    %v2560 = vunpack.c.h.b16 %v2229
    %v2561 = vunpack.c.l.b16 %v2230
    %v2562 = vunpack.c.h.b16 %v2230
    %v2563 = vunpack.c.l.b16 %v2231
    %v2564 = vunpack.c.h.b16 %v2231
    %v2565 = vunpack.c.l.b16 %v2232
    %v2566 = vunpack.c.h.b16 %v2232
    %v2567 = vunpack.c.l.b16 %v2233
    %v2568 = vunpack.c.h.b16 %v2233
    %v2569 = vunpack.c.l.b16 %v2234
    %v2570 = vunpack.c.h.b16 %v2234
    %v2571 = vunpack.c.l.b16 %v2235
    %v2572 = vunpack.c.h.b16 %v2235
    %v2573 = vunpack.c.l.b16 %v2236
    %v2574 = vunpack.c.h.b16 %v2236
    %v2575 = vunpack.c.l.b16 %v2237
    %v2576 = vunpack.c.h.b16 %v2237
    %v2577 = vunpack.c.l.b16 %v2238
    %v2578 = vunpack.c.h.b16 %v2238
    %v2579 = vunpack.c.l.b16 %v2239
    %v2580 = vunpack.c.h.b16 %v2239
    %v2581 = vunpack.c.l.b16 %v2240
    %v2582 = vunpack.c.h.b16 %v2240
    %v2583 = vunpack.c.l.b16 %v2241
    %v2584 = vunpack.c.h.b16 %v2241
    %v2585 = vunpack.c.l.b16 %v2242
    %v2586 = vunpack.c.h.b16 %v2242
    %v2587 = vunpack.c.l.b16 %v2243
    %v2588 = vunpack.c.h.b16 %v2243
    %v2589 = vunpack.c.l.b16 %v2244
    %v2590 = vunpack.c.h.b16 %v2244
    %v2591 = vunpack.c.l.b16 %v2245
    %v2592 = vunpack.c.h.b16 %v2245
    %v2593 = vunpack.c.l.b16 %v2246
    %v2594 = vunpack.c.h.b16 %v2246
    %v2595 = vunpack.c.l.b16 %v2247
    %v2596 = vunpack.c.h.b16 %v2247
    %v2597 = vunpack.c.l.b16 %v2248
    %v2598 = vunpack.c.h.b16 %v2248
    %v2599 = vunpack.c.l.b16 %v2249
    %v2600 = vunpack.c.h.b16 %v2249
    %v2601 = vunpack.c.l.b16 %v2250
    %v2602 = vunpack.c.h.b16 %v2250
    %v2603 = vunpack.c.l.b16 %v2251
    %v2604 = vunpack.c.h.b16 %v2251
    %v2605 = vunpack.c.l.b16 %v2252
    %v2606 = vunpack.c.h.b16 %v2252
    %v2607 = vunpack.c.l.b16 %v2253
    %v2608 = vunpack.c.h.b16 %v2253
    %v2609 = vunpack.c.l.b16 %v2254
    %v2610 = vunpack.c.h.b16 %v2254
    %v2611 = vunpack.c.l.b16 %v2255
    %v2612 = vunpack.c.h.b16 %v2255
    %v2613 = vunpack.c.l.b16 %v2256
    %v2614 = vunpack.c.h.b16 %v2256
    %v2615 = vunpack.c.l.b16 %v2257
    %v2616 = vunpack.c.h.b16 %v2257
    %v2617 = vunpack.c.l.b16 %v2258
    %v2618 = vunpack.c.h.b16 %v2258
    %v2619 = vunpack.c.l.b16 %v2259
    %v2620 = vunpack.c.h.b16 %v2259
    %v2621 = vunpack.c.l.b16 %v2260
    %v2622 = vunpack.c.h.b16 %v2260
    %v2623 = vunpack.c.l.b16 %v2261
    %v2624 = vunpack.c.h.b16 %v2261
    %v2625 = vunpack.c.l.b16 %v2262
    %v2626 = vunpack.c.h.b16 %v2262
    %v2627 = vunpack.c.l.b16 %v2263
    %v2628 = vunpack.c.h.b16 %v2263
    %v2629 = vunpack.c.l.b16 %v2264
    %v2630 = vunpack.c.h.b16 %v2264
    %v2631 = vunpack.c.l.b16 %v2265
    %v2632 = vunpack.c.h.b16 %v2265
    %v2633 = vunpack.c.l.b16 %v2266
    %v2634 = vunpack.c.h.b16 %v2266
    %v2635 = vunpack.c.l.b16 %v2267
    %v2636 = vunpack.c.h.b16 %v2267
    %v2637 = vunpack.c.l.b16 %v2268
    %v2638 = vunpack.c.h.b16 %v2268
    %v2639 = vunpack.c.l.b16 %v2269
    %v2640 = vunpack.c.h.b16 %v2269
    %v2641 = vunpack.c.l.b16 %v2270
    %v2642 = vunpack.c.h.b16 %v2270
    %v2643 = vunpack.c.l.b16 %v2271
    %v2644 = vunpack.c.h.b16 %v2271
    %v2645 = vunpack.c.l.b16 %v2272
    %v2646 = vunpack.c.h.b16 %v2272
    %v2647 = vunpack.c.l.b16 %v2273
    %v2648 = vunpack.c.h.b16 %v2273
    %v2649 = vunpack.c.l.b16 %v2274
    %v2650 = vunpack.c.h.b16 %v2274
    %v2651 = vunpack.c.l.b16 %v2275
    %v2652 = vunpack.c.h.b16 %v2275
    %v2653 = vunpack.c.l.b16 %v2276
    %v2654 = vunpack.c.h.b16 %v2276
    %v2655 = vunpack.c.l.b16 %v2277
    %v2656 = vunpack.c.h.b16 %v2277
    %v2657 = vunpack.c.l.b16 %v2278
    %v2658 = vunpack.c.h.b16 %v2278
    %v2659 = vunpack.c.l.b16 %v2279
    %v2660 = vunpack.c.h.b16 %v2279
    %v2661 = vunpack.c.l.b16 %v2280
    %v2662 = vunpack.c.h.b16 %v2280
    %v2663 = vunpack.c.l.b16 %v2281
    %v2664 = vunpack.c.h.b16 %v2281
    %v2665 = vunpack.c.l.b16 %v2282
    %v2666 = vunpack.c.h.b16 %v2282
    %v2667 = vpack.c.b16 %v2419, %v2411
    %v2668 = vpack.c.b16 %v2420, %v2412
    %v2669 = vpack.c.b16 %v2421, %v2413
    %v2670 = vpack.c.b16 %v2422, %v2414
    %v2671 = vpack.c.b16 %v2423, %v2415
    %v2672 = vpack.c.b16 %v2424, %v2416
    %v2673 = vpack.c.b16 %v2425, %v2417
    %v2674 = vpack.c.b16 %v2426, %v2418
    %v2675 = vpack.c.b16 %v2435, %v2427
    %v2676 = vpack.c.b16 %v2436, %v2428
    %v2677 = vpack.c.b16 %v2437, %v2429
    %v2678 = vpack.c.b16 %v2438, %v2430
    %v2679 = vpack.c.b16 %v2439, %v2431
    %v2680 = vpack.c.b16 %v2440, %v2432
    %v2681 = vpack.c.b16 %v2441, %v2433
    %v2682 = vpack.c.b16 %v2442, %v2434
    %v2683 = vpack.c.b16 %v2451, %v2443
    %v2684 = vpack.c.b16 %v2452, %v2444
    %v2685 = vpack.c.b16 %v2453, %v2445
    %v2686 = vpack.c.b16 %v2454, %v2446
    %v2687 = vpack.c.b16 %v2455, %v2447
    %v2688 = vpack.c.b16 %v2456, %v2448
    %v2689 = vpack.c.b16 %v2457, %v2449
    %v2690 = vpack.c.b16 %v2458, %v2450
    %v2691 = vpack.c.b16 %v2467, %v2459
    %v2692 = vpack.c.b16 %v2468, %v2460
    %v2693 = vpack.c.b16 %v2469, %v2461
    %v2694 = vpack.c.b16 %v2470, %v2462
    %v2695 = vpack.c.b16 %v2471, %v2463
    %v2696 = vpack.c.b16 %v2472, %v2464
    %v2697 = vpack.c.b16 %v2473, %v2465
    %v2698 = vpack.c.b16 %v2474, %v2466
    %v2699 = vpack.c.b16 %v2483, %v2475
    %v2700 = vpack.c.b16 %v2484, %v2476
    %v2701 = vpack.c.b16 %v2485, %v2477
    %v2702 = vpack.c.b16 %v2486, %v2478
    %v2703 = vpack.c.b16 %v2487, %v2479
    %v2704 = vpack.c.b16 %v2488, %v2480
    %v2705 = vpack.c.b16 %v2489, %v2481
    %v2706 = vpack.c.b16 %v2490, %v2482
    %v2707 = vpack.c.b16 %v2499, %v2491
    %v2708 = vpack.c.b16 %v2500, %v2492
    %v2709 = vpack.c.b16 %v2501, %v2493
    %v2710 = vpack.c.b16 %v2502, %v2494
    %v2711 = vpack.c.b16 %v2503, %v2495
    %v2712 = vpack.c.b16 %v2504, %v2496
    %v2713 = vpack.c.b16 %v2505, %v2497
    %v2714 = vpack.c.b16 %v2506, %v2498
    %v2715 = vpack.c.b16 %v2515, %v2507
    %v2716 = vpack.c.b16 %v2516, %v2508
    %v2717 = vpack.c.b16 %v2517, %v2509
    %v2718 = vpack.c.b16 %v2518, %v2510
    %v2719 = vpack.c.b16 %v2519, %v2511
    %v2720 = vpack.c.b16 %v2520, %v2512
    %v2721 = vpack.c.b16 %v2521, %v2513
    %v2722 = vpack.c.b16 %v2522, %v2514
    %v2723 = vpack.c.b16 %v2531, %v2523
    %v2724 = vpack.c.b16 %v2532, %v2524
    %v2725 = vpack.c.b16 %v2533, %v2525
    %v2726 = vpack.c.b16 %v2534, %v2526
    %v2727 = vpack.c.b16 %v2535, %v2527
    %v2728 = vpack.c.b16 %v2536, %v2528
    %v2729 = vpack.c.b16 %v2537, %v2529
    %v2730 = vpack.c.b16 %v2538, %v2530
    %v2731 = vpack.c.b16 %v2547, %v2539
    %v2732 = vpack.c.b16 %v2548, %v2540
    %v2733 = vpack.c.b16 %v2549, %v2541
    %v2734 = vpack.c.b16 %v2550, %v2542
    %v2735 = vpack.c.b16 %v2551, %v2543
    %v2736 = vpack.c.b16 %v2552, %v2544
    %v2737 = vpack.c.b16 %v2553, %v2545
    %v2738 = vpack.c.b16 %v2554, %v2546
    %v2739 = vpack.c.b16 %v2563, %v2555
    %v2740 = vpack.c.b16 %v2564, %v2556
    %v2741 = vpack.c.b16 %v2565, %v2557
    %v2742 = vpack.c.b16 %v2566, %v2558
    %v2743 = vpack.c.b16 %v2567, %v2559
    %v2744 = vpack.c.b16 %v2568, %v2560
    %v2745 = vpack.c.b16 %v2569, %v2561
    %v2746 = vpack.c.b16 %v2570, %v2562
    %v2747 = vpack.c.b16 %v2579, %v2571
    %v2748 = vpack.c.b16 %v2580, %v2572
    %v2749 = vpack.c.b16 %v2581, %v2573
    %v2750 = vpack.c.b16 %v2582, %v2574
    %v2751 = vpack.c.b16 %v2583, %v2575
    %v2752 = vpack.c.b16 %v2584, %v2576
    %v2753 = vpack.c.b16 %v2585, %v2577
    %v2754 = vpack.c.b16 %v2586, %v2578
    %v2755 = vpack.c.b16 %v2595, %v2587
    %v2756 = vpack.c.b16 %v2596, %v2588
    %v2757 = vpack.c.b16 %v2597, %v2589
    %v2758 = vpack.c.b16 %v2598, %v2590
    %v2759 = vpack.c.b16 %v2599, %v2591
    %v2760 = vpack.c.b16 %v2600, %v2592
    %v2761 = vpack.c.b16 %v2601, %v2593
    %v2762 = vpack.c.b16 %v2602, %v2594
    %v2763 = vpack.c.b16 %v2611, %v2603
    %v2764 = vpack.c.b16 %v2612, %v2604
    %v2765 = vpack.c.b16 %v2613, %v2605
    %v2766 = vpack.c.b16 %v2614, %v2606
    %v2767 = vpack.c.b16 %v2615, %v2607
    %v2768 = vpack.c.b16 %v2616, %v2608
    %v2769 = vpack.c.b16 %v2617, %v2609
    %v2770 = vpack.c.b16 %v2618, %v2610
    %v2771 = vpack.c.b16 %v2627, %v2619
    %v2772 = vpack.c.b16 %v2628, %v2620
    %v2773 = vpack.c.b16 %v2629, %v2621
    %v2774 = vpack.c.b16 %v2630, %v2622
    %v2775 = vpack.c.b16 %v2631, %v2623
    %v2776 = vpack.c.b16 %v2632, %v2624
    %v2777 = vpack.c.b16 %v2633, %v2625
    %v2778 = vpack.c.b16 %v2634, %v2626
    %v2779 = vpack.c.b16 %v2643, %v2635
    %v2780 = vpack.c.b16 %v2644, %v2636
    %v2781 = vpack.c.b16 %v2645, %v2637
    %v2782 = vpack.c.b16 %v2646, %v2638
    %v2783 = vpack.c.b16 %v2647, %v2639
    %v2784 = vpack.c.b16 %v2648, %v2640
    %v2785 = vpack.c.b16 %v2649, %v2641
    %v2786 = vpack.c.b16 %v2650, %v2642
    %v2787 = vpack.c.b16 %v2659, %v2651
    %v2788 = vpack.c.b16 %v2660, %v2652
    %v2789 = vpack.c.b16 %v2661, %v2653
    %v2790 = vpack.c.b16 %v2662, %v2654
    %v2791 = vpack.c.b16 %v2663, %v2655
    %v2792 = vpack.c.b16 %v2664, %v2656
    %v2793 = vpack.c.b16 %v2665, %v2657
    %v2794 = vpack.c.b16 %v2666, %v2658
    %2923 = vmatpush.bf16.msra.mxu0 %v2723
    %2924 = vmatpush.bf16.msra.mxu0 %v2715
    %2925 = vmatpush.bf16.msra.mxu0 %v2707
    %2926 = vmatpush.bf16.msra.mxu0 %v2699
    %2927 = vmatpush.bf16.msra.mxu0 %v2691
    %2928 = vmatpush.bf16.msra.mxu0 %v2683
    %2929 = vmatpush.bf16.msra.mxu0 %v2675
    %2930 = vmatpush.bf16.msra.mxu0 %v2667
    %2931 = vmatmul.bf16.gmra.mxu0 %v2153
    %v2932 = vpop.f32.mrf.mxu0
    %v2933 = vadd.f32 0.0, %v2932
    %v2934 = vpop.f32.mrf.mxu0
    %2935 = vdwg.mxu0
    %2936 = vmatpush.bf16.msra.mxu0 %v2787
    %2937 = vmatpush.bf16.msra.mxu0 %v2779
    %2938 = vmatpush.bf16.msra.mxu0 %v2771
    %2939 = vmatpush.bf16.msra.mxu0 %v2763
    %2940 = vmatpush.bf16.msra.mxu0 %v2755
    %2941 = vmatpush.bf16.msra.mxu0 %v2747
    %2942 = vmatpush.bf16.msra.mxu0 %v2739
    %2943 = vmatpush.bf16.msra.mxu0 %v2731
    %2944 = vmatmul.bf16.gmra.mxu0 %v2154
    %v2945 = vpop.f32.mrf.mxu0
    %v2946 = vadd.f32 %v2933, %v2945
    %v2947 = vpop.f32.mrf.mxu0
    %2948 = vdwg.mxu0
    %2949 = vmatpush.bf16.msra.mxu0 %v2724
    %2950 = vmatpush.bf16.msra.mxu0 %v2716
    %2951 = vmatpush.bf16.msra.mxu0 %v2708
    %2952 = vmatpush.bf16.msra.mxu0 %v2700
    %2953 = vmatpush.bf16.msra.mxu0 %v2692
    %2954 = vmatpush.bf16.msra.mxu0 %v2684
    %2955 = vmatpush.bf16.msra.mxu0 %v2676
    %2956 = vmatpush.bf16.msra.mxu0 %v2668
    %2957 = vmatmul.bf16.gmra.mxu0 %v2153
    %v2958 = vpop.f32.mrf.mxu0
    %v2959 = vadd.f32 0.0, %v2958
    %v2960 = vpop.f32.mrf.mxu0
    %2961 = vdwg.mxu0
    %2962 = vmatpush.bf16.msra.mxu0 %v2788
    %2963 = vmatpush.bf16.msra.mxu0 %v2780
    %2964 = vmatpush.bf16.msra.mxu0 %v2772
    %2965 = vmatpush.bf16.msra.mxu0 %v2764
    %2966 = vmatpush.bf16.msra.mxu0 %v2756
    %2967 = vmatpush.bf16.msra.mxu0 %v2748
    %2968 = vmatpush.bf16.msra.mxu0 %v2740
    %2969 = vmatpush.bf16.msra.mxu0 %v2732
    %2970 = vmatmul.bf16.gmra.mxu0 %v2154
    %v2971 = vpop.f32.mrf.mxu0
    %v2972 = vadd.f32 %v2959, %v2971
    %v2973 = vpop.f32.mrf.mxu0
    %2974 = vdwg.mxu0
    %2975 = vmatpush.bf16.msra.mxu0 %v2725
    %2976 = vmatpush.bf16.msra.mxu0 %v2717
    %2977 = vmatpush.bf16.msra.mxu0 %v2709
    %2978 = vmatpush.bf16.msra.mxu0 %v2701
    %2979 = vmatpush.bf16.msra.mxu0 %v2693
    %2980 = vmatpush.bf16.msra.mxu0 %v2685
    %2981 = vmatpush.bf16.msra.mxu0 %v2677
    %2982 = vmatpush.bf16.msra.mxu0 %v2669
    %2983 = vmatmul.bf16.gmra.mxu0 %v2153
    %v2984 = vpop.f32.mrf.mxu0
    %v2985 = vadd.f32 0.0, %v2984
    %v2986 = vpop.f32.mrf.mxu0
    %2987 = vdwg.mxu0
    %2988 = vmatpush.bf16.msra.mxu0 %v2789
    %2989 = vmatpush.bf16.msra.mxu0 %v2781
    %2990 = vmatpush.bf16.msra.mxu0 %v2773
    %2991 = vmatpush.bf16.msra.mxu0 %v2765
    %2992 = vmatpush.bf16.msra.mxu0 %v2757
    %2993 = vmatpush.bf16.msra.mxu0 %v2749
    %2994 = vmatpush.bf16.msra.mxu0 %v2741
    %2995 = vmatpush.bf16.msra.mxu0 %v2733
    %2996 = vmatmul.bf16.gmra.mxu0 %v2154
    %v2997 = vpop.f32.mrf.mxu0
    %v2998 = vadd.f32 %v2985, %v2997
    %v2999 = vpop.f32.mrf.mxu0
    %3000 = vdwg.mxu0
    %3001 = vmatpush.bf16.msra.mxu0 %v2726
    %3002 = vmatpush.bf16.msra.mxu0 %v2718
    %3003 = vmatpush.bf16.msra.mxu0 %v2710
    %3004 = vmatpush.bf16.msra.mxu0 %v2702
    %3005 = vmatpush.bf16.msra.mxu0 %v2694
    %3006 = vmatpush.bf16.msra.mxu0 %v2686
    %3007 = vmatpush.bf16.msra.mxu0 %v2678
    %3008 = vmatpush.bf16.msra.mxu0 %v2670
    %3009 = vmatmul.bf16.gmra.mxu0 %v2153
    %v3010 = vpop.f32.mrf.mxu0
    %v3011 = vadd.f32 0.0, %v3010
    %v3012 = vpop.f32.mrf.mxu0
    %3013 = vdwg.mxu0
    %3014 = vmatpush.bf16.msra.mxu0 %v2790
    %3015 = vmatpush.bf16.msra.mxu0 %v2782
    %3016 = vmatpush.bf16.msra.mxu0 %v2774
    %3017 = vmatpush.bf16.msra.mxu0 %v2766
    %3018 = vmatpush.bf16.msra.mxu0 %v2758
    %3019 = vmatpush.bf16.msra.mxu0 %v2750
    %3020 = vmatpush.bf16.msra.mxu0 %v2742
    %3021 = vmatpush.bf16.msra.mxu0 %v2734
    %3022 = vmatmul.bf16.gmra.mxu0 %v2154
    %v3023 = vpop.f32.mrf.mxu0
    %v3024 = vadd.f32 %v3011, %v3023
    %v3025 = vpop.f32.mrf.mxu0
    %3026 = vdwg.mxu0
    %3027 = vmatpush.bf16.msra.mxu0 %v2727
    %3028 = vmatpush.bf16.msra.mxu0 %v2719
    %3029 = vmatpush.bf16.msra.mxu0 %v2711
    %3030 = vmatpush.bf16.msra.mxu0 %v2703
    %3031 = vmatpush.bf16.msra.mxu0 %v2695
    %3032 = vmatpush.bf16.msra.mxu0 %v2687
    %3033 = vmatpush.bf16.msra.mxu0 %v2679
    %3034 = vmatpush.bf16.msra.mxu0 %v2671
    %3035 = vmatmul.bf16.gmra.mxu0 %v2153
    %v3036 = vpop.f32.mrf.mxu0
    %v3037 = vadd.f32 0.0, %v3036
    %v3038 = vpop.f32.mrf.mxu0
    %3039 = vdwg.mxu0
    %3040 = vmatpush.bf16.msra.mxu0 %v2791
    %3041 = vmatpush.bf16.msra.mxu0 %v2783
    %3042 = vmatpush.bf16.msra.mxu0 %v2775
    %3043 = vmatpush.bf16.msra.mxu0 %v2767
    %3044 = vmatpush.bf16.msra.mxu0 %v2759
    %3045 = vmatpush.bf16.msra.mxu0 %v2751
    %3046 = vmatpush.bf16.msra.mxu0 %v2743
    %3047 = vmatpush.bf16.msra.mxu0 %v2735
    %3048 = vmatmul.bf16.gmra.mxu0 %v2154
    %v3049 = vpop.f32.mrf.mxu0
    %v3050 = vadd.f32 %v3037, %v3049
    %v3051 = vpop.f32.mrf.mxu0
    %3052 = vdwg.mxu0
    %3053 = vmatpush.bf16.msra.mxu0 %v2728
    %3054 = vmatpush.bf16.msra.mxu0 %v2720
    %3055 = vmatpush.bf16.msra.mxu0 %v2712
    %3056 = vmatpush.bf16.msra.mxu0 %v2704
    %3057 = vmatpush.bf16.msra.mxu0 %v2696
    %3058 = vmatpush.bf16.msra.mxu0 %v2688
    %3059 = vmatpush.bf16.msra.mxu0 %v2680
    %3060 = vmatpush.bf16.msra.mxu0 %v2672
    %3061 = vmatmul.bf16.gmra.mxu0 %v2153
    %v3062 = vpop.f32.mrf.mxu0
    %v3063 = vadd.f32 0.0, %v3062
    %v3064 = vpop.f32.mrf.mxu0
    %3065 = vdwg.mxu0
    %3066 = vmatpush.bf16.msra.mxu0 %v2792
    %3067 = vmatpush.bf16.msra.mxu0 %v2784
    %3068 = vmatpush.bf16.msra.mxu0 %v2776
    %3069 = vmatpush.bf16.msra.mxu0 %v2768
    %3070 = vmatpush.bf16.msra.mxu0 %v2760
    %3071 = vmatpush.bf16.msra.mxu0 %v2752
    %3072 = vmatpush.bf16.msra.mxu0 %v2744
    %3073 = vmatpush.bf16.msra.mxu0 %v2736
    %3074 = vmatmul.bf16.gmra.mxu0 %v2154
    %v3075 = vpop.f32.mrf.mxu0
    %v3076 = vadd.f32 %v3063, %v3075
    %v3077 = vpop.f32.mrf.mxu0
    %3078 = vdwg.mxu0
    %3079 = vmatpush.bf16.msra.mxu0 %v2729
    %3080 = vmatpush.bf16.msra.mxu0 %v2721
    %3081 = vmatpush.bf16.msra.mxu0 %v2713
    %3082 = vmatpush.bf16.msra.mxu0 %v2705
    %3083 = vmatpush.bf16.msra.mxu0 %v2697
    %3084 = vmatpush.bf16.msra.mxu0 %v2689
    %3085 = vmatpush.bf16.msra.mxu0 %v2681
    %3086 = vmatpush.bf16.msra.mxu0 %v2673
    %3087 = vmatmul.bf16.gmra.mxu0 %v2153
    %v3088 = vpop.f32.mrf.mxu0
    %v3089 = vadd.f32 0.0, %v3088
    %v3090 = vpop.f32.mrf.mxu0
    %3091 = vdwg.mxu0
    %3092 = vmatpush.bf16.msra.mxu0 %v2793
    %3093 = vmatpush.bf16.msra.mxu0 %v2785
    %3094 = vmatpush.bf16.msra.mxu0 %v2777
    %3095 = vmatpush.bf16.msra.mxu0 %v2769
    %3096 = vmatpush.bf16.msra.mxu0 %v2761
    %3097 = vmatpush.bf16.msra.mxu0 %v2753
    %3098 = vmatpush.bf16.msra.mxu0 %v2745
    %3099 = vmatpush.bf16.msra.mxu0 %v2737
    %3100 = vmatmul.bf16.gmra.mxu0 %v2154
    %v3101 = vpop.f32.mrf.mxu0
    %v3102 = vadd.f32 %v3089, %v3101
    %v3103 = vpop.f32.mrf.mxu0
    %3104 = vdwg.mxu0
    %3105 = vmatpush.bf16.msra.mxu0 %v2730
    %3106 = vmatpush.bf16.msra.mxu0 %v2722
    %3107 = vmatpush.bf16.msra.mxu0 %v2714
    %3108 = vmatpush.bf16.msra.mxu0 %v2706
    %3109 = vmatpush.bf16.msra.mxu0 %v2698
    %3110 = vmatpush.bf16.msra.mxu0 %v2690
    %3111 = vmatpush.bf16.msra.mxu0 %v2682
    %3112 = vmatpush.bf16.msra.mxu0 %v2674
    %3113 = vmatmul.bf16.gmra.mxu0 %v2153
    %v3114 = vpop.f32.mrf.mxu0
    %v3115 = vadd.f32 0.0, %v3114
    %v3116 = vpop.f32.mrf.mxu0
    %3117 = vdwg.mxu0
    %3118 = vmatpush.bf16.msra.mxu0 %v2794
    %3119 = vmatpush.bf16.msra.mxu0 %v2786
    %3120 = vmatpush.bf16.msra.mxu0 %v2778
    %3121 = vmatpush.bf16.msra.mxu0 %v2770
    %3122 = vmatpush.bf16.msra.mxu0 %v2762
    %3123 = vmatpush.bf16.msra.mxu0 %v2754
    %3124 = vmatpush.bf16.msra.mxu0 %v2746
    %3125 = vmatpush.bf16.msra.mxu0 %v2738
    %3126 = vmatmul.bf16.gmra.mxu0 %v2154
    %v3127 = vpop.f32.mrf.mxu0
    %v3128 = vadd.f32 %v3115, %v3127
    %v3129 = vpop.f32.mrf.mxu0
    %3130 = vdwg.mxu0
    %v3139 = vrot.slane %v2972, 7
    %v3140 = vrot.slane %v2998, 6
    %v3141 = vrot.slane %v3024, 5
    %v3142 = vrot.slane %v3050, 4
    %v3143 = vrot.slane %v3076, 3
    %v3144 = vrot.slane %v3102, 2
    %v3145 = vrot.slane %v3128, 1
    %v3146 = vsel %vm1043, %v2946, %v3139
    %v3147 = vsel %vm1045, %v3140, %v3141
    %v3148 = vsel %vm1047, %v3146, %v3147
    %v3149 = vsel %vm1049, %v3142, %v3143
    %v3150 = vsel %vm1051, %v3144, %v3145
    %v3151 = vsel %vm1053, %v3149, %v3150
    %v3152 = vsel %vm1055, %v3148, %v3151
    %v3154 = vadd.f32 %v2147, %v3152
    %v3155 = vxor.u32 %v3154, 2147483648
    %v3156 = vmul.f32 %v3155, 1.442695
    %v3157 = vpow.pop %v3156
    %v3158 = vadd.f32 %v3157, 1.0
    %v3159 = vrcp.pop %v3158
    %v3160 = vmul.f32 %v3158, %v3159
    %v3161 = vsub.f32 1.0, %v3160
    %v3162 = vmul.f32 %v3159, %v3161
    %v3163 = vadd.f32 %v3159, %v3162
    %vm3164 = vweird.f32 %v3158
    %vm3165 = vweird.f32 %v3159
    %vm3166 = vmor %vm3164, %vm3165
    %v3167 = vsel %vm3166, %v3159, %v3163
    %v3168 = vand.u32 2147483647, %v3158
    %vm3169 = vcmp.eq.f32.partialorder %v3168, 8.507059e+37
    %v3170 = vand.u32 %v3158, 2147483648
    %v3171 = vor.u32 1.1754944e-38, %v3170
    %v3172 = vsel %vm3169, %v3171, %v3167
    %v3173 = vmul.f32 1.0, %v3172
    %v3175 = vrot.slane %v3154, 6
    %v3177 = vtanh.pop %v3175
    %v3179 = vrot.slane %v3173, 2
    %v3181 = vmul.f32 %v3179, %v2143
    %v3182 = vmul.f32 %v3173, %v3177
    %v3183 = vadd.f32 %v3181, %v3182
    %3184 = vst.msk [vmem:[#allocation3] sm:$0x3] %vm37, %v3183
    %v3185 = vtanh.pop %v3183
    %v3186 = vrot.slane %v3173, 4
    %v3188 = vmul.f32 %v3186, %v3185
    %3189 = vst.msk [vmem:[#allocation2] sm:$0x3] %vm37, %v3188
    %v3190 = vld [vmem:[#allocation2] sm:$0x3]
    %v3191 = vld [vmem:[#allocation3] sm:$0x3]
    %s3192 = scalar_lea.vmem %s0, 3
    %v3193 = vld [vmem:[%s3192] ss:$8 sm:$0xf]
    %v3194 = vld [vmem:[%s3192] ss:$8 sm:$0xf0]
    %v3195 = vor.u32 %v3193, %v3194
    %v3197 = vperm.slane %v3190, 0
    %v3198 = vperm.slane %v3190, 1
    %v3201 = vpack.c.bf16 %v3197, %v3197
    %v3202 = vpack.c.bf16 %v3198, %v3198
    %v3203 = vld [vmem:[#allocation4] sm:$0xff]
    %v3204 = vld [vmem:[#allocation4 + $0x8] sm:$0xff]
    %v3205 = vld [vmem:[#allocation4 + $0x10] sm:$0xff]
    %v3206 = vld [vmem:[#allocation4 + $0x18] sm:$0xff]
    %v3207 = vld [vmem:[#allocation4 + $0x20] sm:$0xff]
    %v3208 = vld [vmem:[#allocation4 + $0x28] sm:$0xff]
    %v3209 = vld [vmem:[#allocation4 + $0x30] sm:$0xff]
    %v3210 = vld [vmem:[#allocation4 + $0x38] sm:$0xff]
    %v3211 = vld [vmem:[#allocation4 + $0x40] sm:$0xff]
    %v3212 = vld [vmem:[#allocation4 + $0x48] sm:$0xff]
    %v3213 = vld [vmem:[#allocation4 + $0x50] sm:$0xff]
    %v3214 = vld [vmem:[#allocation4 + $0x58] sm:$0xff]
    %v3215 = vld [vmem:[#allocation4 + $0x60] sm:$0xff]
    %v3216 = vld [vmem:[#allocation4 + $0x68] sm:$0xff]
    %v3217 = vld [vmem:[#allocation4 + $0x70] sm:$0xff]
    %v3218 = vld [vmem:[#allocation4 + $0x78] sm:$0xff]
    %v3219 = vld [vmem:[#allocation4 + $0x80] sm:$0xff]
    %v3220 = vld [vmem:[#allocation4 + $0x88] sm:$0xff]
    %v3221 = vld [vmem:[#allocation4 + $0x90] sm:$0xff]
    %v3222 = vld [vmem:[#allocation4 + $0x98] sm:$0xff]
    %v3223 = vld [vmem:[#allocation4 + $0xa0] sm:$0xff]
    %v3224 = vld [vmem:[#allocation4 + $0xa8] sm:$0xff]
    %v3225 = vld [vmem:[#allocation4 + $0xb0] sm:$0xff]
    %v3226 = vld [vmem:[#allocation4 + $0xb8] sm:$0xff]
    %v3227 = vld [vmem:[#allocation4 + $0xc0] sm:$0xff]
    %v3228 = vld [vmem:[#allocation4 + $0xc8] sm:$0xff]
    %v3229 = vld [vmem:[#allocation4 + $0xd0] sm:$0xff]
    %v3230 = vld [vmem:[#allocation4 + $0xd8] sm:$0xff]
    %v3231 = vld [vmem:[#allocation4 + $0xe0] sm:$0xff]
    %v3232 = vld [vmem:[#allocation4 + $0xe8] sm:$0xff]
    %v3233 = vld [vmem:[#allocation4 + $0xf0] sm:$0xff]
    %v3234 = vld [vmem:[#allocation4 + $0xf8] sm:$0xff]
    %v3235 = vld [vmem:[#allocation4 + $0x100] sm:$0xff]
    %v3236 = vld [vmem:[#allocation4 + $0x108] sm:$0xff]
    %v3237 = vld [vmem:[#allocation4 + $0x110] sm:$0xff]
    %v3238 = vld [vmem:[#allocation4 + $0x118] sm:$0xff]
    %v3239 = vld [vmem:[#allocation4 + $0x120] sm:$0xff]
    %v3240 = vld [vmem:[#allocation4 + $0x128] sm:$0xff]
    %v3241 = vld [vmem:[#allocation4 + $0x130] sm:$0xff]
    %v3242 = vld [vmem:[#allocation4 + $0x138] sm:$0xff]
    %v3243 = vld [vmem:[#allocation4 + $0x140] sm:$0xff]
    %v3244 = vld [vmem:[#allocation4 + $0x148] sm:$0xff]
    %v3245 = vld [vmem:[#allocation4 + $0x150] sm:$0xff]
    %v3246 = vld [vmem:[#allocation4 + $0x158] sm:$0xff]
    %v3247 = vld [vmem:[#allocation4 + $0x160] sm:$0xff]
    %v3248 = vld [vmem:[#allocation4 + $0x168] sm:$0xff]
    %v3249 = vld [vmem:[#allocation4 + $0x170] sm:$0xff]
    %v3250 = vld [vmem:[#allocation4 + $0x178] sm:$0xff]
    %v3251 = vld [vmem:[#allocation4 + $0x180] sm:$0xff]
    %v3252 = vld [vmem:[#allocation4 + $0x188] sm:$0xff]
    %v3253 = vld [vmem:[#allocation4 + $0x190] sm:$0xff]
    %v3254 = vld [vmem:[#allocation4 + $0x198] sm:$0xff]
    %v3255 = vld [vmem:[#allocation4 + $0x1a0] sm:$0xff]
    %v3256 = vld [vmem:[#allocation4 + $0x1a8] sm:$0xff]
    %v3257 = vld [vmem:[#allocation4 + $0x1b0] sm:$0xff]
    %v3258 = vld [vmem:[#allocation4 + $0x1b8] sm:$0xff]
    %v3259 = vld [vmem:[#allocation4 + $0x1c0] sm:$0xff]
    %v3260 = vld [vmem:[#allocation4 + $0x1c8] sm:$0xff]
    %v3261 = vld [vmem:[#allocation4 + $0x1d0] sm:$0xff]
    %v3262 = vld [vmem:[#allocation4 + $0x1d8] sm:$0xff]
    %v3263 = vld [vmem:[#allocation4 + $0x1e0] sm:$0xff]
    %v3264 = vld [vmem:[#allocation4 + $0x1e8] sm:$0xff]
    %v3265 = vld [vmem:[#allocation4 + $0x1f0] sm:$0xff]
    %v3266 = vld [vmem:[#allocation4 + $0x1f8] sm:$0xff]
    %v3267 = vld [vmem:[#allocation4 + $0x200] sm:$0xff]
    %v3268 = vld [vmem:[#allocation4 + $0x208] sm:$0xff]
    %v3269 = vld [vmem:[#allocation4 + $0x210] sm:$0xff]
    %v3270 = vld [vmem:[#allocation4 + $0x218] sm:$0xff]
    %v3271 = vld [vmem:[#allocation4 + $0x220] sm:$0xff]
    %v3272 = vld [vmem:[#allocation4 + $0x228] sm:$0xff]
    %v3273 = vld [vmem:[#allocation4 + $0x230] sm:$0xff]
    %v3274 = vld [vmem:[#allocation4 + $0x238] sm:$0xff]
    %v3275 = vld [vmem:[#allocation4 + $0x240] sm:$0xff]
    %v3276 = vld [vmem:[#allocation4 + $0x248] sm:$0xff]
    %v3277 = vld [vmem:[#allocation4 + $0x250] sm:$0xff]
    %v3278 = vld [vmem:[#allocation4 + $0x258] sm:$0xff]
    %v3279 = vld [vmem:[#allocation4 + $0x260] sm:$0xff]
    %v3280 = vld [vmem:[#allocation4 + $0x268] sm:$0xff]
    %v3281 = vld [vmem:[#allocation4 + $0x270] sm:$0xff]
    %v3282 = vld [vmem:[#allocation4 + $0x278] sm:$0xff]
    %v3283 = vld [vmem:[#allocation4 + $0x280] sm:$0xff]
    %v3284 = vld [vmem:[#allocation4 + $0x288] sm:$0xff]
    %v3285 = vld [vmem:[#allocation4 + $0x290] sm:$0xff]
    %v3286 = vld [vmem:[#allocation4 + $0x298] sm:$0xff]
    %v3287 = vld [vmem:[#allocation4 + $0x2a0] sm:$0xff]
    %v3288 = vld [vmem:[#allocation4 + $0x2a8] sm:$0xff]
    %v3289 = vld [vmem:[#allocation4 + $0x2b0] sm:$0xff]
    %v3290 = vld [vmem:[#allocation4 + $0x2b8] sm:$0xff]
    %v3291 = vld [vmem:[#allocation4 + $0x2c0] sm:$0xff]
    %v3292 = vld [vmem:[#allocation4 + $0x2c8] sm:$0xff]
    %v3293 = vld [vmem:[#allocation4 + $0x2d0] sm:$0xff]
    %v3294 = vld [vmem:[#allocation4 + $0x2d8] sm:$0xff]
    %v3295 = vld [vmem:[#allocation4 + $0x2e0] sm:$0xff]
    %v3296 = vld [vmem:[#allocation4 + $0x2e8] sm:$0xff]
    %v3297 = vld [vmem:[#allocation4 + $0x2f0] sm:$0xff]
    %v3298 = vld [vmem:[#allocation4 + $0x2f8] sm:$0xff]
    %v3299 = vld [vmem:[#allocation4 + $0x300] sm:$0xff]
    %v3300 = vld [vmem:[#allocation4 + $0x308] sm:$0xff]
    %v3301 = vld [vmem:[#allocation4 + $0x310] sm:$0xff]
    %v3302 = vld [vmem:[#allocation4 + $0x318] sm:$0xff]
    %v3303 = vld [vmem:[#allocation4 + $0x320] sm:$0xff]
    %v3304 = vld [vmem:[#allocation4 + $0x328] sm:$0xff]
    %v3305 = vld [vmem:[#allocation4 + $0x330] sm:$0xff]
    %v3306 = vld [vmem:[#allocation4 + $0x338] sm:$0xff]
    %v3307 = vld [vmem:[#allocation4 + $0x340] sm:$0xff]
    %v3308 = vld [vmem:[#allocation4 + $0x348] sm:$0xff]
    %v3309 = vld [vmem:[#allocation4 + $0x350] sm:$0xff]
    %v3310 = vld [vmem:[#allocation4 + $0x358] sm:$0xff]
    %v3311 = vld [vmem:[#allocation4 + $0x360] sm:$0xff]
    %v3312 = vld [vmem:[#allocation4 + $0x368] sm:$0xff]
    %v3313 = vld [vmem:[#allocation4 + $0x370] sm:$0xff]
    %v3314 = vld [vmem:[#allocation4 + $0x378] sm:$0xff]
    %v3315 = vld [vmem:[#allocation4 + $0x380] sm:$0xff]
    %v3316 = vld [vmem:[#allocation4 + $0x388] sm:$0xff]
    %v3317 = vld [vmem:[#allocation4 + $0x390] sm:$0xff]
    %v3318 = vld [vmem:[#allocation4 + $0x398] sm:$0xff]
    %v3319 = vld [vmem:[#allocation4 + $0x3a0] sm:$0xff]
    %v3320 = vld [vmem:[#allocation4 + $0x3a8] sm:$0xff]
    %v3321 = vld [vmem:[#allocation4 + $0x3b0] sm:$0xff]
    %v3322 = vld [vmem:[#allocation4 + $0x3b8] sm:$0xff]
    %v3323 = vld [vmem:[#allocation4 + $0x3c0] sm:$0xff]
    %v3324 = vld [vmem:[#allocation4 + $0x3c8] sm:$0xff]
    %v3325 = vld [vmem:[#allocation4 + $0x3d0] sm:$0xff]
    %v3326 = vld [vmem:[#allocation4 + $0x3d8] sm:$0xff]
    %v3327 = vld [vmem:[#allocation4 + $0x3e0] sm:$0xff]
    %v3328 = vld [vmem:[#allocation4 + $0x3e8] sm:$0xff]
    %v3329 = vld [vmem:[#allocation4 + $0x3f0] sm:$0xff]
    %v3330 = vld [vmem:[#allocation4 + $0x3f8] sm:$0xff]
    %v3459 = vunpack.c.l.b16 %v3203
    %v3460 = vunpack.c.h.b16 %v3203
    %v3461 = vunpack.c.l.b16 %v3204
    %v3462 = vunpack.c.h.b16 %v3204
    %v3463 = vunpack.c.l.b16 %v3205
    %v3464 = vunpack.c.h.b16 %v3205
    %v3465 = vunpack.c.l.b16 %v3206
    %v3466 = vunpack.c.h.b16 %v3206
    %v3467 = vunpack.c.l.b16 %v3207
    %v3468 = vunpack.c.h.b16 %v3207
    %v3469 = vunpack.c.l.b16 %v3208
    %v3470 = vunpack.c.h.b16 %v3208
    %v3471 = vunpack.c.l.b16 %v3209
    %v3472 = vunpack.c.h.b16 %v3209
    %v3473 = vunpack.c.l.b16 %v3210
    %v3474 = vunpack.c.h.b16 %v3210
    %v3475 = vunpack.c.l.b16 %v3211
    %v3476 = vunpack.c.h.b16 %v3211
    %v3477 = vunpack.c.l.b16 %v3212
    %v3478 = vunpack.c.h.b16 %v3212
    %v3479 = vunpack.c.l.b16 %v3213
    %v3480 = vunpack.c.h.b16 %v3213
    %v3481 = vunpack.c.l.b16 %v3214
    %v3482 = vunpack.c.h.b16 %v3214
    %v3483 = vunpack.c.l.b16 %v3215
    %v3484 = vunpack.c.h.b16 %v3215
    %v3485 = vunpack.c.l.b16 %v3216
    %v3486 = vunpack.c.h.b16 %v3216
    %v3487 = vunpack.c.l.b16 %v3217
    %v3488 = vunpack.c.h.b16 %v3217
    %v3489 = vunpack.c.l.b16 %v3218
    %v3490 = vunpack.c.h.b16 %v3218
    %v3491 = vunpack.c.l.b16 %v3219
    %v3492 = vunpack.c.h.b16 %v3219
    %v3493 = vunpack.c.l.b16 %v3220
    %v3494 = vunpack.c.h.b16 %v3220
    %v3495 = vunpack.c.l.b16 %v3221
    %v3496 = vunpack.c.h.b16 %v3221
    %v3497 = vunpack.c.l.b16 %v3222
    %v3498 = vunpack.c.h.b16 %v3222
    %v3499 = vunpack.c.l.b16 %v3223
    %v3500 = vunpack.c.h.b16 %v3223
    %v3501 = vunpack.c.l.b16 %v3224
    %v3502 = vunpack.c.h.b16 %v3224
    %v3503 = vunpack.c.l.b16 %v3225
    %v3504 = vunpack.c.h.b16 %v3225
    %v3505 = vunpack.c.l.b16 %v3226
    %v3506 = vunpack.c.h.b16 %v3226
    %v3507 = vunpack.c.l.b16 %v3227
    %v3508 = vunpack.c.h.b16 %v3227
    %v3509 = vunpack.c.l.b16 %v3228
    %v3510 = vunpack.c.h.b16 %v3228
    %v3511 = vunpack.c.l.b16 %v3229
    %v3512 = vunpack.c.h.b16 %v3229
    %v3513 = vunpack.c.l.b16 %v3230
    %v3514 = vunpack.c.h.b16 %v3230
    %v3515 = vunpack.c.l.b16 %v3231
    %v3516 = vunpack.c.h.b16 %v3231
    %v3517 = vunpack.c.l.b16 %v3232
    %v3518 = vunpack.c.h.b16 %v3232
    %v3519 = vunpack.c.l.b16 %v3233
    %v3520 = vunpack.c.h.b16 %v3233
    %v3521 = vunpack.c.l.b16 %v3234
    %v3522 = vunpack.c.h.b16 %v3234
    %v3523 = vunpack.c.l.b16 %v3235
    %v3524 = vunpack.c.h.b16 %v3235
    %v3525 = vunpack.c.l.b16 %v3236
    %v3526 = vunpack.c.h.b16 %v3236
    %v3527 = vunpack.c.l.b16 %v3237
    %v3528 = vunpack.c.h.b16 %v3237
    %v3529 = vunpack.c.l.b16 %v3238
    %v3530 = vunpack.c.h.b16 %v3238
    %v3531 = vunpack.c.l.b16 %v3239
    %v3532 = vunpack.c.h.b16 %v3239
    %v3533 = vunpack.c.l.b16 %v3240
    %v3534 = vunpack.c.h.b16 %v3240
    %v3535 = vunpack.c.l.b16 %v3241
    %v3536 = vunpack.c.h.b16 %v3241
    %v3537 = vunpack.c.l.b16 %v3242
    %v3538 = vunpack.c.h.b16 %v3242
    %v3539 = vunpack.c.l.b16 %v3243
    %v3540 = vunpack.c.h.b16 %v3243
    %v3541 = vunpack.c.l.b16 %v3244
    %v3542 = vunpack.c.h.b16 %v3244
    %v3543 = vunpack.c.l.b16 %v3245
    %v3544 = vunpack.c.h.b16 %v3245
    %v3545 = vunpack.c.l.b16 %v3246
    %v3546 = vunpack.c.h.b16 %v3246
    %v3547 = vunpack.c.l.b16 %v3247
    %v3548 = vunpack.c.h.b16 %v3247
    %v3549 = vunpack.c.l.b16 %v3248
    %v3550 = vunpack.c.h.b16 %v3248
    %v3551 = vunpack.c.l.b16 %v3249
    %v3552 = vunpack.c.h.b16 %v3249
    %v3553 = vunpack.c.l.b16 %v3250
    %v3554 = vunpack.c.h.b16 %v3250
    %v3555 = vunpack.c.l.b16 %v3251
    %v3556 = vunpack.c.h.b16 %v3251
    %v3557 = vunpack.c.l.b16 %v3252
    %v3558 = vunpack.c.h.b16 %v3252
    %v3559 = vunpack.c.l.b16 %v3253
    %v3560 = vunpack.c.h.b16 %v3253
    %v3561 = vunpack.c.l.b16 %v3254
    %v3562 = vunpack.c.h.b16 %v3254
    %v3563 = vunpack.c.l.b16 %v3255
    %v3564 = vunpack.c.h.b16 %v3255
    %v3565 = vunpack.c.l.b16 %v3256
    %v3566 = vunpack.c.h.b16 %v3256
    %v3567 = vunpack.c.l.b16 %v3257
    %v3568 = vunpack.c.h.b16 %v3257
    %v3569 = vunpack.c.l.b16 %v3258
    %v3570 = vunpack.c.h.b16 %v3258
    %v3571 = vunpack.c.l.b16 %v3259
    %v3572 = vunpack.c.h.b16 %v3259
    %v3573 = vunpack.c.l.b16 %v3260
    %v3574 = vunpack.c.h.b16 %v3260
    %v3575 = vunpack.c.l.b16 %v3261
    %v3576 = vunpack.c.h.b16 %v3261
    %v3577 = vunpack.c.l.b16 %v3262
    %v3578 = vunpack.c.h.b16 %v3262
    %v3579 = vunpack.c.l.b16 %v3263
    %v3580 = vunpack.c.h.b16 %v3263
    %v3581 = vunpack.c.l.b16 %v3264
    %v3582 = vunpack.c.h.b16 %v3264
    %v3583 = vunpack.c.l.b16 %v3265
    %v3584 = vunpack.c.h.b16 %v3265
    %v3585 = vunpack.c.l.b16 %v3266
    %v3586 = vunpack.c.h.b16 %v3266
    %v3587 = vunpack.c.l.b16 %v3267
    %v3588 = vunpack.c.h.b16 %v3267
    %v3589 = vunpack.c.l.b16 %v3268
    %v3590 = vunpack.c.h.b16 %v3268
    %v3591 = vunpack.c.l.b16 %v3269
    %v3592 = vunpack.c.h.b16 %v3269
    %v3593 = vunpack.c.l.b16 %v3270
    %v3594 = vunpack.c.h.b16 %v3270
    %v3595 = vunpack.c.l.b16 %v3271
    %v3596 = vunpack.c.h.b16 %v3271
    %v3597 = vunpack.c.l.b16 %v3272
    %v3598 = vunpack.c.h.b16 %v3272
    %v3599 = vunpack.c.l.b16 %v3273
    %v3600 = vunpack.c.h.b16 %v3273
    %v3601 = vunpack.c.l.b16 %v3274
    %v3602 = vunpack.c.h.b16 %v3274
    %v3603 = vunpack.c.l.b16 %v3275
    %v3604 = vunpack.c.h.b16 %v3275
    %v3605 = vunpack.c.l.b16 %v3276
    %v3606 = vunpack.c.h.b16 %v3276
    %v3607 = vunpack.c.l.b16 %v3277
    %v3608 = vunpack.c.h.b16 %v3277
    %v3609 = vunpack.c.l.b16 %v3278
    %v3610 = vunpack.c.h.b16 %v3278
    %v3611 = vunpack.c.l.b16 %v3279
    %v3612 = vunpack.c.h.b16 %v3279
    %v3613 = vunpack.c.l.b16 %v3280
    %v3614 = vunpack.c.h.b16 %v3280
    %v3615 = vunpack.c.l.b16 %v3281
    %v3616 = vunpack.c.h.b16 %v3281
    %v3617 = vunpack.c.l.b16 %v3282
    %v3618 = vunpack.c.h.b16 %v3282
    %v3619 = vunpack.c.l.b16 %v3283
    %v3620 = vunpack.c.h.b16 %v3283
    %v3621 = vunpack.c.l.b16 %v3284
    %v3622 = vunpack.c.h.b16 %v3284
    %v3623 = vunpack.c.l.b16 %v3285
    %v3624 = vunpack.c.h.b16 %v3285
    %v3625 = vunpack.c.l.b16 %v3286
    %v3626 = vunpack.c.h.b16 %v3286
    %v3627 = vunpack.c.l.b16 %v3287
    %v3628 = vunpack.c.h.b16 %v3287
    %v3629 = vunpack.c.l.b16 %v3288
    %v3630 = vunpack.c.h.b16 %v3288
    %v3631 = vunpack.c.l.b16 %v3289
    %v3632 = vunpack.c.h.b16 %v3289
    %v3633 = vunpack.c.l.b16 %v3290
    %v3634 = vunpack.c.h.b16 %v3290
    %v3635 = vunpack.c.l.b16 %v3291
    %v3636 = vunpack.c.h.b16 %v3291
    %v3637 = vunpack.c.l.b16 %v3292
    %v3638 = vunpack.c.h.b16 %v3292
    %v3639 = vunpack.c.l.b16 %v3293
    %v3640 = vunpack.c.h.b16 %v3293
    %v3641 = vunpack.c.l.b16 %v3294
    %v3642 = vunpack.c.h.b16 %v3294
    %v3643 = vunpack.c.l.b16 %v3295
    %v3644 = vunpack.c.h.b16 %v3295
    %v3645 = vunpack.c.l.b16 %v3296
    %v3646 = vunpack.c.h.b16 %v3296
    %v3647 = vunpack.c.l.b16 %v3297
    %v3648 = vunpack.c.h.b16 %v3297
    %v3649 = vunpack.c.l.b16 %v3298
    %v3650 = vunpack.c.h.b16 %v3298
    %v3651 = vunpack.c.l.b16 %v3299
    %v3652 = vunpack.c.h.b16 %v3299
    %v3653 = vunpack.c.l.b16 %v3300
    %v3654 = vunpack.c.h.b16 %v3300
    %v3655 = vunpack.c.l.b16 %v3301
    %v3656 = vunpack.c.h.b16 %v3301
    %v3657 = vunpack.c.l.b16 %v3302
    %v3658 = vunpack.c.h.b16 %v3302
    %v3659 = vunpack.c.l.b16 %v3303
    %v3660 = vunpack.c.h.b16 %v3303
    %v3661 = vunpack.c.l.b16 %v3304
    %v3662 = vunpack.c.h.b16 %v3304
    %v3663 = vunpack.c.l.b16 %v3305
    %v3664 = vunpack.c.h.b16 %v3305
    %v3665 = vunpack.c.l.b16 %v3306
    %v3666 = vunpack.c.h.b16 %v3306
    %v3667 = vunpack.c.l.b16 %v3307
    %v3668 = vunpack.c.h.b16 %v3307
    %v3669 = vunpack.c.l.b16 %v3308
    %v3670 = vunpack.c.h.b16 %v3308
    %v3671 = vunpack.c.l.b16 %v3309
    %v3672 = vunpack.c.h.b16 %v3309
    %v3673 = vunpack.c.l.b16 %v3310
    %v3674 = vunpack.c.h.b16 %v3310
    %v3675 = vunpack.c.l.b16 %v3311
    %v3676 = vunpack.c.h.b16 %v3311
    %v3677 = vunpack.c.l.b16 %v3312
    %v3678 = vunpack.c.h.b16 %v3312
    %v3679 = vunpack.c.l.b16 %v3313
    %v3680 = vunpack.c.h.b16 %v3313
    %v3681 = vunpack.c.l.b16 %v3314
    %v3682 = vunpack.c.h.b16 %v3314
    %v3683 = vunpack.c.l.b16 %v3315
    %v3684 = vunpack.c.h.b16 %v3315
    %v3685 = vunpack.c.l.b16 %v3316
    %v3686 = vunpack.c.h.b16 %v3316
    %v3687 = vunpack.c.l.b16 %v3317
    %v3688 = vunpack.c.h.b16 %v3317
    %v3689 = vunpack.c.l.b16 %v3318
    %v3690 = vunpack.c.h.b16 %v3318
    %v3691 = vunpack.c.l.b16 %v3319
    %v3692 = vunpack.c.h.b16 %v3319
    %v3693 = vunpack.c.l.b16 %v3320
    %v3694 = vunpack.c.h.b16 %v3320
    %v3695 = vunpack.c.l.b16 %v3321
    %v3696 = vunpack.c.h.b16 %v3321
    %v3697 = vunpack.c.l.b16 %v3322
    %v3698 = vunpack.c.h.b16 %v3322
    %v3699 = vunpack.c.l.b16 %v3323
    %v3700 = vunpack.c.h.b16 %v3323
    %v3701 = vunpack.c.l.b16 %v3324
    %v3702 = vunpack.c.h.b16 %v3324
    %v3703 = vunpack.c.l.b16 %v3325
    %v3704 = vunpack.c.h.b16 %v3325
    %v3705 = vunpack.c.l.b16 %v3326
    %v3706 = vunpack.c.h.b16 %v3326
    %v3707 = vunpack.c.l.b16 %v3327
    %v3708 = vunpack.c.h.b16 %v3327
    %v3709 = vunpack.c.l.b16 %v3328
    %v3710 = vunpack.c.h.b16 %v3328
    %v3711 = vunpack.c.l.b16 %v3329
    %v3712 = vunpack.c.h.b16 %v3329
    %v3713 = vunpack.c.l.b16 %v3330
    %v3714 = vunpack.c.h.b16 %v3330
    %v3715 = vpack.c.b16 %v3467, %v3459
    %v3716 = vpack.c.b16 %v3468, %v3460
    %v3717 = vpack.c.b16 %v3469, %v3461
    %v3718 = vpack.c.b16 %v3470, %v3462
    %v3719 = vpack.c.b16 %v3471, %v3463
    %v3720 = vpack.c.b16 %v3472, %v3464
    %v3721 = vpack.c.b16 %v3473, %v3465
    %v3722 = vpack.c.b16 %v3474, %v3466
    %v3723 = vpack.c.b16 %v3483, %v3475
    %v3724 = vpack.c.b16 %v3484, %v3476
    %v3725 = vpack.c.b16 %v3485, %v3477
    %v3726 = vpack.c.b16 %v3486, %v3478
    %v3727 = vpack.c.b16 %v3487, %v3479
    %v3728 = vpack.c.b16 %v3488, %v3480
    %v3729 = vpack.c.b16 %v3489, %v3481
    %v3730 = vpack.c.b16 %v3490, %v3482
    %v3731 = vpack.c.b16 %v3499, %v3491
    %v3732 = vpack.c.b16 %v3500, %v3492
    %v3733 = vpack.c.b16 %v3501, %v3493
    %v3734 = vpack.c.b16 %v3502, %v3494
    %v3735 = vpack.c.b16 %v3503, %v3495
    %v3736 = vpack.c.b16 %v3504, %v3496
    %v3737 = vpack.c.b16 %v3505, %v3497
    %v3738 = vpack.c.b16 %v3506, %v3498
    %v3739 = vpack.c.b16 %v3515, %v3507
    %v3740 = vpack.c.b16 %v3516, %v3508
    %v3741 = vpack.c.b16 %v3517, %v3509
    %v3742 = vpack.c.b16 %v3518, %v3510
    %v3743 = vpack.c.b16 %v3519, %v3511
    %v3744 = vpack.c.b16 %v3520, %v3512
    %v3745 = vpack.c.b16 %v3521, %v3513
    %v3746 = vpack.c.b16 %v3522, %v3514
    %v3747 = vpack.c.b16 %v3531, %v3523
    %v3748 = vpack.c.b16 %v3532, %v3524
    %v3749 = vpack.c.b16 %v3533, %v3525
    %v3750 = vpack.c.b16 %v3534, %v3526
    %v3751 = vpack.c.b16 %v3535, %v3527
    %v3752 = vpack.c.b16 %v3536, %v3528
    %v3753 = vpack.c.b16 %v3537, %v3529
    %v3754 = vpack.c.b16 %v3538, %v3530
    %v3755 = vpack.c.b16 %v3547, %v3539
    %v3756 = vpack.c.b16 %v3548, %v3540
    %v3757 = vpack.c.b16 %v3549, %v3541
    %v3758 = vpack.c.b16 %v3550, %v3542
    %v3759 = vpack.c.b16 %v3551, %v3543
    %v3760 = vpack.c.b16 %v3552, %v3544
    %v3761 = vpack.c.b16 %v3553, %v3545
    %v3762 = vpack.c.b16 %v3554, %v3546
    %v3763 = vpack.c.b16 %v3563, %v3555
    %v3764 = vpack.c.b16 %v3564, %v3556
    %v3765 = vpack.c.b16 %v3565, %v3557
    %v3766 = vpack.c.b16 %v3566, %v3558
    %v3767 = vpack.c.b16 %v3567, %v3559
    %v3768 = vpack.c.b16 %v3568, %v3560
    %v3769 = vpack.c.b16 %v3569, %v3561
    %v3770 = vpack.c.b16 %v3570, %v3562
    %v3771 = vpack.c.b16 %v3579, %v3571
    %v3772 = vpack.c.b16 %v3580, %v3572
    %v3773 = vpack.c.b16 %v3581, %v3573
    %v3774 = vpack.c.b16 %v3582, %v3574
    %v3775 = vpack.c.b16 %v3583, %v3575
    %v3776 = vpack.c.b16 %v3584, %v3576
    %v3777 = vpack.c.b16 %v3585, %v3577
    %v3778 = vpack.c.b16 %v3586, %v3578
    %v3779 = vpack.c.b16 %v3595, %v3587
    %v3780 = vpack.c.b16 %v3596, %v3588
    %v3781 = vpack.c.b16 %v3597, %v3589
    %v3782 = vpack.c.b16 %v3598, %v3590
    %v3783 = vpack.c.b16 %v3599, %v3591
    %v3784 = vpack.c.b16 %v3600, %v3592
    %v3785 = vpack.c.b16 %v3601, %v3593
    %v3786 = vpack.c.b16 %v3602, %v3594
    %v3787 = vpack.c.b16 %v3611, %v3603
    %v3788 = vpack.c.b16 %v3612, %v3604
    %v3789 = vpack.c.b16 %v3613, %v3605
    %v3790 = vpack.c.b16 %v3614, %v3606
    %v3791 = vpack.c.b16 %v3615, %v3607
    %v3792 = vpack.c.b16 %v3616, %v3608
    %v3793 = vpack.c.b16 %v3617, %v3609
    %v3794 = vpack.c.b16 %v3618, %v3610
    %v3795 = vpack.c.b16 %v3627, %v3619
    %v3796 = vpack.c.b16 %v3628, %v3620
    %v3797 = vpack.c.b16 %v3629, %v3621
    %v3798 = vpack.c.b16 %v3630, %v3622
    %v3799 = vpack.c.b16 %v3631, %v3623
    %v3800 = vpack.c.b16 %v3632, %v3624
    %v3801 = vpack.c.b16 %v3633, %v3625
    %v3802 = vpack.c.b16 %v3634, %v3626
    %v3803 = vpack.c.b16 %v3643, %v3635
    %v3804 = vpack.c.b16 %v3644, %v3636
    %v3805 = vpack.c.b16 %v3645, %v3637
    %v3806 = vpack.c.b16 %v3646, %v3638
    %v3807 = vpack.c.b16 %v3647, %v3639
    %v3808 = vpack.c.b16 %v3648, %v3640
    %v3809 = vpack.c.b16 %v3649, %v3641
    %v3810 = vpack.c.b16 %v3650, %v3642
    %v3811 = vpack.c.b16 %v3659, %v3651
    %v3812 = vpack.c.b16 %v3660, %v3652
    %v3813 = vpack.c.b16 %v3661, %v3653
    %v3814 = vpack.c.b16 %v3662, %v3654
    %v3815 = vpack.c.b16 %v3663, %v3655
    %v3816 = vpack.c.b16 %v3664, %v3656
    %v3817 = vpack.c.b16 %v3665, %v3657
    %v3818 = vpack.c.b16 %v3666, %v3658
    %v3819 = vpack.c.b16 %v3675, %v3667
    %v3820 = vpack.c.b16 %v3676, %v3668
    %v3821 = vpack.c.b16 %v3677, %v3669
    %v3822 = vpack.c.b16 %v3678, %v3670
    %v3823 = vpack.c.b16 %v3679, %v3671
    %v3824 = vpack.c.b16 %v3680, %v3672
    %v3825 = vpack.c.b16 %v3681, %v3673
    %v3826 = vpack.c.b16 %v3682, %v3674
    %v3827 = vpack.c.b16 %v3691, %v3683
    %v3828 = vpack.c.b16 %v3692, %v3684
    %v3829 = vpack.c.b16 %v3693, %v3685
    %v3830 = vpack.c.b16 %v3694, %v3686
    %v3831 = vpack.c.b16 %v3695, %v3687
    %v3832 = vpack.c.b16 %v3696, %v3688
    %v3833 = vpack.c.b16 %v3697, %v3689
    %v3834 = vpack.c.b16 %v3698, %v3690
    %v3835 = vpack.c.b16 %v3707, %v3699
    %v3836 = vpack.c.b16 %v3708, %v3700
    %v3837 = vpack.c.b16 %v3709, %v3701
    %v3838 = vpack.c.b16 %v3710, %v3702
    %v3839 = vpack.c.b16 %v3711, %v3703
    %v3840 = vpack.c.b16 %v3712, %v3704
    %v3841 = vpack.c.b16 %v3713, %v3705
    %v3842 = vpack.c.b16 %v3714, %v3706
    %3971 = vmatpush.bf16.msra.mxu0 %v3771
    %3972 = vmatpush.bf16.msra.mxu0 %v3763
    %3973 = vmatpush.bf16.msra.mxu0 %v3755
    %3974 = vmatpush.bf16.msra.mxu0 %v3747
    %3975 = vmatpush.bf16.msra.mxu0 %v3739
    %3976 = vmatpush.bf16.msra.mxu0 %v3731
    %3977 = vmatpush.bf16.msra.mxu0 %v3723
    %3978 = vmatpush.bf16.msra.mxu0 %v3715
    %3979 = vmatmul.bf16.gmra.mxu0 %v3201
    %v3980 = vpop.f32.mrf.mxu0
    %v3981 = vadd.f32 0.0, %v3980
    %v3982 = vpop.f32.mrf.mxu0
    %3983 = vdwg.mxu0
    %3984 = vmatpush.bf16.msra.mxu0 %v3835
    %3985 = vmatpush.bf16.msra.mxu0 %v3827
    %3986 = vmatpush.bf16.msra.mxu0 %v3819
    %3987 = vmatpush.bf16.msra.mxu0 %v3811
    %3988 = vmatpush.bf16.msra.mxu0 %v3803
    %3989 = vmatpush.bf16.msra.mxu0 %v3795
    %3990 = vmatpush.bf16.msra.mxu0 %v3787
    %3991 = vmatpush.bf16.msra.mxu0 %v3779
    %3992 = vmatmul.bf16.gmra.mxu0 %v3202
    %v3993 = vpop.f32.mrf.mxu0
    %v3994 = vadd.f32 %v3981, %v3993
    %v3995 = vpop.f32.mrf.mxu0
    %3996 = vdwg.mxu0
    %3997 = vmatpush.bf16.msra.mxu0 %v3772
    %3998 = vmatpush.bf16.msra.mxu0 %v3764
    %3999 = vmatpush.bf16.msra.mxu0 %v3756
    %4000 = vmatpush.bf16.msra.mxu0 %v3748
    %4001 = vmatpush.bf16.msra.mxu0 %v3740
    %4002 = vmatpush.bf16.msra.mxu0 %v3732
    %4003 = vmatpush.bf16.msra.mxu0 %v3724
    %4004 = vmatpush.bf16.msra.mxu0 %v3716
    %4005 = vmatmul.bf16.gmra.mxu0 %v3201
    %v4006 = vpop.f32.mrf.mxu0
    %v4007 = vadd.f32 0.0, %v4006
    %v4008 = vpop.f32.mrf.mxu0
    %4009 = vdwg.mxu0
    %4010 = vmatpush.bf16.msra.mxu0 %v3836
    %4011 = vmatpush.bf16.msra.mxu0 %v3828
    %4012 = vmatpush.bf16.msra.mxu0 %v3820
    %4013 = vmatpush.bf16.msra.mxu0 %v3812
    %4014 = vmatpush.bf16.msra.mxu0 %v3804
    %4015 = vmatpush.bf16.msra.mxu0 %v3796
    %4016 = vmatpush.bf16.msra.mxu0 %v3788
    %4017 = vmatpush.bf16.msra.mxu0 %v3780
    %4018 = vmatmul.bf16.gmra.mxu0 %v3202
    %v4019 = vpop.f32.mrf.mxu0
    %v4020 = vadd.f32 %v4007, %v4019
    %v4021 = vpop.f32.mrf.mxu0
    %4022 = vdwg.mxu0
    %4023 = vmatpush.bf16.msra.mxu0 %v3773
    %4024 = vmatpush.bf16.msra.mxu0 %v3765
    %4025 = vmatpush.bf16.msra.mxu0 %v3757
    %4026 = vmatpush.bf16.msra.mxu0 %v3749
    %4027 = vmatpush.bf16.msra.mxu0 %v3741
    %4028 = vmatpush.bf16.msra.mxu0 %v3733
    %4029 = vmatpush.bf16.msra.mxu0 %v3725
    %4030 = vmatpush.bf16.msra.mxu0 %v3717
    %4031 = vmatmul.bf16.gmra.mxu0 %v3201
    %v4032 = vpop.f32.mrf.mxu0
    %v4033 = vadd.f32 0.0, %v4032
    %v4034 = vpop.f32.mrf.mxu0
    %4035 = vdwg.mxu0
    %4036 = vmatpush.bf16.msra.mxu0 %v3837
    %4037 = vmatpush.bf16.msra.mxu0 %v3829
    %4038 = vmatpush.bf16.msra.mxu0 %v3821
    %4039 = vmatpush.bf16.msra.mxu0 %v3813
    %4040 = vmatpush.bf16.msra.mxu0 %v3805
    %4041 = vmatpush.bf16.msra.mxu0 %v3797
    %4042 = vmatpush.bf16.msra.mxu0 %v3789
    %4043 = vmatpush.bf16.msra.mxu0 %v3781
    %4044 = vmatmul.bf16.gmra.mxu0 %v3202
    %v4045 = vpop.f32.mrf.mxu0
    %v4046 = vadd.f32 %v4033, %v4045
    %v4047 = vpop.f32.mrf.mxu0
    %4048 = vdwg.mxu0
    %4049 = vmatpush.bf16.msra.mxu0 %v3774
    %4050 = vmatpush.bf16.msra.mxu0 %v3766
    %4051 = vmatpush.bf16.msra.mxu0 %v3758
    %4052 = vmatpush.bf16.msra.mxu0 %v3750
    %4053 = vmatpush.bf16.msra.mxu0 %v3742
    %4054 = vmatpush.bf16.msra.mxu0 %v3734
    %4055 = vmatpush.bf16.msra.mxu0 %v3726
    %4056 = vmatpush.bf16.msra.mxu0 %v3718
    %4057 = vmatmul.bf16.gmra.mxu0 %v3201
    %v4058 = vpop.f32.mrf.mxu0
    %v4059 = vadd.f32 0.0, %v4058
    %v4060 = vpop.f32.mrf.mxu0
    %4061 = vdwg.mxu0
    %4062 = vmatpush.bf16.msra.mxu0 %v3838
    %4063 = vmatpush.bf16.msra.mxu0 %v3830
    %4064 = vmatpush.bf16.msra.mxu0 %v3822
    %4065 = vmatpush.bf16.msra.mxu0 %v3814
    %4066 = vmatpush.bf16.msra.mxu0 %v3806
    %4067 = vmatpush.bf16.msra.mxu0 %v3798
    %4068 = vmatpush.bf16.msra.mxu0 %v3790
    %4069 = vmatpush.bf16.msra.mxu0 %v3782
    %4070 = vmatmul.bf16.gmra.mxu0 %v3202
    %v4071 = vpop.f32.mrf.mxu0
    %v4072 = vadd.f32 %v4059, %v4071
    %v4073 = vpop.f32.mrf.mxu0
    %4074 = vdwg.mxu0
    %4075 = vmatpush.bf16.msra.mxu0 %v3775
    %4076 = vmatpush.bf16.msra.mxu0 %v3767
    %4077 = vmatpush.bf16.msra.mxu0 %v3759
    %4078 = vmatpush.bf16.msra.mxu0 %v3751
    %4079 = vmatpush.bf16.msra.mxu0 %v3743
    %4080 = vmatpush.bf16.msra.mxu0 %v3735
    %4081 = vmatpush.bf16.msra.mxu0 %v3727
    %4082 = vmatpush.bf16.msra.mxu0 %v3719
    %4083 = vmatmul.bf16.gmra.mxu0 %v3201
    %v4084 = vpop.f32.mrf.mxu0
    %v4085 = vadd.f32 0.0, %v4084
    %v4086 = vpop.f32.mrf.mxu0
    %4087 = vdwg.mxu0
    %4088 = vmatpush.bf16.msra.mxu0 %v3839
    %4089 = vmatpush.bf16.msra.mxu0 %v3831
    %4090 = vmatpush.bf16.msra.mxu0 %v3823
    %4091 = vmatpush.bf16.msra.mxu0 %v3815
    %4092 = vmatpush.bf16.msra.mxu0 %v3807
    %4093 = vmatpush.bf16.msra.mxu0 %v3799
    %4094 = vmatpush.bf16.msra.mxu0 %v3791
    %4095 = vmatpush.bf16.msra.mxu0 %v3783
    %4096 = vmatmul.bf16.gmra.mxu0 %v3202
    %v4097 = vpop.f32.mrf.mxu0
    %v4098 = vadd.f32 %v4085, %v4097
    %v4099 = vpop.f32.mrf.mxu0
    %4100 = vdwg.mxu0
    %4101 = vmatpush.bf16.msra.mxu0 %v3776
    %4102 = vmatpush.bf16.msra.mxu0 %v3768
    %4103 = vmatpush.bf16.msra.mxu0 %v3760
    %4104 = vmatpush.bf16.msra.mxu0 %v3752
    %4105 = vmatpush.bf16.msra.mxu0 %v3744
    %4106 = vmatpush.bf16.msra.mxu0 %v3736
    %4107 = vmatpush.bf16.msra.mxu0 %v3728
    %4108 = vmatpush.bf16.msra.mxu0 %v3720
    %4109 = vmatmul.bf16.gmra.mxu0 %v3201
    %v4110 = vpop.f32.mrf.mxu0
    %v4111 = vadd.f32 0.0, %v4110
    %v4112 = vpop.f32.mrf.mxu0
    %4113 = vdwg.mxu0
    %4114 = vmatpush.bf16.msra.mxu0 %v3840
    %4115 = vmatpush.bf16.msra.mxu0 %v3832
    %4116 = vmatpush.bf16.msra.mxu0 %v3824
    %4117 = vmatpush.bf16.msra.mxu0 %v3816
    %4118 = vmatpush.bf16.msra.mxu0 %v3808
    %4119 = vmatpush.bf16.msra.mxu0 %v3800
    %4120 = vmatpush.bf16.msra.mxu0 %v3792
    %4121 = vmatpush.bf16.msra.mxu0 %v3784
    %4122 = vmatmul.bf16.gmra.mxu0 %v3202
    %v4123 = vpop.f32.mrf.mxu0
    %v4124 = vadd.f32 %v4111, %v4123
    %v4125 = vpop.f32.mrf.mxu0
    %4126 = vdwg.mxu0
    %4127 = vmatpush.bf16.msra.mxu0 %v3777
    %4128 = vmatpush.bf16.msra.mxu0 %v3769
    %4129 = vmatpush.bf16.msra.mxu0 %v3761
    %4130 = vmatpush.bf16.msra.mxu0 %v3753
    %4131 = vmatpush.bf16.msra.mxu0 %v3745
    %4132 = vmatpush.bf16.msra.mxu0 %v3737
    %4133 = vmatpush.bf16.msra.mxu0 %v3729
    %4134 = vmatpush.bf16.msra.mxu0 %v3721
    %4135 = vmatmul.bf16.gmra.mxu0 %v3201
    %v4136 = vpop.f32.mrf.mxu0
    %v4137 = vadd.f32 0.0, %v4136
    %v4138 = vpop.f32.mrf.mxu0
    %4139 = vdwg.mxu0
    %4140 = vmatpush.bf16.msra.mxu0 %v3841
    %4141 = vmatpush.bf16.msra.mxu0 %v3833
    %4142 = vmatpush.bf16.msra.mxu0 %v3825
    %4143 = vmatpush.bf16.msra.mxu0 %v3817
    %4144 = vmatpush.bf16.msra.mxu0 %v3809
    %4145 = vmatpush.bf16.msra.mxu0 %v3801
    %4146 = vmatpush.bf16.msra.mxu0 %v3793
    %4147 = vmatpush.bf16.msra.mxu0 %v3785
    %4148 = vmatmul.bf16.gmra.mxu0 %v3202
    %v4149 = vpop.f32.mrf.mxu0
    %v4150 = vadd.f32 %v4137, %v4149
    %v4151 = vpop.f32.mrf.mxu0
    %4152 = vdwg.mxu0
    %4153 = vmatpush.bf16.msra.mxu0 %v3778
    %4154 = vmatpush.bf16.msra.mxu0 %v3770
    %4155 = vmatpush.bf16.msra.mxu0 %v3762
    %4156 = vmatpush.bf16.msra.mxu0 %v3754
    %4157 = vmatpush.bf16.msra.mxu0 %v3746
    %4158 = vmatpush.bf16.msra.mxu0 %v3738
    %4159 = vmatpush.bf16.msra.mxu0 %v3730
    %4160 = vmatpush.bf16.msra.mxu0 %v3722
    %4161 = vmatmul.bf16.gmra.mxu0 %v3201
    %v4162 = vpop.f32.mrf.mxu0
    %v4163 = vadd.f32 0.0, %v4162
    %v4164 = vpop.f32.mrf.mxu0
    %4165 = vdwg.mxu0
    %4166 = vmatpush.bf16.msra.mxu0 %v3842
    %4167 = vmatpush.bf16.msra.mxu0 %v3834
    %4168 = vmatpush.bf16.msra.mxu0 %v3826
    %4169 = vmatpush.bf16.msra.mxu0 %v3818
    %4170 = vmatpush.bf16.msra.mxu0 %v3810
    %4171 = vmatpush.bf16.msra.mxu0 %v3802
    %4172 = vmatpush.bf16.msra.mxu0 %v3794
    %4173 = vmatpush.bf16.msra.mxu0 %v3786
    %4174 = vmatmul.bf16.gmra.mxu0 %v3202
    %v4175 = vpop.f32.mrf.mxu0
    %v4176 = vadd.f32 %v4163, %v4175
    %v4177 = vpop.f32.mrf.mxu0
    %4178 = vdwg.mxu0
    %v4187 = vrot.slane %v4020, 7
    %v4188 = vrot.slane %v4046, 6
    %v4189 = vrot.slane %v4072, 5
    %v4190 = vrot.slane %v4098, 4
    %v4191 = vrot.slane %v4124, 3
    %v4192 = vrot.slane %v4150, 2
    %v4193 = vrot.slane %v4176, 1
    %v4194 = vsel %vm1043, %v3994, %v4187
    %v4195 = vsel %vm1045, %v4188, %v4189
    %v4196 = vsel %vm1047, %v4194, %v4195
    %v4197 = vsel %vm1049, %v4190, %v4191
    %v4198 = vsel %vm1051, %v4192, %v4193
    %v4199 = vsel %vm1053, %v4197, %v4198
    %v4200 = vsel %vm1055, %v4196, %v4199
    %v4202 = vadd.f32 %v3195, %v4200
    %v4203 = vxor.u32 %v4202, 2147483648
    %v4204 = vmul.f32 %v4203, 1.442695
    %v4205 = vpow.pop %v4204
    %v4206 = vadd.f32 %v4205, 1.0
    %v4207 = vrcp.pop %v4206
    %v4208 = vmul.f32 %v4206, %v4207
    %v4209 = vsub.f32 1.0, %v4208
    %v4210 = vmul.f32 %v4207, %v4209
    %v4211 = vadd.f32 %v4207, %v4210
    %vm4212 = vweird.f32 %v4206
    %vm4213 = vweird.f32 %v4207
    %vm4214 = vmor %vm4212, %vm4213
    %v4215 = vsel %vm4214, %v4207, %v4211
    %v4216 = vand.u32 2147483647, %v4206
    %vm4217 = vcmp.eq.f32.partialorder %v4216, 8.507059e+37
    %v4218 = vand.u32 %v4206, 2147483648
    %v4219 = vor.u32 1.1754944e-38, %v4218
    %v4220 = vsel %vm4217, %v4219, %v4215
    %v4221 = vmul.f32 1.0, %v4220
    %v4223 = vrot.slane %v4202, 6
    %v4225 = vtanh.pop %v4223
    %v4227 = vrot.slane %v4221, 2
    %v4229 = vmul.f32 %v4227, %v3191
    %v4230 = vmul.f32 %v4221, %v4225
    %v4231 = vadd.f32 %v4229, %v4230
    %4232 = vst.msk [vmem:[#allocation3] sm:$0x3] %vm37, %v4231
    %v4233 = vtanh.pop %v4231
    %v4234 = vrot.slane %v4221, 4
    %v4236 = vmul.f32 %v4234, %v4233
    %4237 = vst.msk [vmem:[#allocation2] sm:$0x3] %vm37, %v4236
    %v4238 = vld [vmem:[#allocation2] sm:$0x3]
    %v4239 = vld [vmem:[#allocation3] sm:$0x3]
    %s4240 = scalar_lea.vmem %s0, 4
    %v4241 = vld [vmem:[%s4240] ss:$8 sm:$0xf]
    %v4242 = vld [vmem:[%s4240] ss:$8 sm:$0xf0]
    %v4243 = vor.u32 %v4241, %v4242
    %v4245 = vperm.slane %v4238, 0
    %v4246 = vperm.slane %v4238, 1
    %v4249 = vpack.c.bf16 %v4245, %v4245
    %v4250 = vpack.c.bf16 %v4246, %v4246
    %v4251 = vld [vmem:[#allocation4] sm:$0xff]
    %v4252 = vld [vmem:[#allocation4 + $0x8] sm:$0xff]
    %v4253 = vld [vmem:[#allocation4 + $0x10] sm:$0xff]
    %v4254 = vld [vmem:[#allocation4 + $0x18] sm:$0xff]
    %v4255 = vld [vmem:[#allocation4 + $0x20] sm:$0xff]
    %v4256 = vld [vmem:[#allocation4 + $0x28] sm:$0xff]
    %v4257 = vld [vmem:[#allocation4 + $0x30] sm:$0xff]
    %v4258 = vld [vmem:[#allocation4 + $0x38] sm:$0xff]
    %v4259 = vld [vmem:[#allocation4 + $0x40] sm:$0xff]
    %v4260 = vld [vmem:[#allocation4 + $0x48] sm:$0xff]
    %v4261 = vld [vmem:[#allocation4 + $0x50] sm:$0xff]
    %v4262 = vld [vmem:[#allocation4 + $0x58] sm:$0xff]
    %v4263 = vld [vmem:[#allocation4 + $0x60] sm:$0xff]
    %v4264 = vld [vmem:[#allocation4 + $0x68] sm:$0xff]
    %v4265 = vld [vmem:[#allocation4 + $0x70] sm:$0xff]
    %v4266 = vld [vmem:[#allocation4 + $0x78] sm:$0xff]
    %v4267 = vld [vmem:[#allocation4 + $0x80] sm:$0xff]
    %v4268 = vld [vmem:[#allocation4 + $0x88] sm:$0xff]
    %v4269 = vld [vmem:[#allocation4 + $0x90] sm:$0xff]
    %v4270 = vld [vmem:[#allocation4 + $0x98] sm:$0xff]
    %v4271 = vld [vmem:[#allocation4 + $0xa0] sm:$0xff]
    %v4272 = vld [vmem:[#allocation4 + $0xa8] sm:$0xff]
    %v4273 = vld [vmem:[#allocation4 + $0xb0] sm:$0xff]
    %v4274 = vld [vmem:[#allocation4 + $0xb8] sm:$0xff]
    %v4275 = vld [vmem:[#allocation4 + $0xc0] sm:$0xff]
    %v4276 = vld [vmem:[#allocation4 + $0xc8] sm:$0xff]
    %v4277 = vld [vmem:[#allocation4 + $0xd0] sm:$0xff]
    %v4278 = vld [vmem:[#allocation4 + $0xd8] sm:$0xff]
    %v4279 = vld [vmem:[#allocation4 + $0xe0] sm:$0xff]
    %v4280 = vld [vmem:[#allocation4 + $0xe8] sm:$0xff]
    %v4281 = vld [vmem:[#allocation4 + $0xf0] sm:$0xff]
    %v4282 = vld [vmem:[#allocation4 + $0xf8] sm:$0xff]
    %v4283 = vld [vmem:[#allocation4 + $0x100] sm:$0xff]
    %v4284 = vld [vmem:[#allocation4 + $0x108] sm:$0xff]
    %v4285 = vld [vmem:[#allocation4 + $0x110] sm:$0xff]
    %v4286 = vld [vmem:[#allocation4 + $0x118] sm:$0xff]
    %v4287 = vld [vmem:[#allocation4 + $0x120] sm:$0xff]
    %v4288 = vld [vmem:[#allocation4 + $0x128] sm:$0xff]
    %v4289 = vld [vmem:[#allocation4 + $0x130] sm:$0xff]
    %v4290 = vld [vmem:[#allocation4 + $0x138] sm:$0xff]
    %v4291 = vld [vmem:[#allocation4 + $0x140] sm:$0xff]
    %v4292 = vld [vmem:[#allocation4 + $0x148] sm:$0xff]
    %v4293 = vld [vmem:[#allocation4 + $0x150] sm:$0xff]
    %v4294 = vld [vmem:[#allocation4 + $0x158] sm:$0xff]
    %v4295 = vld [vmem:[#allocation4 + $0x160] sm:$0xff]
    %v4296 = vld [vmem:[#allocation4 + $0x168] sm:$0xff]
    %v4297 = vld [vmem:[#allocation4 + $0x170] sm:$0xff]
    %v4298 = vld [vmem:[#allocation4 + $0x178] sm:$0xff]
    %v4299 = vld [vmem:[#allocation4 + $0x180] sm:$0xff]
    %v4300 = vld [vmem:[#allocation4 + $0x188] sm:$0xff]
    %v4301 = vld [vmem:[#allocation4 + $0x190] sm:$0xff]
    %v4302 = vld [vmem:[#allocation4 + $0x198] sm:$0xff]
    %v4303 = vld [vmem:[#allocation4 + $0x1a0] sm:$0xff]
    %v4304 = vld [vmem:[#allocation4 + $0x1a8] sm:$0xff]
    %v4305 = vld [vmem:[#allocation4 + $0x1b0] sm:$0xff]
    %v4306 = vld [vmem:[#allocation4 + $0x1b8] sm:$0xff]
    %v4307 = vld [vmem:[#allocation4 + $0x1c0] sm:$0xff]
    %v4308 = vld [vmem:[#allocation4 + $0x1c8] sm:$0xff]
    %v4309 = vld [vmem:[#allocation4 + $0x1d0] sm:$0xff]
    %v4310 = vld [vmem:[#allocation4 + $0x1d8] sm:$0xff]
    %v4311 = vld [vmem:[#allocation4 + $0x1e0] sm:$0xff]
    %v4312 = vld [vmem:[#allocation4 + $0x1e8] sm:$0xff]
    %v4313 = vld [vmem:[#allocation4 + $0x1f0] sm:$0xff]
    %v4314 = vld [vmem:[#allocation4 + $0x1f8] sm:$0xff]
    %v4315 = vld [vmem:[#allocation4 + $0x200] sm:$0xff]
    %v4316 = vld [vmem:[#allocation4 + $0x208] sm:$0xff]
    %v4317 = vld [vmem:[#allocation4 + $0x210] sm:$0xff]
    %v4318 = vld [vmem:[#allocation4 + $0x218] sm:$0xff]
    %v4319 = vld [vmem:[#allocation4 + $0x220] sm:$0xff]
    %v4320 = vld [vmem:[#allocation4 + $0x228] sm:$0xff]
    %v4321 = vld [vmem:[#allocation4 + $0x230] sm:$0xff]
    %v4322 = vld [vmem:[#allocation4 + $0x238] sm:$0xff]
    %v4323 = vld [vmem:[#allocation4 + $0x240] sm:$0xff]
    %v4324 = vld [vmem:[#allocation4 + $0x248] sm:$0xff]
    %v4325 = vld [vmem:[#allocation4 + $0x250] sm:$0xff]
    %v4326 = vld [vmem:[#allocation4 + $0x258] sm:$0xff]
    %v4327 = vld [vmem:[#allocation4 + $0x260] sm:$0xff]
    %v4328 = vld [vmem:[#allocation4 + $0x268] sm:$0xff]
    %v4329 = vld [vmem:[#allocation4 + $0x270] sm:$0xff]
    %v4330 = vld [vmem:[#allocation4 + $0x278] sm:$0xff]
    %v4331 = vld [vmem:[#allocation4 + $0x280] sm:$0xff]
    %v4332 = vld [vmem:[#allocation4 + $0x288] sm:$0xff]
    %v4333 = vld [vmem:[#allocation4 + $0x290] sm:$0xff]
    %v4334 = vld [vmem:[#allocation4 + $0x298] sm:$0xff]
    %v4335 = vld [vmem:[#allocation4 + $0x2a0] sm:$0xff]
    %v4336 = vld [vmem:[#allocation4 + $0x2a8] sm:$0xff]
    %v4337 = vld [vmem:[#allocation4 + $0x2b0] sm:$0xff]
    %v4338 = vld [vmem:[#allocation4 + $0x2b8] sm:$0xff]
    %v4339 = vld [vmem:[#allocation4 + $0x2c0] sm:$0xff]
    %v4340 = vld [vmem:[#allocation4 + $0x2c8] sm:$0xff]
    %v4341 = vld [vmem:[#allocation4 + $0x2d0] sm:$0xff]
    %v4342 = vld [vmem:[#allocation4 + $0x2d8] sm:$0xff]
    %v4343 = vld [vmem:[#allocation4 + $0x2e0] sm:$0xff]
    %v4344 = vld [vmem:[#allocation4 + $0x2e8] sm:$0xff]
    %v4345 = vld [vmem:[#allocation4 + $0x2f0] sm:$0xff]
    %v4346 = vld [vmem:[#allocation4 + $0x2f8] sm:$0xff]
    %v4347 = vld [vmem:[#allocation4 + $0x300] sm:$0xff]
    %v4348 = vld [vmem:[#allocation4 + $0x308] sm:$0xff]
    %v4349 = vld [vmem:[#allocation4 + $0x310] sm:$0xff]
    %v4350 = vld [vmem:[#allocation4 + $0x318] sm:$0xff]
    %v4351 = vld [vmem:[#allocation4 + $0x320] sm:$0xff]
    %v4352 = vld [vmem:[#allocation4 + $0x328] sm:$0xff]
    %v4353 = vld [vmem:[#allocation4 + $0x330] sm:$0xff]
    %v4354 = vld [vmem:[#allocation4 + $0x338] sm:$0xff]
    %v4355 = vld [vmem:[#allocation4 + $0x340] sm:$0xff]
    %v4356 = vld [vmem:[#allocation4 + $0x348] sm:$0xff]
    %v4357 = vld [vmem:[#allocation4 + $0x350] sm:$0xff]
    %v4358 = vld [vmem:[#allocation4 + $0x358] sm:$0xff]
    %v4359 = vld [vmem:[#allocation4 + $0x360] sm:$0xff]
    %v4360 = vld [vmem:[#allocation4 + $0x368] sm:$0xff]
    %v4361 = vld [vmem:[#allocation4 + $0x370] sm:$0xff]
    %v4362 = vld [vmem:[#allocation4 + $0x378] sm:$0xff]
    %v4363 = vld [vmem:[#allocation4 + $0x380] sm:$0xff]
    %v4364 = vld [vmem:[#allocation4 + $0x388] sm:$0xff]
    %v4365 = vld [vmem:[#allocation4 + $0x390] sm:$0xff]
    %v4366 = vld [vmem:[#allocation4 + $0x398] sm:$0xff]
    %v4367 = vld [vmem:[#allocation4 + $0x3a0] sm:$0xff]
    %v4368 = vld [vmem:[#allocation4 + $0x3a8] sm:$0xff]
    %v4369 = vld [vmem:[#allocation4 + $0x3b0] sm:$0xff]
    %v4370 = vld [vmem:[#allocation4 + $0x3b8] sm:$0xff]
    %v4371 = vld [vmem:[#allocation4 + $0x3c0] sm:$0xff]
    %v4372 = vld [vmem:[#allocation4 + $0x3c8] sm:$0xff]
    %v4373 = vld [vmem:[#allocation4 + $0x3d0] sm:$0xff]
    %v4374 = vld [vmem:[#allocation4 + $0x3d8] sm:$0xff]
    %v4375 = vld [vmem:[#allocation4 + $0x3e0] sm:$0xff]
    %v4376 = vld [vmem:[#allocation4 + $0x3e8] sm:$0xff]
    %v4377 = vld [vmem:[#allocation4 + $0x3f0] sm:$0xff]
    %v4378 = vld [vmem:[#allocation4 + $0x3f8] sm:$0xff]
    %v4507 = vunpack.c.l.b16 %v4251
    %v4508 = vunpack.c.h.b16 %v4251
    %v4509 = vunpack.c.l.b16 %v4252
    %v4510 = vunpack.c.h.b16 %v4252
    %v4511 = vunpack.c.l.b16 %v4253
    %v4512 = vunpack.c.h.b16 %v4253
    %v4513 = vunpack.c.l.b16 %v4254
    %v4514 = vunpack.c.h.b16 %v4254
    %v4515 = vunpack.c.l.b16 %v4255
    %v4516 = vunpack.c.h.b16 %v4255
    %v4517 = vunpack.c.l.b16 %v4256
    %v4518 = vunpack.c.h.b16 %v4256
    %v4519 = vunpack.c.l.b16 %v4257
    %v4520 = vunpack.c.h.b16 %v4257
    %v4521 = vunpack.c.l.b16 %v4258
    %v4522 = vunpack.c.h.b16 %v4258
    %v4523 = vunpack.c.l.b16 %v4259
    %v4524 = vunpack.c.h.b16 %v4259
    %v4525 = vunpack.c.l.b16 %v4260
    %v4526 = vunpack.c.h.b16 %v4260
    %v4527 = vunpack.c.l.b16 %v4261
    %v4528 = vunpack.c.h.b16 %v4261
    %v4529 = vunpack.c.l.b16 %v4262
    %v4530 = vunpack.c.h.b16 %v4262
    %v4531 = vunpack.c.l.b16 %v4263
    %v4532 = vunpack.c.h.b16 %v4263
    %v4533 = vunpack.c.l.b16 %v4264
    %v4534 = vunpack.c.h.b16 %v4264
    %v4535 = vunpack.c.l.b16 %v4265
    %v4536 = vunpack.c.h.b16 %v4265
    %v4537 = vunpack.c.l.b16 %v4266
    %v4538 = vunpack.c.h.b16 %v4266
    %v4539 = vunpack.c.l.b16 %v4267
    %v4540 = vunpack.c.h.b16 %v4267
    %v4541 = vunpack.c.l.b16 %v4268
    %v4542 = vunpack.c.h.b16 %v4268
    %v4543 = vunpack.c.l.b16 %v4269
    %v4544 = vunpack.c.h.b16 %v4269
    %v4545 = vunpack.c.l.b16 %v4270
    %v4546 = vunpack.c.h.b16 %v4270
    %v4547 = vunpack.c.l.b16 %v4271
    %v4548 = vunpack.c.h.b16 %v4271
    %v4549 = vunpack.c.l.b16 %v4272
    %v4550 = vunpack.c.h.b16 %v4272
    %v4551 = vunpack.c.l.b16 %v4273
    %v4552 = vunpack.c.h.b16 %v4273
    %v4553 = vunpack.c.l.b16 %v4274
    %v4554 = vunpack.c.h.b16 %v4274
    %v4555 = vunpack.c.l.b16 %v4275
    %v4556 = vunpack.c.h.b16 %v4275
    %v4557 = vunpack.c.l.b16 %v4276
    %v4558 = vunpack.c.h.b16 %v4276
    %v4559 = vunpack.c.l.b16 %v4277
    %v4560 = vunpack.c.h.b16 %v4277
    %v4561 = vunpack.c.l.b16 %v4278
    %v4562 = vunpack.c.h.b16 %v4278
    %v4563 = vunpack.c.l.b16 %v4279
    %v4564 = vunpack.c.h.b16 %v4279
    %v4565 = vunpack.c.l.b16 %v4280
    %v4566 = vunpack.c.h.b16 %v4280
    %v4567 = vunpack.c.l.b16 %v4281
    %v4568 = vunpack.c.h.b16 %v4281
    %v4569 = vunpack.c.l.b16 %v4282
    %v4570 = vunpack.c.h.b16 %v4282
    %v4571 = vunpack.c.l.b16 %v4283
    %v4572 = vunpack.c.h.b16 %v4283
    %v4573 = vunpack.c.l.b16 %v4284
    %v4574 = vunpack.c.h.b16 %v4284
    %v4575 = vunpack.c.l.b16 %v4285
    %v4576 = vunpack.c.h.b16 %v4285
    %v4577 = vunpack.c.l.b16 %v4286
    %v4578 = vunpack.c.h.b16 %v4286
    %v4579 = vunpack.c.l.b16 %v4287
    %v4580 = vunpack.c.h.b16 %v4287
    %v4581 = vunpack.c.l.b16 %v4288
    %v4582 = vunpack.c.h.b16 %v4288
    %v4583 = vunpack.c.l.b16 %v4289
    %v4584 = vunpack.c.h.b16 %v4289
    %v4585 = vunpack.c.l.b16 %v4290
    %v4586 = vunpack.c.h.b16 %v4290
    %v4587 = vunpack.c.l.b16 %v4291
    %v4588 = vunpack.c.h.b16 %v4291
    %v4589 = vunpack.c.l.b16 %v4292
    %v4590 = vunpack.c.h.b16 %v4292
    %v4591 = vunpack.c.l.b16 %v4293
    %v4592 = vunpack.c.h.b16 %v4293
    %v4593 = vunpack.c.l.b16 %v4294
    %v4594 = vunpack.c.h.b16 %v4294
    %v4595 = vunpack.c.l.b16 %v4295
    %v4596 = vunpack.c.h.b16 %v4295
    %v4597 = vunpack.c.l.b16 %v4296
    %v4598 = vunpack.c.h.b16 %v4296
    %v4599 = vunpack.c.l.b16 %v4297
    %v4600 = vunpack.c.h.b16 %v4297
    %v4601 = vunpack.c.l.b16 %v4298
    %v4602 = vunpack.c.h.b16 %v4298
    %v4603 = vunpack.c.l.b16 %v4299
    %v4604 = vunpack.c.h.b16 %v4299
    %v4605 = vunpack.c.l.b16 %v4300
    %v4606 = vunpack.c.h.b16 %v4300
    %v4607 = vunpack.c.l.b16 %v4301
    %v4608 = vunpack.c.h.b16 %v4301
    %v4609 = vunpack.c.l.b16 %v4302
    %v4610 = vunpack.c.h.b16 %v4302
    %v4611 = vunpack.c.l.b16 %v4303
    %v4612 = vunpack.c.h.b16 %v4303
    %v4613 = vunpack.c.l.b16 %v4304
    %v4614 = vunpack.c.h.b16 %v4304
    %v4615 = vunpack.c.l.b16 %v4305
    %v4616 = vunpack.c.h.b16 %v4305
    %v4617 = vunpack.c.l.b16 %v4306
    %v4618 = vunpack.c.h.b16 %v4306
    %v4619 = vunpack.c.l.b16 %v4307
    %v4620 = vunpack.c.h.b16 %v4307
    %v4621 = vunpack.c.l.b16 %v4308
    %v4622 = vunpack.c.h.b16 %v4308
    %v4623 = vunpack.c.l.b16 %v4309
    %v4624 = vunpack.c.h.b16 %v4309
    %v4625 = vunpack.c.l.b16 %v4310
    %v4626 = vunpack.c.h.b16 %v4310
    %v4627 = vunpack.c.l.b16 %v4311
    %v4628 = vunpack.c.h.b16 %v4311
    %v4629 = vunpack.c.l.b16 %v4312
    %v4630 = vunpack.c.h.b16 %v4312
    %v4631 = vunpack.c.l.b16 %v4313
    %v4632 = vunpack.c.h.b16 %v4313
    %v4633 = vunpack.c.l.b16 %v4314
    %v4634 = vunpack.c.h.b16 %v4314
    %v4635 = vunpack.c.l.b16 %v4315
    %v4636 = vunpack.c.h.b16 %v4315
    %v4637 = vunpack.c.l.b16 %v4316
    %v4638 = vunpack.c.h.b16 %v4316
    %v4639 = vunpack.c.l.b16 %v4317
    %v4640 = vunpack.c.h.b16 %v4317
    %v4641 = vunpack.c.l.b16 %v4318
    %v4642 = vunpack.c.h.b16 %v4318
    %v4643 = vunpack.c.l.b16 %v4319
    %v4644 = vunpack.c.h.b16 %v4319
    %v4645 = vunpack.c.l.b16 %v4320
    %v4646 = vunpack.c.h.b16 %v4320
    %v4647 = vunpack.c.l.b16 %v4321
    %v4648 = vunpack.c.h.b16 %v4321
    %v4649 = vunpack.c.l.b16 %v4322
    %v4650 = vunpack.c.h.b16 %v4322
    %v4651 = vunpack.c.l.b16 %v4323
    %v4652 = vunpack.c.h.b16 %v4323
    %v4653 = vunpack.c.l.b16 %v4324
    %v4654 = vunpack.c.h.b16 %v4324
    %v4655 = vunpack.c.l.b16 %v4325
    %v4656 = vunpack.c.h.b16 %v4325
    %v4657 = vunpack.c.l.b16 %v4326
    %v4658 = vunpack.c.h.b16 %v4326
    %v4659 = vunpack.c.l.b16 %v4327
    %v4660 = vunpack.c.h.b16 %v4327
    %v4661 = vunpack.c.l.b16 %v4328
    %v4662 = vunpack.c.h.b16 %v4328
    %v4663 = vunpack.c.l.b16 %v4329
    %v4664 = vunpack.c.h.b16 %v4329
    %v4665 = vunpack.c.l.b16 %v4330
    %v4666 = vunpack.c.h.b16 %v4330
    %v4667 = vunpack.c.l.b16 %v4331
    %v4668 = vunpack.c.h.b16 %v4331
    %v4669 = vunpack.c.l.b16 %v4332
    %v4670 = vunpack.c.h.b16 %v4332
    %v4671 = vunpack.c.l.b16 %v4333
    %v4672 = vunpack.c.h.b16 %v4333
    %v4673 = vunpack.c.l.b16 %v4334
    %v4674 = vunpack.c.h.b16 %v4334
    %v4675 = vunpack.c.l.b16 %v4335
    %v4676 = vunpack.c.h.b16 %v4335
    %v4677 = vunpack.c.l.b16 %v4336
    %v4678 = vunpack.c.h.b16 %v4336
    %v4679 = vunpack.c.l.b16 %v4337
    %v4680 = vunpack.c.h.b16 %v4337
    %v4681 = vunpack.c.l.b16 %v4338
    %v4682 = vunpack.c.h.b16 %v4338
    %v4683 = vunpack.c.l.b16 %v4339
    %v4684 = vunpack.c.h.b16 %v4339
    %v4685 = vunpack.c.l.b16 %v4340
    %v4686 = vunpack.c.h.b16 %v4340
    %v4687 = vunpack.c.l.b16 %v4341
    %v4688 = vunpack.c.h.b16 %v4341
    %v4689 = vunpack.c.l.b16 %v4342
    %v4690 = vunpack.c.h.b16 %v4342
    %v4691 = vunpack.c.l.b16 %v4343
    %v4692 = vunpack.c.h.b16 %v4343
    %v4693 = vunpack.c.l.b16 %v4344
    %v4694 = vunpack.c.h.b16 %v4344
    %v4695 = vunpack.c.l.b16 %v4345
    %v4696 = vunpack.c.h.b16 %v4345
    %v4697 = vunpack.c.l.b16 %v4346
    %v4698 = vunpack.c.h.b16 %v4346
    %v4699 = vunpack.c.l.b16 %v4347
    %v4700 = vunpack.c.h.b16 %v4347
    %v4701 = vunpack.c.l.b16 %v4348
    %v4702 = vunpack.c.h.b16 %v4348
    %v4703 = vunpack.c.l.b16 %v4349
    %v4704 = vunpack.c.h.b16 %v4349
    %v4705 = vunpack.c.l.b16 %v4350
    %v4706 = vunpack.c.h.b16 %v4350
    %v4707 = vunpack.c.l.b16 %v4351
    %v4708 = vunpack.c.h.b16 %v4351
    %v4709 = vunpack.c.l.b16 %v4352
    %v4710 = vunpack.c.h.b16 %v4352
    %v4711 = vunpack.c.l.b16 %v4353
    %v4712 = vunpack.c.h.b16 %v4353
    %v4713 = vunpack.c.l.b16 %v4354
    %v4714 = vunpack.c.h.b16 %v4354
    %v4715 = vunpack.c.l.b16 %v4355
    %v4716 = vunpack.c.h.b16 %v4355
    %v4717 = vunpack.c.l.b16 %v4356
    %v4718 = vunpack.c.h.b16 %v4356
    %v4719 = vunpack.c.l.b16 %v4357
    %v4720 = vunpack.c.h.b16 %v4357
    %v4721 = vunpack.c.l.b16 %v4358
    %v4722 = vunpack.c.h.b16 %v4358
    %v4723 = vunpack.c.l.b16 %v4359
    %v4724 = vunpack.c.h.b16 %v4359
    %v4725 = vunpack.c.l.b16 %v4360
    %v4726 = vunpack.c.h.b16 %v4360
    %v4727 = vunpack.c.l.b16 %v4361
    %v4728 = vunpack.c.h.b16 %v4361
    %v4729 = vunpack.c.l.b16 %v4362
    %v4730 = vunpack.c.h.b16 %v4362
    %v4731 = vunpack.c.l.b16 %v4363
    %v4732 = vunpack.c.h.b16 %v4363
    %v4733 = vunpack.c.l.b16 %v4364
    %v4734 = vunpack.c.h.b16 %v4364
    %v4735 = vunpack.c.l.b16 %v4365
    %v4736 = vunpack.c.h.b16 %v4365
    %v4737 = vunpack.c.l.b16 %v4366
    %v4738 = vunpack.c.h.b16 %v4366
    %v4739 = vunpack.c.l.b16 %v4367
    %v4740 = vunpack.c.h.b16 %v4367
    %v4741 = vunpack.c.l.b16 %v4368
    %v4742 = vunpack.c.h.b16 %v4368
    %v4743 = vunpack.c.l.b16 %v4369
    %v4744 = vunpack.c.h.b16 %v4369
    %v4745 = vunpack.c.l.b16 %v4370
    %v4746 = vunpack.c.h.b16 %v4370
    %v4747 = vunpack.c.l.b16 %v4371
    %v4748 = vunpack.c.h.b16 %v4371
    %v4749 = vunpack.c.l.b16 %v4372
    %v4750 = vunpack.c.h.b16 %v4372
    %v4751 = vunpack.c.l.b16 %v4373
    %v4752 = vunpack.c.h.b16 %v4373
    %v4753 = vunpack.c.l.b16 %v4374
    %v4754 = vunpack.c.h.b16 %v4374
    %v4755 = vunpack.c.l.b16 %v4375
    %v4756 = vunpack.c.h.b16 %v4375
    %v4757 = vunpack.c.l.b16 %v4376
    %v4758 = vunpack.c.h.b16 %v4376
    %v4759 = vunpack.c.l.b16 %v4377
    %v4760 = vunpack.c.h.b16 %v4377
    %v4761 = vunpack.c.l.b16 %v4378
    %v4762 = vunpack.c.h.b16 %v4378
    %v4763 = vpack.c.b16 %v4515, %v4507
    %v4764 = vpack.c.b16 %v4516, %v4508
    %v4765 = vpack.c.b16 %v4517, %v4509
    %v4766 = vpack.c.b16 %v4518, %v4510
    %v4767 = vpack.c.b16 %v4519, %v4511
    %v4768 = vpack.c.b16 %v4520, %v4512
    %v4769 = vpack.c.b16 %v4521, %v4513
    %v4770 = vpack.c.b16 %v4522, %v4514
    %v4771 = vpack.c.b16 %v4531, %v4523
    %v4772 = vpack.c.b16 %v4532, %v4524
    %v4773 = vpack.c.b16 %v4533, %v4525
    %v4774 = vpack.c.b16 %v4534, %v4526
    %v4775 = vpack.c.b16 %v4535, %v4527
    %v4776 = vpack.c.b16 %v4536, %v4528
    %v4777 = vpack.c.b16 %v4537, %v4529
    %v4778 = vpack.c.b16 %v4538, %v4530
    %v4779 = vpack.c.b16 %v4547, %v4539
    %v4780 = vpack.c.b16 %v4548, %v4540
    %v4781 = vpack.c.b16 %v4549, %v4541
    %v4782 = vpack.c.b16 %v4550, %v4542
    %v4783 = vpack.c.b16 %v4551, %v4543
    %v4784 = vpack.c.b16 %v4552, %v4544
    %v4785 = vpack.c.b16 %v4553, %v4545
    %v4786 = vpack.c.b16 %v4554, %v4546
    %v4787 = vpack.c.b16 %v4563, %v4555
    %v4788 = vpack.c.b16 %v4564, %v4556
    %v4789 = vpack.c.b16 %v4565, %v4557
    %v4790 = vpack.c.b16 %v4566, %v4558
    %v4791 = vpack.c.b16 %v4567, %v4559
    %v4792 = vpack.c.b16 %v4568, %v4560
    %v4793 = vpack.c.b16 %v4569, %v4561
    %v4794 = vpack.c.b16 %v4570, %v4562
    %v4795 = vpack.c.b16 %v4579, %v4571
    %v4796 = vpack.c.b16 %v4580, %v4572
    %v4797 = vpack.c.b16 %v4581, %v4573
    %v4798 = vpack.c.b16 %v4582, %v4574
    %v4799 = vpack.c.b16 %v4583, %v4575
    %v4800 = vpack.c.b16 %v4584, %v4576
    %v4801 = vpack.c.b16 %v4585, %v4577
    %v4802 = vpack.c.b16 %v4586, %v4578
    %v4803 = vpack.c.b16 %v4595, %v4587
    %v4804 = vpack.c.b16 %v4596, %v4588
    %v4805 = vpack.c.b16 %v4597, %v4589
    %v4806 = vpack.c.b16 %v4598, %v4590
    %v4807 = vpack.c.b16 %v4599, %v4591
    %v4808 = vpack.c.b16 %v4600, %v4592
    %v4809 = vpack.c.b16 %v4601, %v4593
    %v4810 = vpack.c.b16 %v4602, %v4594
    %v4811 = vpack.c.b16 %v4611, %v4603
    %v4812 = vpack.c.b16 %v4612, %v4604
    %v4813 = vpack.c.b16 %v4613, %v4605
    %v4814 = vpack.c.b16 %v4614, %v4606
    %v4815 = vpack.c.b16 %v4615, %v4607
    %v4816 = vpack.c.b16 %v4616, %v4608
    %v4817 = vpack.c.b16 %v4617, %v4609
    %v4818 = vpack.c.b16 %v4618, %v4610
    %v4819 = vpack.c.b16 %v4627, %v4619
    %v4820 = vpack.c.b16 %v4628, %v4620
    %v4821 = vpack.c.b16 %v4629, %v4621
    %v4822 = vpack.c.b16 %v4630, %v4622
    %v4823 = vpack.c.b16 %v4631, %v4623
    %v4824 = vpack.c.b16 %v4632, %v4624
    %v4825 = vpack.c.b16 %v4633, %v4625
    %v4826 = vpack.c.b16 %v4634, %v4626
    %v4827 = vpack.c.b16 %v4643, %v4635
    %v4828 = vpack.c.b16 %v4644, %v4636
    %v4829 = vpack.c.b16 %v4645, %v4637
    %v4830 = vpack.c.b16 %v4646, %v4638
    %v4831 = vpack.c.b16 %v4647, %v4639
    %v4832 = vpack.c.b16 %v4648, %v4640
    %v4833 = vpack.c.b16 %v4649, %v4641
    %v4834 = vpack.c.b16 %v4650, %v4642
    %v4835 = vpack.c.b16 %v4659, %v4651
    %v4836 = vpack.c.b16 %v4660, %v4652
    %v4837 = vpack.c.b16 %v4661, %v4653
    %v4838 = vpack.c.b16 %v4662, %v4654
    %v4839 = vpack.c.b16 %v4663, %v4655
    %v4840 = vpack.c.b16 %v4664, %v4656
    %v4841 = vpack.c.b16 %v4665, %v4657
    %v4842 = vpack.c.b16 %v4666, %v4658
    %v4843 = vpack.c.b16 %v4675, %v4667
    %v4844 = vpack.c.b16 %v4676, %v4668
    %v4845 = vpack.c.b16 %v4677, %v4669
    %v4846 = vpack.c.b16 %v4678, %v4670
    %v4847 = vpack.c.b16 %v4679, %v4671
    %v4848 = vpack.c.b16 %v4680, %v4672
    %v4849 = vpack.c.b16 %v4681, %v4673
    %v4850 = vpack.c.b16 %v4682, %v4674
    %v4851 = vpack.c.b16 %v4691, %v4683
    %v4852 = vpack.c.b16 %v4692, %v4684
    %v4853 = vpack.c.b16 %v4693, %v4685
    %v4854 = vpack.c.b16 %v4694, %v4686
    %v4855 = vpack.c.b16 %v4695, %v4687
    %v4856 = vpack.c.b16 %v4696, %v4688
    %v4857 = vpack.c.b16 %v4697, %v4689
    %v4858 = vpack.c.b16 %v4698, %v4690
    %v4859 = vpack.c.b16 %v4707, %v4699
    %v4860 = vpack.c.b16 %v4708, %v4700
    %v4861 = vpack.c.b16 %v4709, %v4701
    %v4862 = vpack.c.b16 %v4710, %v4702
    %v4863 = vpack.c.b16 %v4711, %v4703
    %v4864 = vpack.c.b16 %v4712, %v4704
    %v4865 = vpack.c.b16 %v4713, %v4705
    %v4866 = vpack.c.b16 %v4714, %v4706
    %v4867 = vpack.c.b16 %v4723, %v4715
    %v4868 = vpack.c.b16 %v4724, %v4716
    %v4869 = vpack.c.b16 %v4725, %v4717
    %v4870 = vpack.c.b16 %v4726, %v4718
    %v4871 = vpack.c.b16 %v4727, %v4719
    %v4872 = vpack.c.b16 %v4728, %v4720
    %v4873 = vpack.c.b16 %v4729, %v4721
    %v4874 = vpack.c.b16 %v4730, %v4722
    %v4875 = vpack.c.b16 %v4739, %v4731
    %v4876 = vpack.c.b16 %v4740, %v4732
    %v4877 = vpack.c.b16 %v4741, %v4733
    %v4878 = vpack.c.b16 %v4742, %v4734
    %v4879 = vpack.c.b16 %v4743, %v4735
    %v4880 = vpack.c.b16 %v4744, %v4736
    %v4881 = vpack.c.b16 %v4745, %v4737
    %v4882 = vpack.c.b16 %v4746, %v4738
    %v4883 = vpack.c.b16 %v4755, %v4747
    %v4884 = vpack.c.b16 %v4756, %v4748
    %v4885 = vpack.c.b16 %v4757, %v4749
    %v4886 = vpack.c.b16 %v4758, %v4750
    %v4887 = vpack.c.b16 %v4759, %v4751
    %v4888 = vpack.c.b16 %v4760, %v4752
    %v4889 = vpack.c.b16 %v4761, %v4753
    %v4890 = vpack.c.b16 %v4762, %v4754
    %5019 = vmatpush.bf16.msra.mxu0 %v4819
    %5020 = vmatpush.bf16.msra.mxu0 %v4811
    %5021 = vmatpush.bf16.msra.mxu0 %v4803
    %5022 = vmatpush.bf16.msra.mxu0 %v4795
    %5023 = vmatpush.bf16.msra.mxu0 %v4787
    %5024 = vmatpush.bf16.msra.mxu0 %v4779
    %5025 = vmatpush.bf16.msra.mxu0 %v4771
    %5026 = vmatpush.bf16.msra.mxu0 %v4763
    %5027 = vmatmul.bf16.gmra.mxu0 %v4249
    %v5028 = vpop.f32.mrf.mxu0
    %v5029 = vadd.f32 0.0, %v5028
    %v5030 = vpop.f32.mrf.mxu0
    %5031 = vdwg.mxu0
    %5032 = vmatpush.bf16.msra.mxu0 %v4883
    %5033 = vmatpush.bf16.msra.mxu0 %v4875
    %5034 = vmatpush.bf16.msra.mxu0 %v4867
    %5035 = vmatpush.bf16.msra.mxu0 %v4859
    %5036 = vmatpush.bf16.msra.mxu0 %v4851
    %5037 = vmatpush.bf16.msra.mxu0 %v4843
    %5038 = vmatpush.bf16.msra.mxu0 %v4835
    %5039 = vmatpush.bf16.msra.mxu0 %v4827
    %5040 = vmatmul.bf16.gmra.mxu0 %v4250
    %v5041 = vpop.f32.mrf.mxu0
    %v5042 = vadd.f32 %v5029, %v5041
    %v5043 = vpop.f32.mrf.mxu0
    %5044 = vdwg.mxu0
    %5045 = vmatpush.bf16.msra.mxu0 %v4820
    %5046 = vmatpush.bf16.msra.mxu0 %v4812
    %5047 = vmatpush.bf16.msra.mxu0 %v4804
    %5048 = vmatpush.bf16.msra.mxu0 %v4796
    %5049 = vmatpush.bf16.msra.mxu0 %v4788
    %5050 = vmatpush.bf16.msra.mxu0 %v4780
    %5051 = vmatpush.bf16.msra.mxu0 %v4772
    %5052 = vmatpush.bf16.msra.mxu0 %v4764
    %5053 = vmatmul.bf16.gmra.mxu0 %v4249
    %v5054 = vpop.f32.mrf.mxu0
    %v5055 = vadd.f32 0.0, %v5054
    %v5056 = vpop.f32.mrf.mxu0
    %5057 = vdwg.mxu0
    %5058 = vmatpush.bf16.msra.mxu0 %v4884
    %5059 = vmatpush.bf16.msra.mxu0 %v4876
    %5060 = vmatpush.bf16.msra.mxu0 %v4868
    %5061 = vmatpush.bf16.msra.mxu0 %v4860
    %5062 = vmatpush.bf16.msra.mxu0 %v4852
    %5063 = vmatpush.bf16.msra.mxu0 %v4844
    %5064 = vmatpush.bf16.msra.mxu0 %v4836
    %5065 = vmatpush.bf16.msra.mxu0 %v4828
    %5066 = vmatmul.bf16.gmra.mxu0 %v4250
    %v5067 = vpop.f32.mrf.mxu0
    %v5068 = vadd.f32 %v5055, %v5067
    %v5069 = vpop.f32.mrf.mxu0
    %5070 = vdwg.mxu0
    %5071 = vmatpush.bf16.msra.mxu0 %v4821
    %5072 = vmatpush.bf16.msra.mxu0 %v4813
    %5073 = vmatpush.bf16.msra.mxu0 %v4805
    %5074 = vmatpush.bf16.msra.mxu0 %v4797
    %5075 = vmatpush.bf16.msra.mxu0 %v4789
    %5076 = vmatpush.bf16.msra.mxu0 %v4781
    %5077 = vmatpush.bf16.msra.mxu0 %v4773
    %5078 = vmatpush.bf16.msra.mxu0 %v4765
    %5079 = vmatmul.bf16.gmra.mxu0 %v4249
    %v5080 = vpop.f32.mrf.mxu0
    %v5081 = vadd.f32 0.0, %v5080
    %v5082 = vpop.f32.mrf.mxu0
    %5083 = vdwg.mxu0
    %5084 = vmatpush.bf16.msra.mxu0 %v4885
    %5085 = vmatpush.bf16.msra.mxu0 %v4877
    %5086 = vmatpush.bf16.msra.mxu0 %v4869
    %5087 = vmatpush.bf16.msra.mxu0 %v4861
    %5088 = vmatpush.bf16.msra.mxu0 %v4853
    %5089 = vmatpush.bf16.msra.mxu0 %v4845
    %5090 = vmatpush.bf16.msra.mxu0 %v4837
    %5091 = vmatpush.bf16.msra.mxu0 %v4829
    %5092 = vmatmul.bf16.gmra.mxu0 %v4250
    %v5093 = vpop.f32.mrf.mxu0
    %v5094 = vadd.f32 %v5081, %v5093
    %v5095 = vpop.f32.mrf.mxu0
    %5096 = vdwg.mxu0
    %5097 = vmatpush.bf16.msra.mxu0 %v4822
    %5098 = vmatpush.bf16.msra.mxu0 %v4814
    %5099 = vmatpush.bf16.msra.mxu0 %v4806
    %5100 = vmatpush.bf16.msra.mxu0 %v4798
    %5101 = vmatpush.bf16.msra.mxu0 %v4790
    %5102 = vmatpush.bf16.msra.mxu0 %v4782
    %5103 = vmatpush.bf16.msra.mxu0 %v4774
    %5104 = vmatpush.bf16.msra.mxu0 %v4766
    %5105 = vmatmul.bf16.gmra.mxu0 %v4249
    %v5106 = vpop.f32.mrf.mxu0
    %v5107 = vadd.f32 0.0, %v5106
    %v5108 = vpop.f32.mrf.mxu0
    %5109 = vdwg.mxu0
    %5110 = vmatpush.bf16.msra.mxu0 %v4886
    %5111 = vmatpush.bf16.msra.mxu0 %v4878
    %5112 = vmatpush.bf16.msra.mxu0 %v4870
    %5113 = vmatpush.bf16.msra.mxu0 %v4862
    %5114 = vmatpush.bf16.msra.mxu0 %v4854
    %5115 = vmatpush.bf16.msra.mxu0 %v4846
    %5116 = vmatpush.bf16.msra.mxu0 %v4838
    %5117 = vmatpush.bf16.msra.mxu0 %v4830
    %5118 = vmatmul.bf16.gmra.mxu0 %v4250
    %v5119 = vpop.f32.mrf.mxu0
    %v5120 = vadd.f32 %v5107, %v5119
    %v5121 = vpop.f32.mrf.mxu0
    %5122 = vdwg.mxu0
    %5123 = vmatpush.bf16.msra.mxu0 %v4823
    %5124 = vmatpush.bf16.msra.mxu0 %v4815
    %5125 = vmatpush.bf16.msra.mxu0 %v4807
    %5126 = vmatpush.bf16.msra.mxu0 %v4799
    %5127 = vmatpush.bf16.msra.mxu0 %v4791
    %5128 = vmatpush.bf16.msra.mxu0 %v4783
    %5129 = vmatpush.bf16.msra.mxu0 %v4775
    %5130 = vmatpush.bf16.msra.mxu0 %v4767
    %5131 = vmatmul.bf16.gmra.mxu0 %v4249
    %v5132 = vpop.f32.mrf.mxu0
    %v5133 = vadd.f32 0.0, %v5132
    %v5134 = vpop.f32.mrf.mxu0
    %5135 = vdwg.mxu0
    %5136 = vmatpush.bf16.msra.mxu0 %v4887
    %5137 = vmatpush.bf16.msra.mxu0 %v4879
    %5138 = vmatpush.bf16.msra.mxu0 %v4871
    %5139 = vmatpush.bf16.msra.mxu0 %v4863
    %5140 = vmatpush.bf16.msra.mxu0 %v4855
    %5141 = vmatpush.bf16.msra.mxu0 %v4847
    %5142 = vmatpush.bf16.msra.mxu0 %v4839
    %5143 = vmatpush.bf16.msra.mxu0 %v4831
    %5144 = vmatmul.bf16.gmra.mxu0 %v4250
    %v5145 = vpop.f32.mrf.mxu0
    %v5146 = vadd.f32 %v5133, %v5145
    %v5147 = vpop.f32.mrf.mxu0
    %5148 = vdwg.mxu0
    %5149 = vmatpush.bf16.msra.mxu0 %v4824
    %5150 = vmatpush.bf16.msra.mxu0 %v4816
    %5151 = vmatpush.bf16.msra.mxu0 %v4808
    %5152 = vmatpush.bf16.msra.mxu0 %v4800
    %5153 = vmatpush.bf16.msra.mxu0 %v4792
    %5154 = vmatpush.bf16.msra.mxu0 %v4784
    %5155 = vmatpush.bf16.msra.mxu0 %v4776
    %5156 = vmatpush.bf16.msra.mxu0 %v4768
    %5157 = vmatmul.bf16.gmra.mxu0 %v4249
    %v5158 = vpop.f32.mrf.mxu0
    %v5159 = vadd.f32 0.0, %v5158
    %v5160 = vpop.f32.mrf.mxu0
    %5161 = vdwg.mxu0
    %5162 = vmatpush.bf16.msra.mxu0 %v4888
    %5163 = vmatpush.bf16.msra.mxu0 %v4880
    %5164 = vmatpush.bf16.msra.mxu0 %v4872
    %5165 = vmatpush.bf16.msra.mxu0 %v4864
    %5166 = vmatpush.bf16.msra.mxu0 %v4856
    %5167 = vmatpush.bf16.msra.mxu0 %v4848
    %5168 = vmatpush.bf16.msra.mxu0 %v4840
    %5169 = vmatpush.bf16.msra.mxu0 %v4832
    %5170 = vmatmul.bf16.gmra.mxu0 %v4250
    %v5171 = vpop.f32.mrf.mxu0
    %v5172 = vadd.f32 %v5159, %v5171
    %v5173 = vpop.f32.mrf.mxu0
    %5174 = vdwg.mxu0
    %5175 = vmatpush.bf16.msra.mxu0 %v4825
    %5176 = vmatpush.bf16.msra.mxu0 %v4817
    %5177 = vmatpush.bf16.msra.mxu0 %v4809
    %5178 = vmatpush.bf16.msra.mxu0 %v4801
    %5179 = vmatpush.bf16.msra.mxu0 %v4793
    %5180 = vmatpush.bf16.msra.mxu0 %v4785
    %5181 = vmatpush.bf16.msra.mxu0 %v4777
    %5182 = vmatpush.bf16.msra.mxu0 %v4769
    %5183 = vmatmul.bf16.gmra.mxu0 %v4249
    %v5184 = vpop.f32.mrf.mxu0
    %v5185 = vadd.f32 0.0, %v5184
    %v5186 = vpop.f32.mrf.mxu0
    %5187 = vdwg.mxu0
    %5188 = vmatpush.bf16.msra.mxu0 %v4889
    %5189 = vmatpush.bf16.msra.mxu0 %v4881
    %5190 = vmatpush.bf16.msra.mxu0 %v4873
    %5191 = vmatpush.bf16.msra.mxu0 %v4865
    %5192 = vmatpush.bf16.msra.mxu0 %v4857
    %5193 = vmatpush.bf16.msra.mxu0 %v4849
    %5194 = vmatpush.bf16.msra.mxu0 %v4841
    %5195 = vmatpush.bf16.msra.mxu0 %v4833
    %5196 = vmatmul.bf16.gmra.mxu0 %v4250
    %v5197 = vpop.f32.mrf.mxu0
    %v5198 = vadd.f32 %v5185, %v5197
    %v5199 = vpop.f32.mrf.mxu0
    %5200 = vdwg.mxu0
    %5201 = vmatpush.bf16.msra.mxu0 %v4826
    %5202 = vmatpush.bf16.msra.mxu0 %v4818
    %5203 = vmatpush.bf16.msra.mxu0 %v4810
    %5204 = vmatpush.bf16.msra.mxu0 %v4802
    %5205 = vmatpush.bf16.msra.mxu0 %v4794
    %5206 = vmatpush.bf16.msra.mxu0 %v4786
    %5207 = vmatpush.bf16.msra.mxu0 %v4778
    %5208 = vmatpush.bf16.msra.mxu0 %v4770
    %5209 = vmatmul.bf16.gmra.mxu0 %v4249
    %v5210 = vpop.f32.mrf.mxu0
    %v5211 = vadd.f32 0.0, %v5210
    %v5212 = vpop.f32.mrf.mxu0
    %5213 = vdwg.mxu0
    %5214 = vmatpush.bf16.msra.mxu0 %v4890
    %5215 = vmatpush.bf16.msra.mxu0 %v4882
    %5216 = vmatpush.bf16.msra.mxu0 %v4874
    %5217 = vmatpush.bf16.msra.mxu0 %v4866
    %5218 = vmatpush.bf16.msra.mxu0 %v4858
    %5219 = vmatpush.bf16.msra.mxu0 %v4850
    %5220 = vmatpush.bf16.msra.mxu0 %v4842
    %5221 = vmatpush.bf16.msra.mxu0 %v4834
    %5222 = vmatmul.bf16.gmra.mxu0 %v4250
    %v5223 = vpop.f32.mrf.mxu0
    %v5224 = vadd.f32 %v5211, %v5223
    %v5225 = vpop.f32.mrf.mxu0
    %5226 = vdwg.mxu0
    %v5235 = vrot.slane %v5068, 7
    %v5236 = vrot.slane %v5094, 6
    %v5237 = vrot.slane %v5120, 5
    %v5238 = vrot.slane %v5146, 4
    %v5239 = vrot.slane %v5172, 3
    %v5240 = vrot.slane %v5198, 2
    %v5241 = vrot.slane %v5224, 1
    %v5242 = vsel %vm1043, %v5042, %v5235
    %v5243 = vsel %vm1045, %v5236, %v5237
    %v5244 = vsel %vm1047, %v5242, %v5243
    %v5245 = vsel %vm1049, %v5238, %v5239
    %v5246 = vsel %vm1051, %v5240, %v5241
    %v5247 = vsel %vm1053, %v5245, %v5246
    %v5248 = vsel %vm1055, %v5244, %v5247
    %v5250 = vadd.f32 %v4243, %v5248
    %v5251 = vxor.u32 %v5250, 2147483648
    %v5252 = vmul.f32 %v5251, 1.442695
    %v5253 = vpow.pop %v5252
    %v5254 = vadd.f32 %v5253, 1.0
    %v5255 = vrcp.pop %v5254
    %v5256 = vmul.f32 %v5254, %v5255
    %v5257 = vsub.f32 1.0, %v5256
    %v5258 = vmul.f32 %v5255, %v5257
    %v5259 = vadd.f32 %v5255, %v5258
    %vm5260 = vweird.f32 %v5254
    %vm5261 = vweird.f32 %v5255
    %vm5262 = vmor %vm5260, %vm5261
    %v5263 = vsel %vm5262, %v5255, %v5259
    %v5264 = vand.u32 2147483647, %v5254
    %vm5265 = vcmp.eq.f32.partialorder %v5264, 8.507059e+37
    %v5266 = vand.u32 %v5254, 2147483648
    %v5267 = vor.u32 1.1754944e-38, %v5266
    %v5268 = vsel %vm5265, %v5267, %v5263
    %v5269 = vmul.f32 1.0, %v5268
    %v5271 = vrot.slane %v5250, 6
    %v5273 = vtanh.pop %v5271
    %v5275 = vrot.slane %v5269, 2
    %v5277 = vmul.f32 %v5275, %v4239
    %v5278 = vmul.f32 %v5269, %v5273
    %v5279 = vadd.f32 %v5277, %v5278
    %5280 = vst.msk [vmem:[#allocation3] sm:$0x3] %vm37, %v5279
    %v5281 = vtanh.pop %v5279
    %v5282 = vrot.slane %v5269, 4
    %v5284 = vmul.f32 %v5282, %v5281
    %5285 = vst.msk [vmem:[#allocation2] sm:$0x3] %vm37, %v5284
    %v5286 = vld [vmem:[#allocation2] sm:$0x3]
    %v5287 = vld [vmem:[#allocation3] sm:$0x3]
    %s5288 = scalar_lea.vmem %s0, 5
    %v5289 = vld [vmem:[%s5288] ss:$8 sm:$0xf]
    %v5290 = vld [vmem:[%s5288] ss:$8 sm:$0xf0]
    %v5291 = vor.u32 %v5289, %v5290
    %v5293 = vperm.slane %v5286, 0
    %v5294 = vperm.slane %v5286, 1
    %v5297 = vpack.c.bf16 %v5293, %v5293
    %v5298 = vpack.c.bf16 %v5294, %v5294
    %v5299 = vld [vmem:[#allocation4] sm:$0xff]
    %v5300 = vld [vmem:[#allocation4 + $0x8] sm:$0xff]
    %v5301 = vld [vmem:[#allocation4 + $0x10] sm:$0xff]
    %v5302 = vld [vmem:[#allocation4 + $0x18] sm:$0xff]
    %v5303 = vld [vmem:[#allocation4 + $0x20] sm:$0xff]
    %v5304 = vld [vmem:[#allocation4 + $0x28] sm:$0xff]
    %v5305 = vld [vmem:[#allocation4 + $0x30] sm:$0xff]
    %v5306 = vld [vmem:[#allocation4 + $0x38] sm:$0xff]
    %v5307 = vld [vmem:[#allocation4 + $0x40] sm:$0xff]
    %v5308 = vld [vmem:[#allocation4 + $0x48] sm:$0xff]
    %v5309 = vld [vmem:[#allocation4 + $0x50] sm:$0xff]
    %v5310 = vld [vmem:[#allocation4 + $0x58] sm:$0xff]
    %v5311 = vld [vmem:[#allocation4 + $0x60] sm:$0xff]
    %v5312 = vld [vmem:[#allocation4 + $0x68] sm:$0xff]
    %v5313 = vld [vmem:[#allocation4 + $0x70] sm:$0xff]
    %v5314 = vld [vmem:[#allocation4 + $0x78] sm:$0xff]
    %v5315 = vld [vmem:[#allocation4 + $0x80] sm:$0xff]
    %v5316 = vld [vmem:[#allocation4 + $0x88] sm:$0xff]
    %v5317 = vld [vmem:[#allocation4 + $0x90] sm:$0xff]
    %v5318 = vld [vmem:[#allocation4 + $0x98] sm:$0xff]
    %v5319 = vld [vmem:[#allocation4 + $0xa0] sm:$0xff]
    %v5320 = vld [vmem:[#allocation4 + $0xa8] sm:$0xff]
    %v5321 = vld [vmem:[#allocation4 + $0xb0] sm:$0xff]
    %v5322 = vld [vmem:[#allocation4 + $0xb8] sm:$0xff]
    %v5323 = vld [vmem:[#allocation4 + $0xc0] sm:$0xff]
    %v5324 = vld [vmem:[#allocation4 + $0xc8] sm:$0xff]
    %v5325 = vld [vmem:[#allocation4 + $0xd0] sm:$0xff]
    %v5326 = vld [vmem:[#allocation4 + $0xd8] sm:$0xff]
    %v5327 = vld [vmem:[#allocation4 + $0xe0] sm:$0xff]
    %v5328 = vld [vmem:[#allocation4 + $0xe8] sm:$0xff]
    %v5329 = vld [vmem:[#allocation4 + $0xf0] sm:$0xff]
    %v5330 = vld [vmem:[#allocation4 + $0xf8] sm:$0xff]
    %v5331 = vld [vmem:[#allocation4 + $0x100] sm:$0xff]
    %v5332 = vld [vmem:[#allocation4 + $0x108] sm:$0xff]
    %v5333 = vld [vmem:[#allocation4 + $0x110] sm:$0xff]
    %v5334 = vld [vmem:[#allocation4 + $0x118] sm:$0xff]
    %v5335 = vld [vmem:[#allocation4 + $0x120] sm:$0xff]
    %v5336 = vld [vmem:[#allocation4 + $0x128] sm:$0xff]
    %v5337 = vld [vmem:[#allocation4 + $0x130] sm:$0xff]
    %v5338 = vld [vmem:[#allocation4 + $0x138] sm:$0xff]
    %v5339 = vld [vmem:[#allocation4 + $0x140] sm:$0xff]
    %v5340 = vld [vmem:[#allocation4 + $0x148] sm:$0xff]
    %v5341 = vld [vmem:[#allocation4 + $0x150] sm:$0xff]
    %v5342 = vld [vmem:[#allocation4 + $0x158] sm:$0xff]
    %v5343 = vld [vmem:[#allocation4 + $0x160] sm:$0xff]
    %v5344 = vld [vmem:[#allocation4 + $0x168] sm:$0xff]
    %v5345 = vld [vmem:[#allocation4 + $0x170] sm:$0xff]
    %v5346 = vld [vmem:[#allocation4 + $0x178] sm:$0xff]
    %v5347 = vld [vmem:[#allocation4 + $0x180] sm:$0xff]
    %v5348 = vld [vmem:[#allocation4 + $0x188] sm:$0xff]
    %v5349 = vld [vmem:[#allocation4 + $0x190] sm:$0xff]
    %v5350 = vld [vmem:[#allocation4 + $0x198] sm:$0xff]
    %v5351 = vld [vmem:[#allocation4 + $0x1a0] sm:$0xff]
    %v5352 = vld [vmem:[#allocation4 + $0x1a8] sm:$0xff]
    %v5353 = vld [vmem:[#allocation4 + $0x1b0] sm:$0xff]
    %v5354 = vld [vmem:[#allocation4 + $0x1b8] sm:$0xff]
    %v5355 = vld [vmem:[#allocation4 + $0x1c0] sm:$0xff]
    %v5356 = vld [vmem:[#allocation4 + $0x1c8] sm:$0xff]
    %v5357 = vld [vmem:[#allocation4 + $0x1d0] sm:$0xff]
    %v5358 = vld [vmem:[#allocation4 + $0x1d8] sm:$0xff]
    %v5359 = vld [vmem:[#allocation4 + $0x1e0] sm:$0xff]
    %v5360 = vld [vmem:[#allocation4 + $0x1e8] sm:$0xff]
    %v5361 = vld [vmem:[#allocation4 + $0x1f0] sm:$0xff]
    %v5362 = vld [vmem:[#allocation4 + $0x1f8] sm:$0xff]
    %v5363 = vld [vmem:[#allocation4 + $0x200] sm:$0xff]
    %v5364 = vld [vmem:[#allocation4 + $0x208] sm:$0xff]
    %v5365 = vld [vmem:[#allocation4 + $0x210] sm:$0xff]
    %v5366 = vld [vmem:[#allocation4 + $0x218] sm:$0xff]
    %v5367 = vld [vmem:[#allocation4 + $0x220] sm:$0xff]
    %v5368 = vld [vmem:[#allocation4 + $0x228] sm:$0xff]
    %v5369 = vld [vmem:[#allocation4 + $0x230] sm:$0xff]
    %v5370 = vld [vmem:[#allocation4 + $0x238] sm:$0xff]
    %v5371 = vld [vmem:[#allocation4 + $0x240] sm:$0xff]
    %v5372 = vld [vmem:[#allocation4 + $0x248] sm:$0xff]
    %v5373 = vld [vmem:[#allocation4 + $0x250] sm:$0xff]
    %v5374 = vld [vmem:[#allocation4 + $0x258] sm:$0xff]
    %v5375 = vld [vmem:[#allocation4 + $0x260] sm:$0xff]
    %v5376 = vld [vmem:[#allocation4 + $0x268] sm:$0xff]
    %v5377 = vld [vmem:[#allocation4 + $0x270] sm:$0xff]
    %v5378 = vld [vmem:[#allocation4 + $0x278] sm:$0xff]
    %v5379 = vld [vmem:[#allocation4 + $0x280] sm:$0xff]
    %v5380 = vld [vmem:[#allocation4 + $0x288] sm:$0xff]
    %v5381 = vld [vmem:[#allocation4 + $0x290] sm:$0xff]
    %v5382 = vld [vmem:[#allocation4 + $0x298] sm:$0xff]
    %v5383 = vld [vmem:[#allocation4 + $0x2a0] sm:$0xff]
    %v5384 = vld [vmem:[#allocation4 + $0x2a8] sm:$0xff]
    %v5385 = vld [vmem:[#allocation4 + $0x2b0] sm:$0xff]
    %v5386 = vld [vmem:[#allocation4 + $0x2b8] sm:$0xff]
    %v5387 = vld [vmem:[#allocation4 + $0x2c0] sm:$0xff]
    %v5388 = vld [vmem:[#allocation4 + $0x2c8] sm:$0xff]
    %v5389 = vld [vmem:[#allocation4 + $0x2d0] sm:$0xff]
    %v5390 = vld [vmem:[#allocation4 + $0x2d8] sm:$0xff]
    %v5391 = vld [vmem:[#allocation4 + $0x2e0] sm:$0xff]
    %v5392 = vld [vmem:[#allocation4 + $0x2e8] sm:$0xff]
    %v5393 = vld [vmem:[#allocation4 + $0x2f0] sm:$0xff]
    %v5394 = vld [vmem:[#allocation4 + $0x2f8] sm:$0xff]
    %v5395 = vld [vmem:[#allocation4 + $0x300] sm:$0xff]
    %v5396 = vld [vmem:[#allocation4 + $0x308] sm:$0xff]
    %v5397 = vld [vmem:[#allocation4 + $0x310] sm:$0xff]
    %v5398 = vld [vmem:[#allocation4 + $0x318] sm:$0xff]
    %v5399 = vld [vmem:[#allocation4 + $0x320] sm:$0xff]
    %v5400 = vld [vmem:[#allocation4 + $0x328] sm:$0xff]
    %v5401 = vld [vmem:[#allocation4 + $0x330] sm:$0xff]
    %v5402 = vld [vmem:[#allocation4 + $0x338] sm:$0xff]
    %v5403 = vld [vmem:[#allocation4 + $0x340] sm:$0xff]
    %v5404 = vld [vmem:[#allocation4 + $0x348] sm:$0xff]
    %v5405 = vld [vmem:[#allocation4 + $0x350] sm:$0xff]
    %v5406 = vld [vmem:[#allocation4 + $0x358] sm:$0xff]
    %v5407 = vld [vmem:[#allocation4 + $0x360] sm:$0xff]
    %v5408 = vld [vmem:[#allocation4 + $0x368] sm:$0xff]
    %v5409 = vld [vmem:[#allocation4 + $0x370] sm:$0xff]
    %v5410 = vld [vmem:[#allocation4 + $0x378] sm:$0xff]
    %v5411 = vld [vmem:[#allocation4 + $0x380] sm:$0xff]
    %v5412 = vld [vmem:[#allocation4 + $0x388] sm:$0xff]
    %v5413 = vld [vmem:[#allocation4 + $0x390] sm:$0xff]
    %v5414 = vld [vmem:[#allocation4 + $0x398] sm:$0xff]
    %v5415 = vld [vmem:[#allocation4 + $0x3a0] sm:$0xff]
    %v5416 = vld [vmem:[#allocation4 + $0x3a8] sm:$0xff]
    %v5417 = vld [vmem:[#allocation4 + $0x3b0] sm:$0xff]
    %v5418 = vld [vmem:[#allocation4 + $0x3b8] sm:$0xff]
    %v5419 = vld [vmem:[#allocation4 + $0x3c0] sm:$0xff]
    %v5420 = vld [vmem:[#allocation4 + $0x3c8] sm:$0xff]
    %v5421 = vld [vmem:[#allocation4 + $0x3d0] sm:$0xff]
    %v5422 = vld [vmem:[#allocation4 + $0x3d8] sm:$0xff]
    %v5423 = vld [vmem:[#allocation4 + $0x3e0] sm:$0xff]
    %v5424 = vld [vmem:[#allocation4 + $0x3e8] sm:$0xff]
    %v5425 = vld [vmem:[#allocation4 + $0x3f0] sm:$0xff]
    %v5426 = vld [vmem:[#allocation4 + $0x3f8] sm:$0xff]
    %v5555 = vunpack.c.l.b16 %v5299
    %v5556 = vunpack.c.h.b16 %v5299
    %v5557 = vunpack.c.l.b16 %v5300
    %v5558 = vunpack.c.h.b16 %v5300
    %v5559 = vunpack.c.l.b16 %v5301
    %v5560 = vunpack.c.h.b16 %v5301
    %v5561 = vunpack.c.l.b16 %v5302
    %v5562 = vunpack.c.h.b16 %v5302
    %v5563 = vunpack.c.l.b16 %v5303
    %v5564 = vunpack.c.h.b16 %v5303
    %v5565 = vunpack.c.l.b16 %v5304
    %v5566 = vunpack.c.h.b16 %v5304
    %v5567 = vunpack.c.l.b16 %v5305
    %v5568 = vunpack.c.h.b16 %v5305
    %v5569 = vunpack.c.l.b16 %v5306
    %v5570 = vunpack.c.h.b16 %v5306
    %v5571 = vunpack.c.l.b16 %v5307
    %v5572 = vunpack.c.h.b16 %v5307
    %v5573 = vunpack.c.l.b16 %v5308
    %v5574 = vunpack.c.h.b16 %v5308
    %v5575 = vunpack.c.l.b16 %v5309
    %v5576 = vunpack.c.h.b16 %v5309
    %v5577 = vunpack.c.l.b16 %v5310
    %v5578 = vunpack.c.h.b16 %v5310
    %v5579 = vunpack.c.l.b16 %v5311
    %v5580 = vunpack.c.h.b16 %v5311
    %v5581 = vunpack.c.l.b16 %v5312
    %v5582 = vunpack.c.h.b16 %v5312
    %v5583 = vunpack.c.l.b16 %v5313
    %v5584 = vunpack.c.h.b16 %v5313
    %v5585 = vunpack.c.l.b16 %v5314
    %v5586 = vunpack.c.h.b16 %v5314
    %v5587 = vunpack.c.l.b16 %v5315
    %v5588 = vunpack.c.h.b16 %v5315
    %v5589 = vunpack.c.l.b16 %v5316
    %v5590 = vunpack.c.h.b16 %v5316
    %v5591 = vunpack.c.l.b16 %v5317
    %v5592 = vunpack.c.h.b16 %v5317
    %v5593 = vunpack.c.l.b16 %v5318
    %v5594 = vunpack.c.h.b16 %v5318
    %v5595 = vunpack.c.l.b16 %v5319
    %v5596 = vunpack.c.h.b16 %v5319
    %v5597 = vunpack.c.l.b16 %v5320
    %v5598 = vunpack.c.h.b16 %v5320
    %v5599 = vunpack.c.l.b16 %v5321
    %v5600 = vunpack.c.h.b16 %v5321
    %v5601 = vunpack.c.l.b16 %v5322
    %v5602 = vunpack.c.h.b16 %v5322
    %v5603 = vunpack.c.l.b16 %v5323
    %v5604 = vunpack.c.h.b16 %v5323
    %v5605 = vunpack.c.l.b16 %v5324
    %v5606 = vunpack.c.h.b16 %v5324
    %v5607 = vunpack.c.l.b16 %v5325
    %v5608 = vunpack.c.h.b16 %v5325
    %v5609 = vunpack.c.l.b16 %v5326
    %v5610 = vunpack.c.h.b16 %v5326
    %v5611 = vunpack.c.l.b16 %v5327
    %v5612 = vunpack.c.h.b16 %v5327
    %v5613 = vunpack.c.l.b16 %v5328
    %v5614 = vunpack.c.h.b16 %v5328
    %v5615 = vunpack.c.l.b16 %v5329
    %v5616 = vunpack.c.h.b16 %v5329
    %v5617 = vunpack.c.l.b16 %v5330
    %v5618 = vunpack.c.h.b16 %v5330
    %v5619 = vunpack.c.l.b16 %v5331
    %v5620 = vunpack.c.h.b16 %v5331
    %v5621 = vunpack.c.l.b16 %v5332
    %v5622 = vunpack.c.h.b16 %v5332
    %v5623 = vunpack.c.l.b16 %v5333
    %v5624 = vunpack.c.h.b16 %v5333
    %v5625 = vunpack.c.l.b16 %v5334
    %v5626 = vunpack.c.h.b16 %v5334
    %v5627 = vunpack.c.l.b16 %v5335
    %v5628 = vunpack.c.h.b16 %v5335
    %v5629 = vunpack.c.l.b16 %v5336
    %v5630 = vunpack.c.h.b16 %v5336
    %v5631 = vunpack.c.l.b16 %v5337
    %v5632 = vunpack.c.h.b16 %v5337
    %v5633 = vunpack.c.l.b16 %v5338
    %v5634 = vunpack.c.h.b16 %v5338
    %v5635 = vunpack.c.l.b16 %v5339
    %v5636 = vunpack.c.h.b16 %v5339
    %v5637 = vunpack.c.l.b16 %v5340
    %v5638 = vunpack.c.h.b16 %v5340
    %v5639 = vunpack.c.l.b16 %v5341
    %v5640 = vunpack.c.h.b16 %v5341
    %v5641 = vunpack.c.l.b16 %v5342
    %v5642 = vunpack.c.h.b16 %v5342
    %v5643 = vunpack.c.l.b16 %v5343
    %v5644 = vunpack.c.h.b16 %v5343
    %v5645 = vunpack.c.l.b16 %v5344
    %v5646 = vunpack.c.h.b16 %v5344
    %v5647 = vunpack.c.l.b16 %v5345
    %v5648 = vunpack.c.h.b16 %v5345
    %v5649 = vunpack.c.l.b16 %v5346
    %v5650 = vunpack.c.h.b16 %v5346
    %v5651 = vunpack.c.l.b16 %v5347
    %v5652 = vunpack.c.h.b16 %v5347
    %v5653 = vunpack.c.l.b16 %v5348
    %v5654 = vunpack.c.h.b16 %v5348
    %v5655 = vunpack.c.l.b16 %v5349
    %v5656 = vunpack.c.h.b16 %v5349
    %v5657 = vunpack.c.l.b16 %v5350
    %v5658 = vunpack.c.h.b16 %v5350
    %v5659 = vunpack.c.l.b16 %v5351
    %v5660 = vunpack.c.h.b16 %v5351
    %v5661 = vunpack.c.l.b16 %v5352
    %v5662 = vunpack.c.h.b16 %v5352
    %v5663 = vunpack.c.l.b16 %v5353
    %v5664 = vunpack.c.h.b16 %v5353
    %v5665 = vunpack.c.l.b16 %v5354
    %v5666 = vunpack.c.h.b16 %v5354
    %v5667 = vunpack.c.l.b16 %v5355
    %v5668 = vunpack.c.h.b16 %v5355
    %v5669 = vunpack.c.l.b16 %v5356
    %v5670 = vunpack.c.h.b16 %v5356
    %v5671 = vunpack.c.l.b16 %v5357
    %v5672 = vunpack.c.h.b16 %v5357
    %v5673 = vunpack.c.l.b16 %v5358
    %v5674 = vunpack.c.h.b16 %v5358
    %v5675 = vunpack.c.l.b16 %v5359
    %v5676 = vunpack.c.h.b16 %v5359
    %v5677 = vunpack.c.l.b16 %v5360
    %v5678 = vunpack.c.h.b16 %v5360
    %v5679 = vunpack.c.l.b16 %v5361
    %v5680 = vunpack.c.h.b16 %v5361
    %v5681 = vunpack.c.l.b16 %v5362
    %v5682 = vunpack.c.h.b16 %v5362
    %v5683 = vunpack.c.l.b16 %v5363
    %v5684 = vunpack.c.h.b16 %v5363
    %v5685 = vunpack.c.l.b16 %v5364
    %v5686 = vunpack.c.h.b16 %v5364
    %v5687 = vunpack.c.l.b16 %v5365
    %v5688 = vunpack.c.h.b16 %v5365
    %v5689 = vunpack.c.l.b16 %v5366
    %v5690 = vunpack.c.h.b16 %v5366
    %v5691 = vunpack.c.l.b16 %v5367
    %v5692 = vunpack.c.h.b16 %v5367
    %v5693 = vunpack.c.l.b16 %v5368
    %v5694 = vunpack.c.h.b16 %v5368
    %v5695 = vunpack.c.l.b16 %v5369
    %v5696 = vunpack.c.h.b16 %v5369
    %v5697 = vunpack.c.l.b16 %v5370
    %v5698 = vunpack.c.h.b16 %v5370
    %v5699 = vunpack.c.l.b16 %v5371
    %v5700 = vunpack.c.h.b16 %v5371
    %v5701 = vunpack.c.l.b16 %v5372
    %v5702 = vunpack.c.h.b16 %v5372
    %v5703 = vunpack.c.l.b16 %v5373
    %v5704 = vunpack.c.h.b16 %v5373
    %v5705 = vunpack.c.l.b16 %v5374
    %v5706 = vunpack.c.h.b16 %v5374
    %v5707 = vunpack.c.l.b16 %v5375
    %v5708 = vunpack.c.h.b16 %v5375
    %v5709 = vunpack.c.l.b16 %v5376
    %v5710 = vunpack.c.h.b16 %v5376
    %v5711 = vunpack.c.l.b16 %v5377
    %v5712 = vunpack.c.h.b16 %v5377
    %v5713 = vunpack.c.l.b16 %v5378
    %v5714 = vunpack.c.h.b16 %v5378
    %v5715 = vunpack.c.l.b16 %v5379
    %v5716 = vunpack.c.h.b16 %v5379
    %v5717 = vunpack.c.l.b16 %v5380
    %v5718 = vunpack.c.h.b16 %v5380
    %v5719 = vunpack.c.l.b16 %v5381
    %v5720 = vunpack.c.h.b16 %v5381
    %v5721 = vunpack.c.l.b16 %v5382
    %v5722 = vunpack.c.h.b16 %v5382
    %v5723 = vunpack.c.l.b16 %v5383
    %v5724 = vunpack.c.h.b16 %v5383
    %v5725 = vunpack.c.l.b16 %v5384
    %v5726 = vunpack.c.h.b16 %v5384
    %v5727 = vunpack.c.l.b16 %v5385
    %v5728 = vunpack.c.h.b16 %v5385
    %v5729 = vunpack.c.l.b16 %v5386
    %v5730 = vunpack.c.h.b16 %v5386
    %v5731 = vunpack.c.l.b16 %v5387
    %v5732 = vunpack.c.h.b16 %v5387
    %v5733 = vunpack.c.l.b16 %v5388
    %v5734 = vunpack.c.h.b16 %v5388
    %v5735 = vunpack.c.l.b16 %v5389
    %v5736 = vunpack.c.h.b16 %v5389
    %v5737 = vunpack.c.l.b16 %v5390
    %v5738 = vunpack.c.h.b16 %v5390
    %v5739 = vunpack.c.l.b16 %v5391
    %v5740 = vunpack.c.h.b16 %v5391
    %v5741 = vunpack.c.l.b16 %v5392
    %v5742 = vunpack.c.h.b16 %v5392
    %v5743 = vunpack.c.l.b16 %v5393
    %v5744 = vunpack.c.h.b16 %v5393
    %v5745 = vunpack.c.l.b16 %v5394
    %v5746 = vunpack.c.h.b16 %v5394
    %v5747 = vunpack.c.l.b16 %v5395
    %v5748 = vunpack.c.h.b16 %v5395
    %v5749 = vunpack.c.l.b16 %v5396
    %v5750 = vunpack.c.h.b16 %v5396
    %v5751 = vunpack.c.l.b16 %v5397
    %v5752 = vunpack.c.h.b16 %v5397
    %v5753 = vunpack.c.l.b16 %v5398
    %v5754 = vunpack.c.h.b16 %v5398
    %v5755 = vunpack.c.l.b16 %v5399
    %v5756 = vunpack.c.h.b16 %v5399
    %v5757 = vunpack.c.l.b16 %v5400
    %v5758 = vunpack.c.h.b16 %v5400
    %v5759 = vunpack.c.l.b16 %v5401
    %v5760 = vunpack.c.h.b16 %v5401
    %v5761 = vunpack.c.l.b16 %v5402
    %v5762 = vunpack.c.h.b16 %v5402
    %v5763 = vunpack.c.l.b16 %v5403
    %v5764 = vunpack.c.h.b16 %v5403
    %v5765 = vunpack.c.l.b16 %v5404
    %v5766 = vunpack.c.h.b16 %v5404
    %v5767 = vunpack.c.l.b16 %v5405
    %v5768 = vunpack.c.h.b16 %v5405
    %v5769 = vunpack.c.l.b16 %v5406
    %v5770 = vunpack.c.h.b16 %v5406
    %v5771 = vunpack.c.l.b16 %v5407
    %v5772 = vunpack.c.h.b16 %v5407
    %v5773 = vunpack.c.l.b16 %v5408
    %v5774 = vunpack.c.h.b16 %v5408
    %v5775 = vunpack.c.l.b16 %v5409
    %v5776 = vunpack.c.h.b16 %v5409
    %v5777 = vunpack.c.l.b16 %v5410
    %v5778 = vunpack.c.h.b16 %v5410
    %v5779 = vunpack.c.l.b16 %v5411
    %v5780 = vunpack.c.h.b16 %v5411
    %v5781 = vunpack.c.l.b16 %v5412
    %v5782 = vunpack.c.h.b16 %v5412
    %v5783 = vunpack.c.l.b16 %v5413
    %v5784 = vunpack.c.h.b16 %v5413
    %v5785 = vunpack.c.l.b16 %v5414
    %v5786 = vunpack.c.h.b16 %v5414
    %v5787 = vunpack.c.l.b16 %v5415
    %v5788 = vunpack.c.h.b16 %v5415
    %v5789 = vunpack.c.l.b16 %v5416
    %v5790 = vunpack.c.h.b16 %v5416
    %v5791 = vunpack.c.l.b16 %v5417
    %v5792 = vunpack.c.h.b16 %v5417
    %v5793 = vunpack.c.l.b16 %v5418
    %v5794 = vunpack.c.h.b16 %v5418
    %v5795 = vunpack.c.l.b16 %v5419
    %v5796 = vunpack.c.h.b16 %v5419
    %v5797 = vunpack.c.l.b16 %v5420
    %v5798 = vunpack.c.h.b16 %v5420
    %v5799 = vunpack.c.l.b16 %v5421
    %v5800 = vunpack.c.h.b16 %v5421
    %v5801 = vunpack.c.l.b16 %v5422
    %v5802 = vunpack.c.h.b16 %v5422
    %v5803 = vunpack.c.l.b16 %v5423
    %v5804 = vunpack.c.h.b16 %v5423
    %v5805 = vunpack.c.l.b16 %v5424
    %v5806 = vunpack.c.h.b16 %v5424
    %v5807 = vunpack.c.l.b16 %v5425
    %v5808 = vunpack.c.h.b16 %v5425
    %v5809 = vunpack.c.l.b16 %v5426
    %v5810 = vunpack.c.h.b16 %v5426
    %v5811 = vpack.c.b16 %v5563, %v5555
    %v5812 = vpack.c.b16 %v5564, %v5556
    %v5813 = vpack.c.b16 %v5565, %v5557
    %v5814 = vpack.c.b16 %v5566, %v5558
    %v5815 = vpack.c.b16 %v5567, %v5559
    %v5816 = vpack.c.b16 %v5568, %v5560
    %v5817 = vpack.c.b16 %v5569, %v5561
    %v5818 = vpack.c.b16 %v5570, %v5562
    %v5819 = vpack.c.b16 %v5579, %v5571
    %v5820 = vpack.c.b16 %v5580, %v5572
    %v5821 = vpack.c.b16 %v5581, %v5573
    %v5822 = vpack.c.b16 %v5582, %v5574
    %v5823 = vpack.c.b16 %v5583, %v5575
    %v5824 = vpack.c.b16 %v5584, %v5576
    %v5825 = vpack.c.b16 %v5585, %v5577
    %v5826 = vpack.c.b16 %v5586, %v5578
    %v5827 = vpack.c.b16 %v5595, %v5587
    %v5828 = vpack.c.b16 %v5596, %v5588
    %v5829 = vpack.c.b16 %v5597, %v5589
    %v5830 = vpack.c.b16 %v5598, %v5590
    %v5831 = vpack.c.b16 %v5599, %v5591
    %v5832 = vpack.c.b16 %v5600, %v5592
    %v5833 = vpack.c.b16 %v5601, %v5593
    %v5834 = vpack.c.b16 %v5602, %v5594
    %v5835 = vpack.c.b16 %v5611, %v5603
    %v5836 = vpack.c.b16 %v5612, %v5604
    %v5837 = vpack.c.b16 %v5613, %v5605
    %v5838 = vpack.c.b16 %v5614, %v5606
    %v5839 = vpack.c.b16 %v5615, %v5607
    %v5840 = vpack.c.b16 %v5616, %v5608
    %v5841 = vpack.c.b16 %v5617, %v5609
    %v5842 = vpack.c.b16 %v5618, %v5610
    %v5843 = vpack.c.b16 %v5627, %v5619
    %v5844 = vpack.c.b16 %v5628, %v5620
    %v5845 = vpack.c.b16 %v5629, %v5621
    %v5846 = vpack.c.b16 %v5630, %v5622
    %v5847 = vpack.c.b16 %v5631, %v5623
    %v5848 = vpack.c.b16 %v5632, %v5624
    %v5849 = vpack.c.b16 %v5633, %v5625
    %v5850 = vpack.c.b16 %v5634, %v5626
    %v5851 = vpack.c.b16 %v5643, %v5635
    %v5852 = vpack.c.b16 %v5644, %v5636
    %v5853 = vpack.c.b16 %v5645, %v5637
    %v5854 = vpack.c.b16 %v5646, %v5638
    %v5855 = vpack.c.b16 %v5647, %v5639
    %v5856 = vpack.c.b16 %v5648, %v5640
    %v5857 = vpack.c.b16 %v5649, %v5641
    %v5858 = vpack.c.b16 %v5650, %v5642
    %v5859 = vpack.c.b16 %v5659, %v5651
    %v5860 = vpack.c.b16 %v5660, %v5652
    %v5861 = vpack.c.b16 %v5661, %v5653
    %v5862 = vpack.c.b16 %v5662, %v5654
    %v5863 = vpack.c.b16 %v5663, %v5655
    %v5864 = vpack.c.b16 %v5664, %v5656
    %v5865 = vpack.c.b16 %v5665, %v5657
    %v5866 = vpack.c.b16 %v5666, %v5658
    %v5867 = vpack.c.b16 %v5675, %v5667
    %v5868 = vpack.c.b16 %v5676, %v5668
    %v5869 = vpack.c.b16 %v5677, %v5669
    %v5870 = vpack.c.b16 %v5678, %v5670
    %v5871 = vpack.c.b16 %v5679, %v5671
    %v5872 = vpack.c.b16 %v5680, %v5672
    %v5873 = vpack.c.b16 %v5681, %v5673
    %v5874 = vpack.c.b16 %v5682, %v5674
    %v5875 = vpack.c.b16 %v5691, %v5683
    %v5876 = vpack.c.b16 %v5692, %v5684
    %v5877 = vpack.c.b16 %v5693, %v5685
    %v5878 = vpack.c.b16 %v5694, %v5686
    %v5879 = vpack.c.b16 %v5695, %v5687
    %v5880 = vpack.c.b16 %v5696, %v5688
    %v5881 = vpack.c.b16 %v5697, %v5689
    %v5882 = vpack.c.b16 %v5698, %v5690
    %v5883 = vpack.c.b16 %v5707, %v5699
    %v5884 = vpack.c.b16 %v5708, %v5700
    %v5885 = vpack.c.b16 %v5709, %v5701
    %v5886 = vpack.c.b16 %v5710, %v5702
    %v5887 = vpack.c.b16 %v5711, %v5703
    %v5888 = vpack.c.b16 %v5712, %v5704
    %v5889 = vpack.c.b16 %v5713, %v5705
    %v5890 = vpack.c.b16 %v5714, %v5706
    %v5891 = vpack.c.b16 %v5723, %v5715
    %v5892 = vpack.c.b16 %v5724, %v5716
    %v5893 = vpack.c.b16 %v5725, %v5717
    %v5894 = vpack.c.b16 %v5726, %v5718
    %v5895 = vpack.c.b16 %v5727, %v5719
    %v5896 = vpack.c.b16 %v5728, %v5720
    %v5897 = vpack.c.b16 %v5729, %v5721
    %v5898 = vpack.c.b16 %v5730, %v5722
    %v5899 = vpack.c.b16 %v5739, %v5731
    %v5900 = vpack.c.b16 %v5740, %v5732
    %v5901 = vpack.c.b16 %v5741, %v5733
    %v5902 = vpack.c.b16 %v5742, %v5734
    %v5903 = vpack.c.b16 %v5743, %v5735
    %v5904 = vpack.c.b16 %v5744, %v5736
    %v5905 = vpack.c.b16 %v5745, %v5737
    %v5906 = vpack.c.b16 %v5746, %v5738
    %v5907 = vpack.c.b16 %v5755, %v5747
    %v5908 = vpack.c.b16 %v5756, %v5748
    %v5909 = vpack.c.b16 %v5757, %v5749
    %v5910 = vpack.c.b16 %v5758, %v5750
    %v5911 = vpack.c.b16 %v5759, %v5751
    %v5912 = vpack.c.b16 %v5760, %v5752
    %v5913 = vpack.c.b16 %v5761, %v5753
    %v5914 = vpack.c.b16 %v5762, %v5754
    %v5915 = vpack.c.b16 %v5771, %v5763
    %v5916 = vpack.c.b16 %v5772, %v5764
    %v5917 = vpack.c.b16 %v5773, %v5765
    %v5918 = vpack.c.b16 %v5774, %v5766
    %v5919 = vpack.c.b16 %v5775, %v5767
    %v5920 = vpack.c.b16 %v5776, %v5768
    %v5921 = vpack.c.b16 %v5777, %v5769
    %v5922 = vpack.c.b16 %v5778, %v5770
    %v5923 = vpack.c.b16 %v5787, %v5779
    %v5924 = vpack.c.b16 %v5788, %v5780
    %v5925 = vpack.c.b16 %v5789, %v5781
    %v5926 = vpack.c.b16 %v5790, %v5782
    %v5927 = vpack.c.b16 %v5791, %v5783
    %v5928 = vpack.c.b16 %v5792, %v5784
    %v5929 = vpack.c.b16 %v5793, %v5785
    %v5930 = vpack.c.b16 %v5794, %v5786
    %v5931 = vpack.c.b16 %v5803, %v5795
    %v5932 = vpack.c.b16 %v5804, %v5796
    %v5933 = vpack.c.b16 %v5805, %v5797
    %v5934 = vpack.c.b16 %v5806, %v5798
    %v5935 = vpack.c.b16 %v5807, %v5799
    %v5936 = vpack.c.b16 %v5808, %v5800
    %v5937 = vpack.c.b16 %v5809, %v5801
    %v5938 = vpack.c.b16 %v5810, %v5802
    %6067 = vmatpush.bf16.msra.mxu0 %v5867
    %6068 = vmatpush.bf16.msra.mxu0 %v5859
    %6069 = vmatpush.bf16.msra.mxu0 %v5851
    %6070 = vmatpush.bf16.msra.mxu0 %v5843
    %6071 = vmatpush.bf16.msra.mxu0 %v5835
    %6072 = vmatpush.bf16.msra.mxu0 %v5827
    %6073 = vmatpush.bf16.msra.mxu0 %v5819
    %6074 = vmatpush.bf16.msra.mxu0 %v5811
    %6075 = vmatmul.bf16.gmra.mxu0 %v5297
    %v6076 = vpop.f32.mrf.mxu0
    %v6077 = vadd.f32 0.0, %v6076
    %v6078 = vpop.f32.mrf.mxu0
    %6079 = vdwg.mxu0
    %6080 = vmatpush.bf16.msra.mxu0 %v5931
    %6081 = vmatpush.bf16.msra.mxu0 %v5923
    %6082 = vmatpush.bf16.msra.mxu0 %v5915
    %6083 = vmatpush.bf16.msra.mxu0 %v5907
    %6084 = vmatpush.bf16.msra.mxu0 %v5899
    %6085 = vmatpush.bf16.msra.mxu0 %v5891
    %6086 = vmatpush.bf16.msra.mxu0 %v5883
    %6087 = vmatpush.bf16.msra.mxu0 %v5875
    %6088 = vmatmul.bf16.gmra.mxu0 %v5298
    %v6089 = vpop.f32.mrf.mxu0
    %v6090 = vadd.f32 %v6077, %v6089
    %v6091 = vpop.f32.mrf.mxu0
    %6092 = vdwg.mxu0
    %6093 = vmatpush.bf16.msra.mxu0 %v5868
    %6094 = vmatpush.bf16.msra.mxu0 %v5860
    %6095 = vmatpush.bf16.msra.mxu0 %v5852
    %6096 = vmatpush.bf16.msra.mxu0 %v5844
    %6097 = vmatpush.bf16.msra.mxu0 %v5836
    %6098 = vmatpush.bf16.msra.mxu0 %v5828
    %6099 = vmatpush.bf16.msra.mxu0 %v5820
    %6100 = vmatpush.bf16.msra.mxu0 %v5812
    %6101 = vmatmul.bf16.gmra.mxu0 %v5297
    %v6102 = vpop.f32.mrf.mxu0
    %v6103 = vadd.f32 0.0, %v6102
    %v6104 = vpop.f32.mrf.mxu0
    %6105 = vdwg.mxu0
    %6106 = vmatpush.bf16.msra.mxu0 %v5932
    %6107 = vmatpush.bf16.msra.mxu0 %v5924
    %6108 = vmatpush.bf16.msra.mxu0 %v5916
    %6109 = vmatpush.bf16.msra.mxu0 %v5908
    %6110 = vmatpush.bf16.msra.mxu0 %v5900
    %6111 = vmatpush.bf16.msra.mxu0 %v5892
    %6112 = vmatpush.bf16.msra.mxu0 %v5884
    %6113 = vmatpush.bf16.msra.mxu0 %v5876
    %6114 = vmatmul.bf16.gmra.mxu0 %v5298
    %v6115 = vpop.f32.mrf.mxu0
    %v6116 = vadd.f32 %v6103, %v6115
    %v6117 = vpop.f32.mrf.mxu0
    %6118 = vdwg.mxu0
    %6119 = vmatpush.bf16.msra.mxu0 %v5869
    %6120 = vmatpush.bf16.msra.mxu0 %v5861
    %6121 = vmatpush.bf16.msra.mxu0 %v5853
    %6122 = vmatpush.bf16.msra.mxu0 %v5845
    %6123 = vmatpush.bf16.msra.mxu0 %v5837
    %6124 = vmatpush.bf16.msra.mxu0 %v5829
    %6125 = vmatpush.bf16.msra.mxu0 %v5821
    %6126 = vmatpush.bf16.msra.mxu0 %v5813
    %6127 = vmatmul.bf16.gmra.mxu0 %v5297
    %v6128 = vpop.f32.mrf.mxu0
    %v6129 = vadd.f32 0.0, %v6128
    %v6130 = vpop.f32.mrf.mxu0
    %6131 = vdwg.mxu0
    %6132 = vmatpush.bf16.msra.mxu0 %v5933
    %6133 = vmatpush.bf16.msra.mxu0 %v5925
    %6134 = vmatpush.bf16.msra.mxu0 %v5917
    %6135 = vmatpush.bf16.msra.mxu0 %v5909
    %6136 = vmatpush.bf16.msra.mxu0 %v5901
    %6137 = vmatpush.bf16.msra.mxu0 %v5893
    %6138 = vmatpush.bf16.msra.mxu0 %v5885
    %6139 = vmatpush.bf16.msra.mxu0 %v5877
    %6140 = vmatmul.bf16.gmra.mxu0 %v5298
    %v6141 = vpop.f32.mrf.mxu0
    %v6142 = vadd.f32 %v6129, %v6141
    %v6143 = vpop.f32.mrf.mxu0
    %6144 = vdwg.mxu0
    %6145 = vmatpush.bf16.msra.mxu0 %v5870
    %6146 = vmatpush.bf16.msra.mxu0 %v5862
    %6147 = vmatpush.bf16.msra.mxu0 %v5854
    %6148 = vmatpush.bf16.msra.mxu0 %v5846
    %6149 = vmatpush.bf16.msra.mxu0 %v5838
    %6150 = vmatpush.bf16.msra.mxu0 %v5830
    %6151 = vmatpush.bf16.msra.mxu0 %v5822
    %6152 = vmatpush.bf16.msra.mxu0 %v5814
    %6153 = vmatmul.bf16.gmra.mxu0 %v5297
    %v6154 = vpop.f32.mrf.mxu0
    %v6155 = vadd.f32 0.0, %v6154
    %v6156 = vpop.f32.mrf.mxu0
    %6157 = vdwg.mxu0
    %6158 = vmatpush.bf16.msra.mxu0 %v5934
    %6159 = vmatpush.bf16.msra.mxu0 %v5926
    %6160 = vmatpush.bf16.msra.mxu0 %v5918
    %6161 = vmatpush.bf16.msra.mxu0 %v5910
    %6162 = vmatpush.bf16.msra.mxu0 %v5902
    %6163 = vmatpush.bf16.msra.mxu0 %v5894
    %6164 = vmatpush.bf16.msra.mxu0 %v5886
    %6165 = vmatpush.bf16.msra.mxu0 %v5878
    %6166 = vmatmul.bf16.gmra.mxu0 %v5298
    %v6167 = vpop.f32.mrf.mxu0
    %v6168 = vadd.f32 %v6155, %v6167
    %v6169 = vpop.f32.mrf.mxu0
    %6170 = vdwg.mxu0
    %6171 = vmatpush.bf16.msra.mxu0 %v5871
    %6172 = vmatpush.bf16.msra.mxu0 %v5863
    %6173 = vmatpush.bf16.msra.mxu0 %v5855
    %6174 = vmatpush.bf16.msra.mxu0 %v5847
    %6175 = vmatpush.bf16.msra.mxu0 %v5839
    %6176 = vmatpush.bf16.msra.mxu0 %v5831
    %6177 = vmatpush.bf16.msra.mxu0 %v5823
    %6178 = vmatpush.bf16.msra.mxu0 %v5815
    %6179 = vmatmul.bf16.gmra.mxu0 %v5297
    %v6180 = vpop.f32.mrf.mxu0
    %v6181 = vadd.f32 0.0, %v6180
    %v6182 = vpop.f32.mrf.mxu0
    %6183 = vdwg.mxu0
    %6184 = vmatpush.bf16.msra.mxu0 %v5935
    %6185 = vmatpush.bf16.msra.mxu0 %v5927
    %6186 = vmatpush.bf16.msra.mxu0 %v5919
    %6187 = vmatpush.bf16.msra.mxu0 %v5911
    %6188 = vmatpush.bf16.msra.mxu0 %v5903
    %6189 = vmatpush.bf16.msra.mxu0 %v5895
    %6190 = vmatpush.bf16.msra.mxu0 %v5887
    %6191 = vmatpush.bf16.msra.mxu0 %v5879
    %6192 = vmatmul.bf16.gmra.mxu0 %v5298
    %v6193 = vpop.f32.mrf.mxu0
    %v6194 = vadd.f32 %v6181, %v6193
    %v6195 = vpop.f32.mrf.mxu0
    %6196 = vdwg.mxu0
    %6197 = vmatpush.bf16.msra.mxu0 %v5872
    %6198 = vmatpush.bf16.msra.mxu0 %v5864
    %6199 = vmatpush.bf16.msra.mxu0 %v5856
    %6200 = vmatpush.bf16.msra.mxu0 %v5848
    %6201 = vmatpush.bf16.msra.mxu0 %v5840
    %6202 = vmatpush.bf16.msra.mxu0 %v5832
    %6203 = vmatpush.bf16.msra.mxu0 %v5824
    %6204 = vmatpush.bf16.msra.mxu0 %v5816
    %6205 = vmatmul.bf16.gmra.mxu0 %v5297
    %v6206 = vpop.f32.mrf.mxu0
    %v6207 = vadd.f32 0.0, %v6206
    %v6208 = vpop.f32.mrf.mxu0
    %6209 = vdwg.mxu0
    %6210 = vmatpush.bf16.msra.mxu0 %v5936
    %6211 = vmatpush.bf16.msra.mxu0 %v5928
    %6212 = vmatpush.bf16.msra.mxu0 %v5920
    %6213 = vmatpush.bf16.msra.mxu0 %v5912
    %6214 = vmatpush.bf16.msra.mxu0 %v5904
    %6215 = vmatpush.bf16.msra.mxu0 %v5896
    %6216 = vmatpush.bf16.msra.mxu0 %v5888
    %6217 = vmatpush.bf16.msra.mxu0 %v5880
    %6218 = vmatmul.bf16.gmra.mxu0 %v5298
    %v6219 = vpop.f32.mrf.mxu0
    %v6220 = vadd.f32 %v6207, %v6219
    %v6221 = vpop.f32.mrf.mxu0
    %6222 = vdwg.mxu0
    %6223 = vmatpush.bf16.msra.mxu0 %v5873
    %6224 = vmatpush.bf16.msra.mxu0 %v5865
    %6225 = vmatpush.bf16.msra.mxu0 %v5857
    %6226 = vmatpush.bf16.msra.mxu0 %v5849
    %6227 = vmatpush.bf16.msra.mxu0 %v5841
    %6228 = vmatpush.bf16.msra.mxu0 %v5833
    %6229 = vmatpush.bf16.msra.mxu0 %v5825
    %6230 = vmatpush.bf16.msra.mxu0 %v5817
    %6231 = vmatmul.bf16.gmra.mxu0 %v5297
    %v6232 = vpop.f32.mrf.mxu0
    %v6233 = vadd.f32 0.0, %v6232
    %v6234 = vpop.f32.mrf.mxu0
    %6235 = vdwg.mxu0
    %6236 = vmatpush.bf16.msra.mxu0 %v5937
    %6237 = vmatpush.bf16.msra.mxu0 %v5929
    %6238 = vmatpush.bf16.msra.mxu0 %v5921
    %6239 = vmatpush.bf16.msra.mxu0 %v5913
    %6240 = vmatpush.bf16.msra.mxu0 %v5905
    %6241 = vmatpush.bf16.msra.mxu0 %v5897
    %6242 = vmatpush.bf16.msra.mxu0 %v5889
    %6243 = vmatpush.bf16.msra.mxu0 %v5881
    %6244 = vmatmul.bf16.gmra.mxu0 %v5298
    %v6245 = vpop.f32.mrf.mxu0
    %v6246 = vadd.f32 %v6233, %v6245
    %v6247 = vpop.f32.mrf.mxu0
    %6248 = vdwg.mxu0
    %6249 = vmatpush.bf16.msra.mxu0 %v5874
    %6250 = vmatpush.bf16.msra.mxu0 %v5866
    %6251 = vmatpush.bf16.msra.mxu0 %v5858
    %6252 = vmatpush.bf16.msra.mxu0 %v5850
    %6253 = vmatpush.bf16.msra.mxu0 %v5842
    %6254 = vmatpush.bf16.msra.mxu0 %v5834
    %6255 = vmatpush.bf16.msra.mxu0 %v5826
    %6256 = vmatpush.bf16.msra.mxu0 %v5818
    %6257 = vmatmul.bf16.gmra.mxu0 %v5297
    %v6258 = vpop.f32.mrf.mxu0
    %v6259 = vadd.f32 0.0, %v6258
    %v6260 = vpop.f32.mrf.mxu0
    %6261 = vdwg.mxu0
    %6262 = vmatpush.bf16.msra.mxu0 %v5938
    %6263 = vmatpush.bf16.msra.mxu0 %v5930
    %6264 = vmatpush.bf16.msra.mxu0 %v5922
    %6265 = vmatpush.bf16.msra.mxu0 %v5914
    %6266 = vmatpush.bf16.msra.mxu0 %v5906
    %6267 = vmatpush.bf16.msra.mxu0 %v5898
    %6268 = vmatpush.bf16.msra.mxu0 %v5890
    %6269 = vmatpush.bf16.msra.mxu0 %v5882
    %6270 = vmatmul.bf16.gmra.mxu0 %v5298
    %v6271 = vpop.f32.mrf.mxu0
    %v6272 = vadd.f32 %v6259, %v6271
    %v6273 = vpop.f32.mrf.mxu0
    %6274 = vdwg.mxu0
    %v6283 = vrot.slane %v6116, 7
    %v6284 = vrot.slane %v6142, 6
    %v6285 = vrot.slane %v6168, 5
    %v6286 = vrot.slane %v6194, 4
    %v6287 = vrot.slane %v6220, 3
    %v6288 = vrot.slane %v6246, 2
    %v6289 = vrot.slane %v6272, 1
    %v6290 = vsel %vm1043, %v6090, %v6283
    %v6291 = vsel %vm1045, %v6284, %v6285
    %v6292 = vsel %vm1047, %v6290, %v6291
    %v6293 = vsel %vm1049, %v6286, %v6287
    %v6294 = vsel %vm1051, %v6288, %v6289
    %v6295 = vsel %vm1053, %v6293, %v6294
    %v6296 = vsel %vm1055, %v6292, %v6295
    %v6298 = vadd.f32 %v5291, %v6296
    %v6299 = vxor.u32 %v6298, 2147483648
    %v6300 = vmul.f32 %v6299, 1.442695
    %v6301 = vpow.pop %v6300
    %v6302 = vadd.f32 %v6301, 1.0
    %v6303 = vrcp.pop %v6302
    %v6304 = vmul.f32 %v6302, %v6303
    %v6305 = vsub.f32 1.0, %v6304
    %v6306 = vmul.f32 %v6303, %v6305
    %v6307 = vadd.f32 %v6303, %v6306
    %vm6308 = vweird.f32 %v6302
    %vm6309 = vweird.f32 %v6303
    %vm6310 = vmor %vm6308, %vm6309
    %v6311 = vsel %vm6310, %v6303, %v6307
    %v6312 = vand.u32 2147483647, %v6302
    %vm6313 = vcmp.eq.f32.partialorder %v6312, 8.507059e+37
    %v6314 = vand.u32 %v6302, 2147483648
    %v6315 = vor.u32 1.1754944e-38, %v6314
    %v6316 = vsel %vm6313, %v6315, %v6311
    %v6317 = vmul.f32 1.0, %v6316
    %v6319 = vrot.slane %v6298, 6
    %v6321 = vtanh.pop %v6319
    %v6323 = vrot.slane %v6317, 2
    %v6325 = vmul.f32 %v6323, %v5287
    %v6326 = vmul.f32 %v6317, %v6321
    %v6327 = vadd.f32 %v6325, %v6326
    %6328 = vst.msk [vmem:[#allocation3] sm:$0x3] %vm37, %v6327
    %v6329 = vtanh.pop %v6327
    %v6330 = vrot.slane %v6317, 4
    %v6332 = vmul.f32 %v6330, %v6329
    %6333 = vst.msk [vmem:[#allocation2] sm:$0x3] %vm37, %v6332
    %v6334 = vld [vmem:[#allocation2] sm:$0x3]
    %v6335 = vld [vmem:[#allocation3] sm:$0x3]
    %s6336 = scalar_lea.vmem %s0, 6
    %v6337 = vld [vmem:[%s6336] ss:$8 sm:$0xf]
    %v6338 = vld [vmem:[%s6336] ss:$8 sm:$0xf0]
    %v6339 = vor.u32 %v6337, %v6338
    %v6341 = vperm.slane %v6334, 0
    %v6342 = vperm.slane %v6334, 1
    %v6345 = vpack.c.bf16 %v6341, %v6341
    %v6346 = vpack.c.bf16 %v6342, %v6342
    %v6347 = vld [vmem:[#allocation4] sm:$0xff]
    %v6348 = vld [vmem:[#allocation4 + $0x8] sm:$0xff]
    %v6349 = vld [vmem:[#allocation4 + $0x10] sm:$0xff]
    %v6350 = vld [vmem:[#allocation4 + $0x18] sm:$0xff]
    %v6351 = vld [vmem:[#allocation4 + $0x20] sm:$0xff]
    %v6352 = vld [vmem:[#allocation4 + $0x28] sm:$0xff]
    %v6353 = vld [vmem:[#allocation4 + $0x30] sm:$0xff]
    %v6354 = vld [vmem:[#allocation4 + $0x38] sm:$0xff]
    %v6355 = vld [vmem:[#allocation4 + $0x40] sm:$0xff]
    %v6356 = vld [vmem:[#allocation4 + $0x48] sm:$0xff]
    %v6357 = vld [vmem:[#allocation4 + $0x50] sm:$0xff]
    %v6358 = vld [vmem:[#allocation4 + $0x58] sm:$0xff]
    %v6359 = vld [vmem:[#allocation4 + $0x60] sm:$0xff]
    %v6360 = vld [vmem:[#allocation4 + $0x68] sm:$0xff]
    %v6361 = vld [vmem:[#allocation4 + $0x70] sm:$0xff]
    %v6362 = vld [vmem:[#allocation4 + $0x78] sm:$0xff]
    %v6363 = vld [vmem:[#allocation4 + $0x80] sm:$0xff]
    %v6364 = vld [vmem:[#allocation4 + $0x88] sm:$0xff]
    %v6365 = vld [vmem:[#allocation4 + $0x90] sm:$0xff]
    %v6366 = vld [vmem:[#allocation4 + $0x98] sm:$0xff]
    %v6367 = vld [vmem:[#allocation4 + $0xa0] sm:$0xff]
    %v6368 = vld [vmem:[#allocation4 + $0xa8] sm:$0xff]
    %v6369 = vld [vmem:[#allocation4 + $0xb0] sm:$0xff]
    %v6370 = vld [vmem:[#allocation4 + $0xb8] sm:$0xff]
    %v6371 = vld [vmem:[#allocation4 + $0xc0] sm:$0xff]
    %v6372 = vld [vmem:[#allocation4 + $0xc8] sm:$0xff]
    %v6373 = vld [vmem:[#allocation4 + $0xd0] sm:$0xff]
    %v6374 = vld [vmem:[#allocation4 + $0xd8] sm:$0xff]
    %v6375 = vld [vmem:[#allocation4 + $0xe0] sm:$0xff]
    %v6376 = vld [vmem:[#allocation4 + $0xe8] sm:$0xff]
    %v6377 = vld [vmem:[#allocation4 + $0xf0] sm:$0xff]
    %v6378 = vld [vmem:[#allocation4 + $0xf8] sm:$0xff]
    %v6379 = vld [vmem:[#allocation4 + $0x100] sm:$0xff]
    %v6380 = vld [vmem:[#allocation4 + $0x108] sm:$0xff]
    %v6381 = vld [vmem:[#allocation4 + $0x110] sm:$0xff]
    %v6382 = vld [vmem:[#allocation4 + $0x118] sm:$0xff]
    %v6383 = vld [vmem:[#allocation4 + $0x120] sm:$0xff]
    %v6384 = vld [vmem:[#allocation4 + $0x128] sm:$0xff]
    %v6385 = vld [vmem:[#allocation4 + $0x130] sm:$0xff]
    %v6386 = vld [vmem:[#allocation4 + $0x138] sm:$0xff]
    %v6387 = vld [vmem:[#allocation4 + $0x140] sm:$0xff]
    %v6388 = vld [vmem:[#allocation4 + $0x148] sm:$0xff]
    %v6389 = vld [vmem:[#allocation4 + $0x150] sm:$0xff]
    %v6390 = vld [vmem:[#allocation4 + $0x158] sm:$0xff]
    %v6391 = vld [vmem:[#allocation4 + $0x160] sm:$0xff]
    %v6392 = vld [vmem:[#allocation4 + $0x168] sm:$0xff]
    %v6393 = vld [vmem:[#allocation4 + $0x170] sm:$0xff]
    %v6394 = vld [vmem:[#allocation4 + $0x178] sm:$0xff]
    %v6395 = vld [vmem:[#allocation4 + $0x180] sm:$0xff]
    %v6396 = vld [vmem:[#allocation4 + $0x188] sm:$0xff]
    %v6397 = vld [vmem:[#allocation4 + $0x190] sm:$0xff]
    %v6398 = vld [vmem:[#allocation4 + $0x198] sm:$0xff]
    %v6399 = vld [vmem:[#allocation4 + $0x1a0] sm:$0xff]
    %v6400 = vld [vmem:[#allocation4 + $0x1a8] sm:$0xff]
    %v6401 = vld [vmem:[#allocation4 + $0x1b0] sm:$0xff]
    %v6402 = vld [vmem:[#allocation4 + $0x1b8] sm:$0xff]
    %v6403 = vld [vmem:[#allocation4 + $0x1c0] sm:$0xff]
    %v6404 = vld [vmem:[#allocation4 + $0x1c8] sm:$0xff]
    %v6405 = vld [vmem:[#allocation4 + $0x1d0] sm:$0xff]
    %v6406 = vld [vmem:[#allocation4 + $0x1d8] sm:$0xff]
    %v6407 = vld [vmem:[#allocation4 + $0x1e0] sm:$0xff]
    %v6408 = vld [vmem:[#allocation4 + $0x1e8] sm:$0xff]
    %v6409 = vld [vmem:[#allocation4 + $0x1f0] sm:$0xff]
    %v6410 = vld [vmem:[#allocation4 + $0x1f8] sm:$0xff]
    %v6411 = vld [vmem:[#allocation4 + $0x200] sm:$0xff]
    %v6412 = vld [vmem:[#allocation4 + $0x208] sm:$0xff]
    %v6413 = vld [vmem:[#allocation4 + $0x210] sm:$0xff]
    %v6414 = vld [vmem:[#allocation4 + $0x218] sm:$0xff]
    %v6415 = vld [vmem:[#allocation4 + $0x220] sm:$0xff]
    %v6416 = vld [vmem:[#allocation4 + $0x228] sm:$0xff]
    %v6417 = vld [vmem:[#allocation4 + $0x230] sm:$0xff]
    %v6418 = vld [vmem:[#allocation4 + $0x238] sm:$0xff]
    %v6419 = vld [vmem:[#allocation4 + $0x240] sm:$0xff]
    %v6420 = vld [vmem:[#allocation4 + $0x248] sm:$0xff]
    %v6421 = vld [vmem:[#allocation4 + $0x250] sm:$0xff]
    %v6422 = vld [vmem:[#allocation4 + $0x258] sm:$0xff]
    %v6423 = vld [vmem:[#allocation4 + $0x260] sm:$0xff]
    %v6424 = vld [vmem:[#allocation4 + $0x268] sm:$0xff]
    %v6425 = vld [vmem:[#allocation4 + $0x270] sm:$0xff]
    %v6426 = vld [vmem:[#allocation4 + $0x278] sm:$0xff]
    %v6427 = vld [vmem:[#allocation4 + $0x280] sm:$0xff]
    %v6428 = vld [vmem:[#allocation4 + $0x288] sm:$0xff]
    %v6429 = vld [vmem:[#allocation4 + $0x290] sm:$0xff]
    %v6430 = vld [vmem:[#allocation4 + $0x298] sm:$0xff]
    %v6431 = vld [vmem:[#allocation4 + $0x2a0] sm:$0xff]
    %v6432 = vld [vmem:[#allocation4 + $0x2a8] sm:$0xff]
    %v6433 = vld [vmem:[#allocation4 + $0x2b0] sm:$0xff]
    %v6434 = vld [vmem:[#allocation4 + $0x2b8] sm:$0xff]
    %v6435 = vld [vmem:[#allocation4 + $0x2c0] sm:$0xff]
    %v6436 = vld [vmem:[#allocation4 + $0x2c8] sm:$0xff]
    %v6437 = vld [vmem:[#allocation4 + $0x2d0] sm:$0xff]
    %v6438 = vld [vmem:[#allocation4 + $0x2d8] sm:$0xff]
    %v6439 = vld [vmem:[#allocation4 + $0x2e0] sm:$0xff]
    %v6440 = vld [vmem:[#allocation4 + $0x2e8] sm:$0xff]
    %v6441 = vld [vmem:[#allocation4 + $0x2f0] sm:$0xff]
    %v6442 = vld [vmem:[#allocation4 + $0x2f8] sm:$0xff]
    %v6443 = vld [vmem:[#allocation4 + $0x300] sm:$0xff]
    %v6444 = vld [vmem:[#allocation4 + $0x308] sm:$0xff]
    %v6445 = vld [vmem:[#allocation4 + $0x310] sm:$0xff]
    %v6446 = vld [vmem:[#allocation4 + $0x318] sm:$0xff]
    %v6447 = vld [vmem:[#allocation4 + $0x320] sm:$0xff]
    %v6448 = vld [vmem:[#allocation4 + $0x328] sm:$0xff]
    %v6449 = vld [vmem:[#allocation4 + $0x330] sm:$0xff]
    %v6450 = vld [vmem:[#allocation4 + $0x338] sm:$0xff]
    %v6451 = vld [vmem:[#allocation4 + $0x340] sm:$0xff]
    %v6452 = vld [vmem:[#allocation4 + $0x348] sm:$0xff]
    %v6453 = vld [vmem:[#allocation4 + $0x350] sm:$0xff]
    %v6454 = vld [vmem:[#allocation4 + $0x358] sm:$0xff]
    %v6455 = vld [vmem:[#allocation4 + $0x360] sm:$0xff]
    %v6456 = vld [vmem:[#allocation4 + $0x368] sm:$0xff]
    %v6457 = vld [vmem:[#allocation4 + $0x370] sm:$0xff]
    %v6458 = vld [vmem:[#allocation4 + $0x378] sm:$0xff]
    %v6459 = vld [vmem:[#allocation4 + $0x380] sm:$0xff]
    %v6460 = vld [vmem:[#allocation4 + $0x388] sm:$0xff]
    %v6461 = vld [vmem:[#allocation4 + $0x390] sm:$0xff]
    %v6462 = vld [vmem:[#allocation4 + $0x398] sm:$0xff]
    %v6463 = vld [vmem:[#allocation4 + $0x3a0] sm:$0xff]
    %v6464 = vld [vmem:[#allocation4 + $0x3a8] sm:$0xff]
    %v6465 = vld [vmem:[#allocation4 + $0x3b0] sm:$0xff]
    %v6466 = vld [vmem:[#allocation4 + $0x3b8] sm:$0xff]
    %v6467 = vld [vmem:[#allocation4 + $0x3c0] sm:$0xff]
    %v6468 = vld [vmem:[#allocation4 + $0x3c8] sm:$0xff]
    %v6469 = vld [vmem:[#allocation4 + $0x3d0] sm:$0xff]
    %v6470 = vld [vmem:[#allocation4 + $0x3d8] sm:$0xff]
    %v6471 = vld [vmem:[#allocation4 + $0x3e0] sm:$0xff]
    %v6472 = vld [vmem:[#allocation4 + $0x3e8] sm:$0xff]
    %v6473 = vld [vmem:[#allocation4 + $0x3f0] sm:$0xff]
    %v6474 = vld [vmem:[#allocation4 + $0x3f8] sm:$0xff]
    %v6603 = vunpack.c.l.b16 %v6347
    %v6604 = vunpack.c.h.b16 %v6347
    %v6605 = vunpack.c.l.b16 %v6348
    %v6606 = vunpack.c.h.b16 %v6348
    %v6607 = vunpack.c.l.b16 %v6349
    %v6608 = vunpack.c.h.b16 %v6349
    %v6609 = vunpack.c.l.b16 %v6350
    %v6610 = vunpack.c.h.b16 %v6350
    %v6611 = vunpack.c.l.b16 %v6351
    %v6612 = vunpack.c.h.b16 %v6351
    %v6613 = vunpack.c.l.b16 %v6352
    %v6614 = vunpack.c.h.b16 %v6352
    %v6615 = vunpack.c.l.b16 %v6353
    %v6616 = vunpack.c.h.b16 %v6353
    %v6617 = vunpack.c.l.b16 %v6354
    %v6618 = vunpack.c.h.b16 %v6354
    %v6619 = vunpack.c.l.b16 %v6355
    %v6620 = vunpack.c.h.b16 %v6355
    %v6621 = vunpack.c.l.b16 %v6356
    %v6622 = vunpack.c.h.b16 %v6356
    %v6623 = vunpack.c.l.b16 %v6357
    %v6624 = vunpack.c.h.b16 %v6357
    %v6625 = vunpack.c.l.b16 %v6358
    %v6626 = vunpack.c.h.b16 %v6358
    %v6627 = vunpack.c.l.b16 %v6359
    %v6628 = vunpack.c.h.b16 %v6359
    %v6629 = vunpack.c.l.b16 %v6360
    %v6630 = vunpack.c.h.b16 %v6360
    %v6631 = vunpack.c.l.b16 %v6361
    %v6632 = vunpack.c.h.b16 %v6361
    %v6633 = vunpack.c.l.b16 %v6362
    %v6634 = vunpack.c.h.b16 %v6362
    %v6635 = vunpack.c.l.b16 %v6363
    %v6636 = vunpack.c.h.b16 %v6363
    %v6637 = vunpack.c.l.b16 %v6364
    %v6638 = vunpack.c.h.b16 %v6364
    %v6639 = vunpack.c.l.b16 %v6365
    %v6640 = vunpack.c.h.b16 %v6365
    %v6641 = vunpack.c.l.b16 %v6366
    %v6642 = vunpack.c.h.b16 %v6366
    %v6643 = vunpack.c.l.b16 %v6367
    %v6644 = vunpack.c.h.b16 %v6367
    %v6645 = vunpack.c.l.b16 %v6368
    %v6646 = vunpack.c.h.b16 %v6368
    %v6647 = vunpack.c.l.b16 %v6369
    %v6648 = vunpack.c.h.b16 %v6369
    %v6649 = vunpack.c.l.b16 %v6370
    %v6650 = vunpack.c.h.b16 %v6370
    %v6651 = vunpack.c.l.b16 %v6371
    %v6652 = vunpack.c.h.b16 %v6371
    %v6653 = vunpack.c.l.b16 %v6372
    %v6654 = vunpack.c.h.b16 %v6372
    %v6655 = vunpack.c.l.b16 %v6373
    %v6656 = vunpack.c.h.b16 %v6373
    %v6657 = vunpack.c.l.b16 %v6374
    %v6658 = vunpack.c.h.b16 %v6374
    %v6659 = vunpack.c.l.b16 %v6375
    %v6660 = vunpack.c.h.b16 %v6375
    %v6661 = vunpack.c.l.b16 %v6376
    %v6662 = vunpack.c.h.b16 %v6376
    %v6663 = vunpack.c.l.b16 %v6377
    %v6664 = vunpack.c.h.b16 %v6377
    %v6665 = vunpack.c.l.b16 %v6378
    %v6666 = vunpack.c.h.b16 %v6378
    %v6667 = vunpack.c.l.b16 %v6379
    %v6668 = vunpack.c.h.b16 %v6379
    %v6669 = vunpack.c.l.b16 %v6380
    %v6670 = vunpack.c.h.b16 %v6380
    %v6671 = vunpack.c.l.b16 %v6381
    %v6672 = vunpack.c.h.b16 %v6381
    %v6673 = vunpack.c.l.b16 %v6382
    %v6674 = vunpack.c.h.b16 %v6382
    %v6675 = vunpack.c.l.b16 %v6383
    %v6676 = vunpack.c.h.b16 %v6383
    %v6677 = vunpack.c.l.b16 %v6384
    %v6678 = vunpack.c.h.b16 %v6384
    %v6679 = vunpack.c.l.b16 %v6385
    %v6680 = vunpack.c.h.b16 %v6385
    %v6681 = vunpack.c.l.b16 %v6386
    %v6682 = vunpack.c.h.b16 %v6386
    %v6683 = vunpack.c.l.b16 %v6387
    %v6684 = vunpack.c.h.b16 %v6387
    %v6685 = vunpack.c.l.b16 %v6388
    %v6686 = vunpack.c.h.b16 %v6388
    %v6687 = vunpack.c.l.b16 %v6389
    %v6688 = vunpack.c.h.b16 %v6389
    %v6689 = vunpack.c.l.b16 %v6390
    %v6690 = vunpack.c.h.b16 %v6390
    %v6691 = vunpack.c.l.b16 %v6391
    %v6692 = vunpack.c.h.b16 %v6391
    %v6693 = vunpack.c.l.b16 %v6392
    %v6694 = vunpack.c.h.b16 %v6392
    %v6695 = vunpack.c.l.b16 %v6393
    %v6696 = vunpack.c.h.b16 %v6393
    %v6697 = vunpack.c.l.b16 %v6394
    %v6698 = vunpack.c.h.b16 %v6394
    %v6699 = vunpack.c.l.b16 %v6395
    %v6700 = vunpack.c.h.b16 %v6395
    %v6701 = vunpack.c.l.b16 %v6396
    %v6702 = vunpack.c.h.b16 %v6396
    %v6703 = vunpack.c.l.b16 %v6397
    %v6704 = vunpack.c.h.b16 %v6397
    %v6705 = vunpack.c.l.b16 %v6398
    %v6706 = vunpack.c.h.b16 %v6398
    %v6707 = vunpack.c.l.b16 %v6399
    %v6708 = vunpack.c.h.b16 %v6399
    %v6709 = vunpack.c.l.b16 %v6400
    %v6710 = vunpack.c.h.b16 %v6400
    %v6711 = vunpack.c.l.b16 %v6401
    %v6712 = vunpack.c.h.b16 %v6401
    %v6713 = vunpack.c.l.b16 %v6402
    %v6714 = vunpack.c.h.b16 %v6402
    %v6715 = vunpack.c.l.b16 %v6403
    %v6716 = vunpack.c.h.b16 %v6403
    %v6717 = vunpack.c.l.b16 %v6404
    %v6718 = vunpack.c.h.b16 %v6404
    %v6719 = vunpack.c.l.b16 %v6405
    %v6720 = vunpack.c.h.b16 %v6405
    %v6721 = vunpack.c.l.b16 %v6406
    %v6722 = vunpack.c.h.b16 %v6406
    %v6723 = vunpack.c.l.b16 %v6407
    %v6724 = vunpack.c.h.b16 %v6407
    %v6725 = vunpack.c.l.b16 %v6408
    %v6726 = vunpack.c.h.b16 %v6408
    %v6727 = vunpack.c.l.b16 %v6409
    %v6728 = vunpack.c.h.b16 %v6409
    %v6729 = vunpack.c.l.b16 %v6410
    %v6730 = vunpack.c.h.b16 %v6410
    %v6731 = vunpack.c.l.b16 %v6411
    %v6732 = vunpack.c.h.b16 %v6411
    %v6733 = vunpack.c.l.b16 %v6412
    %v6734 = vunpack.c.h.b16 %v6412
    %v6735 = vunpack.c.l.b16 %v6413
    %v6736 = vunpack.c.h.b16 %v6413
    %v6737 = vunpack.c.l.b16 %v6414
    %v6738 = vunpack.c.h.b16 %v6414
    %v6739 = vunpack.c.l.b16 %v6415
    %v6740 = vunpack.c.h.b16 %v6415
    %v6741 = vunpack.c.l.b16 %v6416
    %v6742 = vunpack.c.h.b16 %v6416
    %v6743 = vunpack.c.l.b16 %v6417
    %v6744 = vunpack.c.h.b16 %v6417
    %v6745 = vunpack.c.l.b16 %v6418
    %v6746 = vunpack.c.h.b16 %v6418
    %v6747 = vunpack.c.l.b16 %v6419
    %v6748 = vunpack.c.h.b16 %v6419
    %v6749 = vunpack.c.l.b16 %v6420
    %v6750 = vunpack.c.h.b16 %v6420
    %v6751 = vunpack.c.l.b16 %v6421
    %v6752 = vunpack.c.h.b16 %v6421
    %v6753 = vunpack.c.l.b16 %v6422
    %v6754 = vunpack.c.h.b16 %v6422
    %v6755 = vunpack.c.l.b16 %v6423
    %v6756 = vunpack.c.h.b16 %v6423
    %v6757 = vunpack.c.l.b16 %v6424
    %v6758 = vunpack.c.h.b16 %v6424
    %v6759 = vunpack.c.l.b16 %v6425
    %v6760 = vunpack.c.h.b16 %v6425
    %v6761 = vunpack.c.l.b16 %v6426
    %v6762 = vunpack.c.h.b16 %v6426
    %v6763 = vunpack.c.l.b16 %v6427
    %v6764 = vunpack.c.h.b16 %v6427
    %v6765 = vunpack.c.l.b16 %v6428
    %v6766 = vunpack.c.h.b16 %v6428
    %v6767 = vunpack.c.l.b16 %v6429
    %v6768 = vunpack.c.h.b16 %v6429
    %v6769 = vunpack.c.l.b16 %v6430
    %v6770 = vunpack.c.h.b16 %v6430
    %v6771 = vunpack.c.l.b16 %v6431
    %v6772 = vunpack.c.h.b16 %v6431
    %v6773 = vunpack.c.l.b16 %v6432
    %v6774 = vunpack.c.h.b16 %v6432
    %v6775 = vunpack.c.l.b16 %v6433
    %v6776 = vunpack.c.h.b16 %v6433
    %v6777 = vunpack.c.l.b16 %v6434
    %v6778 = vunpack.c.h.b16 %v6434
    %v6779 = vunpack.c.l.b16 %v6435
    %v6780 = vunpack.c.h.b16 %v6435
    %v6781 = vunpack.c.l.b16 %v6436
    %v6782 = vunpack.c.h.b16 %v6436
    %v6783 = vunpack.c.l.b16 %v6437
    %v6784 = vunpack.c.h.b16 %v6437
    %v6785 = vunpack.c.l.b16 %v6438
    %v6786 = vunpack.c.h.b16 %v6438
    %v6787 = vunpack.c.l.b16 %v6439
    %v6788 = vunpack.c.h.b16 %v6439
    %v6789 = vunpack.c.l.b16 %v6440
    %v6790 = vunpack.c.h.b16 %v6440
    %v6791 = vunpack.c.l.b16 %v6441
    %v6792 = vunpack.c.h.b16 %v6441
    %v6793 = vunpack.c.l.b16 %v6442
    %v6794 = vunpack.c.h.b16 %v6442
    %v6795 = vunpack.c.l.b16 %v6443
    %v6796 = vunpack.c.h.b16 %v6443
    %v6797 = vunpack.c.l.b16 %v6444
    %v6798 = vunpack.c.h.b16 %v6444
    %v6799 = vunpack.c.l.b16 %v6445
    %v6800 = vunpack.c.h.b16 %v6445
    %v6801 = vunpack.c.l.b16 %v6446
    %v6802 = vunpack.c.h.b16 %v6446
    %v6803 = vunpack.c.l.b16 %v6447
    %v6804 = vunpack.c.h.b16 %v6447
    %v6805 = vunpack.c.l.b16 %v6448
    %v6806 = vunpack.c.h.b16 %v6448
    %v6807 = vunpack.c.l.b16 %v6449
    %v6808 = vunpack.c.h.b16 %v6449
    %v6809 = vunpack.c.l.b16 %v6450
    %v6810 = vunpack.c.h.b16 %v6450
    %v6811 = vunpack.c.l.b16 %v6451
    %v6812 = vunpack.c.h.b16 %v6451
    %v6813 = vunpack.c.l.b16 %v6452
    %v6814 = vunpack.c.h.b16 %v6452
    %v6815 = vunpack.c.l.b16 %v6453
    %v6816 = vunpack.c.h.b16 %v6453
    %v6817 = vunpack.c.l.b16 %v6454
    %v6818 = vunpack.c.h.b16 %v6454
    %v6819 = vunpack.c.l.b16 %v6455
    %v6820 = vunpack.c.h.b16 %v6455
    %v6821 = vunpack.c.l.b16 %v6456
    %v6822 = vunpack.c.h.b16 %v6456
    %v6823 = vunpack.c.l.b16 %v6457
    %v6824 = vunpack.c.h.b16 %v6457
    %v6825 = vunpack.c.l.b16 %v6458
    %v6826 = vunpack.c.h.b16 %v6458
    %v6827 = vunpack.c.l.b16 %v6459
    %v6828 = vunpack.c.h.b16 %v6459
    %v6829 = vunpack.c.l.b16 %v6460
    %v6830 = vunpack.c.h.b16 %v6460
    %v6831 = vunpack.c.l.b16 %v6461
    %v6832 = vunpack.c.h.b16 %v6461
    %v6833 = vunpack.c.l.b16 %v6462
    %v6834 = vunpack.c.h.b16 %v6462
    %v6835 = vunpack.c.l.b16 %v6463
    %v6836 = vunpack.c.h.b16 %v6463
    %v6837 = vunpack.c.l.b16 %v6464
    %v6838 = vunpack.c.h.b16 %v6464
    %v6839 = vunpack.c.l.b16 %v6465
    %v6840 = vunpack.c.h.b16 %v6465
    %v6841 = vunpack.c.l.b16 %v6466
    %v6842 = vunpack.c.h.b16 %v6466
    %v6843 = vunpack.c.l.b16 %v6467
    %v6844 = vunpack.c.h.b16 %v6467
    %v6845 = vunpack.c.l.b16 %v6468
    %v6846 = vunpack.c.h.b16 %v6468
    %v6847 = vunpack.c.l.b16 %v6469
    %v6848 = vunpack.c.h.b16 %v6469
    %v6849 = vunpack.c.l.b16 %v6470
    %v6850 = vunpack.c.h.b16 %v6470
    %v6851 = vunpack.c.l.b16 %v6471
    %v6852 = vunpack.c.h.b16 %v6471
    %v6853 = vunpack.c.l.b16 %v6472
    %v6854 = vunpack.c.h.b16 %v6472
    %v6855 = vunpack.c.l.b16 %v6473
    %v6856 = vunpack.c.h.b16 %v6473
    %v6857 = vunpack.c.l.b16 %v6474
    %v6858 = vunpack.c.h.b16 %v6474
    %v6859 = vpack.c.b16 %v6611, %v6603
    %v6860 = vpack.c.b16 %v6612, %v6604
    %v6861 = vpack.c.b16 %v6613, %v6605
    %v6862 = vpack.c.b16 %v6614, %v6606
    %v6863 = vpack.c.b16 %v6615, %v6607
    %v6864 = vpack.c.b16 %v6616, %v6608
    %v6865 = vpack.c.b16 %v6617, %v6609
    %v6866 = vpack.c.b16 %v6618, %v6610
    %v6867 = vpack.c.b16 %v6627, %v6619
    %v6868 = vpack.c.b16 %v6628, %v6620
    %v6869 = vpack.c.b16 %v6629, %v6621
    %v6870 = vpack.c.b16 %v6630, %v6622
    %v6871 = vpack.c.b16 %v6631, %v6623
    %v6872 = vpack.c.b16 %v6632, %v6624
    %v6873 = vpack.c.b16 %v6633, %v6625
    %v6874 = vpack.c.b16 %v6634, %v6626
    %v6875 = vpack.c.b16 %v6643, %v6635
    %v6876 = vpack.c.b16 %v6644, %v6636
    %v6877 = vpack.c.b16 %v6645, %v6637
    %v6878 = vpack.c.b16 %v6646, %v6638
    %v6879 = vpack.c.b16 %v6647, %v6639
    %v6880 = vpack.c.b16 %v6648, %v6640
    %v6881 = vpack.c.b16 %v6649, %v6641
    %v6882 = vpack.c.b16 %v6650, %v6642
    %v6883 = vpack.c.b16 %v6659, %v6651
    %v6884 = vpack.c.b16 %v6660, %v6652
    %v6885 = vpack.c.b16 %v6661, %v6653
    %v6886 = vpack.c.b16 %v6662, %v6654
    %v6887 = vpack.c.b16 %v6663, %v6655
    %v6888 = vpack.c.b16 %v6664, %v6656
    %v6889 = vpack.c.b16 %v6665, %v6657
    %v6890 = vpack.c.b16 %v6666, %v6658
    %v6891 = vpack.c.b16 %v6675, %v6667
    %v6892 = vpack.c.b16 %v6676, %v6668
    %v6893 = vpack.c.b16 %v6677, %v6669
    %v6894 = vpack.c.b16 %v6678, %v6670
    %v6895 = vpack.c.b16 %v6679, %v6671
    %v6896 = vpack.c.b16 %v6680, %v6672
    %v6897 = vpack.c.b16 %v6681, %v6673
    %v6898 = vpack.c.b16 %v6682, %v6674
    %v6899 = vpack.c.b16 %v6691, %v6683
    %v6900 = vpack.c.b16 %v6692, %v6684
    %v6901 = vpack.c.b16 %v6693, %v6685
    %v6902 = vpack.c.b16 %v6694, %v6686
    %v6903 = vpack.c.b16 %v6695, %v6687
    %v6904 = vpack.c.b16 %v6696, %v6688
    %v6905 = vpack.c.b16 %v6697, %v6689
    %v6906 = vpack.c.b16 %v6698, %v6690
    %v6907 = vpack.c.b16 %v6707, %v6699
    %v6908 = vpack.c.b16 %v6708, %v6700
    %v6909 = vpack.c.b16 %v6709, %v6701
    %v6910 = vpack.c.b16 %v6710, %v6702
    %v6911 = vpack.c.b16 %v6711, %v6703
    %v6912 = vpack.c.b16 %v6712, %v6704
    %v6913 = vpack.c.b16 %v6713, %v6705
    %v6914 = vpack.c.b16 %v6714, %v6706
    %v6915 = vpack.c.b16 %v6723, %v6715
    %v6916 = vpack.c.b16 %v6724, %v6716
    %v6917 = vpack.c.b16 %v6725, %v6717
    %v6918 = vpack.c.b16 %v6726, %v6718
    %v6919 = vpack.c.b16 %v6727, %v6719
    %v6920 = vpack.c.b16 %v6728, %v6720
    %v6921 = vpack.c.b16 %v6729, %v6721
    %v6922 = vpack.c.b16 %v6730, %v6722
    %v6923 = vpack.c.b16 %v6739, %v6731
    %v6924 = vpack.c.b16 %v6740, %v6732
    %v6925 = vpack.c.b16 %v6741, %v6733
    %v6926 = vpack.c.b16 %v6742, %v6734
    %v6927 = vpack.c.b16 %v6743, %v6735
    %v6928 = vpack.c.b16 %v6744, %v6736
    %v6929 = vpack.c.b16 %v6745, %v6737
    %v6930 = vpack.c.b16 %v6746, %v6738
    %v6931 = vpack.c.b16 %v6755, %v6747
    %v6932 = vpack.c.b16 %v6756, %v6748
    %v6933 = vpack.c.b16 %v6757, %v6749
    %v6934 = vpack.c.b16 %v6758, %v6750
    %v6935 = vpack.c.b16 %v6759, %v6751
    %v6936 = vpack.c.b16 %v6760, %v6752
    %v6937 = vpack.c.b16 %v6761, %v6753
    %v6938 = vpack.c.b16 %v6762, %v6754
    %v6939 = vpack.c.b16 %v6771, %v6763
    %v6940 = vpack.c.b16 %v6772, %v6764
    %v6941 = vpack.c.b16 %v6773, %v6765
    %v6942 = vpack.c.b16 %v6774, %v6766
    %v6943 = vpack.c.b16 %v6775, %v6767
    %v6944 = vpack.c.b16 %v6776, %v6768
    %v6945 = vpack.c.b16 %v6777, %v6769
    %v6946 = vpack.c.b16 %v6778, %v6770
    %v6947 = vpack.c.b16 %v6787, %v6779
    %v6948 = vpack.c.b16 %v6788, %v6780
    %v6949 = vpack.c.b16 %v6789, %v6781
    %v6950 = vpack.c.b16 %v6790, %v6782
    %v6951 = vpack.c.b16 %v6791, %v6783
    %v6952 = vpack.c.b16 %v6792, %v6784
    %v6953 = vpack.c.b16 %v6793, %v6785
    %v6954 = vpack.c.b16 %v6794, %v6786
    %v6955 = vpack.c.b16 %v6803, %v6795
    %v6956 = vpack.c.b16 %v6804, %v6796
    %v6957 = vpack.c.b16 %v6805, %v6797
    %v6958 = vpack.c.b16 %v6806, %v6798
    %v6959 = vpack.c.b16 %v6807, %v6799
    %v6960 = vpack.c.b16 %v6808, %v6800
    %v6961 = vpack.c.b16 %v6809, %v6801
    %v6962 = vpack.c.b16 %v6810, %v6802
    %v6963 = vpack.c.b16 %v6819, %v6811
    %v6964 = vpack.c.b16 %v6820, %v6812
    %v6965 = vpack.c.b16 %v6821, %v6813
    %v6966 = vpack.c.b16 %v6822, %v6814
    %v6967 = vpack.c.b16 %v6823, %v6815
    %v6968 = vpack.c.b16 %v6824, %v6816
    %v6969 = vpack.c.b16 %v6825, %v6817
    %v6970 = vpack.c.b16 %v6826, %v6818
    %v6971 = vpack.c.b16 %v6835, %v6827
    %v6972 = vpack.c.b16 %v6836, %v6828
    %v6973 = vpack.c.b16 %v6837, %v6829
    %v6974 = vpack.c.b16 %v6838, %v6830
    %v6975 = vpack.c.b16 %v6839, %v6831
    %v6976 = vpack.c.b16 %v6840, %v6832
    %v6977 = vpack.c.b16 %v6841, %v6833
    %v6978 = vpack.c.b16 %v6842, %v6834
    %v6979 = vpack.c.b16 %v6851, %v6843
    %v6980 = vpack.c.b16 %v6852, %v6844
    %v6981 = vpack.c.b16 %v6853, %v6845
    %v6982 = vpack.c.b16 %v6854, %v6846
    %v6983 = vpack.c.b16 %v6855, %v6847
    %v6984 = vpack.c.b16 %v6856, %v6848
    %v6985 = vpack.c.b16 %v6857, %v6849
    %v6986 = vpack.c.b16 %v6858, %v6850
    %7115 = vmatpush.bf16.msra.mxu0 %v6915
    %7116 = vmatpush.bf16.msra.mxu0 %v6907
    %7117 = vmatpush.bf16.msra.mxu0 %v6899
    %7118 = vmatpush.bf16.msra.mxu0 %v6891
    %7119 = vmatpush.bf16.msra.mxu0 %v6883
    %7120 = vmatpush.bf16.msra.mxu0 %v6875
    %7121 = vmatpush.bf16.msra.mxu0 %v6867
    %7122 = vmatpush.bf16.msra.mxu0 %v6859
    %7123 = vmatmul.bf16.gmra.mxu0 %v6345
    %v7124 = vpop.f32.mrf.mxu0
    %v7125 = vadd.f32 0.0, %v7124
    %v7126 = vpop.f32.mrf.mxu0
    %7127 = vdwg.mxu0
    %7128 = vmatpush.bf16.msra.mxu0 %v6979
    %7129 = vmatpush.bf16.msra.mxu0 %v6971
    %7130 = vmatpush.bf16.msra.mxu0 %v6963
    %7131 = vmatpush.bf16.msra.mxu0 %v6955
    %7132 = vmatpush.bf16.msra.mxu0 %v6947
    %7133 = vmatpush.bf16.msra.mxu0 %v6939
    %7134 = vmatpush.bf16.msra.mxu0 %v6931
    %7135 = vmatpush.bf16.msra.mxu0 %v6923
    %7136 = vmatmul.bf16.gmra.mxu0 %v6346
    %v7137 = vpop.f32.mrf.mxu0
    %v7138 = vadd.f32 %v7125, %v7137
    %v7139 = vpop.f32.mrf.mxu0
    %7140 = vdwg.mxu0
    %7141 = vmatpush.bf16.msra.mxu0 %v6916
    %7142 = vmatpush.bf16.msra.mxu0 %v6908
    %7143 = vmatpush.bf16.msra.mxu0 %v6900
    %7144 = vmatpush.bf16.msra.mxu0 %v6892
    %7145 = vmatpush.bf16.msra.mxu0 %v6884
    %7146 = vmatpush.bf16.msra.mxu0 %v6876
    %7147 = vmatpush.bf16.msra.mxu0 %v6868
    %7148 = vmatpush.bf16.msra.mxu0 %v6860
    %7149 = vmatmul.bf16.gmra.mxu0 %v6345
    %v7150 = vpop.f32.mrf.mxu0
    %v7151 = vadd.f32 0.0, %v7150
    %v7152 = vpop.f32.mrf.mxu0
    %7153 = vdwg.mxu0
    %7154 = vmatpush.bf16.msra.mxu0 %v6980
    %7155 = vmatpush.bf16.msra.mxu0 %v6972
    %7156 = vmatpush.bf16.msra.mxu0 %v6964
    %7157 = vmatpush.bf16.msra.mxu0 %v6956
    %7158 = vmatpush.bf16.msra.mxu0 %v6948
    %7159 = vmatpush.bf16.msra.mxu0 %v6940
    %7160 = vmatpush.bf16.msra.mxu0 %v6932
    %7161 = vmatpush.bf16.msra.mxu0 %v6924
    %7162 = vmatmul.bf16.gmra.mxu0 %v6346
    %v7163 = vpop.f32.mrf.mxu0
    %v7164 = vadd.f32 %v7151, %v7163
    %v7165 = vpop.f32.mrf.mxu0
    %7166 = vdwg.mxu0
    %7167 = vmatpush.bf16.msra.mxu0 %v6917
    %7168 = vmatpush.bf16.msra.mxu0 %v6909
    %7169 = vmatpush.bf16.msra.mxu0 %v6901
    %7170 = vmatpush.bf16.msra.mxu0 %v6893
    %7171 = vmatpush.bf16.msra.mxu0 %v6885
    %7172 = vmatpush.bf16.msra.mxu0 %v6877
    %7173 = vmatpush.bf16.msra.mxu0 %v6869
    %7174 = vmatpush.bf16.msra.mxu0 %v6861
    %7175 = vmatmul.bf16.gmra.mxu0 %v6345
    %v7176 = vpop.f32.mrf.mxu0
    %v7177 = vadd.f32 0.0, %v7176
    %v7178 = vpop.f32.mrf.mxu0
    %7179 = vdwg.mxu0
    %7180 = vmatpush.bf16.msra.mxu0 %v6981
    %7181 = vmatpush.bf16.msra.mxu0 %v6973
    %7182 = vmatpush.bf16.msra.mxu0 %v6965
    %7183 = vmatpush.bf16.msra.mxu0 %v6957
    %7184 = vmatpush.bf16.msra.mxu0 %v6949
    %7185 = vmatpush.bf16.msra.mxu0 %v6941
    %7186 = vmatpush.bf16.msra.mxu0 %v6933
    %7187 = vmatpush.bf16.msra.mxu0 %v6925
    %7188 = vmatmul.bf16.gmra.mxu0 %v6346
    %v7189 = vpop.f32.mrf.mxu0
    %v7190 = vadd.f32 %v7177, %v7189
    %v7191 = vpop.f32.mrf.mxu0
    %7192 = vdwg.mxu0
    %7193 = vmatpush.bf16.msra.mxu0 %v6918
    %7194 = vmatpush.bf16.msra.mxu0 %v6910
    %7195 = vmatpush.bf16.msra.mxu0 %v6902
    %7196 = vmatpush.bf16.msra.mxu0 %v6894
    %7197 = vmatpush.bf16.msra.mxu0 %v6886
    %7198 = vmatpush.bf16.msra.mxu0 %v6878
    %7199 = vmatpush.bf16.msra.mxu0 %v6870
    %7200 = vmatpush.bf16.msra.mxu0 %v6862
    %7201 = vmatmul.bf16.gmra.mxu0 %v6345
    %v7202 = vpop.f32.mrf.mxu0
    %v7203 = vadd.f32 0.0, %v7202
    %v7204 = vpop.f32.mrf.mxu0
    %7205 = vdwg.mxu0
    %7206 = vmatpush.bf16.msra.mxu0 %v6982
    %7207 = vmatpush.bf16.msra.mxu0 %v6974
    %7208 = vmatpush.bf16.msra.mxu0 %v6966
    %7209 = vmatpush.bf16.msra.mxu0 %v6958
    %7210 = vmatpush.bf16.msra.mxu0 %v6950
    %7211 = vmatpush.bf16.msra.mxu0 %v6942
    %7212 = vmatpush.bf16.msra.mxu0 %v6934
    %7213 = vmatpush.bf16.msra.mxu0 %v6926
    %7214 = vmatmul.bf16.gmra.mxu0 %v6346
    %v7215 = vpop.f32.mrf.mxu0
    %v7216 = vadd.f32 %v7203, %v7215
    %v7217 = vpop.f32.mrf.mxu0
    %7218 = vdwg.mxu0
    %7219 = vmatpush.bf16.msra.mxu0 %v6919
    %7220 = vmatpush.bf16.msra.mxu0 %v6911
    %7221 = vmatpush.bf16.msra.mxu0 %v6903
    %7222 = vmatpush.bf16.msra.mxu0 %v6895
    %7223 = vmatpush.bf16.msra.mxu0 %v6887
    %7224 = vmatpush.bf16.msra.mxu0 %v6879
    %7225 = vmatpush.bf16.msra.mxu0 %v6871
    %7226 = vmatpush.bf16.msra.mxu0 %v6863
    %7227 = vmatmul.bf16.gmra.mxu0 %v6345
    %v7228 = vpop.f32.mrf.mxu0
    %v7229 = vadd.f32 0.0, %v7228
    %v7230 = vpop.f32.mrf.mxu0
    %7231 = vdwg.mxu0
    %7232 = vmatpush.bf16.msra.mxu0 %v6983
    %7233 = vmatpush.bf16.msra.mxu0 %v6975
    %7234 = vmatpush.bf16.msra.mxu0 %v6967
    %7235 = vmatpush.bf16.msra.mxu0 %v6959
    %7236 = vmatpush.bf16.msra.mxu0 %v6951
    %7237 = vmatpush.bf16.msra.mxu0 %v6943
    %7238 = vmatpush.bf16.msra.mxu0 %v6935
    %7239 = vmatpush.bf16.msra.mxu0 %v6927
    %7240 = vmatmul.bf16.gmra.mxu0 %v6346
    %v7241 = vpop.f32.mrf.mxu0
    %v7242 = vadd.f32 %v7229, %v7241
    %v7243 = vpop.f32.mrf.mxu0
    %7244 = vdwg.mxu0
    %7245 = vmatpush.bf16.msra.mxu0 %v6920
    %7246 = vmatpush.bf16.msra.mxu0 %v6912
    %7247 = vmatpush.bf16.msra.mxu0 %v6904
    %7248 = vmatpush.bf16.msra.mxu0 %v6896
    %7249 = vmatpush.bf16.msra.mxu0 %v6888
    %7250 = vmatpush.bf16.msra.mxu0 %v6880
    %7251 = vmatpush.bf16.msra.mxu0 %v6872
    %7252 = vmatpush.bf16.msra.mxu0 %v6864
    %7253 = vmatmul.bf16.gmra.mxu0 %v6345
    %v7254 = vpop.f32.mrf.mxu0
    %v7255 = vadd.f32 0.0, %v7254
    %v7256 = vpop.f32.mrf.mxu0
    %7257 = vdwg.mxu0
    %7258 = vmatpush.bf16.msra.mxu0 %v6984
    %7259 = vmatpush.bf16.msra.mxu0 %v6976
    %7260 = vmatpush.bf16.msra.mxu0 %v6968
    %7261 = vmatpush.bf16.msra.mxu0 %v6960
    %7262 = vmatpush.bf16.msra.mxu0 %v6952
    %7263 = vmatpush.bf16.msra.mxu0 %v6944
    %7264 = vmatpush.bf16.msra.mxu0 %v6936
    %7265 = vmatpush.bf16.msra.mxu0 %v6928
    %7266 = vmatmul.bf16.gmra.mxu0 %v6346
    %v7267 = vpop.f32.mrf.mxu0
    %v7268 = vadd.f32 %v7255, %v7267
    %v7269 = vpop.f32.mrf.mxu0
    %7270 = vdwg.mxu0
    %7271 = vmatpush.bf16.msra.mxu0 %v6921
    %7272 = vmatpush.bf16.msra.mxu0 %v6913
    %7273 = vmatpush.bf16.msra.mxu0 %v6905
    %7274 = vmatpush.bf16.msra.mxu0 %v6897
    %7275 = vmatpush.bf16.msra.mxu0 %v6889
    %7276 = vmatpush.bf16.msra.mxu0 %v6881
    %7277 = vmatpush.bf16.msra.mxu0 %v6873
    %7278 = vmatpush.bf16.msra.mxu0 %v6865
    %7279 = vmatmul.bf16.gmra.mxu0 %v6345
    %v7280 = vpop.f32.mrf.mxu0
    %v7281 = vadd.f32 0.0, %v7280
    %v7282 = vpop.f32.mrf.mxu0
    %7283 = vdwg.mxu0
    %7284 = vmatpush.bf16.msra.mxu0 %v6985
    %7285 = vmatpush.bf16.msra.mxu0 %v6977
    %7286 = vmatpush.bf16.msra.mxu0 %v6969
    %7287 = vmatpush.bf16.msra.mxu0 %v6961
    %7288 = vmatpush.bf16.msra.mxu0 %v6953
    %7289 = vmatpush.bf16.msra.mxu0 %v6945
    %7290 = vmatpush.bf16.msra.mxu0 %v6937
    %7291 = vmatpush.bf16.msra.mxu0 %v6929
    %7292 = vmatmul.bf16.gmra.mxu0 %v6346
    %v7293 = vpop.f32.mrf.mxu0
    %v7294 = vadd.f32 %v7281, %v7293
    %v7295 = vpop.f32.mrf.mxu0
    %7296 = vdwg.mxu0
    %7297 = vmatpush.bf16.msra.mxu0 %v6922
    %7298 = vmatpush.bf16.msra.mxu0 %v6914
    %7299 = vmatpush.bf16.msra.mxu0 %v6906
    %7300 = vmatpush.bf16.msra.mxu0 %v6898
    %7301 = vmatpush.bf16.msra.mxu0 %v6890
    %7302 = vmatpush.bf16.msra.mxu0 %v6882
    %7303 = vmatpush.bf16.msra.mxu0 %v6874
    %7304 = vmatpush.bf16.msra.mxu0 %v6866
    %7305 = vmatmul.bf16.gmra.mxu0 %v6345
    %v7306 = vpop.f32.mrf.mxu0
    %v7307 = vadd.f32 0.0, %v7306
    %v7308 = vpop.f32.mrf.mxu0
    %7309 = vdwg.mxu0
    %7310 = vmatpush.bf16.msra.mxu0 %v6986
    %7311 = vmatpush.bf16.msra.mxu0 %v6978
    %7312 = vmatpush.bf16.msra.mxu0 %v6970
    %7313 = vmatpush.bf16.msra.mxu0 %v6962
    %7314 = vmatpush.bf16.msra.mxu0 %v6954
    %7315 = vmatpush.bf16.msra.mxu0 %v6946
    %7316 = vmatpush.bf16.msra.mxu0 %v6938
    %7317 = vmatpush.bf16.msra.mxu0 %v6930
    %7318 = vmatmul.bf16.gmra.mxu0 %v6346
    %v7319 = vpop.f32.mrf.mxu0
    %v7320 = vadd.f32 %v7307, %v7319
    %v7321 = vpop.f32.mrf.mxu0
    %7322 = vdwg.mxu0
    %v7331 = vrot.slane %v7164, 7
    %v7332 = vrot.slane %v7190, 6
    %v7333 = vrot.slane %v7216, 5
    %v7334 = vrot.slane %v7242, 4
    %v7335 = vrot.slane %v7268, 3
    %v7336 = vrot.slane %v7294, 2
    %v7337 = vrot.slane %v7320, 1
    %v7338 = vsel %vm1043, %v7138, %v7331
    %v7339 = vsel %vm1045, %v7332, %v7333
    %v7340 = vsel %vm1047, %v7338, %v7339
    %v7341 = vsel %vm1049, %v7334, %v7335
    %v7342 = vsel %vm1051, %v7336, %v7337
    %v7343 = vsel %vm1053, %v7341, %v7342
    %v7344 = vsel %vm1055, %v7340, %v7343
    %v7346 = vadd.f32 %v6339, %v7344
    %v7347 = vxor.u32 %v7346, 2147483648
    %v7348 = vmul.f32 %v7347, 1.442695
    %v7349 = vpow.pop %v7348
    %v7350 = vadd.f32 %v7349, 1.0
    %v7351 = vrcp.pop %v7350
    %v7352 = vmul.f32 %v7350, %v7351
    %v7353 = vsub.f32 1.0, %v7352
    %v7354 = vmul.f32 %v7351, %v7353
    %v7355 = vadd.f32 %v7351, %v7354
    %vm7356 = vweird.f32 %v7350
    %vm7357 = vweird.f32 %v7351
    %vm7358 = vmor %vm7356, %vm7357
    %v7359 = vsel %vm7358, %v7351, %v7355
    %v7360 = vand.u32 2147483647, %v7350
    %vm7361 = vcmp.eq.f32.partialorder %v7360, 8.507059e+37
    %v7362 = vand.u32 %v7350, 2147483648
    %v7363 = vor.u32 1.1754944e-38, %v7362
    %v7364 = vsel %vm7361, %v7363, %v7359
    %v7365 = vmul.f32 1.0, %v7364
    %v7367 = vrot.slane %v7346, 6
    %v7369 = vtanh.pop %v7367
    %v7371 = vrot.slane %v7365, 2
    %v7373 = vmul.f32 %v7371, %v6335
    %v7374 = vmul.f32 %v7365, %v7369
    %v7375 = vadd.f32 %v7373, %v7374
    %7376 = vst.msk [vmem:[#allocation3] sm:$0x3] %vm37, %v7375
    %v7377 = vtanh.pop %v7375
    %v7378 = vrot.slane %v7365, 4
    %v7380 = vmul.f32 %v7378, %v7377
    %7381 = vst.msk [vmem:[#allocation2] sm:$0x3] %vm37, %v7380
    %v7382 = vld [vmem:[#allocation2] sm:$0x3]
    %v7383 = vld [vmem:[#allocation3] sm:$0x3]
    %s7384 = scalar_lea.vmem %s0, 7
    %v7385 = vld [vmem:[%s7384] ss:$8 sm:$0xf]
    %v7386 = vld [vmem:[%s7384] ss:$8 sm:$0xf0]
    %v7387 = vor.u32 %v7385, %v7386
    %v7389 = vperm.slane %v7382, 0
    %v7390 = vperm.slane %v7382, 1
    %v7393 = vpack.c.bf16 %v7389, %v7389
    %v7394 = vpack.c.bf16 %v7390, %v7390
    %v7395 = vld [vmem:[#allocation4] sm:$0xff]
    %v7396 = vld [vmem:[#allocation4 + $0x8] sm:$0xff]
    %v7397 = vld [vmem:[#allocation4 + $0x10] sm:$0xff]
    %v7398 = vld [vmem:[#allocation4 + $0x18] sm:$0xff]
    %v7399 = vld [vmem:[#allocation4 + $0x20] sm:$0xff]
    %v7400 = vld [vmem:[#allocation4 + $0x28] sm:$0xff]
    %v7401 = vld [vmem:[#allocation4 + $0x30] sm:$0xff]
    %v7402 = vld [vmem:[#allocation4 + $0x38] sm:$0xff]
    %v7403 = vld [vmem:[#allocation4 + $0x40] sm:$0xff]
    %v7404 = vld [vmem:[#allocation4 + $0x48] sm:$0xff]
    %v7405 = vld [vmem:[#allocation4 + $0x50] sm:$0xff]
    %v7406 = vld [vmem:[#allocation4 + $0x58] sm:$0xff]
    %v7407 = vld [vmem:[#allocation4 + $0x60] sm:$0xff]
    %v7408 = vld [vmem:[#allocation4 + $0x68] sm:$0xff]
    %v7409 = vld [vmem:[#allocation4 + $0x70] sm:$0xff]
    %v7410 = vld [vmem:[#allocation4 + $0x78] sm:$0xff]
    %v7411 = vld [vmem:[#allocation4 + $0x80] sm:$0xff]
    %v7412 = vld [vmem:[#allocation4 + $0x88] sm:$0xff]
    %v7413 = vld [vmem:[#allocation4 + $0x90] sm:$0xff]
    %v7414 = vld [vmem:[#allocation4 + $0x98] sm:$0xff]
    %v7415 = vld [vmem:[#allocation4 + $0xa0] sm:$0xff]
    %v7416 = vld [vmem:[#allocation4 + $0xa8] sm:$0xff]
    %v7417 = vld [vmem:[#allocation4 + $0xb0] sm:$0xff]
    %v7418 = vld [vmem:[#allocation4 + $0xb8] sm:$0xff]
    %v7419 = vld [vmem:[#allocation4 + $0xc0] sm:$0xff]
    %v7420 = vld [vmem:[#allocation4 + $0xc8] sm:$0xff]
    %v7421 = vld [vmem:[#allocation4 + $0xd0] sm:$0xff]
    %v7422 = vld [vmem:[#allocation4 + $0xd8] sm:$0xff]
    %v7423 = vld [vmem:[#allocation4 + $0xe0] sm:$0xff]
    %v7424 = vld [vmem:[#allocation4 + $0xe8] sm:$0xff]
    %v7425 = vld [vmem:[#allocation4 + $0xf0] sm:$0xff]
    %v7426 = vld [vmem:[#allocation4 + $0xf8] sm:$0xff]
    %v7427 = vld [vmem:[#allocation4 + $0x100] sm:$0xff]
    %v7428 = vld [vmem:[#allocation4 + $0x108] sm:$0xff]
    %v7429 = vld [vmem:[#allocation4 + $0x110] sm:$0xff]
    %v7430 = vld [vmem:[#allocation4 + $0x118] sm:$0xff]
    %v7431 = vld [vmem:[#allocation4 + $0x120] sm:$0xff]
    %v7432 = vld [vmem:[#allocation4 + $0x128] sm:$0xff]
    %v7433 = vld [vmem:[#allocation4 + $0x130] sm:$0xff]
    %v7434 = vld [vmem:[#allocation4 + $0x138] sm:$0xff]
    %v7435 = vld [vmem:[#allocation4 + $0x140] sm:$0xff]
    %v7436 = vld [vmem:[#allocation4 + $0x148] sm:$0xff]
    %v7437 = vld [vmem:[#allocation4 + $0x150] sm:$0xff]
    %v7438 = vld [vmem:[#allocation4 + $0x158] sm:$0xff]
    %v7439 = vld [vmem:[#allocation4 + $0x160] sm:$0xff]
    %v7440 = vld [vmem:[#allocation4 + $0x168] sm:$0xff]
    %v7441 = vld [vmem:[#allocation4 + $0x170] sm:$0xff]
    %v7442 = vld [vmem:[#allocation4 + $0x178] sm:$0xff]
    %v7443 = vld [vmem:[#allocation4 + $0x180] sm:$0xff]
    %v7444 = vld [vmem:[#allocation4 + $0x188] sm:$0xff]
    %v7445 = vld [vmem:[#allocation4 + $0x190] sm:$0xff]
    %v7446 = vld [vmem:[#allocation4 + $0x198] sm:$0xff]
    %v7447 = vld [vmem:[#allocation4 + $0x1a0] sm:$0xff]
    %v7448 = vld [vmem:[#allocation4 + $0x1a8] sm:$0xff]
    %v7449 = vld [vmem:[#allocation4 + $0x1b0] sm:$0xff]
    %v7450 = vld [vmem:[#allocation4 + $0x1b8] sm:$0xff]
    %v7451 = vld [vmem:[#allocation4 + $0x1c0] sm:$0xff]
    %v7452 = vld [vmem:[#allocation4 + $0x1c8] sm:$0xff]
    %v7453 = vld [vmem:[#allocation4 + $0x1d0] sm:$0xff]
    %v7454 = vld [vmem:[#allocation4 + $0x1d8] sm:$0xff]
    %v7455 = vld [vmem:[#allocation4 + $0x1e0] sm:$0xff]
    %v7456 = vld [vmem:[#allocation4 + $0x1e8] sm:$0xff]
    %v7457 = vld [vmem:[#allocation4 + $0x1f0] sm:$0xff]
    %v7458 = vld [vmem:[#allocation4 + $0x1f8] sm:$0xff]
    %v7459 = vld [vmem:[#allocation4 + $0x200] sm:$0xff]
    %v7460 = vld [vmem:[#allocation4 + $0x208] sm:$0xff]
    %v7461 = vld [vmem:[#allocation4 + $0x210] sm:$0xff]
    %v7462 = vld [vmem:[#allocation4 + $0x218] sm:$0xff]
    %v7463 = vld [vmem:[#allocation4 + $0x220] sm:$0xff]
    %v7464 = vld [vmem:[#allocation4 + $0x228] sm:$0xff]
    %v7465 = vld [vmem:[#allocation4 + $0x230] sm:$0xff]
    %v7466 = vld [vmem:[#allocation4 + $0x238] sm:$0xff]
    %v7467 = vld [vmem:[#allocation4 + $0x240] sm:$0xff]
    %v7468 = vld [vmem:[#allocation4 + $0x248] sm:$0xff]
    %v7469 = vld [vmem:[#allocation4 + $0x250] sm:$0xff]
    %v7470 = vld [vmem:[#allocation4 + $0x258] sm:$0xff]
    %v7471 = vld [vmem:[#allocation4 + $0x260] sm:$0xff]
    %v7472 = vld [vmem:[#allocation4 + $0x268] sm:$0xff]
    %v7473 = vld [vmem:[#allocation4 + $0x270] sm:$0xff]
    %v7474 = vld [vmem:[#allocation4 + $0x278] sm:$0xff]
    %v7475 = vld [vmem:[#allocation4 + $0x280] sm:$0xff]
    %v7476 = vld [vmem:[#allocation4 + $0x288] sm:$0xff]
    %v7477 = vld [vmem:[#allocation4 + $0x290] sm:$0xff]
    %v7478 = vld [vmem:[#allocation4 + $0x298] sm:$0xff]
    %v7479 = vld [vmem:[#allocation4 + $0x2a0] sm:$0xff]
    %v7480 = vld [vmem:[#allocation4 + $0x2a8] sm:$0xff]
    %v7481 = vld [vmem:[#allocation4 + $0x2b0] sm:$0xff]
    %v7482 = vld [vmem:[#allocation4 + $0x2b8] sm:$0xff]
    %v7483 = vld [vmem:[#allocation4 + $0x2c0] sm:$0xff]
    %v7484 = vld [vmem:[#allocation4 + $0x2c8] sm:$0xff]
    %v7485 = vld [vmem:[#allocation4 + $0x2d0] sm:$0xff]
    %v7486 = vld [vmem:[#allocation4 + $0x2d8] sm:$0xff]
    %v7487 = vld [vmem:[#allocation4 + $0x2e0] sm:$0xff]
    %v7488 = vld [vmem:[#allocation4 + $0x2e8] sm:$0xff]
    %v7489 = vld [vmem:[#allocation4 + $0x2f0] sm:$0xff]
    %v7490 = vld [vmem:[#allocation4 + $0x2f8] sm:$0xff]
    %v7491 = vld [vmem:[#allocation4 + $0x300] sm:$0xff]
    %v7492 = vld [vmem:[#allocation4 + $0x308] sm:$0xff]
    %v7493 = vld [vmem:[#allocation4 + $0x310] sm:$0xff]
    %v7494 = vld [vmem:[#allocation4 + $0x318] sm:$0xff]
    %v7495 = vld [vmem:[#allocation4 + $0x320] sm:$0xff]
    %v7496 = vld [vmem:[#allocation4 + $0x328] sm:$0xff]
    %v7497 = vld [vmem:[#allocation4 + $0x330] sm:$0xff]
    %v7498 = vld [vmem:[#allocation4 + $0x338] sm:$0xff]
    %v7499 = vld [vmem:[#allocation4 + $0x340] sm:$0xff]
    %v7500 = vld [vmem:[#allocation4 + $0x348] sm:$0xff]
    %v7501 = vld [vmem:[#allocation4 + $0x350] sm:$0xff]
    %v7502 = vld [vmem:[#allocation4 + $0x358] sm:$0xff]
    %v7503 = vld [vmem:[#allocation4 + $0x360] sm:$0xff]
    %v7504 = vld [vmem:[#allocation4 + $0x368] sm:$0xff]
    %v7505 = vld [vmem:[#allocation4 + $0x370] sm:$0xff]
    %v7506 = vld [vmem:[#allocation4 + $0x378] sm:$0xff]
    %v7507 = vld [vmem:[#allocation4 + $0x380] sm:$0xff]
    %v7508 = vld [vmem:[#allocation4 + $0x388] sm:$0xff]
    %v7509 = vld [vmem:[#allocation4 + $0x390] sm:$0xff]
    %v7510 = vld [vmem:[#allocation4 + $0x398] sm:$0xff]
    %v7511 = vld [vmem:[#allocation4 + $0x3a0] sm:$0xff]
    %v7512 = vld [vmem:[#allocation4 + $0x3a8] sm:$0xff]
    %v7513 = vld [vmem:[#allocation4 + $0x3b0] sm:$0xff]
    %v7514 = vld [vmem:[#allocation4 + $0x3b8] sm:$0xff]
    %v7515 = vld [vmem:[#allocation4 + $0x3c0] sm:$0xff]
    %v7516 = vld [vmem:[#allocation4 + $0x3c8] sm:$0xff]
    %v7517 = vld [vmem:[#allocation4 + $0x3d0] sm:$0xff]
    %v7518 = vld [vmem:[#allocation4 + $0x3d8] sm:$0xff]
    %v7519 = vld [vmem:[#allocation4 + $0x3e0] sm:$0xff]
    %v7520 = vld [vmem:[#allocation4 + $0x3e8] sm:$0xff]
    %v7521 = vld [vmem:[#allocation4 + $0x3f0] sm:$0xff]
    %v7522 = vld [vmem:[#allocation4 + $0x3f8] sm:$0xff]
    %v7651 = vunpack.c.l.b16 %v7395
    %v7652 = vunpack.c.h.b16 %v7395
    %v7653 = vunpack.c.l.b16 %v7396
    %v7654 = vunpack.c.h.b16 %v7396
    %v7655 = vunpack.c.l.b16 %v7397
    %v7656 = vunpack.c.h.b16 %v7397
    %v7657 = vunpack.c.l.b16 %v7398
    %v7658 = vunpack.c.h.b16 %v7398
    %v7659 = vunpack.c.l.b16 %v7399
    %v7660 = vunpack.c.h.b16 %v7399
    %v7661 = vunpack.c.l.b16 %v7400
    %v7662 = vunpack.c.h.b16 %v7400
    %v7663 = vunpack.c.l.b16 %v7401
    %v7664 = vunpack.c.h.b16 %v7401
    %v7665 = vunpack.c.l.b16 %v7402
    %v7666 = vunpack.c.h.b16 %v7402
    %v7667 = vunpack.c.l.b16 %v7403
    %v7668 = vunpack.c.h.b16 %v7403
    %v7669 = vunpack.c.l.b16 %v7404
    %v7670 = vunpack.c.h.b16 %v7404
    %v7671 = vunpack.c.l.b16 %v7405
    %v7672 = vunpack.c.h.b16 %v7405
    %v7673 = vunpack.c.l.b16 %v7406
    %v7674 = vunpack.c.h.b16 %v7406
    %v7675 = vunpack.c.l.b16 %v7407
    %v7676 = vunpack.c.h.b16 %v7407
    %v7677 = vunpack.c.l.b16 %v7408
    %v7678 = vunpack.c.h.b16 %v7408
    %v7679 = vunpack.c.l.b16 %v7409
    %v7680 = vunpack.c.h.b16 %v7409
    %v7681 = vunpack.c.l.b16 %v7410
    %v7682 = vunpack.c.h.b16 %v7410
    %v7683 = vunpack.c.l.b16 %v7411
    %v7684 = vunpack.c.h.b16 %v7411
    %v7685 = vunpack.c.l.b16 %v7412
    %v7686 = vunpack.c.h.b16 %v7412
    %v7687 = vunpack.c.l.b16 %v7413
    %v7688 = vunpack.c.h.b16 %v7413
    %v7689 = vunpack.c.l.b16 %v7414
    %v7690 = vunpack.c.h.b16 %v7414
    %v7691 = vunpack.c.l.b16 %v7415
    %v7692 = vunpack.c.h.b16 %v7415
    %v7693 = vunpack.c.l.b16 %v7416
    %v7694 = vunpack.c.h.b16 %v7416
    %v7695 = vunpack.c.l.b16 %v7417
    %v7696 = vunpack.c.h.b16 %v7417
    %v7697 = vunpack.c.l.b16 %v7418
    %v7698 = vunpack.c.h.b16 %v7418
    %v7699 = vunpack.c.l.b16 %v7419
    %v7700 = vunpack.c.h.b16 %v7419
    %v7701 = vunpack.c.l.b16 %v7420
    %v7702 = vunpack.c.h.b16 %v7420
    %v7703 = vunpack.c.l.b16 %v7421
    %v7704 = vunpack.c.h.b16 %v7421
    %v7705 = vunpack.c.l.b16 %v7422
    %v7706 = vunpack.c.h.b16 %v7422
    %v7707 = vunpack.c.l.b16 %v7423
    %v7708 = vunpack.c.h.b16 %v7423
    %v7709 = vunpack.c.l.b16 %v7424
    %v7710 = vunpack.c.h.b16 %v7424
    %v7711 = vunpack.c.l.b16 %v7425
    %v7712 = vunpack.c.h.b16 %v7425
    %v7713 = vunpack.c.l.b16 %v7426
    %v7714 = vunpack.c.h.b16 %v7426
    %v7715 = vunpack.c.l.b16 %v7427
    %v7716 = vunpack.c.h.b16 %v7427
    %v7717 = vunpack.c.l.b16 %v7428
    %v7718 = vunpack.c.h.b16 %v7428
    %v7719 = vunpack.c.l.b16 %v7429
    %v7720 = vunpack.c.h.b16 %v7429
    %v7721 = vunpack.c.l.b16 %v7430
    %v7722 = vunpack.c.h.b16 %v7430
    %v7723 = vunpack.c.l.b16 %v7431
    %v7724 = vunpack.c.h.b16 %v7431
    %v7725 = vunpack.c.l.b16 %v7432
    %v7726 = vunpack.c.h.b16 %v7432
    %v7727 = vunpack.c.l.b16 %v7433
    %v7728 = vunpack.c.h.b16 %v7433
    %v7729 = vunpack.c.l.b16 %v7434
    %v7730 = vunpack.c.h.b16 %v7434
    %v7731 = vunpack.c.l.b16 %v7435
    %v7732 = vunpack.c.h.b16 %v7435
    %v7733 = vunpack.c.l.b16 %v7436
    %v7734 = vunpack.c.h.b16 %v7436
    %v7735 = vunpack.c.l.b16 %v7437
    %v7736 = vunpack.c.h.b16 %v7437
    %v7737 = vunpack.c.l.b16 %v7438
    %v7738 = vunpack.c.h.b16 %v7438
    %v7739 = vunpack.c.l.b16 %v7439
    %v7740 = vunpack.c.h.b16 %v7439
    %v7741 = vunpack.c.l.b16 %v7440
    %v7742 = vunpack.c.h.b16 %v7440
    %v7743 = vunpack.c.l.b16 %v7441
    %v7744 = vunpack.c.h.b16 %v7441
    %v7745 = vunpack.c.l.b16 %v7442
    %v7746 = vunpack.c.h.b16 %v7442
    %v7747 = vunpack.c.l.b16 %v7443
    %v7748 = vunpack.c.h.b16 %v7443
    %v7749 = vunpack.c.l.b16 %v7444
    %v7750 = vunpack.c.h.b16 %v7444
    %v7751 = vunpack.c.l.b16 %v7445
    %v7752 = vunpack.c.h.b16 %v7445
    %v7753 = vunpack.c.l.b16 %v7446
    %v7754 = vunpack.c.h.b16 %v7446
    %v7755 = vunpack.c.l.b16 %v7447
    %v7756 = vunpack.c.h.b16 %v7447
    %v7757 = vunpack.c.l.b16 %v7448
    %v7758 = vunpack.c.h.b16 %v7448
    %v7759 = vunpack.c.l.b16 %v7449
    %v7760 = vunpack.c.h.b16 %v7449
    %v7761 = vunpack.c.l.b16 %v7450
    %v7762 = vunpack.c.h.b16 %v7450
    %v7763 = vunpack.c.l.b16 %v7451
    %v7764 = vunpack.c.h.b16 %v7451
    %v7765 = vunpack.c.l.b16 %v7452
    %v7766 = vunpack.c.h.b16 %v7452
    %v7767 = vunpack.c.l.b16 %v7453
    %v7768 = vunpack.c.h.b16 %v7453
    %v7769 = vunpack.c.l.b16 %v7454
    %v7770 = vunpack.c.h.b16 %v7454
    %v7771 = vunpack.c.l.b16 %v7455
    %v7772 = vunpack.c.h.b16 %v7455
    %v7773 = vunpack.c.l.b16 %v7456
    %v7774 = vunpack.c.h.b16 %v7456
    %v7775 = vunpack.c.l.b16 %v7457
    %v7776 = vunpack.c.h.b16 %v7457
    %v7777 = vunpack.c.l.b16 %v7458
    %v7778 = vunpack.c.h.b16 %v7458
    %v7779 = vunpack.c.l.b16 %v7459
    %v7780 = vunpack.c.h.b16 %v7459
    %v7781 = vunpack.c.l.b16 %v7460
    %v7782 = vunpack.c.h.b16 %v7460
    %v7783 = vunpack.c.l.b16 %v7461
    %v7784 = vunpack.c.h.b16 %v7461
    %v7785 = vunpack.c.l.b16 %v7462
    %v7786 = vunpack.c.h.b16 %v7462
    %v7787 = vunpack.c.l.b16 %v7463
    %v7788 = vunpack.c.h.b16 %v7463
    %v7789 = vunpack.c.l.b16 %v7464
    %v7790 = vunpack.c.h.b16 %v7464
    %v7791 = vunpack.c.l.b16 %v7465
    %v7792 = vunpack.c.h.b16 %v7465
    %v7793 = vunpack.c.l.b16 %v7466
    %v7794 = vunpack.c.h.b16 %v7466
    %v7795 = vunpack.c.l.b16 %v7467
    %v7796 = vunpack.c.h.b16 %v7467
    %v7797 = vunpack.c.l.b16 %v7468
    %v7798 = vunpack.c.h.b16 %v7468
    %v7799 = vunpack.c.l.b16 %v7469
    %v7800 = vunpack.c.h.b16 %v7469
    %v7801 = vunpack.c.l.b16 %v7470
    %v7802 = vunpack.c.h.b16 %v7470
    %v7803 = vunpack.c.l.b16 %v7471
    %v7804 = vunpack.c.h.b16 %v7471
    %v7805 = vunpack.c.l.b16 %v7472
    %v7806 = vunpack.c.h.b16 %v7472
    %v7807 = vunpack.c.l.b16 %v7473
    %v7808 = vunpack.c.h.b16 %v7473
    %v7809 = vunpack.c.l.b16 %v7474
    %v7810 = vunpack.c.h.b16 %v7474
    %v7811 = vunpack.c.l.b16 %v7475
    %v7812 = vunpack.c.h.b16 %v7475
    %v7813 = vunpack.c.l.b16 %v7476
    %v7814 = vunpack.c.h.b16 %v7476
    %v7815 = vunpack.c.l.b16 %v7477
    %v7816 = vunpack.c.h.b16 %v7477
    %v7817 = vunpack.c.l.b16 %v7478
    %v7818 = vunpack.c.h.b16 %v7478
    %v7819 = vunpack.c.l.b16 %v7479
    %v7820 = vunpack.c.h.b16 %v7479
    %v7821 = vunpack.c.l.b16 %v7480
    %v7822 = vunpack.c.h.b16 %v7480
    %v7823 = vunpack.c.l.b16 %v7481
    %v7824 = vunpack.c.h.b16 %v7481
    %v7825 = vunpack.c.l.b16 %v7482
    %v7826 = vunpack.c.h.b16 %v7482
    %v7827 = vunpack.c.l.b16 %v7483
    %v7828 = vunpack.c.h.b16 %v7483
    %v7829 = vunpack.c.l.b16 %v7484
    %v7830 = vunpack.c.h.b16 %v7484
    %v7831 = vunpack.c.l.b16 %v7485
    %v7832 = vunpack.c.h.b16 %v7485
    %v7833 = vunpack.c.l.b16 %v7486
    %v7834 = vunpack.c.h.b16 %v7486
    %v7835 = vunpack.c.l.b16 %v7487
    %v7836 = vunpack.c.h.b16 %v7487
    %v7837 = vunpack.c.l.b16 %v7488
    %v7838 = vunpack.c.h.b16 %v7488
    %v7839 = vunpack.c.l.b16 %v7489
    %v7840 = vunpack.c.h.b16 %v7489
    %v7841 = vunpack.c.l.b16 %v7490
    %v7842 = vunpack.c.h.b16 %v7490
    %v7843 = vunpack.c.l.b16 %v7491
    %v7844 = vunpack.c.h.b16 %v7491
    %v7845 = vunpack.c.l.b16 %v7492
    %v7846 = vunpack.c.h.b16 %v7492
    %v7847 = vunpack.c.l.b16 %v7493
    %v7848 = vunpack.c.h.b16 %v7493
    %v7849 = vunpack.c.l.b16 %v7494
    %v7850 = vunpack.c.h.b16 %v7494
    %v7851 = vunpack.c.l.b16 %v7495
    %v7852 = vunpack.c.h.b16 %v7495
    %v7853 = vunpack.c.l.b16 %v7496
    %v7854 = vunpack.c.h.b16 %v7496
    %v7855 = vunpack.c.l.b16 %v7497
    %v7856 = vunpack.c.h.b16 %v7497
    %v7857 = vunpack.c.l.b16 %v7498
    %v7858 = vunpack.c.h.b16 %v7498
    %v7859 = vunpack.c.l.b16 %v7499
    %v7860 = vunpack.c.h.b16 %v7499
    %v7861 = vunpack.c.l.b16 %v7500
    %v7862 = vunpack.c.h.b16 %v7500
    %v7863 = vunpack.c.l.b16 %v7501
    %v7864 = vunpack.c.h.b16 %v7501
    %v7865 = vunpack.c.l.b16 %v7502
    %v7866 = vunpack.c.h.b16 %v7502
    %v7867 = vunpack.c.l.b16 %v7503
    %v7868 = vunpack.c.h.b16 %v7503
    %v7869 = vunpack.c.l.b16 %v7504
    %v7870 = vunpack.c.h.b16 %v7504
    %v7871 = vunpack.c.l.b16 %v7505
    %v7872 = vunpack.c.h.b16 %v7505
    %v7873 = vunpack.c.l.b16 %v7506
    %v7874 = vunpack.c.h.b16 %v7506
    %v7875 = vunpack.c.l.b16 %v7507
    %v7876 = vunpack.c.h.b16 %v7507
    %v7877 = vunpack.c.l.b16 %v7508
    %v7878 = vunpack.c.h.b16 %v7508
    %v7879 = vunpack.c.l.b16 %v7509
    %v7880 = vunpack.c.h.b16 %v7509
    %v7881 = vunpack.c.l.b16 %v7510
    %v7882 = vunpack.c.h.b16 %v7510
    %v7883 = vunpack.c.l.b16 %v7511
    %v7884 = vunpack.c.h.b16 %v7511
    %v7885 = vunpack.c.l.b16 %v7512
    %v7886 = vunpack.c.h.b16 %v7512
    %v7887 = vunpack.c.l.b16 %v7513
    %v7888 = vunpack.c.h.b16 %v7513
    %v7889 = vunpack.c.l.b16 %v7514
    %v7890 = vunpack.c.h.b16 %v7514
    %v7891 = vunpack.c.l.b16 %v7515
    %v7892 = vunpack.c.h.b16 %v7515
    %v7893 = vunpack.c.l.b16 %v7516
    %v7894 = vunpack.c.h.b16 %v7516
    %v7895 = vunpack.c.l.b16 %v7517
    %v7896 = vunpack.c.h.b16 %v7517
    %v7897 = vunpack.c.l.b16 %v7518
    %v7898 = vunpack.c.h.b16 %v7518
    %v7899 = vunpack.c.l.b16 %v7519
    %v7900 = vunpack.c.h.b16 %v7519
    %v7901 = vunpack.c.l.b16 %v7520
    %v7902 = vunpack.c.h.b16 %v7520
    %v7903 = vunpack.c.l.b16 %v7521
    %v7904 = vunpack.c.h.b16 %v7521
    %v7905 = vunpack.c.l.b16 %v7522
    %v7906 = vunpack.c.h.b16 %v7522
    %v7907 = vpack.c.b16 %v7659, %v7651
    %v7908 = vpack.c.b16 %v7660, %v7652
    %v7909 = vpack.c.b16 %v7661, %v7653
    %v7910 = vpack.c.b16 %v7662, %v7654
    %v7911 = vpack.c.b16 %v7663, %v7655
    %v7912 = vpack.c.b16 %v7664, %v7656
    %v7913 = vpack.c.b16 %v7665, %v7657
    %v7914 = vpack.c.b16 %v7666, %v7658
    %v7915 = vpack.c.b16 %v7675, %v7667
    %v7916 = vpack.c.b16 %v7676, %v7668
    %v7917 = vpack.c.b16 %v7677, %v7669
    %v7918 = vpack.c.b16 %v7678, %v7670
    %v7919 = vpack.c.b16 %v7679, %v7671
    %v7920 = vpack.c.b16 %v7680, %v7672
    %v7921 = vpack.c.b16 %v7681, %v7673
    %v7922 = vpack.c.b16 %v7682, %v7674
    %v7923 = vpack.c.b16 %v7691, %v7683
    %v7924 = vpack.c.b16 %v7692, %v7684
    %v7925 = vpack.c.b16 %v7693, %v7685
    %v7926 = vpack.c.b16 %v7694, %v7686
    %v7927 = vpack.c.b16 %v7695, %v7687
    %v7928 = vpack.c.b16 %v7696, %v7688
    %v7929 = vpack.c.b16 %v7697, %v7689
    %v7930 = vpack.c.b16 %v7698, %v7690
    %v7931 = vpack.c.b16 %v7707, %v7699
    %v7932 = vpack.c.b16 %v7708, %v7700
    %v7933 = vpack.c.b16 %v7709, %v7701
    %v7934 = vpack.c.b16 %v7710, %v7702
    %v7935 = vpack.c.b16 %v7711, %v7703
    %v7936 = vpack.c.b16 %v7712, %v7704
    %v7937 = vpack.c.b16 %v7713, %v7705
    %v7938 = vpack.c.b16 %v7714, %v7706
    %v7939 = vpack.c.b16 %v7723, %v7715
    %v7940 = vpack.c.b16 %v7724, %v7716
    %v7941 = vpack.c.b16 %v7725, %v7717
    %v7942 = vpack.c.b16 %v7726, %v7718
    %v7943 = vpack.c.b16 %v7727, %v7719
    %v7944 = vpack.c.b16 %v7728, %v7720
    %v7945 = vpack.c.b16 %v7729, %v7721
    %v7946 = vpack.c.b16 %v7730, %v7722
    %v7947 = vpack.c.b16 %v7739, %v7731
    %v7948 = vpack.c.b16 %v7740, %v7732
    %v7949 = vpack.c.b16 %v7741, %v7733
    %v7950 = vpack.c.b16 %v7742, %v7734
    %v7951 = vpack.c.b16 %v7743, %v7735
    %v7952 = vpack.c.b16 %v7744, %v7736
    %v7953 = vpack.c.b16 %v7745, %v7737
    %v7954 = vpack.c.b16 %v7746, %v7738
    %v7955 = vpack.c.b16 %v7755, %v7747
    %v7956 = vpack.c.b16 %v7756, %v7748
    %v7957 = vpack.c.b16 %v7757, %v7749
    %v7958 = vpack.c.b16 %v7758, %v7750
    %v7959 = vpack.c.b16 %v7759, %v7751
    %v7960 = vpack.c.b16 %v7760, %v7752
    %v7961 = vpack.c.b16 %v7761, %v7753
    %v7962 = vpack.c.b16 %v7762, %v7754
    %v7963 = vpack.c.b16 %v7771, %v7763
    %v7964 = vpack.c.b16 %v7772, %v7764
    %v7965 = vpack.c.b16 %v7773, %v7765
    %v7966 = vpack.c.b16 %v7774, %v7766
    %v7967 = vpack.c.b16 %v7775, %v7767
    %v7968 = vpack.c.b16 %v7776, %v7768
    %v7969 = vpack.c.b16 %v7777, %v7769
    %v7970 = vpack.c.b16 %v7778, %v7770
    %v7971 = vpack.c.b16 %v7787, %v7779
    %v7972 = vpack.c.b16 %v7788, %v7780
    %v7973 = vpack.c.b16 %v7789, %v7781
    %v7974 = vpack.c.b16 %v7790, %v7782
    %v7975 = vpack.c.b16 %v7791, %v7783
    %v7976 = vpack.c.b16 %v7792, %v7784
    %v7977 = vpack.c.b16 %v7793, %v7785
    %v7978 = vpack.c.b16 %v7794, %v7786
    %v7979 = vpack.c.b16 %v7803, %v7795
    %v7980 = vpack.c.b16 %v7804, %v7796
    %v7981 = vpack.c.b16 %v7805, %v7797
    %v7982 = vpack.c.b16 %v7806, %v7798
    %v7983 = vpack.c.b16 %v7807, %v7799
    %v7984 = vpack.c.b16 %v7808, %v7800
    %v7985 = vpack.c.b16 %v7809, %v7801
    %v7986 = vpack.c.b16 %v7810, %v7802
    %v7987 = vpack.c.b16 %v7819, %v7811
    %v7988 = vpack.c.b16 %v7820, %v7812
    %v7989 = vpack.c.b16 %v7821, %v7813
    %v7990 = vpack.c.b16 %v7822, %v7814
    %v7991 = vpack.c.b16 %v7823, %v7815
    %v7992 = vpack.c.b16 %v7824, %v7816
    %v7993 = vpack.c.b16 %v7825, %v7817
    %v7994 = vpack.c.b16 %v7826, %v7818
    %v7995 = vpack.c.b16 %v7835, %v7827
    %v7996 = vpack.c.b16 %v7836, %v7828
    %v7997 = vpack.c.b16 %v7837, %v7829
    %v7998 = vpack.c.b16 %v7838, %v7830
    %v7999 = vpack.c.b16 %v7839, %v7831
    %v8000 = vpack.c.b16 %v7840, %v7832
    %v8001 = vpack.c.b16 %v7841, %v7833
    %v8002 = vpack.c.b16 %v7842, %v7834
    %v8003 = vpack.c.b16 %v7851, %v7843
    %v8004 = vpack.c.b16 %v7852, %v7844
    %v8005 = vpack.c.b16 %v7853, %v7845
    %v8006 = vpack.c.b16 %v7854, %v7846
    %v8007 = vpack.c.b16 %v7855, %v7847
    %v8008 = vpack.c.b16 %v7856, %v7848
    %v8009 = vpack.c.b16 %v7857, %v7849
    %v8010 = vpack.c.b16 %v7858, %v7850
    %v8011 = vpack.c.b16 %v7867, %v7859
    %v8012 = vpack.c.b16 %v7868, %v7860
    %v8013 = vpack.c.b16 %v7869, %v7861
    %v8014 = vpack.c.b16 %v7870, %v7862
    %v8015 = vpack.c.b16 %v7871, %v7863
    %v8016 = vpack.c.b16 %v7872, %v7864
    %v8017 = vpack.c.b16 %v7873, %v7865
    %v8018 = vpack.c.b16 %v7874, %v7866
    %v8019 = vpack.c.b16 %v7883, %v7875
    %v8020 = vpack.c.b16 %v7884, %v7876
    %v8021 = vpack.c.b16 %v7885, %v7877
    %v8022 = vpack.c.b16 %v7886, %v7878
    %v8023 = vpack.c.b16 %v7887, %v7879
    %v8024 = vpack.c.b16 %v7888, %v7880
    %v8025 = vpack.c.b16 %v7889, %v7881
    %v8026 = vpack.c.b16 %v7890, %v7882
    %v8027 = vpack.c.b16 %v7899, %v7891
    %v8028 = vpack.c.b16 %v7900, %v7892
    %v8029 = vpack.c.b16 %v7901, %v7893
    %v8030 = vpack.c.b16 %v7902, %v7894
    %v8031 = vpack.c.b16 %v7903, %v7895
    %v8032 = vpack.c.b16 %v7904, %v7896
    %v8033 = vpack.c.b16 %v7905, %v7897
    %v8034 = vpack.c.b16 %v7906, %v7898
    %8163 = vmatpush.bf16.msra.mxu0 %v7963
    %8164 = vmatpush.bf16.msra.mxu0 %v7955
    %8165 = vmatpush.bf16.msra.mxu0 %v7947
    %8166 = vmatpush.bf16.msra.mxu0 %v7939
    %8167 = vmatpush.bf16.msra.mxu0 %v7931
    %8168 = vmatpush.bf16.msra.mxu0 %v7923
    %8169 = vmatpush.bf16.msra.mxu0 %v7915
    %8170 = vmatpush.bf16.msra.mxu0 %v7907
    %8171 = vmatmul.bf16.gmra.mxu0 %v7393
    %v8172 = vpop.f32.mrf.mxu0
    %v8173 = vadd.f32 0.0, %v8172
    %v8174 = vpop.f32.mrf.mxu0
    %8175 = vdwg.mxu0
    %8176 = vmatpush.bf16.msra.mxu0 %v8027
    %8177 = vmatpush.bf16.msra.mxu0 %v8019
    %8178 = vmatpush.bf16.msra.mxu0 %v8011
    %8179 = vmatpush.bf16.msra.mxu0 %v8003
    %8180 = vmatpush.bf16.msra.mxu0 %v7995
    %8181 = vmatpush.bf16.msra.mxu0 %v7987
    %8182 = vmatpush.bf16.msra.mxu0 %v7979
    %8183 = vmatpush.bf16.msra.mxu0 %v7971
    %8184 = vmatmul.bf16.gmra.mxu0 %v7394
    %v8185 = vpop.f32.mrf.mxu0
    %v8186 = vadd.f32 %v8173, %v8185
    %v8187 = vpop.f32.mrf.mxu0
    %8188 = vdwg.mxu0
    %8189 = vmatpush.bf16.msra.mxu0 %v7964
    %8190 = vmatpush.bf16.msra.mxu0 %v7956
    %8191 = vmatpush.bf16.msra.mxu0 %v7948
    %8192 = vmatpush.bf16.msra.mxu0 %v7940
    %8193 = vmatpush.bf16.msra.mxu0 %v7932
    %8194 = vmatpush.bf16.msra.mxu0 %v7924
    %8195 = vmatpush.bf16.msra.mxu0 %v7916
    %8196 = vmatpush.bf16.msra.mxu0 %v7908
    %8197 = vmatmul.bf16.gmra.mxu0 %v7393
    %v8198 = vpop.f32.mrf.mxu0
    %v8199 = vadd.f32 0.0, %v8198
    %v8200 = vpop.f32.mrf.mxu0
    %8201 = vdwg.mxu0
    %8202 = vmatpush.bf16.msra.mxu0 %v8028
    %8203 = vmatpush.bf16.msra.mxu0 %v8020
    %8204 = vmatpush.bf16.msra.mxu0 %v8012
    %8205 = vmatpush.bf16.msra.mxu0 %v8004
    %8206 = vmatpush.bf16.msra.mxu0 %v7996
    %8207 = vmatpush.bf16.msra.mxu0 %v7988
    %8208 = vmatpush.bf16.msra.mxu0 %v7980
    %8209 = vmatpush.bf16.msra.mxu0 %v7972
    %8210 = vmatmul.bf16.gmra.mxu0 %v7394
    %v8211 = vpop.f32.mrf.mxu0
    %v8212 = vadd.f32 %v8199, %v8211
    %v8213 = vpop.f32.mrf.mxu0
    %8214 = vdwg.mxu0
    %8215 = vmatpush.bf16.msra.mxu0 %v7965
    %8216 = vmatpush.bf16.msra.mxu0 %v7957
    %8217 = vmatpush.bf16.msra.mxu0 %v7949
    %8218 = vmatpush.bf16.msra.mxu0 %v7941
    %8219 = vmatpush.bf16.msra.mxu0 %v7933
    %8220 = vmatpush.bf16.msra.mxu0 %v7925
    %8221 = vmatpush.bf16.msra.mxu0 %v7917
    %8222 = vmatpush.bf16.msra.mxu0 %v7909
    %8223 = vmatmul.bf16.gmra.mxu0 %v7393
    %v8224 = vpop.f32.mrf.mxu0
    %v8225 = vadd.f32 0.0, %v8224
    %v8226 = vpop.f32.mrf.mxu0
    %8227 = vdwg.mxu0
    %8228 = vmatpush.bf16.msra.mxu0 %v8029
    %8229 = vmatpush.bf16.msra.mxu0 %v8021
    %8230 = vmatpush.bf16.msra.mxu0 %v8013
    %8231 = vmatpush.bf16.msra.mxu0 %v8005
    %8232 = vmatpush.bf16.msra.mxu0 %v7997
    %8233 = vmatpush.bf16.msra.mxu0 %v7989
    %8234 = vmatpush.bf16.msra.mxu0 %v7981
    %8235 = vmatpush.bf16.msra.mxu0 %v7973
    %8236 = vmatmul.bf16.gmra.mxu0 %v7394
    %v8237 = vpop.f32.mrf.mxu0
    %v8238 = vadd.f32 %v8225, %v8237
    %v8239 = vpop.f32.mrf.mxu0
    %8240 = vdwg.mxu0
    %8241 = vmatpush.bf16.msra.mxu0 %v7966
    %8242 = vmatpush.bf16.msra.mxu0 %v7958
    %8243 = vmatpush.bf16.msra.mxu0 %v7950
    %8244 = vmatpush.bf16.msra.mxu0 %v7942
    %8245 = vmatpush.bf16.msra.mxu0 %v7934
    %8246 = vmatpush.bf16.msra.mxu0 %v7926
    %8247 = vmatpush.bf16.msra.mxu0 %v7918
    %8248 = vmatpush.bf16.msra.mxu0 %v7910
    %8249 = vmatmul.bf16.gmra.mxu0 %v7393
    %v8250 = vpop.f32.mrf.mxu0
    %v8251 = vadd.f32 0.0, %v8250
    %v8252 = vpop.f32.mrf.mxu0
    %8253 = vdwg.mxu0
    %8254 = vmatpush.bf16.msra.mxu0 %v8030
    %8255 = vmatpush.bf16.msra.mxu0 %v8022
    %8256 = vmatpush.bf16.msra.mxu0 %v8014
    %8257 = vmatpush.bf16.msra.mxu0 %v8006
    %8258 = vmatpush.bf16.msra.mxu0 %v7998
    %8259 = vmatpush.bf16.msra.mxu0 %v7990
    %8260 = vmatpush.bf16.msra.mxu0 %v7982
    %8261 = vmatpush.bf16.msra.mxu0 %v7974
    %8262 = vmatmul.bf16.gmra.mxu0 %v7394
    %v8263 = vpop.f32.mrf.mxu0
    %v8264 = vadd.f32 %v8251, %v8263
    %v8265 = vpop.f32.mrf.mxu0
    %8266 = vdwg.mxu0
    %8267 = vmatpush.bf16.msra.mxu0 %v7967
    %8268 = vmatpush.bf16.msra.mxu0 %v7959
    %8269 = vmatpush.bf16.msra.mxu0 %v7951
    %8270 = vmatpush.bf16.msra.mxu0 %v7943
    %8271 = vmatpush.bf16.msra.mxu0 %v7935
    %8272 = vmatpush.bf16.msra.mxu0 %v7927
    %8273 = vmatpush.bf16.msra.mxu0 %v7919
    %8274 = vmatpush.bf16.msra.mxu0 %v7911
    %8275 = vmatmul.bf16.gmra.mxu0 %v7393
    %v8276 = vpop.f32.mrf.mxu0
    %v8277 = vadd.f32 0.0, %v8276
    %v8278 = vpop.f32.mrf.mxu0
    %8279 = vdwg.mxu0
    %8280 = vmatpush.bf16.msra.mxu0 %v8031
    %8281 = vmatpush.bf16.msra.mxu0 %v8023
    %8282 = vmatpush.bf16.msra.mxu0 %v8015
    %8283 = vmatpush.bf16.msra.mxu0 %v8007
    %8284 = vmatpush.bf16.msra.mxu0 %v7999
    %8285 = vmatpush.bf16.msra.mxu0 %v7991
    %8286 = vmatpush.bf16.msra.mxu0 %v7983
    %8287 = vmatpush.bf16.msra.mxu0 %v7975
    %8288 = vmatmul.bf16.gmra.mxu0 %v7394
    %v8289 = vpop.f32.mrf.mxu0
    %v8290 = vadd.f32 %v8277, %v8289
    %v8291 = vpop.f32.mrf.mxu0
    %8292 = vdwg.mxu0
    %8293 = vmatpush.bf16.msra.mxu0 %v7968
    %8294 = vmatpush.bf16.msra.mxu0 %v7960
    %8295 = vmatpush.bf16.msra.mxu0 %v7952
    %8296 = vmatpush.bf16.msra.mxu0 %v7944
    %8297 = vmatpush.bf16.msra.mxu0 %v7936
    %8298 = vmatpush.bf16.msra.mxu0 %v7928
    %8299 = vmatpush.bf16.msra.mxu0 %v7920
    %8300 = vmatpush.bf16.msra.mxu0 %v7912
    %8301 = vmatmul.bf16.gmra.mxu0 %v7393
    %v8302 = vpop.f32.mrf.mxu0
    %v8303 = vadd.f32 0.0, %v8302
    %v8304 = vpop.f32.mrf.mxu0
    %8305 = vdwg.mxu0
    %8306 = vmatpush.bf16.msra.mxu0 %v8032
    %8307 = vmatpush.bf16.msra.mxu0 %v8024
    %8308 = vmatpush.bf16.msra.mxu0 %v8016
    %8309 = vmatpush.bf16.msra.mxu0 %v8008
    %8310 = vmatpush.bf16.msra.mxu0 %v8000
    %8311 = vmatpush.bf16.msra.mxu0 %v7992
    %8312 = vmatpush.bf16.msra.mxu0 %v7984
    %8313 = vmatpush.bf16.msra.mxu0 %v7976
    %8314 = vmatmul.bf16.gmra.mxu0 %v7394
    %v8315 = vpop.f32.mrf.mxu0
    %v8316 = vadd.f32 %v8303, %v8315
    %v8317 = vpop.f32.mrf.mxu0
    %8318 = vdwg.mxu0
    %8319 = vmatpush.bf16.msra.mxu0 %v7969
    %8320 = vmatpush.bf16.msra.mxu0 %v7961
    %8321 = vmatpush.bf16.msra.mxu0 %v7953
    %8322 = vmatpush.bf16.msra.mxu0 %v7945
    %8323 = vmatpush.bf16.msra.mxu0 %v7937
    %8324 = vmatpush.bf16.msra.mxu0 %v7929
    %8325 = vmatpush.bf16.msra.mxu0 %v7921
    %8326 = vmatpush.bf16.msra.mxu0 %v7913
    %8327 = vmatmul.bf16.gmra.mxu0 %v7393
    %v8328 = vpop.f32.mrf.mxu0
    %v8329 = vadd.f32 0.0, %v8328
    %v8330 = vpop.f32.mrf.mxu0
    %8331 = vdwg.mxu0
    %8332 = vmatpush.bf16.msra.mxu0 %v8033
    %8333 = vmatpush.bf16.msra.mxu0 %v8025
    %8334 = vmatpush.bf16.msra.mxu0 %v8017
    %8335 = vmatpush.bf16.msra.mxu0 %v8009
    %8336 = vmatpush.bf16.msra.mxu0 %v8001
    %8337 = vmatpush.bf16.msra.mxu0 %v7993
    %8338 = vmatpush.bf16.msra.mxu0 %v7985
    %8339 = vmatpush.bf16.msra.mxu0 %v7977
    %8340 = vmatmul.bf16.gmra.mxu0 %v7394
    %v8341 = vpop.f32.mrf.mxu0
    %v8342 = vadd.f32 %v8329, %v8341
    %v8343 = vpop.f32.mrf.mxu0
    %8344 = vdwg.mxu0
    %8345 = vmatpush.bf16.msra.mxu0 %v7970
    %8346 = vmatpush.bf16.msra.mxu0 %v7962
    %8347 = vmatpush.bf16.msra.mxu0 %v7954
    %8348 = vmatpush.bf16.msra.mxu0 %v7946
    %8349 = vmatpush.bf16.msra.mxu0 %v7938
    %8350 = vmatpush.bf16.msra.mxu0 %v7930
    %8351 = vmatpush.bf16.msra.mxu0 %v7922
    %8352 = vmatpush.bf16.msra.mxu0 %v7914
    %8353 = vmatmul.bf16.gmra.mxu0 %v7393
    %v8354 = vpop.f32.mrf.mxu0
    %v8355 = vadd.f32 0.0, %v8354
    %v8356 = vpop.f32.mrf.mxu0
    %8357 = vdwg.mxu0
    %8358 = vmatpush.bf16.msra.mxu0 %v8034
    %8359 = vmatpush.bf16.msra.mxu0 %v8026
    %8360 = vmatpush.bf16.msra.mxu0 %v8018
    %8361 = vmatpush.bf16.msra.mxu0 %v8010
    %8362 = vmatpush.bf16.msra.mxu0 %v8002
    %8363 = vmatpush.bf16.msra.mxu0 %v7994
    %8364 = vmatpush.bf16.msra.mxu0 %v7986
    %8365 = vmatpush.bf16.msra.mxu0 %v7978
    %8366 = vmatmul.bf16.gmra.mxu0 %v7394
    %v8367 = vpop.f32.mrf.mxu0
    %v8368 = vadd.f32 %v8355, %v8367
    %v8369 = vpop.f32.mrf.mxu0
    %8370 = vdwg.mxu0
    %v8379 = vrot.slane %v8212, 7
    %v8380 = vrot.slane %v8238, 6
    %v8381 = vrot.slane %v8264, 5
    %v8382 = vrot.slane %v8290, 4
    %v8383 = vrot.slane %v8316, 3
    %v8384 = vrot.slane %v8342, 2
    %v8385 = vrot.slane %v8368, 1
    %v8386 = vsel %vm1043, %v8186, %v8379
    %v8387 = vsel %vm1045, %v8380, %v8381
    %v8388 = vsel %vm1047, %v8386, %v8387
    %v8389 = vsel %vm1049, %v8382, %v8383
    %v8390 = vsel %vm1051, %v8384, %v8385
    %v8391 = vsel %vm1053, %v8389, %v8390
    %v8392 = vsel %vm1055, %v8388, %v8391
    %v8394 = vadd.f32 %v7387, %v8392
    %v8395 = vxor.u32 %v8394, 2147483648
    %v8396 = vmul.f32 %v8395, 1.442695
    %v8397 = vpow.pop %v8396
    %v8398 = vadd.f32 %v8397, 1.0
    %v8399 = vrcp.pop %v8398
    %v8400 = vmul.f32 %v8398, %v8399
    %v8401 = vsub.f32 1.0, %v8400
    %v8402 = vmul.f32 %v8399, %v8401
    %v8403 = vadd.f32 %v8399, %v8402
    %vm8404 = vweird.f32 %v8398
    %vm8405 = vweird.f32 %v8399
    %vm8406 = vmor %vm8404, %vm8405
    %v8407 = vsel %vm8406, %v8399, %v8403
    %v8408 = vand.u32 2147483647, %v8398
    %vm8409 = vcmp.eq.f32.partialorder %v8408, 8.507059e+37
    %v8410 = vand.u32 %v8398, 2147483648
    %v8411 = vor.u32 1.1754944e-38, %v8410
    %v8412 = vsel %vm8409, %v8411, %v8407
    %v8413 = vmul.f32 1.0, %v8412
    %v8415 = vrot.slane %v8394, 6
    %v8417 = vtanh.pop %v8415
    %v8419 = vrot.slane %v8413, 2
    %v8421 = vmul.f32 %v8419, %v7383
    %v8422 = vmul.f32 %v8413, %v8417
    %v8423 = vadd.f32 %v8421, %v8422
    %8424 = vst.msk [vmem:[#allocation3] sm:$0x3] %vm37, %v8423
    %v8425 = vtanh.pop %v8423
    %v8426 = vrot.slane %v8413, 4
    %v8428 = vmul.f32 %v8426, %v8425
    %8429 = vst.msk [vmem:[#allocation2] sm:$0x3] %vm37, %v8428
    %v8430 = vld [vmem:[#allocation2] sm:$0x3]
    %v8431 = vld [vmem:[%s2] sm:$0xff]
    %v8432 = vld [vmem:[%s2 + $0x8] sm:$0xff]
    %v8433 = vld [vmem:[%s2 + $0x10] sm:$0xff]
    %v8434 = vld [vmem:[%s2 + $0x18] sm:$0xff]
    %v8435 = vld [vmem:[%s2 + $0x20] sm:$0xff]
    %v8436 = vld [vmem:[%s2 + $0x28] sm:$0xff]
    %v8437 = vld [vmem:[%s2 + $0x30] sm:$0xff]
    %v8438 = vld [vmem:[%s2 + $0x38] sm:$0xff]
    %v8439 = vld [vmem:[%s2 + $0x40] sm:$0xff]
    %v8440 = vld [vmem:[%s2 + $0x48] sm:$0xff]
    %v8441 = vld [vmem:[%s2 + $0x50] sm:$0xff]
    %v8442 = vld [vmem:[%s2 + $0x58] sm:$0xff]
    %v8443 = vld [vmem:[%s2 + $0x60] sm:$0xff]
    %v8444 = vld [vmem:[%s2 + $0x68] sm:$0xff]
    %v8445 = vld [vmem:[%s2 + $0x70] sm:$0xff]
    %v8446 = vld [vmem:[%s2 + $0x78] sm:$0xff]
    %v8447 = vld [vmem:[%s2 + $0x80] sm:$0xff]
    %v8448 = vld [vmem:[%s2 + $0x88] sm:$0xff]
    %v8449 = vld [vmem:[%s2 + $0x90] sm:$0xff]
    %v8450 = vld [vmem:[%s2 + $0x98] sm:$0xff]
    %v8451 = vld [vmem:[%s2 + $0xa0] sm:$0xff]
    %v8452 = vld [vmem:[%s2 + $0xa8] sm:$0xff]
    %v8453 = vld [vmem:[%s2 + $0xb0] sm:$0xff]
    %v8454 = vld [vmem:[%s2 + $0xb8] sm:$0xff]
    %v8455 = vld [vmem:[%s2 + $0xc0] sm:$0xff]
    %v8456 = vld [vmem:[%s2 + $0xc8] sm:$0xff]
    %v8457 = vld [vmem:[%s2 + $0xd0] sm:$0xff]
    %v8458 = vld [vmem:[%s2 + $0xd8] sm:$0xff]
    %v8459 = vld [vmem:[%s2 + $0xe0] sm:$0xff]
    %v8460 = vld [vmem:[%s2 + $0xe8] sm:$0xff]
    %v8461 = vld [vmem:[%s2 + $0xf0] sm:$0xff]
    %v8462 = vld [vmem:[%s2 + $0xf8] sm:$0xff]
    %v8463 = vld [vmem:[%s3] sm:$0x1]
    %v8465 = vperm.slane %v8430, 0
    %v8466 = vperm.slane %v8430, 1
    %8469 = vmatpush.msra.mxu0 %v8446
    %8470 = vmatpush.msra.mxu0 %v8445
    %8471 = vmatpush.msra.mxu0 %v8444
    %8472 = vmatpush.msra.mxu0 %v8443
    %8473 = vmatpush.msra.mxu0 %v8442
    %8474 = vmatpush.msra.mxu0 %v8441
    %8475 = vmatpush.msra.mxu0 %v8440
    %8476 = vmatpush.msra.mxu0 %v8439
    %8477 = vmatpush.msra.mxu0 %v8438
    %8478 = vmatpush.msra.mxu0 %v8437
    %8479 = vmatpush.msra.mxu0 %v8436
    %8480 = vmatpush.msra.mxu0 %v8435
    %8481 = vmatpush.msra.mxu0 %v8434
    %8482 = vmatpush.msra.mxu0 %v8433
    %8483 = vmatpush.msra.mxu0 %v8432
    %8484 = vmatpush.msra.mxu0 %v8431
    %8485 = vmatmul.f32.gmra.mxu0 %v8465
    %v8486 = vpop.f32.mrf.mxu0
    %v8487 = vadd.f32 %v8463, %v8486
    %8488 = vdwg.mxu0
    %8489 = vmatpush.msra.mxu0 %v8462
    %8490 = vmatpush.msra.mxu0 %v8461
    %8491 = vmatpush.msra.mxu0 %v8460
    %8492 = vmatpush.msra.mxu0 %v8459
    %8493 = vmatpush.msra.mxu0 %v8458
    %8494 = vmatpush.msra.mxu0 %v8457
    %8495 = vmatpush.msra.mxu0 %v8456
    %8496 = vmatpush.msra.mxu0 %v8455
    %8497 = vmatpush.msra.mxu0 %v8454
    %8498 = vmatpush.msra.mxu0 %v8453
    %8499 = vmatpush.msra.mxu0 %v8452
    %8500 = vmatpush.msra.mxu0 %v8451
    %8501 = vmatpush.msra.mxu0 %v8450
    %8502 = vmatpush.msra.mxu0 %v8449
    %8503 = vmatpush.msra.mxu0 %v8448
    %8504 = vmatpush.msra.mxu0 %v8447
    %8505 = vmatmul.f32.gmra.mxu0 %v8466
    %v8506 = vpop.f32.mrf.mxu0
    %v8507 = vadd.f32 %v8487, %v8506
    %8508 = vdwg.mxu0
    %vm8509 = vcmask 516096
    %8510 = vst.msk [vmem:[#allocation7] sm:$0x1] %vm8509, %v8507
    // Predicated region
    $region22: #{tpu_custom_call.1} parent=1 // pred_check
      _
    $region23: #{tpu_custom_call.1} parent=1 // pred_check_branch
      %8512 = sbr.rel (0) target = $region25
    $region24: #{tpu_custom_call.1} parent=1 // pred_region
      %8514 = vsyncadd [#allocation6], 0
      %s8516 = sshll.u32 [#allocation7], 4
      %s8517 = int_to_ptr.vmem [resolvable:$true] %s8516
      %s8518 = sshll.u32 %s4, 4
      %s8519 = int_to_ptr.hbm [resolvable:$true] %s8518
      %8521 = dma.vmem_to_hbm [thread:$0]  %s8517, 16, %s8519, [#allocation6]
    $region25: #{tpu_custom_call.1} parent=1 // pred_fallthru
      _
    // Predicated region
    $region26: #{tpu_custom_call.1} parent=1 // pred_check
      _
    $region27: #{tpu_custom_call.1} parent=1 // pred_check_branch
      %8523 = sbr.rel (0) target = $region29
    $region28: #{tpu_custom_call.1} parent=1 // pred_region
      %8525 = dma.done [#allocation6], 16
    $region29: #{tpu_custom_call.1} parent=1 // pred_fallthru
      _
    %8526 = vsyncpa [#allocation5], 1
    %8527 = vsyncpa [#allocation6], 1

</llo_original>
